<compile_context>
chip_gen: v7x
topology: tpu7x:2x2x1
jax: 0.10.0
libtpu: 0.0.40
codegen_flags: <defaults>
</compile_context>

<pallas_src>
import math
import jax
import jax.numpy as jnp
from jax import lax
from jax.experimental import pallas as pl
from jax.experimental.pallas import tpu as pltpu


def _vmem_limit_bytes():
    # Generation-aware VMEM budget: ~75% of physical capacity, clamped.
    try:
        cap = int(pltpu.get_tpu_info().vmem_capacity_bytes)
    except Exception:
        cap = 128 * 1024 * 1024
    return min((cap * 3) // 4, 100 * 1024 * 1024)


_VMEM_LIMIT = _vmem_limit_bytes()

_SCAN_CHUNK = 8      # token rows per WKV-scan step (f32 sublane height)
_FFN_H_TILE = 512    # hidden-dim tile for the channel-mix FFN


# ----------------------------------------------------------------------------
# In-kernel helpers
# ----------------------------------------------------------------------------

def _layernorm(x, g, b):
    mu = jnp.mean(x, axis=-1, keepdims=True)
    xc = x - mu
    var = jnp.mean(xc * xc, axis=-1, keepdims=True)
    return xc * lax.rsqrt(var + 1e-5) * g + b


def _token_shift(xs, T, C, sp, gch):
    # TODO(synk): `bi_T_token_shift` is loaded via eval() in the reference and its source
    # is not provided; implemented as a bidirectional 1-D token shift: channels
    # [0, 2*gamma*C) take the forward-shifted rows, [2*gamma*C, 4*gamma*C) the
    # backward-shifted rows, remainder untouched (zeros at the shifted-in edges).
    row = lax.broadcasted_iota(jnp.int32, (T, C), 0)
    col = lax.broadcasted_iota(jnp.int32, (T, C), 1)
    fwd = pltpu.roll(xs, shift=sp, axis=0)          # row t <- xs[t - sp] (wrapped)
    bwd = pltpu.roll(xs, shift=T - sp, axis=0)      # row t <- xs[t + sp] (wrapped)
    fwd = jnp.where(row >= sp, fwd, 0.0)            # zero the sp wrapped rows at the top
    bwd = jnp.where(row < T - sp, bwd, 0.0)         # zero the sp wrapped rows at the bottom
    return jnp.where(col < 2 * gch, fwd, jnp.where(col < 4 * gch, bwd, xs))


# ----------------------------------------------------------------------------
# Pallas kernels
# ----------------------------------------------------------------------------

def _make_spatial_kernel(T, C, sp, gch, apply_ln0):
    CH = _SCAN_CHUNK
    n_chunks = T // CH

    def kernel(x_ref, aux_ref, wk_ref, wv_ref, wr_ref, wo_ref, o_ref,
               k_scr, v_scr, m_scr, num_scr, den_scr):
        x = x_ref[0].astype(jnp.float32)                    # (T, C)
        aux = aux_ref[...]                                  # (16, C) f32
        if apply_ln0:                                       # fused ln0 (layer 0 only)
            x = _layernorm(x, aux[7:8], aux[8:9])
        ln1_g, ln1_b = aux[0:1], aux[1:2]
        mix_k, mix_v, mix_r = aux[2:3], aux[3:4], aux[4:5]
        w, u = aux[5:6], aux[6:7]                           # spatial_decay/T, spatial_first/T

        # Fused LayerNorm(ln1) + bidirectional token shift + learned channel mixing.
        xs = _layernorm(x, ln1_g, ln1_b)
        xx = _token_shift(xs, T, C, sp, gch)
        xk = (xs * mix_k + xx * (1.0 - mix_k)).astype(jnp.bfloat16)
        xv = (xs * mix_v + xx * (1.0 - mix_v)).astype(jnp.bfloat16)
        xr = (xs * mix_r + xx * (1.0 - mix_r)).astype(jnp.bfloat16)

        # k/v projections on the bf16 MXU path; the scan math below stays f32.
        k_scr[...] = jnp.dot(xk, wk_ref[...], preferred_element_type=jnp.float32)
        v_scr[...] = jnp.dot(xv, wv_ref[...], preferred_element_type=jnp.float32)

        # Bidirectional WKV (Vision-RWKV, w/u already divided by T in the wrapper):
        #   y_t = ( sum_{i!=t} e^{-(|t-i|-1) w + k_i} v_i + e^{u + k_t} v_t )
        #       / ( sum_{i!=t} e^{-(|t-i|-1) w + k_i}     + e^{u + k_t}     )
        # computed as a backward streaming log-sum-exp pass (store stabilized
        # backward+self partials per token) followed by a forward pass folding in the
        # forward prefix. State (m, a, b) encodes numerator a*e^m, denominator b*e^m.
        neg_big = jnp.full((1, C), -1e30, jnp.float32)
        zrow = jnp.zeros((1, C), jnp.float32)

        def bwd_chunk(s, carry):
            c = n_chunks - 1 - s
            off = pl.multiple_of(c * CH, CH)
            k_blk = k_scr[pl.ds(off, CH), :]                # aligned full-chunk loads
            v_blk = v_scr[pl.ds(off, CH), :]
            m_c, a_c, b_c = carry                           # state over i > t
            m_rows = [None] * CH
            n_rows = [None] * CH
            d_rows = [None] * CH
            for r in reversed(range(CH)):                   # statically unrolled
                k_t = k_blk[r:r + 1, :]
                v_t = v_blk[r:r + 1, :]
                e_s = u + k_t                               # self term e^{u + k_t}
                m_out = jnp.maximum(m_c, e_s)
                sc_c = jnp.exp(m_c - m_out)
                sc_s = jnp.exp(e_s - m_out)
                n_rows[r] = a_c * sc_c + v_t * sc_s
                d_rows[r] = b_c * sc_c + sc_s
                m_rows[r] = m_out
                # fold token t into the backward state (for use at token t-1)
                m_new = jnp.maximum(m_c - w, k_t)
                sd_c = jnp.exp(m_c - w - m_new)
                sd_t = jnp.exp(k_t - m_new)
                a_c = a_c * sd_c + v_t * sd_t
                b_c = b_c * sd_c + sd_t
                m_c = m_new
            m_scr[pl.ds(off, CH), :] = jnp.concatenate(m_rows, axis=0)
            num_scr[pl.ds(off, CH), :] = jnp.concatenate(n_rows, axis=0)
            den_scr[pl.ds(off, CH), :] = jnp.concatenate(d_rows, axis=0)
            return m_c, a_c, b_c

        lax.fori_loop(0, n_chunks, bwd_chunk, (neg_big, zrow, zrow))

        def fwd_chunk(c, carry):
            off = pl.multiple_of(c * CH, CH)
            k_blk = k_scr[pl.ds(off, CH), :]
            v_blk = v_scr[pl.ds(off, CH), :]
            m_blk = m_scr[pl.ds(off, CH), :]
            n_blk = num_scr[pl.ds(off, CH), :]
            d_blk = den_scr[pl.ds(off, CH), :]
            m_c, a_c, b_c = carry                           # state over i < t
            n_rows = [None] * CH
            d_rows = [None] * CH
            for r in range(CH):                             # statically unrolled
                k_t = k_blk[r:r + 1, :]
                v_t = v_blk[r:r + 1, :]
                m_s = m_blk[r:r + 1, :]
                n_s = n_blk[r:r + 1, :]
                d_s = d_blk[r:r + 1, :]
                m_out = jnp.maximum(m_c, m_s)
                sc_c = jnp.exp(m_c - m_out)
                sc_s = jnp.exp(m_s - m_out)
                n_rows[r] = a_c * sc_c + n_s * sc_s
                d_rows[r] = b_c * sc_c + d_s * sc_s
                # fold token t into the forward state (for use at token t+1)
                m_new = jnp.maximum(m_c - w, k_t)
                sd_c = jnp.exp(m_c - w - m_new)
                sd_t = jnp.exp(k_t - m_new)
                a_c = a_c * sd_c + v_t * sd_t
                b_c = b_c * sd_c + sd_t
                m_c = m_new
            num_scr[pl.ds(off, CH), :] = jnp.concatenate(n_rows, axis=0)
            den_scr[pl.ds(off, CH), :] = jnp.concatenate(d_rows, axis=0)
            return m_c, a_c, b_c

        lax.fori_loop(0, n_chunks, fwd_chunk, (neg_big, zrow, zrow))

        # den > 0 by construction; exact divide for parity with the CUDA reference.
        y = num_scr[...] / den_scr[...]

        # receptance gate computed after the scan (smaller live set across it).
        r = jnp.dot(xr, wr_ref[...], preferred_element_type=jnp.float32)
        rwkv = (jax.nn.sigmoid(r) * y).astype(jnp.bfloat16)
        att = jnp.dot(rwkv, wo_ref[...], preferred_element_type=jnp.float32)
        o_ref[...] = (x + att)[None].astype(o_ref.dtype)    # fused residual add

    return kernel


def _make_channel_kernel(T, C, H, sp, gch, apply_ln_out):
    if H <= _FFN_H_TILE or H % _FFN_H_TILE != 0:
        h_tile = H
    else:
        h_tile = _FFN_H_TILE
    n_h = H // h_tile

    def kernel(x_ref, aux_ref, wkey_ref, wval_ref, wrec_ref, o_ref):
        x = x_ref[0].astype(jnp.float32)                    # (T, C)
        aux = aux_ref[...]                                  # (8, C) f32
        ln2_g, ln2_b, mix_k, mix_r = aux[0:1], aux[1:2], aux[2:3], aux[3:4]

        xs = _layernorm(x, ln2_g, ln2_b)
        xx = _token_shift(xs, T, C, sp, gch)
        xk = (xs * mix_k + xx * (1.0 - mix_k)).astype(jnp.bfloat16)
        xr = (xs * mix_r + xx * (1.0 - mix_r)).astype(jnp.bfloat16)

        # FFN with the hidden dim tiled: never materializes the full (T, 4C) f32 block.
        kv = jnp.zeros((T, C), jnp.float32)
        for hi in range(n_h):
            wk_t = wkey_ref[:, hi * h_tile:(hi + 1) * h_tile]          # (C, h_tile) bf16
            wv_t = wval_ref[hi * h_tile:(hi + 1) * h_tile, :]          # (h_tile, C) bf16
            h = jnp.dot(xk, wk_t, preferred_element_type=jnp.float32)  # (T, h_tile) f32
            h = jnp.square(jnp.maximum(h, 0.0)).astype(jnp.bfloat16)
            kv = kv + jnp.dot(h, wv_t, preferred_element_type=jnp.float32)

        r = jax.nn.sigmoid(jnp.dot(xr, wrec_ref[...], preferred_element_type=jnp.float32))
        out = x + r * kv                                    # fused residual add
        if apply_ln_out:                                    # fused final ln_out (last layer)
            out = _layernorm(out, aux[4:5], aux[5:6])
        o_ref[...] = out[None].astype(o_ref.dtype)

    return kernel


# ----------------------------------------------------------------------------
# Pallas wrappers
# ----------------------------------------------------------------------------

def spatial_mix_block(blk, x, channel_gamma, shift_pixel, apply_ln0):
    B, T, C = x.shape
    gch = int(C * channel_gamma)
    assert T % _SCAN_CHUNK == 0, "T must be a multiple of the WKV scan chunk (8)"
    assert 1 <= shift_pixel < T

    zc = jnp.zeros((C,), jnp.float32)
    rows = [
        blk["ln1_g"], blk["ln1_b"],
        blk["att_mix_k"].reshape(C), blk["att_mix_v"].reshape(C),
        blk["att_mix_r"].reshape(C),
        blk["spatial_decay"] / T, blk["spatial_first"] / T,
        blk["ln0_g"] if apply_ln0 else zc,
        blk["ln0_b"] if apply_ln0 else zc,
    ]
    rows += [zc] * (16 - len(rows))
    aux = jnp.stack(rows, axis=0).astype(jnp.float32)                 # (16, C)

    wk = blk["att_wk"].astype(jnp.bfloat16)
    wv = blk["att_wv"].astype(jnp.bfloat16)
    wr = blk["att_wr"].astype(jnp.bfloat16)
    wo = blk["att_wo"].astype(jnp.bfloat16)

    kernel = _make_spatial_kernel(T, C, shift_pixel, gch, apply_ln0)
    return pl.pallas_call(
        kernel,
        out_shape=jax.ShapeDtypeStruct((B, T, C), x.dtype),
        grid=(B,),
        in_specs=[pl.BlockSpec((1, T, C), lambda b: (b, 0, 0)),
                  pl.BlockSpec((16, C), lambda b: (0, 0)),
                  pl.BlockSpec((C, C), lambda b: (0, 0)),
                  pl.BlockSpec((C, C), lambda b: (0, 0)),
                  pl.BlockSpec((C, C), lambda b: (0, 0)),
                  pl.BlockSpec((C, C), lambda b: (0, 0))],
        out_specs=pl.BlockSpec((1, T, C), lambda b: (b, 0, 0)),
        scratch_shapes=[pltpu.VMEM((T, C), jnp.float32) for _ in range(5)],
        compiler_params=pltpu.CompilerParams(
            dimension_semantics=("parallel",),
            vmem_limit_bytes=_VMEM_LIMIT),
    )(x, aux, wk, wv, wr, wo)


def channel_mix_block(blk, x, channel_gamma, shift_pixel, ln_out=None):
    B, T, C = x.shape
    H = blk["ffn_wkey"].shape[1]
    gch = int(C * channel_gamma)
    assert 1 <= shift_pixel < T
    apply_ln_out = ln_out is not None

    zc = jnp.zeros((C,), jnp.float32)
    lnog, lnob = ln_out if apply_ln_out else (zc, zc)
    rows = [blk["ln2_g"], blk["ln2_b"],
            blk["ffn_mix_k"].reshape(C), blk["ffn_mix_r"].reshape(C),
            lnog, lnob, zc, zc]
    aux = jnp.stack(rows, axis=0).astype(jnp.float32)                 # (8, C)

    wkey = blk["ffn_wkey"].astype(jnp.bfloat16)
    wval = blk["ffn_wval"].astype(jnp.bfloat16)
    wrec = blk["ffn_wrec"].astype(jnp.bfloat16)

    kernel = _make_channel_kernel(T, C, H, shift_pixel, gch, apply_ln_out)
    return pl.pallas_call(
        kernel,
        out_shape=jax.ShapeDtypeStruct((B, T, C), x.dtype),
        grid=(B,),
        in_specs=[pl.BlockSpec((1, T, C), lambda b: (b, 0, 0)),
                  pl.BlockSpec((8, C), lambda b: (0, 0)),
                  pl.BlockSpec((C, H), lambda b: (0, 0)),
                  pl.BlockSpec((H, C), lambda b: (0, 0)),
                  pl.BlockSpec((C, C), lambda b: (0, 0))],
        out_specs=pl.BlockSpec((1, T, C), lambda b: (b, 0, 0)),
        compiler_params=pltpu.CompilerParams(
            dimension_semantics=("parallel",),
            vmem_limit_bytes=_VMEM_LIMIT),
    )(x, aux, wkey, wval, wrec)


# ----------------------------------------------------------------------------
# Forward pass: per layer, fused spatial-mix block then fused channel-mix block.
# ln0 is fused into layer 0's spatial block, ln_out into the last channel block.
# ----------------------------------------------------------------------------

def rwkv_forward(params, x, patch_resolution, channel_gamma=0.25, shift_pixel=1):
    n_layer = len(params["blocks"])
    for layer_id, blk in enumerate(params["blocks"]):
        x = spatial_mix_block(blk, x, channel_gamma, shift_pixel,
                              apply_ln0=(layer_id == 0))               # x + att(ln1(x))
        last = layer_id == n_layer - 1
        x = channel_mix_block(
            blk, x, channel_gamma, shift_pixel,
            ln_out=(params["ln_out_g"], params["ln_out_b"]) if last else None)  # x + ffn(ln2(x))
    return x


# ----------------------------------------------------------------------------
# Deterministic parameter initialization (mirrors the PyTorch 'fancy' init)
# ----------------------------------------------------------------------------

def init_params(key, n_embd, n_layer, hidden_rate=4):
    C = n_embd
    Hsz = hidden_rate * C
    blocks = []
    for layer_id in range(n_layer):
        key, *sub = jax.random.split(key, 8)
        r0 = layer_id / max(n_layer - 1, 1)
        r1 = 1.0 - layer_id / n_layer
        h_idx = jnp.arange(C, dtype=jnp.float32)

        decay_speed = -5.0 + 8.0 * (h_idx / (C - 1)) ** (0.7 + 1.3 * r0)
        zigzag = (((jnp.arange(C) + 1) % 3) - 1).astype(jnp.float32) * 0.5
        spatial_first = jnp.ones((C,), jnp.float32) * math.log(0.3) + zigzag

        xlin = h_idx / C
        att_mix_k = (xlin ** r1).reshape(1, 1, C)
        att_mix_v = (xlin ** r1 + 0.3 * r0).reshape(1, 1, C)
        att_mix_r = (xlin ** (0.5 * r1)).reshape(1, 1, C)
        ffn_mix_k = (xlin ** r1).reshape(1, 1, C)
        ffn_mix_r = (xlin ** r1).reshape(1, 1, C)

        def lin(k_, din, dout):
            # nn.Linear weight is (dout, din); store transposed (din, dout) for x @ W
            return (jax.random.normal(k_, (dout, din), jnp.float32) * 0.02).T

        blocks.append(dict(
            ln0_g=jnp.ones((C,), jnp.float32), ln0_b=jnp.zeros((C,), jnp.float32),
            ln1_g=jnp.ones((C,), jnp.float32), ln1_b=jnp.zeros((C,), jnp.float32),
            ln2_g=jnp.ones((C,), jnp.float32), ln2_b=jnp.zeros((C,), jnp.float32),
            spatial_decay=decay_speed, spatial_first=spatial_first,
            att_mix_k=att_mix_k, att_mix_v=att_mix_v, att_mix_r=att_mix_r,
            att_wk=lin(sub[0], C, C), att_wv=lin(sub[1], C, C),
            att_wr=lin(sub[2], C, C), att_wo=lin(sub[3], C, C),
            ffn_mix_k=ffn_mix_k, ffn_mix_r=ffn_mix_r,
            ffn_wkey=lin(sub[4], C, Hsz), ffn_wval=lin(sub[5], Hsz, C),
            ffn_wrec=lin(sub[6], C, C),
        ))
    return dict(blocks=blocks,
                ln_out_g=jnp.ones((n_embd,), jnp.float32),
                ln_out_b=jnp.zeros((n_embd,), jnp.float32))


# ----------------------------------------------------------------------------
# Main
# ----------------------------------------------------------------------------

if __name__ == "__main__":
    n_embd, n_layer = 32, 2
    B, Hp, Wp = 2, 8, 8
    T = Hp * Wp

    key = jax.random.PRNGKey(0)
    key, pkey, xkey = jax.random.split(key, 3)
    params = init_params(pkey, n_embd, n_layer)
    x = jax.random.normal(xkey, (B, T, n_embd), jnp.float32)

    fwd = jax.jit(lambda p, xx: rwkv_forward(p, xx, (Hp, Wp)))
    y = jax.block_until_ready(fwd(params, x))

    assert y.shape == (B, T, n_embd)
    assert bool(jnp.all(jnp.isfinite(y)))
    print("KERNEL_OK")
</pallas_src>

<mosaic_0001>
module attributes {stable_mosaic.version = 11 : i64} {
  func.func @kernel(%arg0: i32, %arg1: memref<1x64x32xf32, #tpu.memory_space<vmem>>, %arg2: memref<16x32xf32, #tpu.memory_space<vmem>>, %arg3: memref<32x32xbf16, #tpu.memory_space<vmem>>, %arg4: memref<32x32xbf16, #tpu.memory_space<vmem>>, %arg5: memref<32x32xbf16, #tpu.memory_space<vmem>>, %arg6: memref<32x32xbf16, #tpu.memory_space<vmem>>, %arg7: memref<1x64x32xf32, #tpu.memory_space<vmem>>, %arg8: memref<64x32xf32, #tpu.memory_space<vmem>>, %arg9: memref<64x32xf32, #tpu.memory_space<vmem>>, %arg10: memref<64x32xf32, #tpu.memory_space<vmem>>, %arg11: memref<64x32xf32, #tpu.memory_space<vmem>>, %arg12: memref<64x32xf32, #tpu.memory_space<vmem>>) attributes {dimension_semantics = [#tpu.dimension_semantics<parallel>], iteration_bounds = array<i64: 2>, scalar_prefetch = 0 : i64, scratch_operands = 5 : i64, tpu.core_type = #tpu.core_type<tc>, window_params = [{transform_indices = @transform_0, window_bounds = array<i64: 1, 64, 32>}, {pipeline_mode = #tpu.pipeline_mode<synchronous>, transform_indices = @transform_1, window_bounds = array<i64: 16, 32>}, {pipeline_mode = #tpu.pipeline_mode<synchronous>, transform_indices = @transform_2, window_bounds = array<i64: 32, 32>}, {pipeline_mode = #tpu.pipeline_mode<synchronous>, transform_indices = @transform_3, window_bounds = array<i64: 32, 32>}, {pipeline_mode = #tpu.pipeline_mode<synchronous>, transform_indices = @transform_4, window_bounds = array<i64: 32, 32>}, {pipeline_mode = #tpu.pipeline_mode<synchronous>, transform_indices = @transform_5, window_bounds = array<i64: 32, 32>}, {transform_indices = @transform_6, window_bounds = array<i64: 1, 64, 32>}]} {
    %c0 = arith.constant 0 : index
    %c0_0 = arith.constant 0 : index
    %c0_1 = arith.constant 0 : index
    %0 = vector.load %arg1[%c0, %c0_0, %c0_1] : memref<1x64x32xf32, #tpu.memory_space<vmem>>, vector<1x64x32xf32>
    %1 = vector.shape_cast %0 : vector<1x64x32xf32> to vector<64x32xf32>
    %c0_2 = arith.constant 0 : index
    %c0_3 = arith.constant 0 : index
    %2 = vector.load %arg2[%c0_2, %c0_3] : memref<16x32xf32, #tpu.memory_space<vmem>>, vector<16x32xf32>
    %3 = vector.extract_strided_slice %2 {offsets = [7, 0], sizes = [1, 32], strides = [1, 1]} : vector<16x32xf32> to vector<1x32xf32>
    %4 = vector.extract_strided_slice %2 {offsets = [8, 0], sizes = [1, 32], strides = [1, 1]} : vector<16x32xf32> to vector<1x32xf32>
    %cst = arith.constant dense<0.000000e+00> : vector<64xf32>
    %5 = vector.multi_reduction <add>, %1, %cst [1] : vector<64x32xf32> to vector<64xf32>
    %6 = vector.shape_cast %5 : vector<64xf32> to vector<64x1xf32>
    %cst_4 = arith.constant 3.200000e+01 : f32
    %7 = vector.broadcast %cst_4 : f32 to vector<64x1xf32>
    %8 = arith.divf %6, %7 : vector<64x1xf32>
    %9 = vector.broadcast %8 : vector<64x1xf32> to vector<64x32xf32>
    %10 = arith.subf %1, %9 : vector<64x32xf32>
    %11 = arith.mulf %10, %10 : vector<64x32xf32>
    %cst_5 = arith.constant dense<0.000000e+00> : vector<64xf32>
    %12 = vector.multi_reduction <add>, %11, %cst_5 [1] : vector<64x32xf32> to vector<64xf32>
    %13 = vector.shape_cast %12 : vector<64xf32> to vector<64x1xf32>
    %cst_6 = arith.constant 3.200000e+01 : f32
    %14 = vector.broadcast %cst_6 : f32 to vector<64x1xf32>
    %15 = arith.divf %13, %14 : vector<64x1xf32>
    %cst_7 = arith.constant 9.99999974E-6 : f32
    %16 = vector.broadcast %cst_7 : f32 to vector<64x1xf32>
    %17 = arith.addf %15, %16 : vector<64x1xf32>
    %18 = math.rsqrt %17 : vector<64x1xf32>
    %19 = vector.broadcast %18 : vector<64x1xf32> to vector<64x32xf32>
    %20 = arith.mulf %10, %19 : vector<64x32xf32>
    %21 = vector.broadcast %3 : vector<1x32xf32> to vector<64x32xf32>
    %22 = arith.mulf %20, %21 : vector<64x32xf32>
    %23 = vector.broadcast %4 : vector<1x32xf32> to vector<64x32xf32>
    %24 = arith.addf %22, %23 : vector<64x32xf32>
    %25 = vector.extract_strided_slice %2 {offsets = [0, 0], sizes = [1, 32], strides = [1, 1]} : vector<16x32xf32> to vector<1x32xf32>
    %26 = vector.extract_strided_slice %2 {offsets = [1, 0], sizes = [1, 32], strides = [1, 1]} : vector<16x32xf32> to vector<1x32xf32>
    %27 = vector.extract_strided_slice %2 {offsets = [2, 0], sizes = [1, 32], strides = [1, 1]} : vector<16x32xf32> to vector<1x32xf32>
    %28 = vector.extract_strided_slice %2 {offsets = [3, 0], sizes = [1, 32], strides = [1, 1]} : vector<16x32xf32> to vector<1x32xf32>
    %29 = vector.extract_strided_slice %2 {offsets = [4, 0], sizes = [1, 32], strides = [1, 1]} : vector<16x32xf32> to vector<1x32xf32>
    %30 = vector.extract_strided_slice %2 {offsets = [5, 0], sizes = [1, 32], strides = [1, 1]} : vector<16x32xf32> to vector<1x32xf32>
    %31 = vector.extract_strided_slice %2 {offsets = [6, 0], sizes = [1, 32], strides = [1, 1]} : vector<16x32xf32> to vector<1x32xf32>
    %cst_8 = arith.constant dense<0.000000e+00> : vector<64xf32>
    %32 = vector.multi_reduction <add>, %24, %cst_8 [1] : vector<64x32xf32> to vector<64xf32>
    %33 = vector.shape_cast %32 : vector<64xf32> to vector<64x1xf32>
    %cst_9 = arith.constant 3.200000e+01 : f32
    %34 = vector.broadcast %cst_9 : f32 to vector<64x1xf32>
    %35 = arith.divf %33, %34 : vector<64x1xf32>
    %36 = vector.broadcast %35 : vector<64x1xf32> to vector<64x32xf32>
    %37 = arith.subf %24, %36 : vector<64x32xf32>
    %38 = arith.mulf %37, %37 : vector<64x32xf32>
    %cst_10 = arith.constant dense<0.000000e+00> : vector<64xf32>
    %39 = vector.multi_reduction <add>, %38, %cst_10 [1] : vector<64x32xf32> to vector<64xf32>
    %40 = vector.shape_cast %39 : vector<64xf32> to vector<64x1xf32>
    %cst_11 = arith.constant 3.200000e+01 : f32
    %41 = vector.broadcast %cst_11 : f32 to vector<64x1xf32>
    %42 = arith.divf %40, %41 : vector<64x1xf32>
    %cst_12 = arith.constant 9.99999974E-6 : f32
    %43 = vector.broadcast %cst_12 : f32 to vector<64x1xf32>
    %44 = arith.addf %42, %43 : vector<64x1xf32>
    %45 = math.rsqrt %44 : vector<64x1xf32>
    %46 = vector.broadcast %45 : vector<64x1xf32> to vector<64x32xf32>
    %47 = arith.mulf %37, %46 : vector<64x32xf32>
    %48 = vector.broadcast %25 : vector<1x32xf32> to vector<64x32xf32>
    %49 = arith.mulf %47, %48 : vector<64x32xf32>
    %50 = vector.broadcast %26 : vector<1x32xf32> to vector<64x32xf32>
    %51 = arith.addf %49, %50 : vector<64x32xf32>
    %52 = tpu.iota {dimensions = array<i32: 0>} : vector<64x32xi32>
    %53 = tpu.iota {dimensions = array<i32: 1>} : vector<64x32xi32>
    %c1_i32 = arith.constant 1 : i32
    %54 = tpu.dynamic_rotate %51 by %c1_i32 dim 0 : vector<64x32xf32>, i32 -> vector<64x32xf32>
    %c63_i32 = arith.constant 63 : i32
    %55 = tpu.dynamic_rotate %51 by %c63_i32 dim 0 : vector<64x32xf32>, i32 -> vector<64x32xf32>
    %c1_i32_13 = arith.constant 1 : i32
    %56 = vector.broadcast %c1_i32_13 : i32 to vector<64x32xi32>
    %57 = arith.cmpi sge, %52, %56 : vector<64x32xi32>
    %cst_14 = arith.constant 0.000000e+00 : f32
    %58 = vector.broadcast %cst_14 : f32 to vector<64x32xf32>
    %59 = arith.select %57, %54, %58 : vector<64x32xi1>, vector<64x32xf32>
    %c63_i32_15 = arith.constant 63 : i32
    %60 = vector.broadcast %c63_i32_15 : i32 to vector<64x32xi32>
    %61 = arith.cmpi slt, %52, %60 : vector<64x32xi32>
    %cst_16 = arith.constant 0.000000e+00 : f32
    %62 = vector.broadcast %cst_16 : f32 to vector<64x32xf32>
    %63 = arith.select %61, %55, %62 : vector<64x32xi1>, vector<64x32xf32>
    %c16_i32 = arith.constant 16 : i32
    %64 = vector.broadcast %c16_i32 : i32 to vector<64x32xi32>
    %65 = arith.cmpi slt, %53, %64 : vector<64x32xi32>
    %c32_i32 = arith.constant 32 : i32
    %66 = vector.broadcast %c32_i32 : i32 to vector<64x32xi32>
    %67 = arith.cmpi slt, %53, %66 : vector<64x32xi32>
    %68 = arith.select %67, %63, %51 : vector<64x32xi1>, vector<64x32xf32>
    %69 = arith.select %65, %59, %68 : vector<64x32xi1>, vector<64x32xf32>
    %70 = vector.broadcast %27 : vector<1x32xf32> to vector<64x32xf32>
    %71 = arith.mulf %51, %70 : vector<64x32xf32>
    %cst_17 = arith.constant 1.000000e+00 : f32
    %72 = vector.broadcast %cst_17 : f32 to vector<1x32xf32>
    %73 = arith.subf %72, %27 : vector<1x32xf32>
    %74 = vector.broadcast %73 : vector<1x32xf32> to vector<64x32xf32>
    %75 = arith.mulf %69, %74 : vector<64x32xf32>
    %76 = arith.addf %71, %75 : vector<64x32xf32>
    %77 = arith.truncf %76 : vector<64x32xf32> to vector<64x32xbf16>
    %78 = vector.broadcast %28 : vector<1x32xf32> to vector<64x32xf32>
    %79 = arith.mulf %51, %78 : vector<64x32xf32>
    %cst_18 = arith.constant 1.000000e+00 : f32
    %80 = vector.broadcast %cst_18 : f32 to vector<1x32xf32>
    %81 = arith.subf %80, %28 : vector<1x32xf32>
    %82 = vector.broadcast %81 : vector<1x32xf32> to vector<64x32xf32>
    %83 = arith.mulf %69, %82 : vector<64x32xf32>
    %84 = arith.addf %79, %83 : vector<64x32xf32>
    %85 = arith.truncf %84 : vector<64x32xf32> to vector<64x32xbf16>
    %86 = vector.broadcast %29 : vector<1x32xf32> to vector<64x32xf32>
    %87 = arith.mulf %51, %86 : vector<64x32xf32>
    %cst_19 = arith.constant 1.000000e+00 : f32
    %88 = vector.broadcast %cst_19 : f32 to vector<1x32xf32>
    %89 = arith.subf %88, %29 : vector<1x32xf32>
    %90 = vector.broadcast %89 : vector<1x32xf32> to vector<64x32xf32>
    %91 = arith.mulf %69, %90 : vector<64x32xf32>
    %92 = arith.addf %87, %91 : vector<64x32xf32>
    %93 = arith.truncf %92 : vector<64x32xf32> to vector<64x32xbf16>
    %c0_20 = arith.constant 0 : index
    %c0_21 = arith.constant 0 : index
    %94 = vector.load %arg3[%c0_20, %c0_21] : memref<32x32xbf16, #tpu.memory_space<vmem>>, vector<32x32xbf16>
    %cst_22 = arith.constant dense<0.000000e+00> : vector<64x32xf32>
    %95 = tpu.matmul %77, %94, %cst_22 {dimension_numbers = #tpu.dot_dimension_numbers<[1], [0], [0], [1], [0, 0, 1, 1], [], []>} : vector<64x32xbf16>, vector<32x32xbf16>, vector<64x32xf32> -> vector<64x32xf32>
    %c0_23 = arith.constant 0 : index
    %c0_24 = arith.constant 0 : index
    %96 = vector.load %arg8[%c0_23, %c0_24] : memref<64x32xf32, #tpu.memory_space<vmem>>, vector<64x32xf32>
    tpu.vector_store %arg8[%c0_23, %c0_24], %95 {strides = array<i32>} : memref<64x32xf32, #tpu.memory_space<vmem>>, vector<64x32xf32>,
    %c0_25 = arith.constant 0 : index
    %c0_26 = arith.constant 0 : index
    %97 = vector.load %arg4[%c0_25, %c0_26] : memref<32x32xbf16, #tpu.memory_space<vmem>>, vector<32x32xbf16>
    %cst_27 = arith.constant dense<0.000000e+00> : vector<64x32xf32>
    %98 = tpu.matmul %85, %97, %cst_27 {dimension_numbers = #tpu.dot_dimension_numbers<[1], [0], [0], [1], [0, 0, 1, 1], [], []>} : vector<64x32xbf16>, vector<32x32xbf16>, vector<64x32xf32> -> vector<64x32xf32>
    %c0_28 = arith.constant 0 : index
    %c0_29 = arith.constant 0 : index
    %99 = vector.load %arg9[%c0_28, %c0_29] : memref<64x32xf32, #tpu.memory_space<vmem>>, vector<64x32xf32>
    tpu.vector_store %arg9[%c0_28, %c0_29], %98 {strides = array<i32>} : memref<64x32xf32, #tpu.memory_space<vmem>>, vector<64x32xf32>,
    %cst_30 = arith.constant -1.000000e+30 : f32
    %100 = vector.broadcast %cst_30 : f32 to vector<1x32xf32>
    %cst_31 = arith.constant 0.000000e+00 : f32
    %101 = vector.broadcast %cst_31 : f32 to vector<1x32xf32>
    %c0_i32 = arith.constant 0 : i32
    %c8_i32 = arith.constant 8 : i32
    %102 = arith.addi %c0_i32, %c8_i32 : i32
    %c1_i32_32 = arith.constant 1 : i32
    %103:3 = scf.for %arg13 = %c0_i32 to %102 step %c1_i32_32 iter_args(%arg14 = %100, %arg15 = %101, %arg16 = %101) -> (vector<1x32xf32>, vector<1x32xf32>, vector<1x32xf32>)  : i32 {
      %c7_i32 = arith.constant 7 : i32
      %123 = arith.subi %c7_i32, %arg13 : i32
      %c8_i32_52 = arith.constant 8 : i32
      %124 = arith.muli %123, %c8_i32_52 : i32
      %125 = tpu.assume_multiple %124, 8 : i32
      %126 = arith.index_cast %125 : i32 to index
      %c0_53 = arith.constant 0 : index
      %127 = vector.load %arg8[%126, %c0_53] : memref<64x32xf32, #tpu.memory_space<vmem>>, vector<8x32xf32>
      %128 = arith.index_cast %125 : i32 to index
      %c0_54 = arith.constant 0 : index
      %129 = vector.load %arg9[%128, %c0_54] : memref<64x32xf32, #tpu.memory_space<vmem>>, vector<8x32xf32>
      %130 = vector.extract_strided_slice %127 {offsets = [7, 0], sizes = [1, 32], strides = [1, 1]} : vector<8x32xf32> to vector<1x32xf32>
      %131 = vector.extract_strided_slice %129 {offsets = [7, 0], sizes = [1, 32], strides = [1, 1]} : vector<8x32xf32> to vector<1x32xf32>
      %132 = arith.addf %31, %130 : vector<1x32xf32>
      %133 = arith.maximumf %arg14, %132 : vector<1x32xf32>
      %134 = arith.subf %arg14, %133 : vector<1x32xf32>
      %135 = math.exp %134 : vector<1x32xf32>
      %136 = arith.subf %132, %133 : vector<1x32xf32>
      %137 = math.exp %136 : vector<1x32xf32>
      %138 = arith.mulf %arg15, %135 : vector<1x32xf32>
      %139 = arith.mulf %131, %137 : vector<1x32xf32>
      %140 = arith.addf %138, %139 : vector<1x32xf32>
      %141 = arith.mulf %arg16, %135 : vector<1x32xf32>
      %142 = arith.addf %141, %137 : vector<1x32xf32>
      %143 = arith.subf %arg14, %30 : vector<1x32xf32>
      %144 = arith.maximumf %143, %130 : vector<1x32xf32>
      %145 = arith.subf %arg14, %30 : vector<1x32xf32>
      %146 = arith.subf %145, %144 : vector<1x32xf32>
      %147 = math.exp %146 : vector<1x32xf32>
      %148 = arith.subf %130, %144 : vector<1x32xf32>
      %149 = math.exp %148 : vector<1x32xf32>
      %150 = arith.mulf %arg15, %147 : vector<1x32xf32>
      %151 = arith.mulf %131, %149 : vector<1x32xf32>
      %152 = arith.addf %150, %151 : vector<1x32xf32>
      %153 = arith.mulf %arg16, %147 : vector<1x32xf32>
      %154 = arith.addf %153, %149 : vector<1x32xf32>
      %155 = vector.extract_strided_slice %127 {offsets = [6, 0], sizes = [1, 32], strides = [1, 1]} : vector<8x32xf32> to vector<1x32xf32>
      %156 = vector.extract_strided_slice %129 {offsets = [6, 0], sizes = [1, 32], strides = [1, 1]} : vector<8x32xf32> to vector<1x32xf32>
      %157 = arith.addf %31, %155 : vector<1x32xf32>
      %158 = arith.maximumf %144, %157 : vector<1x32xf32>
      %159 = arith.subf %144, %158 : vector<1x32xf32>
      %160 = math.exp %159 : vector<1x32xf32>
      %161 = arith.subf %157, %158 : vector<1x32xf32>
      %162 = math.exp %161 : vector<1x32xf32>
      %163 = arith.mulf %152, %160 : vector<1x32xf32>
      %164 = arith.mulf %156, %162 : vector<1x32xf32>
      %165 = arith.addf %163, %164 : vector<1x32xf32>
      %166 = arith.mulf %154, %160 : vector<1x32xf32>
      %167 = arith.addf %166, %162 : vector<1x32xf32>
      %168 = arith.subf %144, %30 : vector<1x32xf32>
      %169 = arith.maximumf %168, %155 : vector<1x32xf32>
      %170 = arith.subf %144, %30 : vector<1x32xf32>
      %171 = arith.subf %170, %169 : vector<1x32xf32>
      %172 = math.exp %171 : vector<1x32xf32>
      %173 = arith.subf %155, %169 : vector<1x32xf32>
      %174 = math.exp %173 : vector<1x32xf32>
      %175 = arith.mulf %152, %172 : vector<1x32xf32>
      %176 = arith.mulf %156, %174 : vector<1x32xf32>
      %177 = arith.addf %175, %176 : vector<1x32xf32>
      %178 = arith.mulf %154, %172 : vector<1x32xf32>
      %179 = arith.addf %178, %174 : vector<1x32xf32>
      %180 = vector.extract_strided_slice %127 {offsets = [5, 0], sizes = [1, 32], strides = [1, 1]} : vector<8x32xf32> to vector<1x32xf32>
      %181 = vector.extract_strided_slice %129 {offsets = [5, 0], sizes = [1, 32], strides = [1, 1]} : vector<8x32xf32> to vector<1x32xf32>
      %182 = arith.addf %31, %180 : vector<1x32xf32>
      %183 = arith.maximumf %169, %182 : vector<1x32xf32>
      %184 = arith.subf %169, %183 : vector<1x32xf32>
      %185 = math.exp %184 : vector<1x32xf32>
      %186 = arith.subf %182, %183 : vector<1x32xf32>
      %187 = math.exp %186 : vector<1x32xf32>
      %188 = arith.mulf %177, %185 : vector<1x32xf32>
      %189 = arith.mulf %181, %187 : vector<1x32xf32>
      %190 = arith.addf %188, %189 : vector<1x32xf32>
      %191 = arith.mulf %179, %185 : vector<1x32xf32>
      %192 = arith.addf %191, %187 : vector<1x32xf32>
      %193 = arith.subf %169, %30 : vector<1x32xf32>
      %194 = arith.maximumf %193, %180 : vector<1x32xf32>
      %195 = arith.subf %169, %30 : vector<1x32xf32>
      %196 = arith.subf %195, %194 : vector<1x32xf32>
      %197 = math.exp %196 : vector<1x32xf32>
      %198 = arith.subf %180, %194 : vector<1x32xf32>
      %199 = math.exp %198 : vector<1x32xf32>
      %200 = arith.mulf %177, %197 : vector<1x32xf32>
      %201 = arith.mulf %181, %199 : vector<1x32xf32>
      %202 = arith.addf %200, %201 : vector<1x32xf32>
      %203 = arith.mulf %179, %197 : vector<1x32xf32>
      %204 = arith.addf %203, %199 : vector<1x32xf32>
      %205 = vector.extract_strided_slice %127 {offsets = [4, 0], sizes = [1, 32], strides = [1, 1]} : vector<8x32xf32> to vector<1x32xf32>
      %206 = vector.extract_strided_slice %129 {offsets = [4, 0], sizes = [1, 32], strides = [1, 1]} : vector<8x32xf32> to vector<1x32xf32>
      %207 = arith.addf %31, %205 : vector<1x32xf32>
      %208 = arith.maximumf %194, %207 : vector<1x32xf32>
      %209 = arith.subf %194, %208 : vector<1x32xf32>
      %210 = math.exp %209 : vector<1x32xf32>
      %211 = arith.subf %207, %208 : vector<1x32xf32>
      %212 = math.exp %211 : vector<1x32xf32>
      %213 = arith.mulf %202, %210 : vector<1x32xf32>
      %214 = arith.mulf %206, %212 : vector<1x32xf32>
      %215 = arith.addf %213, %214 : vector<1x32xf32>
      %216 = arith.mulf %204, %210 : vector<1x32xf32>
      %217 = arith.addf %216, %212 : vector<1x32xf32>
      %218 = arith.subf %194, %30 : vector<1x32xf32>
      %219 = arith.maximumf %218, %205 : vector<1x32xf32>
      %220 = arith.subf %194, %30 : vector<1x32xf32>
      %221 = arith.subf %220, %219 : vector<1x32xf32>
      %222 = math.exp %221 : vector<1x32xf32>
      %223 = arith.subf %205, %219 : vector<1x32xf32>
      %224 = math.exp %223 : vector<1x32xf32>
      %225 = arith.mulf %202, %222 : vector<1x32xf32>
      %226 = arith.mulf %206, %224 : vector<1x32xf32>
      %227 = arith.addf %225, %226 : vector<1x32xf32>
      %228 = arith.mulf %204, %222 : vector<1x32xf32>
      %229 = arith.addf %228, %224 : vector<1x32xf32>
      %230 = vector.extract_strided_slice %127 {offsets = [3, 0], sizes = [1, 32], strides = [1, 1]} : vector<8x32xf32> to vector<1x32xf32>
      %231 = vector.extract_strided_slice %129 {offsets = [3, 0], sizes = [1, 32], strides = [1, 1]} : vector<8x32xf32> to vector<1x32xf32>
      %232 = arith.addf %31, %230 : vector<1x32xf32>
      %233 = arith.maximumf %219, %232 : vector<1x32xf32>
      %234 = arith.subf %219, %233 : vector<1x32xf32>
      %235 = math.exp %234 : vector<1x32xf32>
      %236 = arith.subf %232, %233 : vector<1x32xf32>
      %237 = math.exp %236 : vector<1x32xf32>
      %238 = arith.mulf %227, %235 : vector<1x32xf32>
      %239 = arith.mulf %231, %237 : vector<1x32xf32>
      %240 = arith.addf %238, %239 : vector<1x32xf32>
      %241 = arith.mulf %229, %235 : vector<1x32xf32>
      %242 = arith.addf %241, %237 : vector<1x32xf32>
      %243 = arith.subf %219, %30 : vector<1x32xf32>
      %244 = arith.maximumf %243, %230 : vector<1x32xf32>
      %245 = arith.subf %219, %30 : vector<1x32xf32>
      %246 = arith.subf %245, %244 : vector<1x32xf32>
      %247 = math.exp %246 : vector<1x32xf32>
      %248 = arith.subf %230, %244 : vector<1x32xf32>
      %249 = math.exp %248 : vector<1x32xf32>
      %250 = arith.mulf %227, %247 : vector<1x32xf32>
      %251 = arith.mulf %231, %249 : vector<1x32xf32>
      %252 = arith.addf %250, %251 : vector<1x32xf32>
      %253 = arith.mulf %229, %247 : vector<1x32xf32>
      %254 = arith.addf %253, %249 : vector<1x32xf32>
      %255 = vector.extract_strided_slice %127 {offsets = [2, 0], sizes = [1, 32], strides = [1, 1]} : vector<8x32xf32> to vector<1x32xf32>
      %256 = vector.extract_strided_slice %129 {offsets = [2, 0], sizes = [1, 32], strides = [1, 1]} : vector<8x32xf32> to vector<1x32xf32>
      %257 = arith.addf %31, %255 : vector<1x32xf32>
      %258 = arith.maximumf %244, %257 : vector<1x32xf32>
      %259 = arith.subf %244, %258 : vector<1x32xf32>
      %260 = math.exp %259 : vector<1x32xf32>
      %261 = arith.subf %257, %258 : vector<1x32xf32>
      %262 = math.exp %261 : vector<1x32xf32>
      %263 = arith.mulf %252, %260 : vector<1x32xf32>
      %264 = arith.mulf %256, %262 : vector<1x32xf32>
      %265 = arith.addf %263, %264 : vector<1x32xf32>
      %266 = arith.mulf %254, %260 : vector<1x32xf32>
      %267 = arith.addf %266, %262 : vector<1x32xf32>
      %268 = arith.subf %244, %30 : vector<1x32xf32>
      %269 = arith.maximumf %268, %255 : vector<1x32xf32>
      %270 = arith.subf %244, %30 : vector<1x32xf32>
      %271 = arith.subf %270, %269 : vector<1x32xf32>
      %272 = math.exp %271 : vector<1x32xf32>
      %273 = arith.subf %255, %269 : vector<1x32xf32>
      %274 = math.exp %273 : vector<1x32xf32>
      %275 = arith.mulf %252, %272 : vector<1x32xf32>
      %276 = arith.mulf %256, %274 : vector<1x32xf32>
      %277 = arith.addf %275, %276 : vector<1x32xf32>
      %278 = arith.mulf %254, %272 : vector<1x32xf32>
      %279 = arith.addf %278, %274 : vector<1x32xf32>
      %280 = vector.extract_strided_slice %127 {offsets = [1, 0], sizes = [1, 32], strides = [1, 1]} : vector<8x32xf32> to vector<1x32xf32>
      %281 = vector.extract_strided_slice %129 {offsets = [1, 0], sizes = [1, 32], strides = [1, 1]} : vector<8x32xf32> to vector<1x32xf32>
      %282 = arith.addf %31, %280 : vector<1x32xf32>
      %283 = arith.maximumf %269, %282 : vector<1x32xf32>
      %284 = arith.subf %269, %283 : vector<1x32xf32>
      %285 = math.exp %284 : vector<1x32xf32>
      %286 = arith.subf %282, %283 : vector<1x32xf32>
      %287 = math.exp %286 : vector<1x32xf32>
      %288 = arith.mulf %277, %285 : vector<1x32xf32>
      %289 = arith.mulf %281, %287 : vector<1x32xf32>
      %290 = arith.addf %288, %289 : vector<1x32xf32>
      %291 = arith.mulf %279, %285 : vector<1x32xf32>
      %292 = arith.addf %291, %287 : vector<1x32xf32>
      %293 = arith.subf %269, %30 : vector<1x32xf32>
      %294 = arith.maximumf %293, %280 : vector<1x32xf32>
      %295 = arith.subf %269, %30 : vector<1x32xf32>
      %296 = arith.subf %295, %294 : vector<1x32xf32>
      %297 = math.exp %296 : vector<1x32xf32>
      %298 = arith.subf %280, %294 : vector<1x32xf32>
      %299 = math.exp %298 : vector<1x32xf32>
      %300 = arith.mulf %277, %297 : vector<1x32xf32>
      %301 = arith.mulf %281, %299 : vector<1x32xf32>
      %302 = arith.addf %300, %301 : vector<1x32xf32>
      %303 = arith.mulf %279, %297 : vector<1x32xf32>
      %304 = arith.addf %303, %299 : vector<1x32xf32>
      %305 = vector.extract_strided_slice %127 {offsets = [0, 0], sizes = [1, 32], strides = [1, 1]} : vector<8x32xf32> to vector<1x32xf32>
      %306 = vector.extract_strided_slice %129 {offsets = [0, 0], sizes = [1, 32], strides = [1, 1]} : vector<8x32xf32> to vector<1x32xf32>
      %307 = arith.addf %31, %305 : vector<1x32xf32>
      %308 = arith.maximumf %294, %307 : vector<1x32xf32>
      %309 = arith.subf %294, %308 : vector<1x32xf32>
      %310 = math.exp %309 : vector<1x32xf32>
      %311 = arith.subf %307, %308 : vector<1x32xf32>
      %312 = math.exp %311 : vector<1x32xf32>
      %313 = arith.mulf %302, %310 : vector<1x32xf32>
      %314 = arith.mulf %306, %312 : vector<1x32xf32>
      %315 = arith.addf %313, %314 : vector<1x32xf32>
      %316 = arith.mulf %304, %310 : vector<1x32xf32>
      %317 = arith.addf %316, %312 : vector<1x32xf32>
      %318 = arith.subf %294, %30 : vector<1x32xf32>
      %319 = arith.maximumf %318, %305 : vector<1x32xf32>
      %320 = arith.subf %294, %30 : vector<1x32xf32>
      %321 = arith.subf %320, %319 : vector<1x32xf32>
      %322 = math.exp %321 : vector<1x32xf32>
      %323 = arith.subf %305, %319 : vector<1x32xf32>
      %324 = math.exp %323 : vector<1x32xf32>
      %325 = arith.mulf %302, %322 : vector<1x32xf32>
      %326 = arith.mulf %306, %324 : vector<1x32xf32>
      %327 = arith.addf %325, %326 : vector<1x32xf32>
      %328 = arith.mulf %304, %322 : vector<1x32xf32>
      %329 = arith.addf %328, %324 : vector<1x32xf32>
      %330 = tpu.concatenate %308, %283, %258, %233, %208, %183, %158, %133 in 0 : vector<1x32xf32>, vector<1x32xf32>, vector<1x32xf32>, vector<1x32xf32>, vector<1x32xf32>, vector<1x32xf32>, vector<1x32xf32>, vector<1x32xf32> -> vector<8x32xf32>
      %331 = arith.index_cast %125 : i32 to index
      %c0_55 = arith.constant 0 : index
      %332 = vector.load %arg10[%331, %c0_55] : memref<64x32xf32, #tpu.memory_space<vmem>>, vector<8x32xf32>
      tpu.vector_store %arg10[%331, %c0_55], %330 {strides = array<i32>} : memref<64x32xf32, #tpu.memory_space<vmem>>, vector<8x32xf32>,
      %333 = tpu.concatenate %315, %290, %265, %240, %215, %190, %165, %140 in 0 : vector<1x32xf32>, vector<1x32xf32>, vector<1x32xf32>, vector<1x32xf32>, vector<1x32xf32>, vector<1x32xf32>, vector<1x32xf32>, vector<1x32xf32> -> vector<8x32xf32>
      %334 = arith.index_cast %125 : i32 to index
      %c0_56 = arith.constant 0 : index
      %335 = vector.load %arg11[%334, %c0_56] : memref<64x32xf32, #tpu.memory_space<vmem>>, vector<8x32xf32>
      tpu.vector_store %arg11[%334, %c0_56], %333 {strides = array<i32>} : memref<64x32xf32, #tpu.memory_space<vmem>>, vector<8x32xf32>,
      %336 = tpu.concatenate %317, %292, %267, %242, %217, %192, %167, %142 in 0 : vector<1x32xf32>, vector<1x32xf32>, vector<1x32xf32>, vector<1x32xf32>, vector<1x32xf32>, vector<1x32xf32>, vector<1x32xf32>, vector<1x32xf32> -> vector<8x32xf32>
      %337 = arith.index_cast %125 : i32 to index
      %c0_57 = arith.constant 0 : index
      %338 = vector.load %arg12[%337, %c0_57] : memref<64x32xf32, #tpu.memory_space<vmem>>, vector<8x32xf32>
      tpu.vector_store %arg12[%337, %c0_57], %336 {strides = array<i32>} : memref<64x32xf32, #tpu.memory_space<vmem>>, vector<8x32xf32>,
      scf.yield %319, %327, %329 : vector<1x32xf32>, vector<1x32xf32>, vector<1x32xf32>
    }
    %c8_i32_33 = arith.constant 8 : i32
    %c0_i32_34 = arith.constant 0 : i32
    %c8_i32_35 = arith.constant 8 : i32
    %104 = arith.addi %c0_i32_34, %c8_i32_35 : i32
    %c1_i32_36 = arith.constant 1 : i32
    %105:3 = scf.for %arg13 = %c0_i32_34 to %104 step %c1_i32_36 iter_args(%arg14 = %100, %arg15 = %101, %arg16 = %101) -> (vector<1x32xf32>, vector<1x32xf32>, vector<1x32xf32>)  : i32 {
      %c8_i32_52 = arith.constant 8 : i32
      %123 = arith.muli %arg13, %c8_i32_52 : i32
      %124 = tpu.assume_multiple %123, 8 : i32
      %125 = arith.index_cast %124 : i32 to index
      %c0_53 = arith.constant 0 : index
      %126 = vector.load %arg8[%125, %c0_53] : memref<64x32xf32, #tpu.memory_space<vmem>>, vector<8x32xf32>
      %127 = arith.index_cast %124 : i32 to index
      %c0_54 = arith.constant 0 : index
      %128 = vector.load %arg9[%127, %c0_54] : memref<64x32xf32, #tpu.memory_space<vmem>>, vector<8x32xf32>
      %129 = arith.index_cast %124 : i32 to index
      %c0_55 = arith.constant 0 : index
      %130 = vector.load %arg10[%129, %c0_55] : memref<64x32xf32, #tpu.memory_space<vmem>>, vector<8x32xf32>
      %131 = arith.index_cast %124 : i32 to index
      %c0_56 = arith.constant 0 : index
      %132 = vector.load %arg11[%131, %c0_56] : memref<64x32xf32, #tpu.memory_space<vmem>>, vector<8x32xf32>
      %133 = arith.index_cast %124 : i32 to index
      %c0_57 = arith.constant 0 : index
      %134 = vector.load %arg12[%133, %c0_57] : memref<64x32xf32, #tpu.memory_space<vmem>>, vector<8x32xf32>
      %135 = vector.extract_strided_slice %126 {offsets = [0, 0], sizes = [1, 32], strides = [1, 1]} : vector<8x32xf32> to vector<1x32xf32>
      %136 = vector.extract_strided_slice %128 {offsets = [0, 0], sizes = [1, 32], strides = [1, 1]} : vector<8x32xf32> to vector<1x32xf32>
      %137 = vector.extract_strided_slice %130 {offsets = [0, 0], sizes = [1, 32], strides = [1, 1]} : vector<8x32xf32> to vector<1x32xf32>
      %138 = vector.extract_strided_slice %132 {offsets = [0, 0], sizes = [1, 32], strides = [1, 1]} : vector<8x32xf32> to vector<1x32xf32>
      %139 = vector.extract_strided_slice %134 {offsets = [0, 0], sizes = [1, 32], strides = [1, 1]} : vector<8x32xf32> to vector<1x32xf32>
      %140 = arith.maximumf %arg14, %137 : vector<1x32xf32>
      %141 = arith.subf %arg14, %140 : vector<1x32xf32>
      %142 = math.exp %141 : vector<1x32xf32>
      %143 = arith.subf %137, %140 : vector<1x32xf32>
      %144 = math.exp %143 : vector<1x32xf32>
      %145 = arith.mulf %arg15, %142 : vector<1x32xf32>
      %146 = arith.mulf %138, %144 : vector<1x32xf32>
      %147 = arith.addf %145, %146 : vector<1x32xf32>
      %148 = arith.mulf %arg16, %142 : vector<1x32xf32>
      %149 = arith.mulf %139, %144 : vector<1x32xf32>
      %150 = arith.addf %148, %149 : vector<1x32xf32>
      %151 = arith.subf %arg14, %30 : vector<1x32xf32>
      %152 = arith.maximumf %151, %135 : vector<1x32xf32>
      %153 = arith.subf %arg14, %30 : vector<1x32xf32>
      %154 = arith.subf %153, %152 : vector<1x32xf32>
      %155 = math.exp %154 : vector<1x32xf32>
      %156 = arith.subf %135, %152 : vector<1x32xf32>
      %157 = math.exp %156 : vector<1x32xf32>
      %158 = arith.mulf %arg15, %155 : vector<1x32xf32>
      %159 = arith.mulf %136, %157 : vector<1x32xf32>
      %160 = arith.addf %158, %159 : vector<1x32xf32>
      %161 = arith.mulf %arg16, %155 : vector<1x32xf32>
      %162 = arith.addf %161, %157 : vector<1x32xf32>
      %163 = vector.extract_strided_slice %126 {offsets = [1, 0], sizes = [1, 32], strides = [1, 1]} : vector<8x32xf32> to vector<1x32xf32>
      %164 = vector.extract_strided_slice %128 {offsets = [1, 0], sizes = [1, 32], strides = [1, 1]} : vector<8x32xf32> to vector<1x32xf32>
      %165 = vector.extract_strided_slice %130 {offsets = [1, 0], sizes = [1, 32], strides = [1, 1]} : vector<8x32xf32> to vector<1x32xf32>
      %166 = vector.extract_strided_slice %132 {offsets = [1, 0], sizes = [1, 32], strides = [1, 1]} : vector<8x32xf32> to vector<1x32xf32>
      %167 = vector.extract_strided_slice %134 {offsets = [1, 0], sizes = [1, 32], strides = [1, 1]} : vector<8x32xf32> to vector<1x32xf32>
      %168 = arith.maximumf %152, %165 : vector<1x32xf32>
      %169 = arith.subf %152, %168 : vector<1x32xf32>
      %170 = math.exp %169 : vector<1x32xf32>
      %171 = arith.subf %165, %168 : vector<1x32xf32>
      %172 = math.exp %171 : vector<1x32xf32>
      %173 = arith.mulf %160, %170 : vector<1x32xf32>
      %174 = arith.mulf %166, %172 : vector<1x32xf32>
      %175 = arith.addf %173, %174 : vector<1x32xf32>
      %176 = arith.mulf %162, %170 : vector<1x32xf32>
      %177 = arith.mulf %167, %172 : vector<1x32xf32>
      %178 = arith.addf %176, %177 : vector<1x32xf32>
      %179 = arith.subf %152, %30 : vector<1x32xf32>
      %180 = arith.maximumf %179, %163 : vector<1x32xf32>
      %181 = arith.subf %152, %30 : vector<1x32xf32>
      %182 = arith.subf %181, %180 : vector<1x32xf32>
      %183 = math.exp %182 : vector<1x32xf32>
      %184 = arith.subf %163, %180 : vector<1x32xf32>
      %185 = math.exp %184 : vector<1x32xf32>
      %186 = arith.mulf %160, %183 : vector<1x32xf32>
      %187 = arith.mulf %164, %185 : vector<1x32xf32>
      %188 = arith.addf %186, %187 : vector<1x32xf32>
      %189 = arith.mulf %162, %183 : vector<1x32xf32>
      %190 = arith.addf %189, %185 : vector<1x32xf32>
      %191 = vector.extract_strided_slice %126 {offsets = [2, 0], sizes = [1, 32], strides = [1, 1]} : vector<8x32xf32> to vector<1x32xf32>
      %192 = vector.extract_strided_slice %128 {offsets = [2, 0], sizes = [1, 32], strides = [1, 1]} : vector<8x32xf32> to vector<1x32xf32>
      %193 = vector.extract_strided_slice %130 {offsets = [2, 0], sizes = [1, 32], strides = [1, 1]} : vector<8x32xf32> to vector<1x32xf32>
      %194 = vector.extract_strided_slice %132 {offsets = [2, 0], sizes = [1, 32], strides = [1, 1]} : vector<8x32xf32> to vector<1x32xf32>
      %195 = vector.extract_strided_slice %134 {offsets = [2, 0], sizes = [1, 32], strides = [1, 1]} : vector<8x32xf32> to vector<1x32xf32>
      %196 = arith.maximumf %180, %193 : vector<1x32xf32>
      %197 = arith.subf %180, %196 : vector<1x32xf32>
      %198 = math.exp %197 : vector<1x32xf32>
      %199 = arith.subf %193, %196 : vector<1x32xf32>
      %200 = math.exp %199 : vector<1x32xf32>
      %201 = arith.mulf %188, %198 : vector<1x32xf32>
      %202 = arith.mulf %194, %200 : vector<1x32xf32>
      %203 = arith.addf %201, %202 : vector<1x32xf32>
      %204 = arith.mulf %190, %198 : vector<1x32xf32>
      %205 = arith.mulf %195, %200 : vector<1x32xf32>
      %206 = arith.addf %204, %205 : vector<1x32xf32>
      %207 = arith.subf %180, %30 : vector<1x32xf32>
      %208 = arith.maximumf %207, %191 : vector<1x32xf32>
      %209 = arith.subf %180, %30 : vector<1x32xf32>
      %210 = arith.subf %209, %208 : vector<1x32xf32>
      %211 = math.exp %210 : vector<1x32xf32>
      %212 = arith.subf %191, %208 : vector<1x32xf32>
      %213 = math.exp %212 : vector<1x32xf32>
      %214 = arith.mulf %188, %211 : vector<1x32xf32>
      %215 = arith.mulf %192, %213 : vector<1x32xf32>
      %216 = arith.addf %214, %215 : vector<1x32xf32>
      %217 = arith.mulf %190, %211 : vector<1x32xf32>
      %218 = arith.addf %217, %213 : vector<1x32xf32>
      %219 = vector.extract_strided_slice %126 {offsets = [3, 0], sizes = [1, 32], strides = [1, 1]} : vector<8x32xf32> to vector<1x32xf32>
      %220 = vector.extract_strided_slice %128 {offsets = [3, 0], sizes = [1, 32], strides = [1, 1]} : vector<8x32xf32> to vector<1x32xf32>
      %221 = vector.extract_strided_slice %130 {offsets = [3, 0], sizes = [1, 32], strides = [1, 1]} : vector<8x32xf32> to vector<1x32xf32>
      %222 = vector.extract_strided_slice %132 {offsets = [3, 0], sizes = [1, 32], strides = [1, 1]} : vector<8x32xf32> to vector<1x32xf32>
      %223 = vector.extract_strided_slice %134 {offsets = [3, 0], sizes = [1, 32], strides = [1, 1]} : vector<8x32xf32> to vector<1x32xf32>
      %224 = arith.maximumf %208, %221 : vector<1x32xf32>
      %225 = arith.subf %208, %224 : vector<1x32xf32>
      %226 = math.exp %225 : vector<1x32xf32>
      %227 = arith.subf %221, %224 : vector<1x32xf32>
      %228 = math.exp %227 : vector<1x32xf32>
      %229 = arith.mulf %216, %226 : vector<1x32xf32>
      %230 = arith.mulf %222, %228 : vector<1x32xf32>
      %231 = arith.addf %229, %230 : vector<1x32xf32>
      %232 = arith.mulf %218, %226 : vector<1x32xf32>
      %233 = arith.mulf %223, %228 : vector<1x32xf32>
      %234 = arith.addf %232, %233 : vector<1x32xf32>
      %235 = arith.subf %208, %30 : vector<1x32xf32>
      %236 = arith.maximumf %235, %219 : vector<1x32xf32>
      %237 = arith.subf %208, %30 : vector<1x32xf32>
      %238 = arith.subf %237, %236 : vector<1x32xf32>
      %239 = math.exp %238 : vector<1x32xf32>
      %240 = arith.subf %219, %236 : vector<1x32xf32>
      %241 = math.exp %240 : vector<1x32xf32>
      %242 = arith.mulf %216, %239 : vector<1x32xf32>
      %243 = arith.mulf %220, %241 : vector<1x32xf32>
      %244 = arith.addf %242, %243 : vector<1x32xf32>
      %245 = arith.mulf %218, %239 : vector<1x32xf32>
      %246 = arith.addf %245, %241 : vector<1x32xf32>
      %247 = vector.extract_strided_slice %126 {offsets = [4, 0], sizes = [1, 32], strides = [1, 1]} : vector<8x32xf32> to vector<1x32xf32>
      %248 = vector.extract_strided_slice %128 {offsets = [4, 0], sizes = [1, 32], strides = [1, 1]} : vector<8x32xf32> to vector<1x32xf32>
      %249 = vector.extract_strided_slice %130 {offsets = [4, 0], sizes = [1, 32], strides = [1, 1]} : vector<8x32xf32> to vector<1x32xf32>
      %250 = vector.extract_strided_slice %132 {offsets = [4, 0], sizes = [1, 32], strides = [1, 1]} : vector<8x32xf32> to vector<1x32xf32>
      %251 = vector.extract_strided_slice %134 {offsets = [4, 0], sizes = [1, 32], strides = [1, 1]} : vector<8x32xf32> to vector<1x32xf32>
      %252 = arith.maximumf %236, %249 : vector<1x32xf32>
      %253 = arith.subf %236, %252 : vector<1x32xf32>
      %254 = math.exp %253 : vector<1x32xf32>
      %255 = arith.subf %249, %252 : vector<1x32xf32>
      %256 = math.exp %255 : vector<1x32xf32>
      %257 = arith.mulf %244, %254 : vector<1x32xf32>
      %258 = arith.mulf %250, %256 : vector<1x32xf32>
      %259 = arith.addf %257, %258 : vector<1x32xf32>
      %260 = arith.mulf %246, %254 : vector<1x32xf32>
      %261 = arith.mulf %251, %256 : vector<1x32xf32>
      %262 = arith.addf %260, %261 : vector<1x32xf32>
      %263 = arith.subf %236, %30 : vector<1x32xf32>
      %264 = arith.maximumf %263, %247 : vector<1x32xf32>
      %265 = arith.subf %236, %30 : vector<1x32xf32>
      %266 = arith.subf %265, %264 : vector<1x32xf32>
      %267 = math.exp %266 : vector<1x32xf32>
      %268 = arith.subf %247, %264 : vector<1x32xf32>
      %269 = math.exp %268 : vector<1x32xf32>
      %270 = arith.mulf %244, %267 : vector<1x32xf32>
      %271 = arith.mulf %248, %269 : vector<1x32xf32>
      %272 = arith.addf %270, %271 : vector<1x32xf32>
      %273 = arith.mulf %246, %267 : vector<1x32xf32>
      %274 = arith.addf %273, %269 : vector<1x32xf32>
      %275 = vector.extract_strided_slice %126 {offsets = [5, 0], sizes = [1, 32], strides = [1, 1]} : vector<8x32xf32> to vector<1x32xf32>
      %276 = vector.extract_strided_slice %128 {offsets = [5, 0], sizes = [1, 32], strides = [1, 1]} : vector<8x32xf32> to vector<1x32xf32>
      %277 = vector.extract_strided_slice %130 {offsets = [5, 0], sizes = [1, 32], strides = [1, 1]} : vector<8x32xf32> to vector<1x32xf32>
      %278 = vector.extract_strided_slice %132 {offsets = [5, 0], sizes = [1, 32], strides = [1, 1]} : vector<8x32xf32> to vector<1x32xf32>
      %279 = vector.extract_strided_slice %134 {offsets = [5, 0], sizes = [1, 32], strides = [1, 1]} : vector<8x32xf32> to vector<1x32xf32>
      %280 = arith.maximumf %264, %277 : vector<1x32xf32>
      %281 = arith.subf %264, %280 : vector<1x32xf32>
      %282 = math.exp %281 : vector<1x32xf32>
      %283 = arith.subf %277, %280 : vector<1x32xf32>
      %284 = math.exp %283 : vector<1x32xf32>
      %285 = arith.mulf %272, %282 : vector<1x32xf32>
      %286 = arith.mulf %278, %284 : vector<1x32xf32>
      %287 = arith.addf %285, %286 : vector<1x32xf32>
      %288 = arith.mulf %274, %282 : vector<1x32xf32>
      %289 = arith.mulf %279, %284 : vector<1x32xf32>
      %290 = arith.addf %288, %289 : vector<1x32xf32>
      %291 = arith.subf %264, %30 : vector<1x32xf32>
      %292 = arith.maximumf %291, %275 : vector<1x32xf32>
      %293 = arith.subf %264, %30 : vector<1x32xf32>
      %294 = arith.subf %293, %292 : vector<1x32xf32>
      %295 = math.exp %294 : vector<1x32xf32>
      %296 = arith.subf %275, %292 : vector<1x32xf32>
      %297 = math.exp %296 : vector<1x32xf32>
      %298 = arith.mulf %272, %295 : vector<1x32xf32>
      %299 = arith.mulf %276, %297 : vector<1x32xf32>
      %300 = arith.addf %298, %299 : vector<1x32xf32>
      %301 = arith.mulf %274, %295 : vector<1x32xf32>
      %302 = arith.addf %301, %297 : vector<1x32xf32>
      %303 = vector.extract_strided_slice %126 {offsets = [6, 0], sizes = [1, 32], strides = [1, 1]} : vector<8x32xf32> to vector<1x32xf32>
      %304 = vector.extract_strided_slice %128 {offsets = [6, 0], sizes = [1, 32], strides = [1, 1]} : vector<8x32xf32> to vector<1x32xf32>
      %305 = vector.extract_strided_slice %130 {offsets = [6, 0], sizes = [1, 32], strides = [1, 1]} : vector<8x32xf32> to vector<1x32xf32>
      %306 = vector.extract_strided_slice %132 {offsets = [6, 0], sizes = [1, 32], strides = [1, 1]} : vector<8x32xf32> to vector<1x32xf32>
      %307 = vector.extract_strided_slice %134 {offsets = [6, 0], sizes = [1, 32], strides = [1, 1]} : vector<8x32xf32> to vector<1x32xf32>
      %308 = arith.maximumf %292, %305 : vector<1x32xf32>
      %309 = arith.subf %292, %308 : vector<1x32xf32>
      %310 = math.exp %309 : vector<1x32xf32>
      %311 = arith.subf %305, %308 : vector<1x32xf32>
      %312 = math.exp %311 : vector<1x32xf32>
      %313 = arith.mulf %300, %310 : vector<1x32xf32>
      %314 = arith.mulf %306, %312 : vector<1x32xf32>
      %315 = arith.addf %313, %314 : vector<1x32xf32>
      %316 = arith.mulf %302, %310 : vector<1x32xf32>
      %317 = arith.mulf %307, %312 : vector<1x32xf32>
      %318 = arith.addf %316, %317 : vector<1x32xf32>
      %319 = arith.subf %292, %30 : vector<1x32xf32>
      %320 = arith.maximumf %319, %303 : vector<1x32xf32>
      %321 = arith.subf %292, %30 : vector<1x32xf32>
      %322 = arith.subf %321, %320 : vector<1x32xf32>
      %323 = math.exp %322 : vector<1x32xf32>
      %324 = arith.subf %303, %320 : vector<1x32xf32>
      %325 = math.exp %324 : vector<1x32xf32>
      %326 = arith.mulf %300, %323 : vector<1x32xf32>
      %327 = arith.mulf %304, %325 : vector<1x32xf32>
      %328 = arith.addf %326, %327 : vector<1x32xf32>
      %329 = arith.mulf %302, %323 : vector<1x32xf32>
      %330 = arith.addf %329, %325 : vector<1x32xf32>
      %331 = vector.extract_strided_slice %126 {offsets = [7, 0], sizes = [1, 32], strides = [1, 1]} : vector<8x32xf32> to vector<1x32xf32>
      %332 = vector.extract_strided_slice %128 {offsets = [7, 0], sizes = [1, 32], strides = [1, 1]} : vector<8x32xf32> to vector<1x32xf32>
      %333 = vector.extract_strided_slice %130 {offsets = [7, 0], sizes = [1, 32], strides = [1, 1]} : vector<8x32xf32> to vector<1x32xf32>
      %334 = vector.extract_strided_slice %132 {offsets = [7, 0], sizes = [1, 32], strides = [1, 1]} : vector<8x32xf32> to vector<1x32xf32>
      %335 = vector.extract_strided_slice %134 {offsets = [7, 0], sizes = [1, 32], strides = [1, 1]} : vector<8x32xf32> to vector<1x32xf32>
      %336 = arith.maximumf %320, %333 : vector<1x32xf32>
      %337 = arith.subf %320, %336 : vector<1x32xf32>
      %338 = math.exp %337 : vector<1x32xf32>
      %339 = arith.subf %333, %336 : vector<1x32xf32>
      %340 = math.exp %339 : vector<1x32xf32>
      %341 = arith.mulf %328, %338 : vector<1x32xf32>
      %342 = arith.mulf %334, %340 : vector<1x32xf32>
      %343 = arith.addf %341, %342 : vector<1x32xf32>
      %344 = arith.mulf %330, %338 : vector<1x32xf32>
      %345 = arith.mulf %335, %340 : vector<1x32xf32>
      %346 = arith.addf %344, %345 : vector<1x32xf32>
      %347 = arith.subf %320, %30 : vector<1x32xf32>
      %348 = arith.maximumf %347, %331 : vector<1x32xf32>
      %349 = arith.subf %320, %30 : vector<1x32xf32>
      %350 = arith.subf %349, %348 : vector<1x32xf32>
      %351 = math.exp %350 : vector<1x32xf32>
      %352 = arith.subf %331, %348 : vector<1x32xf32>
      %353 = math.exp %352 : vector<1x32xf32>
      %354 = arith.mulf %328, %351 : vector<1x32xf32>
      %355 = arith.mulf %332, %353 : vector<1x32xf32>
      %356 = arith.addf %354, %355 : vector<1x32xf32>
      %357 = arith.mulf %330, %351 : vector<1x32xf32>
      %358 = arith.addf %357, %353 : vector<1x32xf32>
      %359 = tpu.concatenate %147, %175, %203, %231, %259, %287, %315, %343 in 0 : vector<1x32xf32>, vector<1x32xf32>, vector<1x32xf32>, vector<1x32xf32>, vector<1x32xf32>, vector<1x32xf32>, vector<1x32xf32>, vector<1x32xf32> -> vector<8x32xf32>
      %360 = arith.index_cast %124 : i32 to index
      %c0_58 = arith.constant 0 : index
      %361 = vector.load %arg11[%360, %c0_58] : memref<64x32xf32, #tpu.memory_space<vmem>>, vector<8x32xf32>
      tpu.vector_store %arg11[%360, %c0_58], %359 {strides = array<i32>} : memref<64x32xf32, #tpu.memory_space<vmem>>, vector<8x32xf32>,
      %362 = tpu.concatenate %150, %178, %206, %234, %262, %290, %318, %346 in 0 : vector<1x32xf32>, vector<1x32xf32>, vector<1x32xf32>, vector<1x32xf32>, vector<1x32xf32>, vector<1x32xf32>, vector<1x32xf32>, vector<1x32xf32> -> vector<8x32xf32>
      %363 = arith.index_cast %124 : i32 to index
      %c0_59 = arith.constant 0 : index
      %364 = vector.load %arg12[%363, %c0_59] : memref<64x32xf32, #tpu.memory_space<vmem>>, vector<8x32xf32>
      tpu.vector_store %arg12[%363, %c0_59], %362 {strides = array<i32>} : memref<64x32xf32, #tpu.memory_space<vmem>>, vector<8x32xf32>,
      scf.yield %348, %356, %358 : vector<1x32xf32>, vector<1x32xf32>, vector<1x32xf32>
    }
    %c8_i32_37 = arith.constant 8 : i32
    %c0_38 = arith.constant 0 : index
    %c0_39 = arith.constant 0 : index
    %106 = vector.load %arg11[%c0_38, %c0_39] : memref<64x32xf32, #tpu.memory_space<vmem>>, vector<64x32xf32>
    %c0_40 = arith.constant 0 : index
    %c0_41 = arith.constant 0 : index
    %107 = vector.load %arg12[%c0_40, %c0_41] : memref<64x32xf32, #tpu.memory_space<vmem>>, vector<64x32xf32>
    %108 = arith.divf %106, %107 : vector<64x32xf32>
    %c0_42 = arith.constant 0 : index
    %c0_43 = arith.constant 0 : index
    %109 = vector.load %arg5[%c0_42, %c0_43] : memref<32x32xbf16, #tpu.memory_space<vmem>>, vector<32x32xbf16>
    %cst_44 = arith.constant dense<0.000000e+00> : vector<64x32xf32>
    %110 = tpu.matmul %93, %109, %cst_44 {dimension_numbers = #tpu.dot_dimension_numbers<[1], [0], [0], [1], [0, 0, 1, 1], [], []>} : vector<64x32xbf16>, vector<32x32xbf16>, vector<64x32xf32> -> vector<64x32xf32>
    %111 = arith.negf %110 : vector<64x32xf32>
    %112 = math.exp %111 : vector<64x32xf32>
    %cst_45 = arith.constant 1.000000e+00 : f32
    %113 = vector.broadcast %cst_45 : f32 to vector<64x32xf32>
    %114 = arith.addf %113, %112 : vector<64x32xf32>
    %115 = arith.divf %113, %114 : vector<64x32xf32>
    %116 = arith.mulf %115, %108 : vector<64x32xf32>
    %117 = arith.truncf %116 : vector<64x32xf32> to vector<64x32xbf16>
    %c0_46 = arith.constant 0 : index
    %c0_47 = arith.constant 0 : index
    %118 = vector.load %arg6[%c0_46, %c0_47] : memref<32x32xbf16, #tpu.memory_space<vmem>>, vector<32x32xbf16>
    %cst_48 = arith.constant dense<0.000000e+00> : vector<64x32xf32>
    %119 = tpu.matmul %117, %118, %cst_48 {dimension_numbers = #tpu.dot_dimension_numbers<[1], [0], [0], [1], [0, 0, 1, 1], [], []>} : vector<64x32xbf16>, vector<32x32xbf16>, vector<64x32xf32> -> vector<64x32xf32>
    %120 = arith.addf %24, %119 : vector<64x32xf32>
    %121 = vector.shape_cast %120 : vector<64x32xf32> to vector<1x64x32xf32>
    %c0_49 = arith.constant 0 : index
    %c0_50 = arith.constant 0 : index
    %c0_51 = arith.constant 0 : index
    %122 = vector.load %arg7[%c0_49, %c0_50, %c0_51] : memref<1x64x32xf32, #tpu.memory_space<vmem>>, vector<1x64x32xf32>
    tpu.vector_store %arg7[%c0_49, %c0_50, %c0_51], %121 {strides = array<i32>} : memref<1x64x32xf32, #tpu.memory_space<vmem>>, vector<1x64x32xf32>,
    return
  }
  func.func @transform_0(%arg0: i32) -> (i32, i32, i32) {
    %c0_i32 = arith.constant 0 : i32
    %c0_i32_0 = arith.constant 0 : i32
    %c0_i32_1 = arith.constant 0 : i32
    return %arg0, %c0_i32, %c0_i32_0 : i32, i32, i32
  }
  func.func @transform_1(%arg0: i32) -> (i32, i32) {
    %c0_i32 = arith.constant 0 : i32
    %c0_i32_0 = arith.constant 0 : i32
    %c0_i32_1 = arith.constant 0 : i32
    return %c0_i32, %c0_i32_0 : i32, i32
  }
  func.func @transform_2(%arg0: i32) -> (i32, i32) {
    %c0_i32 = arith.constant 0 : i32
    %c0_i32_0 = arith.constant 0 : i32
    %c0_i32_1 = arith.constant 0 : i32
    return %c0_i32, %c0_i32_0 : i32, i32
  }
  func.func @transform_3(%arg0: i32) -> (i32, i32) {
    %c0_i32 = arith.constant 0 : i32
    %c0_i32_0 = arith.constant 0 : i32
    %c0_i32_1 = arith.constant 0 : i32
    return %c0_i32, %c0_i32_0 : i32, i32
  }
  func.func @transform_4(%arg0: i32) -> (i32, i32) {
    %c0_i32 = arith.constant 0 : i32
    %c0_i32_0 = arith.constant 0 : i32
    %c0_i32_1 = arith.constant 0 : i32
    return %c0_i32, %c0_i32_0 : i32, i32
  }
  func.func @transform_5(%arg0: i32) -> (i32, i32) {
    %c0_i32 = arith.constant 0 : i32
    %c0_i32_0 = arith.constant 0 : i32
    %c0_i32_1 = arith.constant 0 : i32
    return %c0_i32, %c0_i32_0 : i32, i32
  }
  func.func @transform_6(%arg0: i32) -> (i32, i32, i32) {
    %c0_i32 = arith.constant 0 : i32
    %c0_i32_0 = arith.constant 0 : i32
    %c0_i32_1 = arith.constant 0 : i32
    return %arg0, %c0_i32, %c0_i32_0 : i32, i32, i32
  }
}

module attributes {stable_mosaic.version = 11 : i64} {
  func.func @kernel(%arg0: i32, %arg1: memref<1x64x32xf32, #tpu.memory_space<vmem>>, %arg2: memref<8x32xf32, #tpu.memory_space<vmem>>, %arg3: memref<32x128xbf16, #tpu.memory_space<vmem>>, %arg4: memref<128x32xbf16, #tpu.memory_space<vmem>>, %arg5: memref<32x32xbf16, #tpu.memory_space<vmem>>, %arg6: memref<1x64x32xf32, #tpu.memory_space<vmem>>) attributes {dimension_semantics = [#tpu.dimension_semantics<parallel>], iteration_bounds = array<i64: 2>, scalar_prefetch = 0 : i64, scratch_operands = 0 : i64, tpu.core_type = #tpu.core_type<tc>, window_params = [{transform_indices = @transform_0, window_bounds = array<i64: 1, 64, 32>}, {pipeline_mode = #tpu.pipeline_mode<synchronous>, transform_indices = @transform_1, window_bounds = array<i64: 8, 32>}, {pipeline_mode = #tpu.pipeline_mode<synchronous>, transform_indices = @transform_2, window_bounds = array<i64: 32, 128>}, {pipeline_mode = #tpu.pipeline_mode<synchronous>, transform_indices = @transform_3, window_bounds = array<i64: 128, 32>}, {pipeline_mode = #tpu.pipeline_mode<synchronous>, transform_indices = @transform_4, window_bounds = array<i64: 32, 32>}, {transform_indices = @transform_5, window_bounds = array<i64: 1, 64, 32>}]} {
    %c0 = arith.constant 0 : index
    %c0_0 = arith.constant 0 : index
    %c0_1 = arith.constant 0 : index
    %0 = vector.load %arg1[%c0, %c0_0, %c0_1] : memref<1x64x32xf32, #tpu.memory_space<vmem>>, vector<1x64x32xf32>
    %1 = vector.shape_cast %0 : vector<1x64x32xf32> to vector<64x32xf32>
    %c0_2 = arith.constant 0 : index
    %c0_3 = arith.constant 0 : index
    %2 = vector.load %arg2[%c0_2, %c0_3] : memref<8x32xf32, #tpu.memory_space<vmem>>, vector<8x32xf32>
    %3 = vector.extract_strided_slice %2 {offsets = [0, 0], sizes = [1, 32], strides = [1, 1]} : vector<8x32xf32> to vector<1x32xf32>
    %4 = vector.extract_strided_slice %2 {offsets = [1, 0], sizes = [1, 32], strides = [1, 1]} : vector<8x32xf32> to vector<1x32xf32>
    %5 = vector.extract_strided_slice %2 {offsets = [2, 0], sizes = [1, 32], strides = [1, 1]} : vector<8x32xf32> to vector<1x32xf32>
    %6 = vector.extract_strided_slice %2 {offsets = [3, 0], sizes = [1, 32], strides = [1, 1]} : vector<8x32xf32> to vector<1x32xf32>
    %cst = arith.constant dense<0.000000e+00> : vector<64xf32>
    %7 = vector.multi_reduction <add>, %1, %cst [1] : vector<64x32xf32> to vector<64xf32>
    %8 = vector.shape_cast %7 : vector<64xf32> to vector<64x1xf32>
    %cst_4 = arith.constant 3.200000e+01 : f32
    %9 = vector.broadcast %cst_4 : f32 to vector<64x1xf32>
    %10 = arith.divf %8, %9 : vector<64x1xf32>
    %11 = vector.broadcast %10 : vector<64x1xf32> to vector<64x32xf32>
    %12 = arith.subf %1, %11 : vector<64x32xf32>
    %13 = arith.mulf %12, %12 : vector<64x32xf32>
    %cst_5 = arith.constant dense<0.000000e+00> : vector<64xf32>
    %14 = vector.multi_reduction <add>, %13, %cst_5 [1] : vector<64x32xf32> to vector<64xf32>
    %15 = vector.shape_cast %14 : vector<64xf32> to vector<64x1xf32>
    %cst_6 = arith.constant 3.200000e+01 : f32
    %16 = vector.broadcast %cst_6 : f32 to vector<64x1xf32>
    %17 = arith.divf %15, %16 : vector<64x1xf32>
    %cst_7 = arith.constant 9.99999974E-6 : f32
    %18 = vector.broadcast %cst_7 : f32 to vector<64x1xf32>
    %19 = arith.addf %17, %18 : vector<64x1xf32>
    %20 = math.rsqrt %19 : vector<64x1xf32>
    %21 = vector.broadcast %20 : vector<64x1xf32> to vector<64x32xf32>
    %22 = arith.mulf %12, %21 : vector<64x32xf32>
    %23 = vector.broadcast %3 : vector<1x32xf32> to vector<64x32xf32>
    %24 = arith.mulf %22, %23 : vector<64x32xf32>
    %25 = vector.broadcast %4 : vector<1x32xf32> to vector<64x32xf32>
    %26 = arith.addf %24, %25 : vector<64x32xf32>
    %27 = tpu.iota {dimensions = array<i32: 0>} : vector<64x32xi32>
    %28 = tpu.iota {dimensions = array<i32: 1>} : vector<64x32xi32>
    %c1_i32 = arith.constant 1 : i32
    %29 = tpu.dynamic_rotate %26 by %c1_i32 dim 0 : vector<64x32xf32>, i32 -> vector<64x32xf32>
    %c63_i32 = arith.constant 63 : i32
    %30 = tpu.dynamic_rotate %26 by %c63_i32 dim 0 : vector<64x32xf32>, i32 -> vector<64x32xf32>
    %c1_i32_8 = arith.constant 1 : i32
    %31 = vector.broadcast %c1_i32_8 : i32 to vector<64x32xi32>
    %32 = arith.cmpi sge, %27, %31 : vector<64x32xi32>
    %cst_9 = arith.constant 0.000000e+00 : f32
    %33 = vector.broadcast %cst_9 : f32 to vector<64x32xf32>
    %34 = arith.select %32, %29, %33 : vector<64x32xi1>, vector<64x32xf32>
    %c63_i32_10 = arith.constant 63 : i32
    %35 = vector.broadcast %c63_i32_10 : i32 to vector<64x32xi32>
    %36 = arith.cmpi slt, %27, %35 : vector<64x32xi32>
    %cst_11 = arith.constant 0.000000e+00 : f32
    %37 = vector.broadcast %cst_11 : f32 to vector<64x32xf32>
    %38 = arith.select %36, %30, %37 : vector<64x32xi1>, vector<64x32xf32>
    %c16_i32 = arith.constant 16 : i32
    %39 = vector.broadcast %c16_i32 : i32 to vector<64x32xi32>
    %40 = arith.cmpi slt, %28, %39 : vector<64x32xi32>
    %c32_i32 = arith.constant 32 : i32
    %41 = vector.broadcast %c32_i32 : i32 to vector<64x32xi32>
    %42 = arith.cmpi slt, %28, %41 : vector<64x32xi32>
    %43 = arith.select %42, %38, %26 : vector<64x32xi1>, vector<64x32xf32>
    %44 = arith.select %40, %34, %43 : vector<64x32xi1>, vector<64x32xf32>
    %45 = vector.broadcast %5 : vector<1x32xf32> to vector<64x32xf32>
    %46 = arith.mulf %26, %45 : vector<64x32xf32>
    %cst_12 = arith.constant 1.000000e+00 : f32
    %47 = vector.broadcast %cst_12 : f32 to vector<1x32xf32>
    %48 = arith.subf %47, %5 : vector<1x32xf32>
    %49 = vector.broadcast %48 : vector<1x32xf32> to vector<64x32xf32>
    %50 = arith.mulf %44, %49 : vector<64x32xf32>
    %51 = arith.addf %46, %50 : vector<64x32xf32>
    %52 = arith.truncf %51 : vector<64x32xf32> to vector<64x32xbf16>
    %53 = vector.broadcast %6 : vector<1x32xf32> to vector<64x32xf32>
    %54 = arith.mulf %26, %53 : vector<64x32xf32>
    %cst_13 = arith.constant 1.000000e+00 : f32
    %55 = vector.broadcast %cst_13 : f32 to vector<1x32xf32>
    %56 = arith.subf %55, %6 : vector<1x32xf32>
    %57 = vector.broadcast %56 : vector<1x32xf32> to vector<64x32xf32>
    %58 = arith.mulf %44, %57 : vector<64x32xf32>
    %59 = arith.addf %54, %58 : vector<64x32xf32>
    %60 = arith.truncf %59 : vector<64x32xf32> to vector<64x32xbf16>
    %cst_14 = arith.constant 0.000000e+00 : f32
    %61 = vector.broadcast %cst_14 : f32 to vector<64x32xf32>
    %c0_15 = arith.constant 0 : index
    %c0_16 = arith.constant 0 : index
    %62 = vector.load %arg3[%c0_15, %c0_16] : memref<32x128xbf16, #tpu.memory_space<vmem>>, vector<32x128xbf16>
    %c0_17 = arith.constant 0 : index
    %c0_18 = arith.constant 0 : index
    %63 = vector.load %arg4[%c0_17, %c0_18] : memref<128x32xbf16, #tpu.memory_space<vmem>>, vector<128x32xbf16>
    %cst_19 = arith.constant dense<0.000000e+00> : vector<64x128xf32>
    %64 = tpu.matmul %52, %62, %cst_19 {dimension_numbers = #tpu.dot_dimension_numbers<[1], [0], [0], [1], [0, 0, 1, 1], [], []>} : vector<64x32xbf16>, vector<32x128xbf16>, vector<64x128xf32> -> vector<64x128xf32>
    %cst_20 = arith.constant 0.000000e+00 : f32
    %65 = vector.broadcast %cst_20 : f32 to vector<64x128xf32>
    %66 = arith.maximumf %64, %65 : vector<64x128xf32>
    %67 = arith.mulf %66, %66 : vector<64x128xf32>
    %68 = arith.truncf %67 : vector<64x128xf32> to vector<64x128xbf16>
    %cst_21 = arith.constant dense<0.000000e+00> : vector<64x32xf32>
    %69 = tpu.matmul %68, %63, %cst_21 {dimension_numbers = #tpu.dot_dimension_numbers<[1], [0], [0], [1], [0, 0, 1, 1], [], []>} : vector<64x128xbf16>, vector<128x32xbf16>, vector<64x32xf32> -> vector<64x32xf32>
    %70 = arith.addf %61, %69 : vector<64x32xf32>
    %c0_22 = arith.constant 0 : index
    %c0_23 = arith.constant 0 : index
    %71 = vector.load %arg5[%c0_22, %c0_23] : memref<32x32xbf16, #tpu.memory_space<vmem>>, vector<32x32xbf16>
    %cst_24 = arith.constant dense<0.000000e+00> : vector<64x32xf32>
    %72 = tpu.matmul %60, %71, %cst_24 {dimension_numbers = #tpu.dot_dimension_numbers<[1], [0], [0], [1], [0, 0, 1, 1], [], []>} : vector<64x32xbf16>, vector<32x32xbf16>, vector<64x32xf32> -> vector<64x32xf32>
    %73 = arith.negf %72 : vector<64x32xf32>
    %74 = math.exp %73 : vector<64x32xf32>
    %cst_25 = arith.constant 1.000000e+00 : f32
    %75 = vector.broadcast %cst_25 : f32 to vector<64x32xf32>
    %76 = arith.addf %75, %74 : vector<64x32xf32>
    %77 = arith.divf %75, %76 : vector<64x32xf32>
    %78 = arith.mulf %77, %70 : vector<64x32xf32>
    %79 = arith.addf %1, %78 : vector<64x32xf32>
    %80 = vector.shape_cast %79 : vector<64x32xf32> to vector<1x64x32xf32>
    %c0_26 = arith.constant 0 : index
    %c0_27 = arith.constant 0 : index
    %c0_28 = arith.constant 0 : index
    %81 = vector.load %arg6[%c0_26, %c0_27, %c0_28] : memref<1x64x32xf32, #tpu.memory_space<vmem>>, vector<1x64x32xf32>
    tpu.vector_store %arg6[%c0_26, %c0_27, %c0_28], %80 {strides = array<i32>} : memref<1x64x32xf32, #tpu.memory_space<vmem>>, vector<1x64x32xf32>,
    return
  }
  func.func @transform_0(%arg0: i32) -> (i32, i32, i32) {
    %c0_i32 = arith.constant 0 : i32
    %c0_i32_0 = arith.constant 0 : i32
    %c0_i32_1 = arith.constant 0 : i32
    return %arg0, %c0_i32, %c0_i32_0 : i32, i32, i32
  }
  func.func @transform_1(%arg0: i32) -> (i32, i32) {
    %c0_i32 = arith.constant 0 : i32
    %c0_i32_0 = arith.constant 0 : i32
    %c0_i32_1 = arith.constant 0 : i32
    return %c0_i32, %c0_i32_0 : i32, i32
  }
  func.func @transform_2(%arg0: i32) -> (i32, i32) {
    %c0_i32 = arith.constant 0 : i32
    %c0_i32_0 = arith.constant 0 : i32
    %c0_i32_1 = arith.constant 0 : i32
    return %c0_i32, %c0_i32_0 : i32, i32
  }
  func.func @transform_3(%arg0: i32) -> (i32, i32) {
    %c0_i32 = arith.constant 0 : i32
    %c0_i32_0 = arith.constant 0 : i32
    %c0_i32_1 = arith.constant 0 : i32
    return %c0_i32, %c0_i32_0 : i32, i32
  }
  func.func @transform_4(%arg0: i32) -> (i32, i32) {
    %c0_i32 = arith.constant 0 : i32
    %c0_i32_0 = arith.constant 0 : i32
    %c0_i32_1 = arith.constant 0 : i32
    return %c0_i32, %c0_i32_0 : i32, i32
  }
  func.func @transform_5(%arg0: i32) -> (i32, i32, i32) {
    %c0_i32 = arith.constant 0 : i32
    %c0_i32_0 = arith.constant 0 : i32
    %c0_i32_1 = arith.constant 0 : i32
    return %arg0, %c0_i32, %c0_i32_0 : i32, i32, i32
  }
}

module attributes {stable_mosaic.version = 11 : i64} {
  func.func @kernel(%arg0: i32, %arg1: memref<1x64x32xf32, #tpu.memory_space<vmem>>, %arg2: memref<16x32xf32, #tpu.memory_space<vmem>>, %arg3: memref<32x32xbf16, #tpu.memory_space<vmem>>, %arg4: memref<32x32xbf16, #tpu.memory_space<vmem>>, %arg5: memref<32x32xbf16, #tpu.memory_space<vmem>>, %arg6: memref<32x32xbf16, #tpu.memory_space<vmem>>, %arg7: memref<1x64x32xf32, #tpu.memory_space<vmem>>, %arg8: memref<64x32xf32, #tpu.memory_space<vmem>>, %arg9: memref<64x32xf32, #tpu.memory_space<vmem>>, %arg10: memref<64x32xf32, #tpu.memory_space<vmem>>, %arg11: memref<64x32xf32, #tpu.memory_space<vmem>>, %arg12: memref<64x32xf32, #tpu.memory_space<vmem>>) attributes {dimension_semantics = [#tpu.dimension_semantics<parallel>], iteration_bounds = array<i64: 2>, scalar_prefetch = 0 : i64, scratch_operands = 5 : i64, tpu.core_type = #tpu.core_type<tc>, window_params = [{transform_indices = @transform_0, window_bounds = array<i64: 1, 64, 32>}, {pipeline_mode = #tpu.pipeline_mode<synchronous>, transform_indices = @transform_1, window_bounds = array<i64: 16, 32>}, {pipeline_mode = #tpu.pipeline_mode<synchronous>, transform_indices = @transform_2, window_bounds = array<i64: 32, 32>}, {pipeline_mode = #tpu.pipeline_mode<synchronous>, transform_indices = @transform_3, window_bounds = array<i64: 32, 32>}, {pipeline_mode = #tpu.pipeline_mode<synchronous>, transform_indices = @transform_4, window_bounds = array<i64: 32, 32>}, {pipeline_mode = #tpu.pipeline_mode<synchronous>, transform_indices = @transform_5, window_bounds = array<i64: 32, 32>}, {transform_indices = @transform_6, window_bounds = array<i64: 1, 64, 32>}]} {
    %c0 = arith.constant 0 : index
    %c0_0 = arith.constant 0 : index
    %c0_1 = arith.constant 0 : index
    %0 = vector.load %arg1[%c0, %c0_0, %c0_1] : memref<1x64x32xf32, #tpu.memory_space<vmem>>, vector<1x64x32xf32>
    %1 = vector.shape_cast %0 : vector<1x64x32xf32> to vector<64x32xf32>
    %c0_2 = arith.constant 0 : index
    %c0_3 = arith.constant 0 : index
    %2 = vector.load %arg2[%c0_2, %c0_3] : memref<16x32xf32, #tpu.memory_space<vmem>>, vector<16x32xf32>
    %3 = vector.extract_strided_slice %2 {offsets = [0, 0], sizes = [1, 32], strides = [1, 1]} : vector<16x32xf32> to vector<1x32xf32>
    %4 = vector.extract_strided_slice %2 {offsets = [1, 0], sizes = [1, 32], strides = [1, 1]} : vector<16x32xf32> to vector<1x32xf32>
    %5 = vector.extract_strided_slice %2 {offsets = [2, 0], sizes = [1, 32], strides = [1, 1]} : vector<16x32xf32> to vector<1x32xf32>
    %6 = vector.extract_strided_slice %2 {offsets = [3, 0], sizes = [1, 32], strides = [1, 1]} : vector<16x32xf32> to vector<1x32xf32>
    %7 = vector.extract_strided_slice %2 {offsets = [4, 0], sizes = [1, 32], strides = [1, 1]} : vector<16x32xf32> to vector<1x32xf32>
    %8 = vector.extract_strided_slice %2 {offsets = [5, 0], sizes = [1, 32], strides = [1, 1]} : vector<16x32xf32> to vector<1x32xf32>
    %9 = vector.extract_strided_slice %2 {offsets = [6, 0], sizes = [1, 32], strides = [1, 1]} : vector<16x32xf32> to vector<1x32xf32>
    %cst = arith.constant dense<0.000000e+00> : vector<64xf32>
    %10 = vector.multi_reduction <add>, %1, %cst [1] : vector<64x32xf32> to vector<64xf32>
    %11 = vector.shape_cast %10 : vector<64xf32> to vector<64x1xf32>
    %cst_4 = arith.constant 3.200000e+01 : f32
    %12 = vector.broadcast %cst_4 : f32 to vector<64x1xf32>
    %13 = arith.divf %11, %12 : vector<64x1xf32>
    %14 = vector.broadcast %13 : vector<64x1xf32> to vector<64x32xf32>
    %15 = arith.subf %1, %14 : vector<64x32xf32>
    %16 = arith.mulf %15, %15 : vector<64x32xf32>
    %cst_5 = arith.constant dense<0.000000e+00> : vector<64xf32>
    %17 = vector.multi_reduction <add>, %16, %cst_5 [1] : vector<64x32xf32> to vector<64xf32>
    %18 = vector.shape_cast %17 : vector<64xf32> to vector<64x1xf32>
    %cst_6 = arith.constant 3.200000e+01 : f32
    %19 = vector.broadcast %cst_6 : f32 to vector<64x1xf32>
    %20 = arith.divf %18, %19 : vector<64x1xf32>
    %cst_7 = arith.constant 9.99999974E-6 : f32
    %21 = vector.broadcast %cst_7 : f32 to vector<64x1xf32>
    %22 = arith.addf %20, %21 : vector<64x1xf32>
    %23 = math.rsqrt %22 : vector<64x1xf32>
    %24 = vector.broadcast %23 : vector<64x1xf32> to vector<64x32xf32>
    %25 = arith.mulf %15, %24 : vector<64x32xf32>
    %26 = vector.broadcast %3 : vector<1x32xf32> to vector<64x32xf32>
    %27 = arith.mulf %25, %26 : vector<64x32xf32>
    %28 = vector.broadcast %4 : vector<1x32xf32> to vector<64x32xf32>
    %29 = arith.addf %27, %28 : vector<64x32xf32>
    %30 = tpu.iota {dimensions = array<i32: 0>} : vector<64x32xi32>
    %31 = tpu.iota {dimensions = array<i32: 1>} : vector<64x32xi32>
    %c1_i32 = arith.constant 1 : i32
    %32 = tpu.dynamic_rotate %29 by %c1_i32 dim 0 : vector<64x32xf32>, i32 -> vector<64x32xf32>
    %c63_i32 = arith.constant 63 : i32
    %33 = tpu.dynamic_rotate %29 by %c63_i32 dim 0 : vector<64x32xf32>, i32 -> vector<64x32xf32>
    %c1_i32_8 = arith.constant 1 : i32
    %34 = vector.broadcast %c1_i32_8 : i32 to vector<64x32xi32>
    %35 = arith.cmpi sge, %30, %34 : vector<64x32xi32>
    %cst_9 = arith.constant 0.000000e+00 : f32
    %36 = vector.broadcast %cst_9 : f32 to vector<64x32xf32>
    %37 = arith.select %35, %32, %36 : vector<64x32xi1>, vector<64x32xf32>
    %c63_i32_10 = arith.constant 63 : i32
    %38 = vector.broadcast %c63_i32_10 : i32 to vector<64x32xi32>
    %39 = arith.cmpi slt, %30, %38 : vector<64x32xi32>
    %cst_11 = arith.constant 0.000000e+00 : f32
    %40 = vector.broadcast %cst_11 : f32 to vector<64x32xf32>
    %41 = arith.select %39, %33, %40 : vector<64x32xi1>, vector<64x32xf32>
    %c16_i32 = arith.constant 16 : i32
    %42 = vector.broadcast %c16_i32 : i32 to vector<64x32xi32>
    %43 = arith.cmpi slt, %31, %42 : vector<64x32xi32>
    %c32_i32 = arith.constant 32 : i32
    %44 = vector.broadcast %c32_i32 : i32 to vector<64x32xi32>
    %45 = arith.cmpi slt, %31, %44 : vector<64x32xi32>
    %46 = arith.select %45, %41, %29 : vector<64x32xi1>, vector<64x32xf32>
    %47 = arith.select %43, %37, %46 : vector<64x32xi1>, vector<64x32xf32>
    %48 = vector.broadcast %5 : vector<1x32xf32> to vector<64x32xf32>
    %49 = arith.mulf %29, %48 : vector<64x32xf32>
    %cst_12 = arith.constant 1.000000e+00 : f32
    %50 = vector.broadcast %cst_12 : f32 to vector<1x32xf32>
    %51 = arith.subf %50, %5 : vector<1x32xf32>
    %52 = vector.broadcast %51 : vector<1x32xf32> to vector<64x32xf32>
    %53 = arith.mulf %47, %52 : vector<64x32xf32>
    %54 = arith.addf %49, %53 : vector<64x32xf32>
    %55 = arith.truncf %54 : vector<64x32xf32> to vector<64x32xbf16>
    %56 = vector.broadcast %6 : vector<1x32xf32> to vector<64x32xf32>
    %57 = arith.mulf %29, %56 : vector<64x32xf32>
    %cst_13 = arith.constant 1.000000e+00 : f32
    %58 = vector.broadcast %cst_13 : f32 to vector<1x32xf32>
    %59 = arith.subf %58, %6 : vector<1x32xf32>
    %60 = vector.broadcast %59 : vector<1x32xf32> to vector<64x32xf32>
    %61 = arith.mulf %47, %60 : vector<64x32xf32>
    %62 = arith.addf %57, %61 : vector<64x32xf32>
    %63 = arith.truncf %62 : vector<64x32xf32> to vector<64x32xbf16>
    %64 = vector.broadcast %7 : vector<1x32xf32> to vector<64x32xf32>
    %65 = arith.mulf %29, %64 : vector<64x32xf32>
    %cst_14 = arith.constant 1.000000e+00 : f32
    %66 = vector.broadcast %cst_14 : f32 to vector<1x32xf32>
    %67 = arith.subf %66, %7 : vector<1x32xf32>
    %68 = vector.broadcast %67 : vector<1x32xf32> to vector<64x32xf32>
    %69 = arith.mulf %47, %68 : vector<64x32xf32>
    %70 = arith.addf %65, %69 : vector<64x32xf32>
    %71 = arith.truncf %70 : vector<64x32xf32> to vector<64x32xbf16>
    %c0_15 = arith.constant 0 : index
    %c0_16 = arith.constant 0 : index
    %72 = vector.load %arg3[%c0_15, %c0_16] : memref<32x32xbf16, #tpu.memory_space<vmem>>, vector<32x32xbf16>
    %cst_17 = arith.constant dense<0.000000e+00> : vector<64x32xf32>
    %73 = tpu.matmul %55, %72, %cst_17 {dimension_numbers = #tpu.dot_dimension_numbers<[1], [0], [0], [1], [0, 0, 1, 1], [], []>} : vector<64x32xbf16>, vector<32x32xbf16>, vector<64x32xf32> -> vector<64x32xf32>
    %c0_18 = arith.constant 0 : index
    %c0_19 = arith.constant 0 : index
    %74 = vector.load %arg8[%c0_18, %c0_19] : memref<64x32xf32, #tpu.memory_space<vmem>>, vector<64x32xf32>
    tpu.vector_store %arg8[%c0_18, %c0_19], %73 {strides = array<i32>} : memref<64x32xf32, #tpu.memory_space<vmem>>, vector<64x32xf32>,
    %c0_20 = arith.constant 0 : index
    %c0_21 = arith.constant 0 : index
    %75 = vector.load %arg4[%c0_20, %c0_21] : memref<32x32xbf16, #tpu.memory_space<vmem>>, vector<32x32xbf16>
    %cst_22 = arith.constant dense<0.000000e+00> : vector<64x32xf32>
    %76 = tpu.matmul %63, %75, %cst_22 {dimension_numbers = #tpu.dot_dimension_numbers<[1], [0], [0], [1], [0, 0, 1, 1], [], []>} : vector<64x32xbf16>, vector<32x32xbf16>, vector<64x32xf32> -> vector<64x32xf32>
    %c0_23 = arith.constant 0 : index
    %c0_24 = arith.constant 0 : index
    %77 = vector.load %arg9[%c0_23, %c0_24] : memref<64x32xf32, #tpu.memory_space<vmem>>, vector<64x32xf32>
    tpu.vector_store %arg9[%c0_23, %c0_24], %76 {strides = array<i32>} : memref<64x32xf32, #tpu.memory_space<vmem>>, vector<64x32xf32>,
    %cst_25 = arith.constant -1.000000e+30 : f32
    %78 = vector.broadcast %cst_25 : f32 to vector<1x32xf32>
    %cst_26 = arith.constant 0.000000e+00 : f32
    %79 = vector.broadcast %cst_26 : f32 to vector<1x32xf32>
    %c0_i32 = arith.constant 0 : i32
    %c8_i32 = arith.constant 8 : i32
    %80 = arith.addi %c0_i32, %c8_i32 : i32
    %c1_i32_27 = arith.constant 1 : i32
    %81:3 = scf.for %arg13 = %c0_i32 to %80 step %c1_i32_27 iter_args(%arg14 = %78, %arg15 = %79, %arg16 = %79) -> (vector<1x32xf32>, vector<1x32xf32>, vector<1x32xf32>)  : i32 {
      %c7_i32 = arith.constant 7 : i32
      %101 = arith.subi %c7_i32, %arg13 : i32
      %c8_i32_47 = arith.constant 8 : i32
      %102 = arith.muli %101, %c8_i32_47 : i32
      %103 = tpu.assume_multiple %102, 8 : i32
      %104 = arith.index_cast %103 : i32 to index
      %c0_48 = arith.constant 0 : index
      %105 = vector.load %arg8[%104, %c0_48] : memref<64x32xf32, #tpu.memory_space<vmem>>, vector<8x32xf32>
      %106 = arith.index_cast %103 : i32 to index
      %c0_49 = arith.constant 0 : index
      %107 = vector.load %arg9[%106, %c0_49] : memref<64x32xf32, #tpu.memory_space<vmem>>, vector<8x32xf32>
      %108 = vector.extract_strided_slice %105 {offsets = [7, 0], sizes = [1, 32], strides = [1, 1]} : vector<8x32xf32> to vector<1x32xf32>
      %109 = vector.extract_strided_slice %107 {offsets = [7, 0], sizes = [1, 32], strides = [1, 1]} : vector<8x32xf32> to vector<1x32xf32>
      %110 = arith.addf %9, %108 : vector<1x32xf32>
      %111 = arith.maximumf %arg14, %110 : vector<1x32xf32>
      %112 = arith.subf %arg14, %111 : vector<1x32xf32>
      %113 = math.exp %112 : vector<1x32xf32>
      %114 = arith.subf %110, %111 : vector<1x32xf32>
      %115 = math.exp %114 : vector<1x32xf32>
      %116 = arith.mulf %arg15, %113 : vector<1x32xf32>
      %117 = arith.mulf %109, %115 : vector<1x32xf32>
      %118 = arith.addf %116, %117 : vector<1x32xf32>
      %119 = arith.mulf %arg16, %113 : vector<1x32xf32>
      %120 = arith.addf %119, %115 : vector<1x32xf32>
      %121 = arith.subf %arg14, %8 : vector<1x32xf32>
      %122 = arith.maximumf %121, %108 : vector<1x32xf32>
      %123 = arith.subf %arg14, %8 : vector<1x32xf32>
      %124 = arith.subf %123, %122 : vector<1x32xf32>
      %125 = math.exp %124 : vector<1x32xf32>
      %126 = arith.subf %108, %122 : vector<1x32xf32>
      %127 = math.exp %126 : vector<1x32xf32>
      %128 = arith.mulf %arg15, %125 : vector<1x32xf32>
      %129 = arith.mulf %109, %127 : vector<1x32xf32>
      %130 = arith.addf %128, %129 : vector<1x32xf32>
      %131 = arith.mulf %arg16, %125 : vector<1x32xf32>
      %132 = arith.addf %131, %127 : vector<1x32xf32>
      %133 = vector.extract_strided_slice %105 {offsets = [6, 0], sizes = [1, 32], strides = [1, 1]} : vector<8x32xf32> to vector<1x32xf32>
      %134 = vector.extract_strided_slice %107 {offsets = [6, 0], sizes = [1, 32], strides = [1, 1]} : vector<8x32xf32> to vector<1x32xf32>
      %135 = arith.addf %9, %133 : vector<1x32xf32>
      %136 = arith.maximumf %122, %135 : vector<1x32xf32>
      %137 = arith.subf %122, %136 : vector<1x32xf32>
      %138 = math.exp %137 : vector<1x32xf32>
      %139 = arith.subf %135, %136 : vector<1x32xf32>
      %140 = math.exp %139 : vector<1x32xf32>
      %141 = arith.mulf %130, %138 : vector<1x32xf32>
      %142 = arith.mulf %134, %140 : vector<1x32xf32>
      %143 = arith.addf %141, %142 : vector<1x32xf32>
      %144 = arith.mulf %132, %138 : vector<1x32xf32>
      %145 = arith.addf %144, %140 : vector<1x32xf32>
      %146 = arith.subf %122, %8 : vector<1x32xf32>
      %147 = arith.maximumf %146, %133 : vector<1x32xf32>
      %148 = arith.subf %122, %8 : vector<1x32xf32>
      %149 = arith.subf %148, %147 : vector<1x32xf32>
      %150 = math.exp %149 : vector<1x32xf32>
      %151 = arith.subf %133, %147 : vector<1x32xf32>
      %152 = math.exp %151 : vector<1x32xf32>
      %153 = arith.mulf %130, %150 : vector<1x32xf32>
      %154 = arith.mulf %134, %152 : vector<1x32xf32>
      %155 = arith.addf %153, %154 : vector<1x32xf32>
      %156 = arith.mulf %132, %150 : vector<1x32xf32>
      %157 = arith.addf %156, %152 : vector<1x32xf32>
      %158 = vector.extract_strided_slice %105 {offsets = [5, 0], sizes = [1, 32], strides = [1, 1]} : vector<8x32xf32> to vector<1x32xf32>
      %159 = vector.extract_strided_slice %107 {offsets = [5, 0], sizes = [1, 32], strides = [1, 1]} : vector<8x32xf32> to vector<1x32xf32>
      %160 = arith.addf %9, %158 : vector<1x32xf32>
      %161 = arith.maximumf %147, %160 : vector<1x32xf32>
      %162 = arith.subf %147, %161 : vector<1x32xf32>
      %163 = math.exp %162 : vector<1x32xf32>
      %164 = arith.subf %160, %161 : vector<1x32xf32>
      %165 = math.exp %164 : vector<1x32xf32>
      %166 = arith.mulf %155, %163 : vector<1x32xf32>
      %167 = arith.mulf %159, %165 : vector<1x32xf32>
      %168 = arith.addf %166, %167 : vector<1x32xf32>
      %169 = arith.mulf %157, %163 : vector<1x32xf32>
      %170 = arith.addf %169, %165 : vector<1x32xf32>
      %171 = arith.subf %147, %8 : vector<1x32xf32>
      %172 = arith.maximumf %171, %158 : vector<1x32xf32>
      %173 = arith.subf %147, %8 : vector<1x32xf32>
      %174 = arith.subf %173, %172 : vector<1x32xf32>
      %175 = math.exp %174 : vector<1x32xf32>
      %176 = arith.subf %158, %172 : vector<1x32xf32>
      %177 = math.exp %176 : vector<1x32xf32>
      %178 = arith.mulf %155, %175 : vector<1x32xf32>
      %179 = arith.mulf %159, %177 : vector<1x32xf32>
      %180 = arith.addf %178, %179 : vector<1x32xf32>
      %181 = arith.mulf %157, %175 : vector<1x32xf32>
      %182 = arith.addf %181, %177 : vector<1x32xf32>
      %183 = vector.extract_strided_slice %105 {offsets = [4, 0], sizes = [1, 32], strides = [1, 1]} : vector<8x32xf32> to vector<1x32xf32>
      %184 = vector.extract_strided_slice %107 {offsets = [4, 0], sizes = [1, 32], strides = [1, 1]} : vector<8x32xf32> to vector<1x32xf32>
      %185 = arith.addf %9, %183 : vector<1x32xf32>
      %186 = arith.maximumf %172, %185 : vector<1x32xf32>
      %187 = arith.subf %172, %186 : vector<1x32xf32>
      %188 = math.exp %187 : vector<1x32xf32>
      %189 = arith.subf %185, %186 : vector<1x32xf32>
      %190 = math.exp %189 : vector<1x32xf32>
      %191 = arith.mulf %180, %188 : vector<1x32xf32>
      %192 = arith.mulf %184, %190 : vector<1x32xf32>
      %193 = arith.addf %191, %192 : vector<1x32xf32>
      %194 = arith.mulf %182, %188 : vector<1x32xf32>
      %195 = arith.addf %194, %190 : vector<1x32xf32>
      %196 = arith.subf %172, %8 : vector<1x32xf32>
      %197 = arith.maximumf %196, %183 : vector<1x32xf32>
      %198 = arith.subf %172, %8 : vector<1x32xf32>
      %199 = arith.subf %198, %197 : vector<1x32xf32>
      %200 = math.exp %199 : vector<1x32xf32>
      %201 = arith.subf %183, %197 : vector<1x32xf32>
      %202 = math.exp %201 : vector<1x32xf32>
      %203 = arith.mulf %180, %200 : vector<1x32xf32>
      %204 = arith.mulf %184, %202 : vector<1x32xf32>
      %205 = arith.addf %203, %204 : vector<1x32xf32>
      %206 = arith.mulf %182, %200 : vector<1x32xf32>
      %207 = arith.addf %206, %202 : vector<1x32xf32>
      %208 = vector.extract_strided_slice %105 {offsets = [3, 0], sizes = [1, 32], strides = [1, 1]} : vector<8x32xf32> to vector<1x32xf32>
      %209 = vector.extract_strided_slice %107 {offsets = [3, 0], sizes = [1, 32], strides = [1, 1]} : vector<8x32xf32> to vector<1x32xf32>
      %210 = arith.addf %9, %208 : vector<1x32xf32>
      %211 = arith.maximumf %197, %210 : vector<1x32xf32>
      %212 = arith.subf %197, %211 : vector<1x32xf32>
      %213 = math.exp %212 : vector<1x32xf32>
      %214 = arith.subf %210, %211 : vector<1x32xf32>
      %215 = math.exp %214 : vector<1x32xf32>
      %216 = arith.mulf %205, %213 : vector<1x32xf32>
      %217 = arith.mulf %209, %215 : vector<1x32xf32>
      %218 = arith.addf %216, %217 : vector<1x32xf32>
      %219 = arith.mulf %207, %213 : vector<1x32xf32>
      %220 = arith.addf %219, %215 : vector<1x32xf32>
      %221 = arith.subf %197, %8 : vector<1x32xf32>
      %222 = arith.maximumf %221, %208 : vector<1x32xf32>
      %223 = arith.subf %197, %8 : vector<1x32xf32>
      %224 = arith.subf %223, %222 : vector<1x32xf32>
      %225 = math.exp %224 : vector<1x32xf32>
      %226 = arith.subf %208, %222 : vector<1x32xf32>
      %227 = math.exp %226 : vector<1x32xf32>
      %228 = arith.mulf %205, %225 : vector<1x32xf32>
      %229 = arith.mulf %209, %227 : vector<1x32xf32>
      %230 = arith.addf %228, %229 : vector<1x32xf32>
      %231 = arith.mulf %207, %225 : vector<1x32xf32>
      %232 = arith.addf %231, %227 : vector<1x32xf32>
      %233 = vector.extract_strided_slice %105 {offsets = [2, 0], sizes = [1, 32], strides = [1, 1]} : vector<8x32xf32> to vector<1x32xf32>
      %234 = vector.extract_strided_slice %107 {offsets = [2, 0], sizes = [1, 32], strides = [1, 1]} : vector<8x32xf32> to vector<1x32xf32>
      %235 = arith.addf %9, %233 : vector<1x32xf32>
      %236 = arith.maximumf %222, %235 : vector<1x32xf32>
      %237 = arith.subf %222, %236 : vector<1x32xf32>
      %238 = math.exp %237 : vector<1x32xf32>
      %239 = arith.subf %235, %236 : vector<1x32xf32>
      %240 = math.exp %239 : vector<1x32xf32>
      %241 = arith.mulf %230, %238 : vector<1x32xf32>
      %242 = arith.mulf %234, %240 : vector<1x32xf32>
      %243 = arith.addf %241, %242 : vector<1x32xf32>
      %244 = arith.mulf %232, %238 : vector<1x32xf32>
      %245 = arith.addf %244, %240 : vector<1x32xf32>
      %246 = arith.subf %222, %8 : vector<1x32xf32>
      %247 = arith.maximumf %246, %233 : vector<1x32xf32>
      %248 = arith.subf %222, %8 : vector<1x32xf32>
      %249 = arith.subf %248, %247 : vector<1x32xf32>
      %250 = math.exp %249 : vector<1x32xf32>
      %251 = arith.subf %233, %247 : vector<1x32xf32>
      %252 = math.exp %251 : vector<1x32xf32>
      %253 = arith.mulf %230, %250 : vector<1x32xf32>
      %254 = arith.mulf %234, %252 : vector<1x32xf32>
      %255 = arith.addf %253, %254 : vector<1x32xf32>
      %256 = arith.mulf %232, %250 : vector<1x32xf32>
      %257 = arith.addf %256, %252 : vector<1x32xf32>
      %258 = vector.extract_strided_slice %105 {offsets = [1, 0], sizes = [1, 32], strides = [1, 1]} : vector<8x32xf32> to vector<1x32xf32>
      %259 = vector.extract_strided_slice %107 {offsets = [1, 0], sizes = [1, 32], strides = [1, 1]} : vector<8x32xf32> to vector<1x32xf32>
      %260 = arith.addf %9, %258 : vector<1x32xf32>
      %261 = arith.maximumf %247, %260 : vector<1x32xf32>
      %262 = arith.subf %247, %261 : vector<1x32xf32>
      %263 = math.exp %262 : vector<1x32xf32>
      %264 = arith.subf %260, %261 : vector<1x32xf32>
      %265 = math.exp %264 : vector<1x32xf32>
      %266 = arith.mulf %255, %263 : vector<1x32xf32>
      %267 = arith.mulf %259, %265 : vector<1x32xf32>
      %268 = arith.addf %266, %267 : vector<1x32xf32>
      %269 = arith.mulf %257, %263 : vector<1x32xf32>
      %270 = arith.addf %269, %265 : vector<1x32xf32>
      %271 = arith.subf %247, %8 : vector<1x32xf32>
      %272 = arith.maximumf %271, %258 : vector<1x32xf32>
      %273 = arith.subf %247, %8 : vector<1x32xf32>
      %274 = arith.subf %273, %272 : vector<1x32xf32>
      %275 = math.exp %274 : vector<1x32xf32>
      %276 = arith.subf %258, %272 : vector<1x32xf32>
      %277 = math.exp %276 : vector<1x32xf32>
      %278 = arith.mulf %255, %275 : vector<1x32xf32>
      %279 = arith.mulf %259, %277 : vector<1x32xf32>
      %280 = arith.addf %278, %279 : vector<1x32xf32>
      %281 = arith.mulf %257, %275 : vector<1x32xf32>
      %282 = arith.addf %281, %277 : vector<1x32xf32>
      %283 = vector.extract_strided_slice %105 {offsets = [0, 0], sizes = [1, 32], strides = [1, 1]} : vector<8x32xf32> to vector<1x32xf32>
      %284 = vector.extract_strided_slice %107 {offsets = [0, 0], sizes = [1, 32], strides = [1, 1]} : vector<8x32xf32> to vector<1x32xf32>
      %285 = arith.addf %9, %283 : vector<1x32xf32>
      %286 = arith.maximumf %272, %285 : vector<1x32xf32>
      %287 = arith.subf %272, %286 : vector<1x32xf32>
      %288 = math.exp %287 : vector<1x32xf32>
      %289 = arith.subf %285, %286 : vector<1x32xf32>
      %290 = math.exp %289 : vector<1x32xf32>
      %291 = arith.mulf %280, %288 : vector<1x32xf32>
      %292 = arith.mulf %284, %290 : vector<1x32xf32>
      %293 = arith.addf %291, %292 : vector<1x32xf32>
      %294 = arith.mulf %282, %288 : vector<1x32xf32>
      %295 = arith.addf %294, %290 : vector<1x32xf32>
      %296 = arith.subf %272, %8 : vector<1x32xf32>
      %297 = arith.maximumf %296, %283 : vector<1x32xf32>
      %298 = arith.subf %272, %8 : vector<1x32xf32>
      %299 = arith.subf %298, %297 : vector<1x32xf32>
      %300 = math.exp %299 : vector<1x32xf32>
      %301 = arith.subf %283, %297 : vector<1x32xf32>
      %302 = math.exp %301 : vector<1x32xf32>
      %303 = arith.mulf %280, %300 : vector<1x32xf32>
      %304 = arith.mulf %284, %302 : vector<1x32xf32>
      %305 = arith.addf %303, %304 : vector<1x32xf32>
      %306 = arith.mulf %282, %300 : vector<1x32xf32>
      %307 = arith.addf %306, %302 : vector<1x32xf32>
      %308 = tpu.concatenate %286, %261, %236, %211, %186, %161, %136, %111 in 0 : vector<1x32xf32>, vector<1x32xf32>, vector<1x32xf32>, vector<1x32xf32>, vector<1x32xf32>, vector<1x32xf32>, vector<1x32xf32>, vector<1x32xf32> -> vector<8x32xf32>
      %309 = arith.index_cast %103 : i32 to index
      %c0_50 = arith.constant 0 : index
      %310 = vector.load %arg10[%309, %c0_50] : memref<64x32xf32, #tpu.memory_space<vmem>>, vector<8x32xf32>
      tpu.vector_store %arg10[%309, %c0_50], %308 {strides = array<i32>} : memref<64x32xf32, #tpu.memory_space<vmem>>, vector<8x32xf32>,
      %311 = tpu.concatenate %293, %268, %243, %218, %193, %168, %143, %118 in 0 : vector<1x32xf32>, vector<1x32xf32>, vector<1x32xf32>, vector<1x32xf32>, vector<1x32xf32>, vector<1x32xf32>, vector<1x32xf32>, vector<1x32xf32> -> vector<8x32xf32>
      %312 = arith.index_cast %103 : i32 to index
      %c0_51 = arith.constant 0 : index
      %313 = vector.load %arg11[%312, %c0_51] : memref<64x32xf32, #tpu.memory_space<vmem>>, vector<8x32xf32>
      tpu.vector_store %arg11[%312, %c0_51], %311 {strides = array<i32>} : memref<64x32xf32, #tpu.memory_space<vmem>>, vector<8x32xf32>,
      %314 = tpu.concatenate %295, %270, %245, %220, %195, %170, %145, %120 in 0 : vector<1x32xf32>, vector<1x32xf32>, vector<1x32xf32>, vector<1x32xf32>, vector<1x32xf32>, vector<1x32xf32>, vector<1x32xf32>, vector<1x32xf32> -> vector<8x32xf32>
      %315 = arith.index_cast %103 : i32 to index
      %c0_52 = arith.constant 0 : index
      %316 = vector.load %arg12[%315, %c0_52] : memref<64x32xf32, #tpu.memory_space<vmem>>, vector<8x32xf32>
      tpu.vector_store %arg12[%315, %c0_52], %314 {strides = array<i32>} : memref<64x32xf32, #tpu.memory_space<vmem>>, vector<8x32xf32>,
      scf.yield %297, %305, %307 : vector<1x32xf32>, vector<1x32xf32>, vector<1x32xf32>
    }
    %c8_i32_28 = arith.constant 8 : i32
    %c0_i32_29 = arith.constant 0 : i32
    %c8_i32_30 = arith.constant 8 : i32
    %82 = arith.addi %c0_i32_29, %c8_i32_30 : i32
    %c1_i32_31 = arith.constant 1 : i32
    %83:3 = scf.for %arg13 = %c0_i32_29 to %82 step %c1_i32_31 iter_args(%arg14 = %78, %arg15 = %79, %arg16 = %79) -> (vector<1x32xf32>, vector<1x32xf32>, vector<1x32xf32>)  : i32 {
      %c8_i32_47 = arith.constant 8 : i32
      %101 = arith.muli %arg13, %c8_i32_47 : i32
      %102 = tpu.assume_multiple %101, 8 : i32
      %103 = arith.index_cast %102 : i32 to index
      %c0_48 = arith.constant 0 : index
      %104 = vector.load %arg8[%103, %c0_48] : memref<64x32xf32, #tpu.memory_space<vmem>>, vector<8x32xf32>
      %105 = arith.index_cast %102 : i32 to index
      %c0_49 = arith.constant 0 : index
      %106 = vector.load %arg9[%105, %c0_49] : memref<64x32xf32, #tpu.memory_space<vmem>>, vector<8x32xf32>
      %107 = arith.index_cast %102 : i32 to index
      %c0_50 = arith.constant 0 : index
      %108 = vector.load %arg10[%107, %c0_50] : memref<64x32xf32, #tpu.memory_space<vmem>>, vector<8x32xf32>
      %109 = arith.index_cast %102 : i32 to index
      %c0_51 = arith.constant 0 : index
      %110 = vector.load %arg11[%109, %c0_51] : memref<64x32xf32, #tpu.memory_space<vmem>>, vector<8x32xf32>
      %111 = arith.index_cast %102 : i32 to index
      %c0_52 = arith.constant 0 : index
      %112 = vector.load %arg12[%111, %c0_52] : memref<64x32xf32, #tpu.memory_space<vmem>>, vector<8x32xf32>
      %113 = vector.extract_strided_slice %104 {offsets = [0, 0], sizes = [1, 32], strides = [1, 1]} : vector<8x32xf32> to vector<1x32xf32>
      %114 = vector.extract_strided_slice %106 {offsets = [0, 0], sizes = [1, 32], strides = [1, 1]} : vector<8x32xf32> to vector<1x32xf32>
      %115 = vector.extract_strided_slice %108 {offsets = [0, 0], sizes = [1, 32], strides = [1, 1]} : vector<8x32xf32> to vector<1x32xf32>
      %116 = vector.extract_strided_slice %110 {offsets = [0, 0], sizes = [1, 32], strides = [1, 1]} : vector<8x32xf32> to vector<1x32xf32>
      %117 = vector.extract_strided_slice %112 {offsets = [0, 0], sizes = [1, 32], strides = [1, 1]} : vector<8x32xf32> to vector<1x32xf32>
      %118 = arith.maximumf %arg14, %115 : vector<1x32xf32>
      %119 = arith.subf %arg14, %118 : vector<1x32xf32>
      %120 = math.exp %119 : vector<1x32xf32>
      %121 = arith.subf %115, %118 : vector<1x32xf32>
      %122 = math.exp %121 : vector<1x32xf32>
      %123 = arith.mulf %arg15, %120 : vector<1x32xf32>
      %124 = arith.mulf %116, %122 : vector<1x32xf32>
      %125 = arith.addf %123, %124 : vector<1x32xf32>
      %126 = arith.mulf %arg16, %120 : vector<1x32xf32>
      %127 = arith.mulf %117, %122 : vector<1x32xf32>
      %128 = arith.addf %126, %127 : vector<1x32xf32>
      %129 = arith.subf %arg14, %8 : vector<1x32xf32>
      %130 = arith.maximumf %129, %113 : vector<1x32xf32>
      %131 = arith.subf %arg14, %8 : vector<1x32xf32>
      %132 = arith.subf %131, %130 : vector<1x32xf32>
      %133 = math.exp %132 : vector<1x32xf32>
      %134 = arith.subf %113, %130 : vector<1x32xf32>
      %135 = math.exp %134 : vector<1x32xf32>
      %136 = arith.mulf %arg15, %133 : vector<1x32xf32>
      %137 = arith.mulf %114, %135 : vector<1x32xf32>
      %138 = arith.addf %136, %137 : vector<1x32xf32>
      %139 = arith.mulf %arg16, %133 : vector<1x32xf32>
      %140 = arith.addf %139, %135 : vector<1x32xf32>
      %141 = vector.extract_strided_slice %104 {offsets = [1, 0], sizes = [1, 32], strides = [1, 1]} : vector<8x32xf32> to vector<1x32xf32>
      %142 = vector.extract_strided_slice %106 {offsets = [1, 0], sizes = [1, 32], strides = [1, 1]} : vector<8x32xf32> to vector<1x32xf32>
      %143 = vector.extract_strided_slice %108 {offsets = [1, 0], sizes = [1, 32], strides = [1, 1]} : vector<8x32xf32> to vector<1x32xf32>
      %144 = vector.extract_strided_slice %110 {offsets = [1, 0], sizes = [1, 32], strides = [1, 1]} : vector<8x32xf32> to vector<1x32xf32>
      %145 = vector.extract_strided_slice %112 {offsets = [1, 0], sizes = [1, 32], strides = [1, 1]} : vector<8x32xf32> to vector<1x32xf32>
      %146 = arith.maximumf %130, %143 : vector<1x32xf32>
      %147 = arith.subf %130, %146 : vector<1x32xf32>
      %148 = math.exp %147 : vector<1x32xf32>
      %149 = arith.subf %143, %146 : vector<1x32xf32>
      %150 = math.exp %149 : vector<1x32xf32>
      %151 = arith.mulf %138, %148 : vector<1x32xf32>
      %152 = arith.mulf %144, %150 : vector<1x32xf32>
      %153 = arith.addf %151, %152 : vector<1x32xf32>
      %154 = arith.mulf %140, %148 : vector<1x32xf32>
      %155 = arith.mulf %145, %150 : vector<1x32xf32>
      %156 = arith.addf %154, %155 : vector<1x32xf32>
      %157 = arith.subf %130, %8 : vector<1x32xf32>
      %158 = arith.maximumf %157, %141 : vector<1x32xf32>
      %159 = arith.subf %130, %8 : vector<1x32xf32>
      %160 = arith.subf %159, %158 : vector<1x32xf32>
      %161 = math.exp %160 : vector<1x32xf32>
      %162 = arith.subf %141, %158 : vector<1x32xf32>
      %163 = math.exp %162 : vector<1x32xf32>
      %164 = arith.mulf %138, %161 : vector<1x32xf32>
      %165 = arith.mulf %142, %163 : vector<1x32xf32>
      %166 = arith.addf %164, %165 : vector<1x32xf32>
      %167 = arith.mulf %140, %161 : vector<1x32xf32>
      %168 = arith.addf %167, %163 : vector<1x32xf32>
      %169 = vector.extract_strided_slice %104 {offsets = [2, 0], sizes = [1, 32], strides = [1, 1]} : vector<8x32xf32> to vector<1x32xf32>
      %170 = vector.extract_strided_slice %106 {offsets = [2, 0], sizes = [1, 32], strides = [1, 1]} : vector<8x32xf32> to vector<1x32xf32>
      %171 = vector.extract_strided_slice %108 {offsets = [2, 0], sizes = [1, 32], strides = [1, 1]} : vector<8x32xf32> to vector<1x32xf32>
      %172 = vector.extract_strided_slice %110 {offsets = [2, 0], sizes = [1, 32], strides = [1, 1]} : vector<8x32xf32> to vector<1x32xf32>
      %173 = vector.extract_strided_slice %112 {offsets = [2, 0], sizes = [1, 32], strides = [1, 1]} : vector<8x32xf32> to vector<1x32xf32>
      %174 = arith.maximumf %158, %171 : vector<1x32xf32>
      %175 = arith.subf %158, %174 : vector<1x32xf32>
      %176 = math.exp %175 : vector<1x32xf32>
      %177 = arith.subf %171, %174 : vector<1x32xf32>
      %178 = math.exp %177 : vector<1x32xf32>
      %179 = arith.mulf %166, %176 : vector<1x32xf32>
      %180 = arith.mulf %172, %178 : vector<1x32xf32>
      %181 = arith.addf %179, %180 : vector<1x32xf32>
      %182 = arith.mulf %168, %176 : vector<1x32xf32>
      %183 = arith.mulf %173, %178 : vector<1x32xf32>
      %184 = arith.addf %182, %183 : vector<1x32xf32>
      %185 = arith.subf %158, %8 : vector<1x32xf32>
      %186 = arith.maximumf %185, %169 : vector<1x32xf32>
      %187 = arith.subf %158, %8 : vector<1x32xf32>
      %188 = arith.subf %187, %186 : vector<1x32xf32>
      %189 = math.exp %188 : vector<1x32xf32>
      %190 = arith.subf %169, %186 : vector<1x32xf32>
      %191 = math.exp %190 : vector<1x32xf32>
      %192 = arith.mulf %166, %189 : vector<1x32xf32>
      %193 = arith.mulf %170, %191 : vector<1x32xf32>
      %194 = arith.addf %192, %193 : vector<1x32xf32>
      %195 = arith.mulf %168, %189 : vector<1x32xf32>
      %196 = arith.addf %195, %191 : vector<1x32xf32>
      %197 = vector.extract_strided_slice %104 {offsets = [3, 0], sizes = [1, 32], strides = [1, 1]} : vector<8x32xf32> to vector<1x32xf32>
      %198 = vector.extract_strided_slice %106 {offsets = [3, 0], sizes = [1, 32], strides = [1, 1]} : vector<8x32xf32> to vector<1x32xf32>
      %199 = vector.extract_strided_slice %108 {offsets = [3, 0], sizes = [1, 32], strides = [1, 1]} : vector<8x32xf32> to vector<1x32xf32>
      %200 = vector.extract_strided_slice %110 {offsets = [3, 0], sizes = [1, 32], strides = [1, 1]} : vector<8x32xf32> to vector<1x32xf32>
      %201 = vector.extract_strided_slice %112 {offsets = [3, 0], sizes = [1, 32], strides = [1, 1]} : vector<8x32xf32> to vector<1x32xf32>
      %202 = arith.maximumf %186, %199 : vector<1x32xf32>
      %203 = arith.subf %186, %202 : vector<1x32xf32>
      %204 = math.exp %203 : vector<1x32xf32>
      %205 = arith.subf %199, %202 : vector<1x32xf32>
      %206 = math.exp %205 : vector<1x32xf32>
      %207 = arith.mulf %194, %204 : vector<1x32xf32>
      %208 = arith.mulf %200, %206 : vector<1x32xf32>
      %209 = arith.addf %207, %208 : vector<1x32xf32>
      %210 = arith.mulf %196, %204 : vector<1x32xf32>
      %211 = arith.mulf %201, %206 : vector<1x32xf32>
      %212 = arith.addf %210, %211 : vector<1x32xf32>
      %213 = arith.subf %186, %8 : vector<1x32xf32>
      %214 = arith.maximumf %213, %197 : vector<1x32xf32>
      %215 = arith.subf %186, %8 : vector<1x32xf32>
      %216 = arith.subf %215, %214 : vector<1x32xf32>
      %217 = math.exp %216 : vector<1x32xf32>
      %218 = arith.subf %197, %214 : vector<1x32xf32>
      %219 = math.exp %218 : vector<1x32xf32>
      %220 = arith.mulf %194, %217 : vector<1x32xf32>
      %221 = arith.mulf %198, %219 : vector<1x32xf32>
      %222 = arith.addf %220, %221 : vector<1x32xf32>
      %223 = arith.mulf %196, %217 : vector<1x32xf32>
      %224 = arith.addf %223, %219 : vector<1x32xf32>
      %225 = vector.extract_strided_slice %104 {offsets = [4, 0], sizes = [1, 32], strides = [1, 1]} : vector<8x32xf32> to vector<1x32xf32>
      %226 = vector.extract_strided_slice %106 {offsets = [4, 0], sizes = [1, 32], strides = [1, 1]} : vector<8x32xf32> to vector<1x32xf32>
      %227 = vector.extract_strided_slice %108 {offsets = [4, 0], sizes = [1, 32], strides = [1, 1]} : vector<8x32xf32> to vector<1x32xf32>
      %228 = vector.extract_strided_slice %110 {offsets = [4, 0], sizes = [1, 32], strides = [1, 1]} : vector<8x32xf32> to vector<1x32xf32>
      %229 = vector.extract_strided_slice %112 {offsets = [4, 0], sizes = [1, 32], strides = [1, 1]} : vector<8x32xf32> to vector<1x32xf32>
      %230 = arith.maximumf %214, %227 : vector<1x32xf32>
      %231 = arith.subf %214, %230 : vector<1x32xf32>
      %232 = math.exp %231 : vector<1x32xf32>
      %233 = arith.subf %227, %230 : vector<1x32xf32>
      %234 = math.exp %233 : vector<1x32xf32>
      %235 = arith.mulf %222, %232 : vector<1x32xf32>
      %236 = arith.mulf %228, %234 : vector<1x32xf32>
      %237 = arith.addf %235, %236 : vector<1x32xf32>
      %238 = arith.mulf %224, %232 : vector<1x32xf32>
      %239 = arith.mulf %229, %234 : vector<1x32xf32>
      %240 = arith.addf %238, %239 : vector<1x32xf32>
      %241 = arith.subf %214, %8 : vector<1x32xf32>
      %242 = arith.maximumf %241, %225 : vector<1x32xf32>
      %243 = arith.subf %214, %8 : vector<1x32xf32>
      %244 = arith.subf %243, %242 : vector<1x32xf32>
      %245 = math.exp %244 : vector<1x32xf32>
      %246 = arith.subf %225, %242 : vector<1x32xf32>
      %247 = math.exp %246 : vector<1x32xf32>
      %248 = arith.mulf %222, %245 : vector<1x32xf32>
      %249 = arith.mulf %226, %247 : vector<1x32xf32>
      %250 = arith.addf %248, %249 : vector<1x32xf32>
      %251 = arith.mulf %224, %245 : vector<1x32xf32>
      %252 = arith.addf %251, %247 : vector<1x32xf32>
      %253 = vector.extract_strided_slice %104 {offsets = [5, 0], sizes = [1, 32], strides = [1, 1]} : vector<8x32xf32> to vector<1x32xf32>
      %254 = vector.extract_strided_slice %106 {offsets = [5, 0], sizes = [1, 32], strides = [1, 1]} : vector<8x32xf32> to vector<1x32xf32>
      %255 = vector.extract_strided_slice %108 {offsets = [5, 0], sizes = [1, 32], strides = [1, 1]} : vector<8x32xf32> to vector<1x32xf32>
      %256 = vector.extract_strided_slice %110 {offsets = [5, 0], sizes = [1, 32], strides = [1, 1]} : vector<8x32xf32> to vector<1x32xf32>
      %257 = vector.extract_strided_slice %112 {offsets = [5, 0], sizes = [1, 32], strides = [1, 1]} : vector<8x32xf32> to vector<1x32xf32>
      %258 = arith.maximumf %242, %255 : vector<1x32xf32>
      %259 = arith.subf %242, %258 : vector<1x32xf32>
      %260 = math.exp %259 : vector<1x32xf32>
      %261 = arith.subf %255, %258 : vector<1x32xf32>
      %262 = math.exp %261 : vector<1x32xf32>
      %263 = arith.mulf %250, %260 : vector<1x32xf32>
      %264 = arith.mulf %256, %262 : vector<1x32xf32>
      %265 = arith.addf %263, %264 : vector<1x32xf32>
      %266 = arith.mulf %252, %260 : vector<1x32xf32>
      %267 = arith.mulf %257, %262 : vector<1x32xf32>
      %268 = arith.addf %266, %267 : vector<1x32xf32>
      %269 = arith.subf %242, %8 : vector<1x32xf32>
      %270 = arith.maximumf %269, %253 : vector<1x32xf32>
      %271 = arith.subf %242, %8 : vector<1x32xf32>
      %272 = arith.subf %271, %270 : vector<1x32xf32>
      %273 = math.exp %272 : vector<1x32xf32>
      %274 = arith.subf %253, %270 : vector<1x32xf32>
      %275 = math.exp %274 : vector<1x32xf32>
      %276 = arith.mulf %250, %273 : vector<1x32xf32>
      %277 = arith.mulf %254, %275 : vector<1x32xf32>
      %278 = arith.addf %276, %277 : vector<1x32xf32>
      %279 = arith.mulf %252, %273 : vector<1x32xf32>
      %280 = arith.addf %279, %275 : vector<1x32xf32>
      %281 = vector.extract_strided_slice %104 {offsets = [6, 0], sizes = [1, 32], strides = [1, 1]} : vector<8x32xf32> to vector<1x32xf32>
      %282 = vector.extract_strided_slice %106 {offsets = [6, 0], sizes = [1, 32], strides = [1, 1]} : vector<8x32xf32> to vector<1x32xf32>
      %283 = vector.extract_strided_slice %108 {offsets = [6, 0], sizes = [1, 32], strides = [1, 1]} : vector<8x32xf32> to vector<1x32xf32>
      %284 = vector.extract_strided_slice %110 {offsets = [6, 0], sizes = [1, 32], strides = [1, 1]} : vector<8x32xf32> to vector<1x32xf32>
      %285 = vector.extract_strided_slice %112 {offsets = [6, 0], sizes = [1, 32], strides = [1, 1]} : vector<8x32xf32> to vector<1x32xf32>
      %286 = arith.maximumf %270, %283 : vector<1x32xf32>
      %287 = arith.subf %270, %286 : vector<1x32xf32>
      %288 = math.exp %287 : vector<1x32xf32>
      %289 = arith.subf %283, %286 : vector<1x32xf32>
      %290 = math.exp %289 : vector<1x32xf32>
      %291 = arith.mulf %278, %288 : vector<1x32xf32>
      %292 = arith.mulf %284, %290 : vector<1x32xf32>
      %293 = arith.addf %291, %292 : vector<1x32xf32>
      %294 = arith.mulf %280, %288 : vector<1x32xf32>
      %295 = arith.mulf %285, %290 : vector<1x32xf32>
      %296 = arith.addf %294, %295 : vector<1x32xf32>
      %297 = arith.subf %270, %8 : vector<1x32xf32>
      %298 = arith.maximumf %297, %281 : vector<1x32xf32>
      %299 = arith.subf %270, %8 : vector<1x32xf32>
      %300 = arith.subf %299, %298 : vector<1x32xf32>
      %301 = math.exp %300 : vector<1x32xf32>
      %302 = arith.subf %281, %298 : vector<1x32xf32>
      %303 = math.exp %302 : vector<1x32xf32>
      %304 = arith.mulf %278, %301 : vector<1x32xf32>
      %305 = arith.mulf %282, %303 : vector<1x32xf32>
      %306 = arith.addf %304, %305 : vector<1x32xf32>
      %307 = arith.mulf %280, %301 : vector<1x32xf32>
      %308 = arith.addf %307, %303 : vector<1x32xf32>
      %309 = vector.extract_strided_slice %104 {offsets = [7, 0], sizes = [1, 32], strides = [1, 1]} : vector<8x32xf32> to vector<1x32xf32>
      %310 = vector.extract_strided_slice %106 {offsets = [7, 0], sizes = [1, 32], strides = [1, 1]} : vector<8x32xf32> to vector<1x32xf32>
      %311 = vector.extract_strided_slice %108 {offsets = [7, 0], sizes = [1, 32], strides = [1, 1]} : vector<8x32xf32> to vector<1x32xf32>
      %312 = vector.extract_strided_slice %110 {offsets = [7, 0], sizes = [1, 32], strides = [1, 1]} : vector<8x32xf32> to vector<1x32xf32>
      %313 = vector.extract_strided_slice %112 {offsets = [7, 0], sizes = [1, 32], strides = [1, 1]} : vector<8x32xf32> to vector<1x32xf32>
      %314 = arith.maximumf %298, %311 : vector<1x32xf32>
      %315 = arith.subf %298, %314 : vector<1x32xf32>
      %316 = math.exp %315 : vector<1x32xf32>
      %317 = arith.subf %311, %314 : vector<1x32xf32>
      %318 = math.exp %317 : vector<1x32xf32>
      %319 = arith.mulf %306, %316 : vector<1x32xf32>
      %320 = arith.mulf %312, %318 : vector<1x32xf32>
      %321 = arith.addf %319, %320 : vector<1x32xf32>
      %322 = arith.mulf %308, %316 : vector<1x32xf32>
      %323 = arith.mulf %313, %318 : vector<1x32xf32>
      %324 = arith.addf %322, %323 : vector<1x32xf32>
      %325 = arith.subf %298, %8 : vector<1x32xf32>
      %326 = arith.maximumf %325, %309 : vector<1x32xf32>
      %327 = arith.subf %298, %8 : vector<1x32xf32>
      %328 = arith.subf %327, %326 : vector<1x32xf32>
      %329 = math.exp %328 : vector<1x32xf32>
      %330 = arith.subf %309, %326 : vector<1x32xf32>
      %331 = math.exp %330 : vector<1x32xf32>
      %332 = arith.mulf %306, %329 : vector<1x32xf32>
      %333 = arith.mulf %310, %331 : vector<1x32xf32>
      %334 = arith.addf %332, %333 : vector<1x32xf32>
      %335 = arith.mulf %308, %329 : vector<1x32xf32>
      %336 = arith.addf %335, %331 : vector<1x32xf32>
      %337 = tpu.concatenate %125, %153, %181, %209, %237, %265, %293, %321 in 0 : vector<1x32xf32>, vector<1x32xf32>, vector<1x32xf32>, vector<1x32xf32>, vector<1x32xf32>, vector<1x32xf32>, vector<1x32xf32>, vector<1x32xf32> -> vector<8x32xf32>
      %338 = arith.index_cast %102 : i32 to index
      %c0_53 = arith.constant 0 : index
      %339 = vector.load %arg11[%338, %c0_53] : memref<64x32xf32, #tpu.memory_space<vmem>>, vector<8x32xf32>
      tpu.vector_store %arg11[%338, %c0_53], %337 {strides = array<i32>} : memref<64x32xf32, #tpu.memory_space<vmem>>, vector<8x32xf32>,
      %340 = tpu.concatenate %128, %156, %184, %212, %240, %268, %296, %324 in 0 : vector<1x32xf32>, vector<1x32xf32>, vector<1x32xf32>, vector<1x32xf32>, vector<1x32xf32>, vector<1x32xf32>, vector<1x32xf32>, vector<1x32xf32> -> vector<8x32xf32>
      %341 = arith.index_cast %102 : i32 to index
      %c0_54 = arith.constant 0 : index
      %342 = vector.load %arg12[%341, %c0_54] : memref<64x32xf32, #tpu.memory_space<vmem>>, vector<8x32xf32>
      tpu.vector_store %arg12[%341, %c0_54], %340 {strides = array<i32>} : memref<64x32xf32, #tpu.memory_space<vmem>>, vector<8x32xf32>,
      scf.yield %326, %334, %336 : vector<1x32xf32>, vector<1x32xf32>, vector<1x32xf32>
    }
    %c8_i32_32 = arith.constant 8 : i32
    %c0_33 = arith.constant 0 : index
    %c0_34 = arith.constant 0 : index
    %84 = vector.load %arg11[%c0_33, %c0_34] : memref<64x32xf32, #tpu.memory_space<vmem>>, vector<64x32xf32>
    %c0_35 = arith.constant 0 : index
    %c0_36 = arith.constant 0 : index
    %85 = vector.load %arg12[%c0_35, %c0_36] : memref<64x32xf32, #tpu.memory_space<vmem>>, vector<64x32xf32>
    %86 = arith.divf %84, %85 : vector<64x32xf32>
    %c0_37 = arith.constant 0 : index
    %c0_38 = arith.constant 0 : index
    %87 = vector.load %arg5[%c0_37, %c0_38] : memref<32x32xbf16, #tpu.memory_space<vmem>>, vector<32x32xbf16>
    %cst_39 = arith.constant dense<0.000000e+00> : vector<64x32xf32>
    %88 = tpu.matmul %71, %87, %cst_39 {dimension_numbers = #tpu.dot_dimension_numbers<[1], [0], [0], [1], [0, 0, 1, 1], [], []>} : vector<64x32xbf16>, vector<32x32xbf16>, vector<64x32xf32> -> vector<64x32xf32>
    %89 = arith.negf %88 : vector<64x32xf32>
    %90 = math.exp %89 : vector<64x32xf32>
    %cst_40 = arith.constant 1.000000e+00 : f32
    %91 = vector.broadcast %cst_40 : f32 to vector<64x32xf32>
    %92 = arith.addf %91, %90 : vector<64x32xf32>
    %93 = arith.divf %91, %92 : vector<64x32xf32>
    %94 = arith.mulf %93, %86 : vector<64x32xf32>
    %95 = arith.truncf %94 : vector<64x32xf32> to vector<64x32xbf16>
    %c0_41 = arith.constant 0 : index
    %c0_42 = arith.constant 0 : index
    %96 = vector.load %arg6[%c0_41, %c0_42] : memref<32x32xbf16, #tpu.memory_space<vmem>>, vector<32x32xbf16>
    %cst_43 = arith.constant dense<0.000000e+00> : vector<64x32xf32>
    %97 = tpu.matmul %95, %96, %cst_43 {dimension_numbers = #tpu.dot_dimension_numbers<[1], [0], [0], [1], [0, 0, 1, 1], [], []>} : vector<64x32xbf16>, vector<32x32xbf16>, vector<64x32xf32> -> vector<64x32xf32>
    %98 = arith.addf %1, %97 : vector<64x32xf32>
    %99 = vector.shape_cast %98 : vector<64x32xf32> to vector<1x64x32xf32>
    %c0_44 = arith.constant 0 : index
    %c0_45 = arith.constant 0 : index
    %c0_46 = arith.constant 0 : index
    %100 = vector.load %arg7[%c0_44, %c0_45, %c0_46] : memref<1x64x32xf32, #tpu.memory_space<vmem>>, vector<1x64x32xf32>
    tpu.vector_store %arg7[%c0_44, %c0_45, %c0_46], %99 {strides = array<i32>} : memref<1x64x32xf32, #tpu.memory_space<vmem>>, vector<1x64x32xf32>,
    return
  }
  func.func @transform_0(%arg0: i32) -> (i32, i32, i32) {
    %c0_i32 = arith.constant 0 : i32
    %c0_i32_0 = arith.constant 0 : i32
    %c0_i32_1 = arith.constant 0 : i32
    return %arg0, %c0_i32, %c0_i32_0 : i32, i32, i32
  }
  func.func @transform_1(%arg0: i32) -> (i32, i32) {
    %c0_i32 = arith.constant 0 : i32
    %c0_i32_0 = arith.constant 0 : i32
    %c0_i32_1 = arith.constant 0 : i32
    return %c0_i32, %c0_i32_0 : i32, i32
  }
  func.func @transform_2(%arg0: i32) -> (i32, i32) {
    %c0_i32 = arith.constant 0 : i32
    %c0_i32_0 = arith.constant 0 : i32
    %c0_i32_1 = arith.constant 0 : i32
    return %c0_i32, %c0_i32_0 : i32, i32
  }
  func.func @transform_3(%arg0: i32) -> (i32, i32) {
    %c0_i32 = arith.constant 0 : i32
    %c0_i32_0 = arith.constant 0 : i32
    %c0_i32_1 = arith.constant 0 : i32
    return %c0_i32, %c0_i32_0 : i32, i32
  }
  func.func @transform_4(%arg0: i32) -> (i32, i32) {
    %c0_i32 = arith.constant 0 : i32
    %c0_i32_0 = arith.constant 0 : i32
    %c0_i32_1 = arith.constant 0 : i32
    return %c0_i32, %c0_i32_0 : i32, i32
  }
  func.func @transform_5(%arg0: i32) -> (i32, i32) {
    %c0_i32 = arith.constant 0 : i32
    %c0_i32_0 = arith.constant 0 : i32
    %c0_i32_1 = arith.constant 0 : i32
    return %c0_i32, %c0_i32_0 : i32, i32
  }
  func.func @transform_6(%arg0: i32) -> (i32, i32, i32) {
    %c0_i32 = arith.constant 0 : i32
    %c0_i32_0 = arith.constant 0 : i32
    %c0_i32_1 = arith.constant 0 : i32
    return %arg0, %c0_i32, %c0_i32_0 : i32, i32, i32
  }
}

module attributes {stable_mosaic.version = 11 : i64} {
  func.func @kernel(%arg0: i32, %arg1: memref<1x64x32xf32, #tpu.memory_space<vmem>>, %arg2: memref<8x32xf32, #tpu.memory_space<vmem>>, %arg3: memref<32x128xbf16, #tpu.memory_space<vmem>>, %arg4: memref<128x32xbf16, #tpu.memory_space<vmem>>, %arg5: memref<32x32xbf16, #tpu.memory_space<vmem>>, %arg6: memref<1x64x32xf32, #tpu.memory_space<vmem>>) attributes {dimension_semantics = [#tpu.dimension_semantics<parallel>], iteration_bounds = array<i64: 2>, scalar_prefetch = 0 : i64, scratch_operands = 0 : i64, tpu.core_type = #tpu.core_type<tc>, window_params = [{transform_indices = @transform_0, window_bounds = array<i64: 1, 64, 32>}, {pipeline_mode = #tpu.pipeline_mode<synchronous>, transform_indices = @transform_1, window_bounds = array<i64: 8, 32>}, {pipeline_mode = #tpu.pipeline_mode<synchronous>, transform_indices = @transform_2, window_bounds = array<i64: 32, 128>}, {pipeline_mode = #tpu.pipeline_mode<synchronous>, transform_indices = @transform_3, window_bounds = array<i64: 128, 32>}, {pipeline_mode = #tpu.pipeline_mode<synchronous>, transform_indices = @transform_4, window_bounds = array<i64: 32, 32>}, {transform_indices = @transform_5, window_bounds = array<i64: 1, 64, 32>}]} {
    %c0 = arith.constant 0 : index
    %c0_0 = arith.constant 0 : index
    %c0_1 = arith.constant 0 : index
    %0 = vector.load %arg1[%c0, %c0_0, %c0_1] : memref<1x64x32xf32, #tpu.memory_space<vmem>>, vector<1x64x32xf32>
    %1 = vector.shape_cast %0 : vector<1x64x32xf32> to vector<64x32xf32>
    %c0_2 = arith.constant 0 : index
    %c0_3 = arith.constant 0 : index
    %2 = vector.load %arg2[%c0_2, %c0_3] : memref<8x32xf32, #tpu.memory_space<vmem>>, vector<8x32xf32>
    %3 = vector.extract_strided_slice %2 {offsets = [0, 0], sizes = [1, 32], strides = [1, 1]} : vector<8x32xf32> to vector<1x32xf32>
    %4 = vector.extract_strided_slice %2 {offsets = [1, 0], sizes = [1, 32], strides = [1, 1]} : vector<8x32xf32> to vector<1x32xf32>
    %5 = vector.extract_strided_slice %2 {offsets = [2, 0], sizes = [1, 32], strides = [1, 1]} : vector<8x32xf32> to vector<1x32xf32>
    %6 = vector.extract_strided_slice %2 {offsets = [3, 0], sizes = [1, 32], strides = [1, 1]} : vector<8x32xf32> to vector<1x32xf32>
    %cst = arith.constant dense<0.000000e+00> : vector<64xf32>
    %7 = vector.multi_reduction <add>, %1, %cst [1] : vector<64x32xf32> to vector<64xf32>
    %8 = vector.shape_cast %7 : vector<64xf32> to vector<64x1xf32>
    %cst_4 = arith.constant 3.200000e+01 : f32
    %9 = vector.broadcast %cst_4 : f32 to vector<64x1xf32>
    %10 = arith.divf %8, %9 : vector<64x1xf32>
    %11 = vector.broadcast %10 : vector<64x1xf32> to vector<64x32xf32>
    %12 = arith.subf %1, %11 : vector<64x32xf32>
    %13 = arith.mulf %12, %12 : vector<64x32xf32>
    %cst_5 = arith.constant dense<0.000000e+00> : vector<64xf32>
    %14 = vector.multi_reduction <add>, %13, %cst_5 [1] : vector<64x32xf32> to vector<64xf32>
    %15 = vector.shape_cast %14 : vector<64xf32> to vector<64x1xf32>
    %cst_6 = arith.constant 3.200000e+01 : f32
    %16 = vector.broadcast %cst_6 : f32 to vector<64x1xf32>
    %17 = arith.divf %15, %16 : vector<64x1xf32>
    %cst_7 = arith.constant 9.99999974E-6 : f32
    %18 = vector.broadcast %cst_7 : f32 to vector<64x1xf32>
    %19 = arith.addf %17, %18 : vector<64x1xf32>
    %20 = math.rsqrt %19 : vector<64x1xf32>
    %21 = vector.broadcast %20 : vector<64x1xf32> to vector<64x32xf32>
    %22 = arith.mulf %12, %21 : vector<64x32xf32>
    %23 = vector.broadcast %3 : vector<1x32xf32> to vector<64x32xf32>
    %24 = arith.mulf %22, %23 : vector<64x32xf32>
    %25 = vector.broadcast %4 : vector<1x32xf32> to vector<64x32xf32>
    %26 = arith.addf %24, %25 : vector<64x32xf32>
    %27 = tpu.iota {dimensions = array<i32: 0>} : vector<64x32xi32>
    %28 = tpu.iota {dimensions = array<i32: 1>} : vector<64x32xi32>
    %c1_i32 = arith.constant 1 : i32
    %29 = tpu.dynamic_rotate %26 by %c1_i32 dim 0 : vector<64x32xf32>, i32 -> vector<64x32xf32>
    %c63_i32 = arith.constant 63 : i32
    %30 = tpu.dynamic_rotate %26 by %c63_i32 dim 0 : vector<64x32xf32>, i32 -> vector<64x32xf32>
    %c1_i32_8 = arith.constant 1 : i32
    %31 = vector.broadcast %c1_i32_8 : i32 to vector<64x32xi32>
    %32 = arith.cmpi sge, %27, %31 : vector<64x32xi32>
    %cst_9 = arith.constant 0.000000e+00 : f32
    %33 = vector.broadcast %cst_9 : f32 to vector<64x32xf32>
    %34 = arith.select %32, %29, %33 : vector<64x32xi1>, vector<64x32xf32>
    %c63_i32_10 = arith.constant 63 : i32
    %35 = vector.broadcast %c63_i32_10 : i32 to vector<64x32xi32>
    %36 = arith.cmpi slt, %27, %35 : vector<64x32xi32>
    %cst_11 = arith.constant 0.000000e+00 : f32
    %37 = vector.broadcast %cst_11 : f32 to vector<64x32xf32>
    %38 = arith.select %36, %30, %37 : vector<64x32xi1>, vector<64x32xf32>
    %c16_i32 = arith.constant 16 : i32
    %39 = vector.broadcast %c16_i32 : i32 to vector<64x32xi32>
    %40 = arith.cmpi slt, %28, %39 : vector<64x32xi32>
    %c32_i32 = arith.constant 32 : i32
    %41 = vector.broadcast %c32_i32 : i32 to vector<64x32xi32>
    %42 = arith.cmpi slt, %28, %41 : vector<64x32xi32>
    %43 = arith.select %42, %38, %26 : vector<64x32xi1>, vector<64x32xf32>
    %44 = arith.select %40, %34, %43 : vector<64x32xi1>, vector<64x32xf32>
    %45 = vector.broadcast %5 : vector<1x32xf32> to vector<64x32xf32>
    %46 = arith.mulf %26, %45 : vector<64x32xf32>
    %cst_12 = arith.constant 1.000000e+00 : f32
    %47 = vector.broadcast %cst_12 : f32 to vector<1x32xf32>
    %48 = arith.subf %47, %5 : vector<1x32xf32>
    %49 = vector.broadcast %48 : vector<1x32xf32> to vector<64x32xf32>
    %50 = arith.mulf %44, %49 : vector<64x32xf32>
    %51 = arith.addf %46, %50 : vector<64x32xf32>
    %52 = arith.truncf %51 : vector<64x32xf32> to vector<64x32xbf16>
    %53 = vector.broadcast %6 : vector<1x32xf32> to vector<64x32xf32>
    %54 = arith.mulf %26, %53 : vector<64x32xf32>
    %cst_13 = arith.constant 1.000000e+00 : f32
    %55 = vector.broadcast %cst_13 : f32 to vector<1x32xf32>
    %56 = arith.subf %55, %6 : vector<1x32xf32>
    %57 = vector.broadcast %56 : vector<1x32xf32> to vector<64x32xf32>
    %58 = arith.mulf %44, %57 : vector<64x32xf32>
    %59 = arith.addf %54, %58 : vector<64x32xf32>
    %60 = arith.truncf %59 : vector<64x32xf32> to vector<64x32xbf16>
    %cst_14 = arith.constant 0.000000e+00 : f32
    %61 = vector.broadcast %cst_14 : f32 to vector<64x32xf32>
    %c0_15 = arith.constant 0 : index
    %c0_16 = arith.constant 0 : index
    %62 = vector.load %arg3[%c0_15, %c0_16] : memref<32x128xbf16, #tpu.memory_space<vmem>>, vector<32x128xbf16>
    %c0_17 = arith.constant 0 : index
    %c0_18 = arith.constant 0 : index
    %63 = vector.load %arg4[%c0_17, %c0_18] : memref<128x32xbf16, #tpu.memory_space<vmem>>, vector<128x32xbf16>
    %cst_19 = arith.constant dense<0.000000e+00> : vector<64x128xf32>
    %64 = tpu.matmul %52, %62, %cst_19 {dimension_numbers = #tpu.dot_dimension_numbers<[1], [0], [0], [1], [0, 0, 1, 1], [], []>} : vector<64x32xbf16>, vector<32x128xbf16>, vector<64x128xf32> -> vector<64x128xf32>
    %cst_20 = arith.constant 0.000000e+00 : f32
    %65 = vector.broadcast %cst_20 : f32 to vector<64x128xf32>
    %66 = arith.maximumf %64, %65 : vector<64x128xf32>
    %67 = arith.mulf %66, %66 : vector<64x128xf32>
    %68 = arith.truncf %67 : vector<64x128xf32> to vector<64x128xbf16>
    %cst_21 = arith.constant dense<0.000000e+00> : vector<64x32xf32>
    %69 = tpu.matmul %68, %63, %cst_21 {dimension_numbers = #tpu.dot_dimension_numbers<[1], [0], [0], [1], [0, 0, 1, 1], [], []>} : vector<64x128xbf16>, vector<128x32xbf16>, vector<64x32xf32> -> vector<64x32xf32>
    %70 = arith.addf %61, %69 : vector<64x32xf32>
    %c0_22 = arith.constant 0 : index
    %c0_23 = arith.constant 0 : index
    %71 = vector.load %arg5[%c0_22, %c0_23] : memref<32x32xbf16, #tpu.memory_space<vmem>>, vector<32x32xbf16>
    %cst_24 = arith.constant dense<0.000000e+00> : vector<64x32xf32>
    %72 = tpu.matmul %60, %71, %cst_24 {dimension_numbers = #tpu.dot_dimension_numbers<[1], [0], [0], [1], [0, 0, 1, 1], [], []>} : vector<64x32xbf16>, vector<32x32xbf16>, vector<64x32xf32> -> vector<64x32xf32>
    %73 = arith.negf %72 : vector<64x32xf32>
    %74 = math.exp %73 : vector<64x32xf32>
    %cst_25 = arith.constant 1.000000e+00 : f32
    %75 = vector.broadcast %cst_25 : f32 to vector<64x32xf32>
    %76 = arith.addf %75, %74 : vector<64x32xf32>
    %77 = arith.divf %75, %76 : vector<64x32xf32>
    %78 = arith.mulf %77, %70 : vector<64x32xf32>
    %79 = arith.addf %1, %78 : vector<64x32xf32>
    %80 = vector.extract_strided_slice %2 {offsets = [4, 0], sizes = [1, 32], strides = [1, 1]} : vector<8x32xf32> to vector<1x32xf32>
    %81 = vector.extract_strided_slice %2 {offsets = [5, 0], sizes = [1, 32], strides = [1, 1]} : vector<8x32xf32> to vector<1x32xf32>
    %cst_26 = arith.constant dense<0.000000e+00> : vector<64xf32>
    %82 = vector.multi_reduction <add>, %79, %cst_26 [1] : vector<64x32xf32> to vector<64xf32>
    %83 = vector.shape_cast %82 : vector<64xf32> to vector<64x1xf32>
    %cst_27 = arith.constant 3.200000e+01 : f32
    %84 = vector.broadcast %cst_27 : f32 to vector<64x1xf32>
    %85 = arith.divf %83, %84 : vector<64x1xf32>
    %86 = vector.broadcast %85 : vector<64x1xf32> to vector<64x32xf32>
    %87 = arith.subf %79, %86 : vector<64x32xf32>
    %88 = arith.mulf %87, %87 : vector<64x32xf32>
    %cst_28 = arith.constant dense<0.000000e+00> : vector<64xf32>
    %89 = vector.multi_reduction <add>, %88, %cst_28 [1] : vector<64x32xf32> to vector<64xf32>
    %90 = vector.shape_cast %89 : vector<64xf32> to vector<64x1xf32>
    %cst_29 = arith.constant 3.200000e+01 : f32
    %91 = vector.broadcast %cst_29 : f32 to vector<64x1xf32>
    %92 = arith.divf %90, %91 : vector<64x1xf32>
    %cst_30 = arith.constant 9.99999974E-6 : f32
    %93 = vector.broadcast %cst_30 : f32 to vector<64x1xf32>
    %94 = arith.addf %92, %93 : vector<64x1xf32>
    %95 = math.rsqrt %94 : vector<64x1xf32>
    %96 = vector.broadcast %95 : vector<64x1xf32> to vector<64x32xf32>
    %97 = arith.mulf %87, %96 : vector<64x32xf32>
    %98 = vector.broadcast %80 : vector<1x32xf32> to vector<64x32xf32>
    %99 = arith.mulf %97, %98 : vector<64x32xf32>
    %100 = vector.broadcast %81 : vector<1x32xf32> to vector<64x32xf32>
    %101 = arith.addf %99, %100 : vector<64x32xf32>
    %102 = vector.shape_cast %101 : vector<64x32xf32> to vector<1x64x32xf32>
    %c0_31 = arith.constant 0 : index
    %c0_32 = arith.constant 0 : index
    %c0_33 = arith.constant 0 : index
    %103 = vector.load %arg6[%c0_31, %c0_32, %c0_33] : memref<1x64x32xf32, #tpu.memory_space<vmem>>, vector<1x64x32xf32>
    tpu.vector_store %arg6[%c0_31, %c0_32, %c0_33], %102 {strides = array<i32>} : memref<1x64x32xf32, #tpu.memory_space<vmem>>, vector<1x64x32xf32>,
    return
  }
  func.func @transform_0(%arg0: i32) -> (i32, i32, i32) {
    %c0_i32 = arith.constant 0 : i32
    %c0_i32_0 = arith.constant 0 : i32
    %c0_i32_1 = arith.constant 0 : i32
    return %arg0, %c0_i32, %c0_i32_0 : i32, i32, i32
  }
  func.func @transform_1(%arg0: i32) -> (i32, i32) {
    %c0_i32 = arith.constant 0 : i32
    %c0_i32_0 = arith.constant 0 : i32
    %c0_i32_1 = arith.constant 0 : i32
    return %c0_i32, %c0_i32_0 : i32, i32
  }
  func.func @transform_2(%arg0: i32) -> (i32, i32) {
    %c0_i32 = arith.constant 0 : i32
    %c0_i32_0 = arith.constant 0 : i32
    %c0_i32_1 = arith.constant 0 : i32
    return %c0_i32, %c0_i32_0 : i32, i32
  }
  func.func @transform_3(%arg0: i32) -> (i32, i32) {
    %c0_i32 = arith.constant 0 : i32
    %c0_i32_0 = arith.constant 0 : i32
    %c0_i32_1 = arith.constant 0 : i32
    return %c0_i32, %c0_i32_0 : i32, i32
  }
  func.func @transform_4(%arg0: i32) -> (i32, i32) {
    %c0_i32 = arith.constant 0 : i32
    %c0_i32_0 = arith.constant 0 : i32
    %c0_i32_1 = arith.constant 0 : i32
    return %c0_i32, %c0_i32_0 : i32, i32
  }
  func.func @transform_5(%arg0: i32) -> (i32, i32, i32) {
    %c0_i32 = arith.constant 0 : i32
    %c0_i32_0 = arith.constant 0 : i32
    %c0_i32_1 = arith.constant 0 : i32
    return %arg0, %c0_i32, %c0_i32_0 : i32, i32, i32
  }
}

</mosaic_0001>

<llo_original>
// kernel: _lambda_.5
$region0: #{_lambda_.5}
  #allocation0 [shape = 'u32[]', space=smem, size = 0x4, offset = 0x4, fixed_abs, tag = 'smem constant byte address 0x4 - core index']
  #allocation1 [shape = 'u32[144,128]{1,0:T(1,128)}', space=vmem, size = 0x12000, scoped, tag = 'internal scratch']
  %s0 = inlined_call_operand.hbm [shape: f32[2,64,32], index: 0, kind: input, shape index: {}]
  %s1 = inlined_call_operand.hbm [shape: f32[8,32], index: 1, kind: input, shape index: {}]
  %s2 = inlined_call_operand.hbm [shape: bf16[32,128], index: 2, kind: input, shape index: {}]
  %s3 = inlined_call_operand.hbm [shape: bf16[128,32], index: 3, kind: input, shape index: {}]
  %s4 = inlined_call_operand.hbm [shape: bf16[32,32], index: 4, kind: input, shape index: {}]
  %s5 = inlined_call_operand.hbm [shape: f32[2,64,32], index: 5, kind: output, shape index: {}]
  %s6 = sld [smem:[#allocation0]]
  $region73: #{_lambda_.5} parent=0
    _
  %s8 = ssub.s32 1, %s6
  %s9 = scalar_select 0, %s8, %s6
  $region1: #{_lambda_.5} parent=0
    #allocation2 [shape = 'u8[65536]{0}', space=vmem, size = 0x10000, scoped, tag = 'input window, operand 0']
    #allocation3 [shape = 's32[2]{0}', space=sflag, size = 0x8, scoped, tag = 'scoped memory for _lambda_.5']
    #allocation4 [shape = 's32[2]{0}', space=sflag, size = 0x8, scoped, tag = 'scoped memory for _lambda_.5']
    #allocation5 [shape = 'u8[4096]{0}', space=vmem, size = 0x1000, scoped, tag = 'input window, operand 1, single buffered']
    #allocation6 [shape = 's32[1]{0}', space=sflag, size = 0x4, scoped, tag = 'scoped memory for _lambda_.5']
    #allocation7 [shape = 'u8[8192]{0}', space=vmem, size = 0x2000, scoped, tag = 'input window, operand 2, single buffered']
    #allocation8 [shape = 'u8[32768]{0}', space=vmem, size = 0x8000, scoped, tag = 'input window, operand 3, single buffered']
    #allocation9 [shape = 's32[1]{0}', space=sflag, size = 0x4, scoped, tag = 'scoped memory for _lambda_.5']
    #allocation10 [shape = 'u8[8192]{0}', space=vmem, size = 0x2000, scoped, tag = 'input window, operand 4, single buffered']
    #allocation11 [shape = 'u8[65536]{0}', space=vmem, size = 0x10000, scoped, tag = 'output window, operand 0']
    %10 = vsyncpa [#allocation3], 0
    %s11 = scalar_lea.sflag [#allocation3], 1
    %12 = vsyncpa %s11, 0
    %13 = vsyncpa [#allocation6], 0
    %14 = vsyncpa [#allocation9], 0
    %15 = vsyncpa [#allocation4], 0
    %s16 = scalar_lea.sflag [#allocation4], 1
    %17 = vsyncpa %s16, 0
    loop: start=0, step=1, limit=4
    $region2: #{_lambda_.5} parent=1 // loop_pre_header
      _
    $region3: #{_lambda_.5} parent=1 // loop_header
      %s19 = sphi 0, %s23
      %p20 = scmp.ge.s32.totalorder %s19, 4
      %s29 = sphi 0, %s31
      %s32 = sphi 0, %s29
      %s33 = sphi 0, %s32
      %s49 = sphi 0, %s33
      %s53 = sphi 0, %s53
      %s55 = sphi 0, %s53
      %s56 = sphi 0, %s55
      %s70 = sphi 0, %s56
      %s74 = sphi 0, %s74
      %s76 = sphi 0, %s74
      %s77 = sphi 0, %s76
      %s91 = sphi 0, %s77
      %s95 = sphi 0, %s95
      %s97 = sphi 0, %s95
      %s98 = sphi 0, %s97
      %s112 = sphi 0, %s98
      %s116 = sphi 0, %s116
      %s118 = sphi 0, %s116
      %s119 = sphi 0, %s118
      %s133 = sphi 0, %s119
      %s139 = sphi 0, %s141
      %s142 = sphi 0, %s139
      %s143 = sphi 0, %s142
      %s159 = sphi 0, %s143
    $region4: #{_lambda_.5} parent=1 // loop_header_branch
      %22 = sbr.rel (%p20) target = $region8
    $region5: #{_lambda_.5} parent=1 // loop_body
      %s24 = ssub.s32 %s19, 1
      %s25 = ssub.s32 %s19, 2
      %s26 = sadd.s32 %s19, 1
      %s27 = ssub.s32 %s19, %s26
      %p28 = scmp.eq.s32.totalorder %s27, 0
      %s30 = sadd.s32 %s29, 1
      %s31 = scalar_select %p28, %s29, %s30
      %p34 = pneg %p28
      %p35 = scmp.eq.s32.totalorder %s19, 1
      %p36 = por %p34, %p35
      %p37 = scmp.ne.s32.totalorder %s29, %s32
      %p38 = scmp.eq.s32.totalorder %s19, 0
      %p39 = por %p37, %p38
      %p40 = scmp.ne.s32.totalorder %s29, %s32
      %p41 = scmp.eq.s32.totalorder %s24, 1
      %p42 = por %p40, %p41
      %p43 = scmp.ne.s32.totalorder %s32, %s33
      %p44 = scmp.eq.s32.totalorder %s24, 0
      %p45 = por %p43, %p44
      %p46 = scmp.ne.s32.totalorder %s32, %s33
      %p47 = scmp.eq.s32.totalorder %s25, 1
      %p48 = por %p46, %p47
      %p50 = scmp.ne.s32.totalorder %s33, %s49
      %p51 = scmp.eq.s32.totalorder %s25, 0
      %p52 = por %p50, %p51
      %s54 = sadd.s32 %s53, 1
      %p57 = scmp.eq.s32.totalorder %s19, 1
      %p58 = scmp.ne.s32.totalorder %s53, %s55
      %p59 = scmp.eq.s32.totalorder %s19, 0
      %p60 = por %p58, %p59
      %p61 = scmp.ne.s32.totalorder %s53, %s55
      %p62 = scmp.eq.s32.totalorder %s24, 1
      %p63 = por %p61, %p62
      %p64 = scmp.ne.s32.totalorder %s55, %s56
      %p65 = scmp.eq.s32.totalorder %s24, 0
      %p66 = por %p64, %p65
      %p67 = scmp.ne.s32.totalorder %s55, %s56
      %p68 = scmp.eq.s32.totalorder %s25, 1
      %p69 = por %p67, %p68
      %p71 = scmp.ne.s32.totalorder %s56, %s70
      %p72 = scmp.eq.s32.totalorder %s25, 0
      %p73 = por %p71, %p72
      %s75 = sadd.s32 %s74, 1
      %p78 = scmp.eq.s32.totalorder %s19, 1
      %p79 = scmp.ne.s32.totalorder %s74, %s76
      %p80 = scmp.eq.s32.totalorder %s19, 0
      %p81 = por %p79, %p80
      %p82 = scmp.ne.s32.totalorder %s74, %s76
      %p83 = scmp.eq.s32.totalorder %s24, 1
      %p84 = por %p82, %p83
      %p85 = scmp.ne.s32.totalorder %s76, %s77
      %p86 = scmp.eq.s32.totalorder %s24, 0
      %p87 = por %p85, %p86
      %p88 = scmp.ne.s32.totalorder %s76, %s77
      %p89 = scmp.eq.s32.totalorder %s25, 1
      %p90 = por %p88, %p89
      %p92 = scmp.ne.s32.totalorder %s77, %s91
      %p93 = scmp.eq.s32.totalorder %s25, 0
      %p94 = por %p92, %p93
      %s96 = sadd.s32 %s95, 1
      %p99 = scmp.eq.s32.totalorder %s19, 1
      %p100 = scmp.ne.s32.totalorder %s95, %s97
      %p101 = scmp.eq.s32.totalorder %s19, 0
      %p102 = por %p100, %p101
      %p103 = scmp.ne.s32.totalorder %s95, %s97
      %p104 = scmp.eq.s32.totalorder %s24, 1
      %p105 = por %p103, %p104
      %p106 = scmp.ne.s32.totalorder %s97, %s98
      %p107 = scmp.eq.s32.totalorder %s24, 0
      %p108 = por %p106, %p107
      %p109 = scmp.ne.s32.totalorder %s97, %s98
      %p110 = scmp.eq.s32.totalorder %s25, 1
      %p111 = por %p109, %p110
      %p113 = scmp.ne.s32.totalorder %s98, %s112
      %p114 = scmp.eq.s32.totalorder %s25, 0
      %p115 = por %p113, %p114
      %s117 = sadd.s32 %s116, 1
      %p120 = scmp.eq.s32.totalorder %s19, 1
      %p121 = scmp.ne.s32.totalorder %s116, %s118
      %p122 = scmp.eq.s32.totalorder %s19, 0
      %p123 = por %p121, %p122
      %p124 = scmp.ne.s32.totalorder %s116, %s118
      %p125 = scmp.eq.s32.totalorder %s24, 1
      %p126 = por %p124, %p125
      %p127 = scmp.ne.s32.totalorder %s118, %s119
      %p128 = scmp.eq.s32.totalorder %s24, 0
      %p129 = por %p127, %p128
      %p130 = scmp.ne.s32.totalorder %s118, %s119
      %p131 = scmp.eq.s32.totalorder %s25, 1
      %p132 = por %p130, %p131
      %p134 = scmp.ne.s32.totalorder %s119, %s133
      %p135 = scmp.eq.s32.totalorder %s25, 0
      %p136 = por %p134, %p135
      %s137 = ssub.s32 %s19, %s26
      %p138 = scmp.eq.s32.totalorder %s137, 0
      %s140 = sadd.s32 %s139, 1
      %s141 = scalar_select %p138, %s139, %s140
      %p144 = pneg %p138
      %p145 = scmp.eq.s32.totalorder %s19, 1
      %p146 = por %p144, %p145
      %p147 = scmp.ne.s32.totalorder %s139, %s142
      %p148 = scmp.eq.s32.totalorder %s19, 0
      %p149 = por %p147, %p148
      %p150 = scmp.ne.s32.totalorder %s139, %s142
      %p151 = scmp.eq.s32.totalorder %s24, 1
      %p152 = por %p150, %p151
      %p153 = scmp.ne.s32.totalorder %s142, %s143
      %p154 = scmp.eq.s32.totalorder %s24, 0
      %p155 = por %p153, %p154
      %p156 = scmp.ne.s32.totalorder %s142, %s143
      %p157 = scmp.eq.s32.totalorder %s25, 1
      %p158 = por %p156, %p157
      %p160 = scmp.ne.s32.totalorder %s143, %s159
      %p161 = scmp.eq.s32.totalorder %s25, 0
      %p162 = por %p160, %p161
      %p163 = scmp.le.s32.totalorder 1, %s19
      %p164 = scmp.lt.s32.totalorder %s19, 3
      %p165 = pnand %p163, %p164
      %p166 = pneg %p165
      // Predicated region
      $region9: #{_lambda_.5} parent=5 // pred_check
        _
      $region10: #{_lambda_.5} parent=5 // pred_check_branch
        %168 = sbr.rel (%p165) target = $region12
      $region11: #{_lambda_.5} parent=5 // pred_region
        %s169 = ssub.s32 %s19, 1
        // Predicated region
        $region13: #{_lambda_.5} parent=11 // pred_check
          %p170 = pneg %p66
        $region14: #{_lambda_.5} parent=11 // pred_check_branch
          %172 = sbr.rel (%p170) target = $region16
        $region15: #{_lambda_.5} parent=11 // pred_region
          %s174 = ssub.s32 128, 128
          %175 = vsyncadd [#allocation6], %s174
          %s177 = sshll.u32 [#allocation5], 4
          %s178 = int_to_ptr.vmem [resolvable:$true] %s177
          %180 = dma.hbm_to_vmem [thread:$0]  %s1, 128, %s178, [#allocation6]
        $region16: #{_lambda_.5} parent=11 // pred_fallthru
          _
        // Predicated region
        $region17: #{_lambda_.5} parent=11 // pred_check
          %p181 = pneg %p87
        $region18: #{_lambda_.5} parent=11 // pred_check_branch
          %183 = sbr.rel (%p181) target = $region20
        $region19: #{_lambda_.5} parent=11 // pred_region
          %s185 = ssub.s32 256, 256
          %186 = vsyncadd [#allocation6], %s185
          %s187 = sshll.u32 [#allocation7], 4
          %s188 = int_to_ptr.vmem [resolvable:$true] %s187
          %193 = dma.hbm_to_vmem [thread:$0]  %s2, 256, %s188, [#allocation6], 64, 64, 4
        $region20: #{_lambda_.5} parent=11 // pred_fallthru
          _
        // Predicated region
        $region21: #{_lambda_.5} parent=11 // pred_check
          %p194 = pneg %p108
        $region22: #{_lambda_.5} parent=11 // pred_check_branch
          %196 = sbr.rel (%p194) target = $region24
        $region23: #{_lambda_.5} parent=11 // pred_region
          %s198 = ssub.s32 1024, 1024
          %199 = vsyncadd [#allocation9], %s198
          %s200 = sshll.u32 [#allocation8], 4
          %s201 = int_to_ptr.vmem [resolvable:$true] %s200
          %206 = dma.hbm_to_vmem [thread:$0]  %s3, 1024, %s201, [#allocation9], 64, 64, 4
        $region24: #{_lambda_.5} parent=11 // pred_fallthru
          _
        // Predicated region
        $region25: #{_lambda_.5} parent=11 // pred_check
          %p207 = pneg %p129
        $region26: #{_lambda_.5} parent=11 // pred_check_branch
          %209 = sbr.rel (%p207) target = $region28
        $region27: #{_lambda_.5} parent=11 // pred_region
          %s211 = ssub.s32 256, 256
          %212 = vsyncadd [#allocation9], %s211
          %s213 = sshll.u32 [#allocation10], 4
          %s214 = int_to_ptr.vmem [resolvable:$true] %s213
          %219 = dma.hbm_to_vmem [thread:$0]  %s4, 256, %s214, [#allocation9], 64, 64, 4
        $region28: #{_lambda_.5} parent=11 // pred_fallthru
          _
      $region12: #{_lambda_.5} parent=5 // pred_fallthru
        _
      %p220 = scmp.lt.s32.totalorder %s19, 2
      // Predicated region
      $region29: #{_lambda_.5} parent=5 // pred_check
        %p221 = pneg %p220
      $region30: #{_lambda_.5} parent=5 // pred_check_branch
        %223 = sbr.rel (%p221) target = $region32
      $region31: #{_lambda_.5} parent=5 // pred_region
        // Predicated region
        $region33: #{_lambda_.5} parent=31 // pred_check
          %p224 = pneg %p39
        $region34: #{_lambda_.5} parent=31 // pred_check_branch
          %226 = sbr.rel (%p224) target = $region36
        $region35: #{_lambda_.5} parent=31 // pred_region
          %s227 = sand.u32 %s29, 1
          %s228 = scalar_lea.sflag [#allocation3], %s227
          %s229 = sand.u32 %s29, 1
          %s230 = smul.addr %s229, 64
          %s231 = scalar_lea.vmem [#allocation2], %s230
          %s233 = ssub.s32 1024, 1024
          %234 = vsyncadd %s228, %s233
          %s235 = smul.addr %s19, 8
          %s236 = smul.addr %s235, 128
          %s237 = scalar_lea.hbm %s0, %s236
          %s238 = sshll.u32 %s231, 4
          %s239 = int_to_ptr.vmem [resolvable:$true] %s238
          %244 = dma.hbm_to_vmem [thread:$0]  %s237, 1024, %s239, %s228, 128, 128, 8
        $region36: #{_lambda_.5} parent=31 // pred_fallthru
          _
      $region32: #{_lambda_.5} parent=5 // pred_fallthru
        _
      %p245 = scmp.le.s32.totalorder 1, %s19
      %p246 = scmp.lt.s32.totalorder %s19, 3
      %p247 = pnand %p245, %p246
      %p248 = pneg %p247
      // Predicated region
      $region37: #{_lambda_.5} parent=5 // pred_check
        _
      $region38: #{_lambda_.5} parent=5 // pred_check_branch
        %250 = sbr.rel (%p247) target = $region40
      $region39: #{_lambda_.5} parent=5 // pred_region
        %s251 = ssub.s32 %s19, 1
        %s252 = sand.u32 %s32, 1
        %s253 = scalar_lea.sflag [#allocation3], %s252
        %s254 = sand.u32 %s32, 1
        %s255 = smul.addr %s254, 64
        %s256 = scalar_lea.vmem [#allocation2], %s255
        // Predicated region
        $region41: #{_lambda_.5} parent=39 // pred_check
          %p257 = pneg %p45
        $region42: #{_lambda_.5} parent=39 // pred_check_branch
          %259 = sbr.rel (%p257) target = $region44
        $region43: #{_lambda_.5} parent=39 // pred_region
          %260 = dma.done %s253, 1024
        $region44: #{_lambda_.5} parent=39 // pred_fallthru
          _
        // Predicated region
        $region45: #{_lambda_.5} parent=39 // pred_check
          %p261 = pneg %p66
        $region46: #{_lambda_.5} parent=39 // pred_check_branch
          %263 = sbr.rel (%p261) target = $region48
        $region47: #{_lambda_.5} parent=39 // pred_region
          %264 = dma.done [#allocation6], 128
        $region48: #{_lambda_.5} parent=39 // pred_fallthru
          _
        // Predicated region
        $region49: #{_lambda_.5} parent=39 // pred_check
          %p265 = pneg %p87
        $region50: #{_lambda_.5} parent=39 // pred_check_branch
          %267 = sbr.rel (%p265) target = $region52
        $region51: #{_lambda_.5} parent=39 // pred_region
          %268 = dma.done [#allocation6], 256
        $region52: #{_lambda_.5} parent=39 // pred_fallthru
          _
        // Predicated region
        $region53: #{_lambda_.5} parent=39 // pred_check
          %p269 = pneg %p108
        $region54: #{_lambda_.5} parent=39 // pred_check_branch
          %271 = sbr.rel (%p269) target = $region56
        $region55: #{_lambda_.5} parent=39 // pred_region
          %272 = dma.done [#allocation9], 1024
        $region56: #{_lambda_.5} parent=39 // pred_fallthru
          _
        // Predicated region
        $region57: #{_lambda_.5} parent=39 // pred_check
          %p273 = pneg %p129
        $region58: #{_lambda_.5} parent=39 // pred_check_branch
          %275 = sbr.rel (%p273) target = $region60
        $region59: #{_lambda_.5} parent=39 // pred_region
          %276 = dma.done [#allocation9], 256
        $region60: #{_lambda_.5} parent=39 // pred_fallthru
          _
        %s277 = sand.u32 %s32, 1
        %s278 = scalar_lea.sflag [#allocation3], %s277
        %s279 = sand.u32 %s32, 1
        %s280 = smul.addr %s279, 64
        %s281 = scalar_lea.vmem [#allocation2], %s280
        %p282 = pneg %p45
        %p283 = pneg %p42
        %p284 = pneg %p66
        %p285 = pneg %p63
        %p286 = pneg %p87
        %p287 = pneg %p84
        %p288 = pneg %p108
        %p289 = pneg %p105
        %p290 = pneg %p129
        %p291 = pneg %p126
        %p292 = pneg %p155
        %p293 = pneg %p152
        %s294 = sand.u32 %s142, 1
        %s295 = scalar_lea.sflag [#allocation4], %s294
        %s296 = sand.u32 %s142, 1
        %s297 = smul.addr %s296, 64
        %s298 = scalar_lea.vmem [#allocation11], %s297
        %v300 = vld [vmem:[%s256] sm:$0xff]
        %v301 = vld [vmem:[%s256 + $0x8] sm:$0xff]
        %v302 = vld [vmem:[%s256 + $0x10] sm:$0xff]
        %v303 = vld [vmem:[%s256 + $0x18] sm:$0xff]
        %v304 = vld [vmem:[%s256 + $0x20] sm:$0xff]
        %v305 = vld [vmem:[%s256 + $0x28] sm:$0xff]
        %v306 = vld [vmem:[%s256 + $0x30] sm:$0xff]
        %v307 = vld [vmem:[%s256 + $0x38] sm:$0xff]
        %v308 = vld [vmem:[#allocation5] sm:$0xff]
        %vm309 = vcmask 261120
        %v310 = vsel %vm309, %v300, 0.0
        %311 = vadd.xlane.f32.xlu0 %v310
        %v312 = vpop.xlane.xlu0 %311
        %v313 = vsel %vm309, %v301, 0.0
        %314 = vadd.xlane.f32.xlu0 %v313
        %v315 = vpop.xlane.xlu0 %314
        %v316 = vsel %vm309, %v302, 0.0
        %317 = vadd.xlane.f32.xlu0 %v316
        %v318 = vpop.xlane.xlu0 %317
        %v319 = vsel %vm309, %v303, 0.0
        %320 = vadd.xlane.f32.xlu0 %v319
        %v321 = vpop.xlane.xlu0 %320
        %v322 = vsel %vm309, %v304, 0.0
        %323 = vadd.xlane.f32.xlu0 %v322
        %v324 = vpop.xlane.xlu0 %323
        %v325 = vsel %vm309, %v305, 0.0
        %326 = vadd.xlane.f32.xlu0 %v325
        %v327 = vpop.xlane.xlu0 %326
        %v328 = vsel %vm309, %v306, 0.0
        %329 = vadd.xlane.f32.xlu0 %v328
        %v330 = vpop.xlane.xlu0 %329
        %v331 = vsel %vm309, %v307, 0.0
        %332 = vadd.xlane.f32.xlu0 %v331
        %v333 = vpop.xlane.xlu0 %332
        %v334 = vrcp.pop 32.0
        %v335 = vmul.f32 %v312, %v334
        %v336 = vmul.f32 %v315, %v334
        %v337 = vmul.f32 %v318, %v334
        %v338 = vmul.f32 %v321, %v334
        %v339 = vmul.f32 %v324, %v334
        %v340 = vmul.f32 %v327, %v334
        %v341 = vmul.f32 %v330, %v334
        %v342 = vmul.f32 %v333, %v334
        %v343 = vsub.f32 %v300, %v335
        %v344 = vsub.f32 %v301, %v336
        %v345 = vsub.f32 %v302, %v337
        %v346 = vsub.f32 %v303, %v338
        %v347 = vsub.f32 %v304, %v339
        %v348 = vsub.f32 %v305, %v340
        %v349 = vsub.f32 %v306, %v341
        %v350 = vsub.f32 %v307, %v342
        %v351 = vmul.f32 %v343, %v343
        %v352 = vmul.f32 %v344, %v344
        %v353 = vmul.f32 %v345, %v345
        %v354 = vmul.f32 %v346, %v346
        %v355 = vmul.f32 %v347, %v347
        %v356 = vmul.f32 %v348, %v348
        %v357 = vmul.f32 %v349, %v349
        %v358 = vmul.f32 %v350, %v350
        %v359 = vsel %vm309, %v351, 0.0
        %360 = vadd.xlane.f32.xlu0 %v359
        %v361 = vpop.xlane.xlu0 %360
        %v362 = vsel %vm309, %v352, 0.0
        %363 = vadd.xlane.f32.xlu0 %v362
        %v364 = vpop.xlane.xlu0 %363
        %v365 = vsel %vm309, %v353, 0.0
        %366 = vadd.xlane.f32.xlu0 %v365
        %v367 = vpop.xlane.xlu0 %366
        %v368 = vsel %vm309, %v354, 0.0
        %369 = vadd.xlane.f32.xlu0 %v368
        %v370 = vpop.xlane.xlu0 %369
        %v371 = vsel %vm309, %v355, 0.0
        %372 = vadd.xlane.f32.xlu0 %v371
        %v373 = vpop.xlane.xlu0 %372
        %v374 = vsel %vm309, %v356, 0.0
        %375 = vadd.xlane.f32.xlu0 %v374
        %v376 = vpop.xlane.xlu0 %375
        %v377 = vsel %vm309, %v357, 0.0
        %378 = vadd.xlane.f32.xlu0 %v377
        %v379 = vpop.xlane.xlu0 %378
        %v380 = vsel %vm309, %v358, 0.0
        %381 = vadd.xlane.f32.xlu0 %v380
        %v382 = vpop.xlane.xlu0 %381
        %v383 = vmul.f32 %v361, %v334
        %v384 = vmul.f32 %v364, %v334
        %v385 = vmul.f32 %v367, %v334
        %v386 = vmul.f32 %v370, %v334
        %v387 = vmul.f32 %v373, %v334
        %v388 = vmul.f32 %v376, %v334
        %v389 = vmul.f32 %v379, %v334
        %v390 = vmul.f32 %v382, %v334
        %v391 = vadd.f32 %v383, 1e-05
        %v392 = vadd.f32 %v384, 1e-05
        %v393 = vadd.f32 %v385, 1e-05
        %v394 = vadd.f32 %v386, 1e-05
        %v395 = vadd.f32 %v387, 1e-05
        %v396 = vadd.f32 %v388, 1e-05
        %v397 = vadd.f32 %v389, 1e-05
        %v398 = vadd.f32 %v390, 1e-05
        %v399 = vrsqrt.pop %v391
        %v400 = vrsqrt.pop %v392
        %v401 = vrsqrt.pop %v393
        %v402 = vrsqrt.pop %v394
        %v403 = vrsqrt.pop %v395
        %v404 = vrsqrt.pop %v396
        %v405 = vrsqrt.pop %v397
        %v406 = vrsqrt.pop %v398
        %v407 = vmul.f32 %v343, %v399
        %v408 = vmul.f32 %v344, %v400
        %v409 = vmul.f32 %v345, %v401
        %v410 = vmul.f32 %v346, %v402
        %v411 = vmul.f32 %v347, %v403
        %v412 = vmul.f32 %v348, %v404
        %v413 = vmul.f32 %v349, %v405
        %v414 = vmul.f32 %v350, %v406
        %v415 = vlaneseq
        %v416 = vshrl.u32 %v415, 7
        %v417 = vsub.s32 0, %v416
        %v418 = vrot.slane %v308, %v417
        %v419 = vmul.f32 %v407, %v418
        %v420 = vmul.f32 %v408, %v418
        %v421 = vmul.f32 %v409, %v418
        %v422 = vmul.f32 %v410, %v418
        %v423 = vmul.f32 %v411, %v418
        %v424 = vmul.f32 %v412, %v418
        %v425 = vmul.f32 %v413, %v418
        %v426 = vmul.f32 %v414, %v418
        %v427 = vlaneseq
        %v428 = vshrl.u32 %v427, 7
        %v429 = vsub.s32 1, %v428
        %v430 = vrot.slane %v308, %v429
        %v431 = vadd.f32 %v419, %v430
        %v432 = vadd.f32 %v420, %v430
        %v433 = vadd.f32 %v421, %v430
        %v434 = vadd.f32 %v422, %v430
        %v435 = vadd.f32 %v423, %v430
        %v436 = vadd.f32 %v424, %v430
        %v437 = vadd.f32 %v425, %v430
        %v438 = vadd.f32 %v426, %v430
        %v439 = vlaneseq
        %v440 = vshrl.u32 %v439, 7
        %v441 = vadd.s32 %v440, 8
        %v442 = vadd.s32 %v440, 16
        %v443 = vadd.s32 %v440, 24
        %v444 = vadd.s32 %v440, 32
        %v445 = vadd.s32 %v440, 40
        %v446 = vadd.s32 %v440, 48
        %v447 = vadd.s32 %v440, 56
        %v448 = vlaneseq
        %v449 = vand.u32 %v448, 127
        %v450 = vrot.slane %v431, 7
        %v451 = vrot.slane %v432, 7
        %v452 = vrot.slane %v433, 7
        %v453 = vrot.slane %v434, 7
        %v454 = vrot.slane %v435, 7
        %v455 = vrot.slane %v436, 7
        %v456 = vrot.slane %v437, 7
        %v457 = vrot.slane %v438, 7
        %vm458 = vcmp.lt.s32.totalorder %v440, 1
        %v459 = vsel %vm458, %v456, %v457
        %v460 = vsel %vm458, %v455, %v456
        %v461 = vsel %vm458, %v454, %v455
        %v462 = vsel %vm458, %v453, %v454
        %v463 = vsel %vm458, %v452, %v453
        %v464 = vsel %vm458, %v451, %v452
        %v465 = vsel %vm458, %v450, %v451
        %v466 = vsel %vm458, %v457, %v450
        %v467 = vrot.slane %v431, 1
        %v468 = vrot.slane %v432, 1
        %v469 = vrot.slane %v433, 1
        %v470 = vrot.slane %v434, 1
        %v471 = vrot.slane %v435, 1
        %v472 = vrot.slane %v436, 1
        %v473 = vrot.slane %v437, 1
        %v474 = vrot.slane %v438, 1
        %vm475 = vcmp.lt.s32.totalorder %v440, 7
        %v476 = vsel %vm475, %v473, %v474
        %v477 = vsel %vm475, %v472, %v473
        %v478 = vsel %vm475, %v471, %v472
        %v479 = vsel %vm475, %v470, %v471
        %v480 = vsel %vm475, %v469, %v470
        %v481 = vsel %vm475, %v468, %v469
        %v482 = vsel %vm475, %v467, %v468
        %v483 = vsel %vm475, %v474, %v467
        %vm484 = vcmp.ge.s32.totalorder %v440, 1
        %vm485 = vcmp.ge.s32.totalorder %v441, 1
        %vm486 = vcmp.ge.s32.totalorder %v442, 1
        %vm487 = vcmp.ge.s32.totalorder %v443, 1
        %vm488 = vcmp.ge.s32.totalorder %v444, 1
        %vm489 = vcmp.ge.s32.totalorder %v445, 1
        %vm490 = vcmp.ge.s32.totalorder %v446, 1
        %vm491 = vcmp.ge.s32.totalorder %v447, 1
        %v492 = vsel %vm484, %v466, 0.0
        %v493 = vsel %vm485, %v465, 0.0
        %v494 = vsel %vm486, %v464, 0.0
        %v495 = vsel %vm487, %v463, 0.0
        %v496 = vsel %vm488, %v462, 0.0
        %v497 = vsel %vm489, %v461, 0.0
        %v498 = vsel %vm490, %v460, 0.0
        %v499 = vsel %vm491, %v459, 0.0
        %vm500 = vcmp.lt.s32.totalorder %v440, 63
        %vm501 = vcmp.lt.s32.totalorder %v441, 63
        %vm502 = vcmp.lt.s32.totalorder %v442, 63
        %vm503 = vcmp.lt.s32.totalorder %v443, 63
        %vm504 = vcmp.lt.s32.totalorder %v444, 63
        %vm505 = vcmp.lt.s32.totalorder %v445, 63
        %vm506 = vcmp.lt.s32.totalorder %v446, 63
        %vm507 = vcmp.lt.s32.totalorder %v447, 63
        %v508 = vsel %vm500, %v482, 0.0
        %v509 = vsel %vm501, %v481, 0.0
        %v510 = vsel %vm502, %v480, 0.0
        %v511 = vsel %vm503, %v479, 0.0
        %v512 = vsel %vm504, %v478, 0.0
        %v513 = vsel %vm505, %v477, 0.0
        %v514 = vsel %vm506, %v476, 0.0
        %v515 = vsel %vm507, %v483, 0.0
        %vm516 = vcmp.lt.s32.totalorder %v449, 16
        %vm517 = vcmp.lt.s32.totalorder %v449, 32
        %v518 = vsel %vm517, %v508, %v431
        %v519 = vsel %vm517, %v509, %v432
        %v520 = vsel %vm517, %v510, %v433
        %v521 = vsel %vm517, %v511, %v434
        %v522 = vsel %vm517, %v512, %v435
        %v523 = vsel %vm517, %v513, %v436
        %v524 = vsel %vm517, %v514, %v437
        %v525 = vsel %vm517, %v515, %v438
        %v526 = vsel %vm516, %v492, %v518
        %v527 = vsel %vm516, %v493, %v519
        %v528 = vsel %vm516, %v494, %v520
        %v529 = vsel %vm516, %v495, %v521
        %v530 = vsel %vm516, %v496, %v522
        %v531 = vsel %vm516, %v497, %v523
        %v532 = vsel %vm516, %v498, %v524
        %v533 = vsel %vm516, %v499, %v525
        %v534 = vlaneseq
        %v535 = vshrl.u32 %v534, 7
        %v536 = vsub.s32 2, %v535
        %v537 = vrot.slane %v308, %v536
        %v538 = vmul.f32 %v431, %v537
        %v539 = vmul.f32 %v432, %v537
        %v540 = vmul.f32 %v433, %v537
        %v541 = vmul.f32 %v434, %v537
        %v542 = vmul.f32 %v435, %v537
        %v543 = vmul.f32 %v436, %v537
        %v544 = vmul.f32 %v437, %v537
        %v545 = vmul.f32 %v438, %v537
        %v546 = vsub.f32 1.0, %v308
        %v547 = vlaneseq
        %v548 = vshrl.u32 %v547, 7
        %v549 = vsub.s32 2, %v548
        %v550 = vrot.slane %v546, %v549
        %v551 = vmul.f32 %v526, %v550
        %v552 = vmul.f32 %v527, %v550
        %v553 = vmul.f32 %v528, %v550
        %v554 = vmul.f32 %v529, %v550
        %v555 = vmul.f32 %v530, %v550
        %v556 = vmul.f32 %v531, %v550
        %v557 = vmul.f32 %v532, %v550
        %v558 = vmul.f32 %v533, %v550
        %v559 = vadd.f32 %v538, %v551
        %v560 = vadd.f32 %v539, %v552
        %v561 = vadd.f32 %v540, %v553
        %v562 = vadd.f32 %v541, %v554
        %v563 = vadd.f32 %v542, %v555
        %v564 = vadd.f32 %v543, %v556
        %v565 = vadd.f32 %v544, %v557
        %v566 = vadd.f32 %v545, %v558
        %v567 = vpack.c.bf16 %v560, %v559
        %v568 = vpack.c.bf16 %v562, %v561
        %v569 = vpack.c.bf16 %v564, %v563
        %v570 = vpack.c.bf16 %v566, %v565
        %v571 = vlaneseq
        %v572 = vshrl.u32 %v571, 7
        %v573 = vsub.s32 3, %v572
        %v574 = vrot.slane %v308, %v573
        %v575 = vmul.f32 %v431, %v574
        %v576 = vmul.f32 %v432, %v574
        %v577 = vmul.f32 %v433, %v574
        %v578 = vmul.f32 %v434, %v574
        %v579 = vmul.f32 %v435, %v574
        %v580 = vmul.f32 %v436, %v574
        %v581 = vmul.f32 %v437, %v574
        %v582 = vmul.f32 %v438, %v574
        %v583 = vlaneseq
        %v584 = vshrl.u32 %v583, 7
        %v585 = vsub.s32 3, %v584
        %v586 = vrot.slane %v546, %v585
        %v587 = vmul.f32 %v526, %v586
        %v588 = vmul.f32 %v527, %v586
        %v589 = vmul.f32 %v528, %v586
        %v590 = vmul.f32 %v529, %v586
        %v591 = vmul.f32 %v530, %v586
        %v592 = vmul.f32 %v531, %v586
        %v593 = vmul.f32 %v532, %v586
        %v594 = vmul.f32 %v533, %v586
        %v595 = vadd.f32 %v575, %v587
        %v596 = vadd.f32 %v576, %v588
        %v597 = vadd.f32 %v577, %v589
        %v598 = vadd.f32 %v578, %v590
        %v599 = vadd.f32 %v579, %v591
        %v600 = vadd.f32 %v580, %v592
        %v601 = vadd.f32 %v581, %v593
        %v602 = vadd.f32 %v582, %v594
        %v603 = vpack.c.bf16 %v596, %v595
        %v604 = vpack.c.bf16 %v598, %v597
        %v605 = vpack.c.bf16 %v600, %v599
        %v606 = vpack.c.bf16 %v602, %v601
        %v607 = vld [vmem:[#allocation7] sm:$0xf]
        %v608 = vld [vmem:[#allocation7 + $0x4] sm:$0xf]
        %v609 = vld [vmem:[#allocation7 + $0x8] sm:$0xf]
        %v610 = vld [vmem:[#allocation7 + $0xc] sm:$0xf]
        %v611 = vld [vmem:[#allocation8] sm:$0xf]
        %v612 = vld [vmem:[#allocation8 + $0x4] sm:$0xf]
        %v613 = vld [vmem:[#allocation8 + $0x8] sm:$0xf]
        %v614 = vld [vmem:[#allocation8 + $0xc] sm:$0xf]
        %v615 = vld [vmem:[#allocation8 + $0x10] sm:$0xf]
        %v616 = vld [vmem:[#allocation8 + $0x14] sm:$0xf]
        %v617 = vld [vmem:[#allocation8 + $0x18] sm:$0xf]
        %v618 = vld [vmem:[#allocation8 + $0x1c] sm:$0xf]
        %v619 = vld [vmem:[#allocation8 + $0x20] sm:$0xf]
        %v620 = vld [vmem:[#allocation8 + $0x24] sm:$0xf]
        %v621 = vld [vmem:[#allocation8 + $0x28] sm:$0xf]
        %v622 = vld [vmem:[#allocation8 + $0x2c] sm:$0xf]
        %v623 = vld [vmem:[#allocation8 + $0x30] sm:$0xf]
        %v624 = vld [vmem:[#allocation8 + $0x34] sm:$0xf]
        %v625 = vld [vmem:[#allocation8 + $0x38] sm:$0xf]
        %v626 = vld [vmem:[#allocation8 + $0x3c] sm:$0xf]
        %v631 = vunpack.c.l.b16 %v607
        %v632 = vunpack.c.l.b16 %v608
        %v633 = vunpack.c.l.b16 %v609
        %v634 = vunpack.c.l.b16 %v610
        %v635 = vpack.c.b16 %v632, %v631
        %v636 = vpack.c.b16 %v634, %v633
        %v640 = vsel %vm309, %v567, 0
        %v643 = vsel %vm309, %v568, 0
        %v646 = vsel %vm309, %v569, 0
        %v649 = vsel %vm309, %v570, 0
        %651 = vmatprep.subr.bf16.mxu0 0
        %652 = vmatpush1.bf16.msra.mxu0 %v635
        %653 = vmatprep.subr.bf16.mxu0 0
        %654 = vmatpush1.bf16.msra.mxu0 %v636
        %655 = vmatprep.subr.bf16.mxu0 0
        %656 = vmatpush1.bf16.msra.mxu0 0
        %657 = vmatprep.subr.bf16.mxu0 0
        %658 = vmatpush1.bf16.msra.mxu0 0
        %659 = vmatprep.subr.bf16.mxu0 0
        %660 = vmatpush1.bf16.msra.mxu0 0
        %661 = vmatprep.subr.bf16.mxu0 0
        %662 = vmatpush1.bf16.msra.mxu0 0
        %663 = vmatprep.subr.bf16.mxu0 0
        %664 = vmatpush1.bf16.msra.mxu0 0
        %665 = vmatprep.subr.bf16.mxu0 0
        %666 = vmatpush1.bf16.msra.mxu0 0
        %667 = vmatprep.subr.bf16.mxu0 0
        %668 = vmatpush1.bf16.msra.mxu0 0
        %669 = vmatprep.subr.bf16.mxu0 0
        %670 = vmatpush1.bf16.msra.mxu0 0
        %671 = vmatprep.subr.bf16.mxu0 0
        %672 = vmatpush1.bf16.msra.mxu0 0
        %673 = vmatprep.subr.bf16.mxu0 0
        %674 = vmatpush1.bf16.msra.mxu0 0
        %675 = vmatprep.subr.bf16.mxu0 0
        %676 = vmatpush1.bf16.msra.mxu0 0
        %677 = vmatprep.subr.bf16.mxu0 0
        %678 = vmatpush1.bf16.msra.mxu0 0
        %679 = vmatprep.subr.bf16.mxu0 0
        %680 = vmatpush1.bf16.msra.mxu0 0
        %681 = vmatprep.subr.bf16.mxu0 0
        %682 = vmatpush1.bf16.msra.mxu0 0
        %683 = vmatprep.mubr.bf16.mxu0 0
        %684 = vmatmul.mubr.bf16.gmra.mrb[0].mxu0 %v640
        %v685 = vpop.f32.mrb[0].mxu0
        %v686 = vadd.f32 0.0, %v685
        %v687 = vpop.f32.mrb[0].mxu0
        %v688 = vpop.f32.mrb[0].mxu0
        %v689 = vadd.f32 0.0, %v688
        %v690 = vpop.f32.mrb[0].mxu0
        %691 = vmatprep.mubr.bf16.mxu0 0
        %692 = vmatmul.mubr.bf16.gmra.mrb[0].mxu0 %v643
        %v693 = vpop.f32.mrb[0].mxu0
        %v694 = vadd.f32 0.0, %v693
        %v695 = vpop.f32.mrb[0].mxu0
        %v696 = vpop.f32.mrb[0].mxu0
        %v697 = vadd.f32 0.0, %v696
        %v698 = vpop.f32.mrb[0].mxu0
        %699 = vmatprep.mubr.bf16.mxu0 0
        %700 = vmatmul.mubr.bf16.gmra.mrb[0].mxu0 %v646
        %v701 = vpop.f32.mrb[0].mxu0
        %v702 = vadd.f32 0.0, %v701
        %v703 = vpop.f32.mrb[0].mxu0
        %v704 = vpop.f32.mrb[0].mxu0
        %v705 = vadd.f32 0.0, %v704
        %v706 = vpop.f32.mrb[0].mxu0
        %707 = vmatprep.mubr.bf16.mxu0 0
        %708 = vmatmul.mubr.bf16.gmra.mrb[0].mxu0 %v649
        %v709 = vpop.f32.mrb[0].mxu0
        %v710 = vadd.f32 0.0, %v709
        %v711 = vpop.f32.mrb[0].mxu0
        %v712 = vpop.f32.mrb[0].mxu0
        %v713 = vadd.f32 0.0, %v712
        %v714 = vpop.f32.mrb[0].mxu0
        %715 = vdwg.mxu0
        %v716 = vmax.f32 %v686, 0.0
        %v717 = vmax.f32 %v689, 0.0
        %v718 = vmax.f32 %v694, 0.0
        %v719 = vmax.f32 %v697, 0.0
        %v720 = vmax.f32 %v702, 0.0
        %v721 = vmax.f32 %v705, 0.0
        %v722 = vmax.f32 %v710, 0.0
        %v723 = vmax.f32 %v713, 0.0
        %v724 = vmul.f32 %v716, %v716
        %v725 = vmul.f32 %v717, %v717
        %v726 = vmul.f32 %v718, %v718
        %v727 = vmul.f32 %v719, %v719
        %v728 = vmul.f32 %v720, %v720
        %v729 = vmul.f32 %v721, %v721
        %v730 = vmul.f32 %v722, %v722
        %v731 = vmul.f32 %v723, %v723
        %v732 = vpack.c.bf16 %v725, %v724
        %v733 = vpack.c.bf16 %v727, %v726
        %v734 = vpack.c.bf16 %v729, %v728
        %v735 = vpack.c.bf16 %v731, %v730
        %v752 = vunpack.c.l.b16 %v611
        %v753 = vunpack.c.l.b16 %v612
        %v754 = vunpack.c.l.b16 %v613
        %v755 = vunpack.c.l.b16 %v614
        %v756 = vunpack.c.l.b16 %v615
        %v757 = vunpack.c.l.b16 %v616
        %v758 = vunpack.c.l.b16 %v617
        %v759 = vunpack.c.l.b16 %v618
        %v760 = vunpack.c.l.b16 %v619
        %v761 = vunpack.c.l.b16 %v620
        %v762 = vunpack.c.l.b16 %v621
        %v763 = vunpack.c.l.b16 %v622
        %v764 = vunpack.c.l.b16 %v623
        %v765 = vunpack.c.l.b16 %v624
        %v766 = vunpack.c.l.b16 %v625
        %v767 = vunpack.c.l.b16 %v626
        %v768 = vpack.c.b16 %v753, %v752
        %v769 = vpack.c.b16 %v755, %v754
        %v770 = vpack.c.b16 %v757, %v756
        %v771 = vpack.c.b16 %v759, %v758
        %v772 = vpack.c.b16 %v761, %v760
        %v773 = vpack.c.b16 %v763, %v762
        %v774 = vpack.c.b16 %v765, %v764
        %v775 = vpack.c.b16 %v767, %v766
        %784 = vmatprep.subr.bf16.mxu0 0
        %785 = vmatpush1.bf16.msra.mxu0 %v768
        %786 = vmatprep.subr.bf16.mxu0 0
        %787 = vmatpush1.bf16.msra.mxu0 %v769
        %788 = vmatprep.subr.bf16.mxu0 0
        %789 = vmatpush1.bf16.msra.mxu0 %v770
        %790 = vmatprep.subr.bf16.mxu0 0
        %791 = vmatpush1.bf16.msra.mxu0 %v771
        %792 = vmatprep.subr.bf16.mxu0 0
        %793 = vmatpush1.bf16.msra.mxu0 %v772
        %794 = vmatprep.subr.bf16.mxu0 0
        %795 = vmatpush1.bf16.msra.mxu0 %v773
        %796 = vmatprep.subr.bf16.mxu0 0
        %797 = vmatpush1.bf16.msra.mxu0 %v774
        %798 = vmatprep.subr.bf16.mxu0 0
        %799 = vmatpush1.bf16.msra.mxu0 %v775
        %800 = vmatprep.subr.bf16.mxu0 0
        %801 = vmatpush1.bf16.msra.mxu0 0
        %802 = vmatprep.subr.bf16.mxu0 0
        %803 = vmatpush1.bf16.msra.mxu0 0
        %804 = vmatprep.subr.bf16.mxu0 0
        %805 = vmatpush1.bf16.msra.mxu0 0
        %806 = vmatprep.subr.bf16.mxu0 0
        %807 = vmatpush1.bf16.msra.mxu0 0
        %808 = vmatprep.subr.bf16.mxu0 0
        %809 = vmatpush1.bf16.msra.mxu0 0
        %810 = vmatprep.subr.bf16.mxu0 0
        %811 = vmatpush1.bf16.msra.mxu0 0
        %812 = vmatprep.subr.bf16.mxu0 0
        %813 = vmatpush1.bf16.msra.mxu0 0
        %814 = vmatprep.subr.bf16.mxu0 0
        %815 = vmatpush1.bf16.msra.mxu0 0
        %816 = vmatprep.mubr.bf16.mxu0 0
        %817 = vmatmul.mubr.bf16.gmra.mrb[0].mxu0 %v732
        %v818 = vpop.f32.mrb[0].mxu0
        %v819 = vadd.f32 0.0, %v818
        %v820 = vpop.f32.mrb[0].mxu0
        %v821 = vpop.f32.mrb[0].mxu0
        %v822 = vadd.f32 0.0, %v821
        %v823 = vpop.f32.mrb[0].mxu0
        %824 = vmatprep.mubr.bf16.mxu0 0
        %825 = vmatmul.mubr.bf16.gmra.mrb[0].mxu0 %v733
        %v826 = vpop.f32.mrb[0].mxu0
        %v827 = vadd.f32 0.0, %v826
        %v828 = vpop.f32.mrb[0].mxu0
        %v829 = vpop.f32.mrb[0].mxu0
        %v830 = vadd.f32 0.0, %v829
        %v831 = vpop.f32.mrb[0].mxu0
        %832 = vmatprep.mubr.bf16.mxu0 0
        %833 = vmatmul.mubr.bf16.gmra.mrb[0].mxu0 %v734
        %v834 = vpop.f32.mrb[0].mxu0
        %v835 = vadd.f32 0.0, %v834
        %v836 = vpop.f32.mrb[0].mxu0
        %v837 = vpop.f32.mrb[0].mxu0
        %v838 = vadd.f32 0.0, %v837
        %v839 = vpop.f32.mrb[0].mxu0
        %840 = vmatprep.mubr.bf16.mxu0 0
        %841 = vmatmul.mubr.bf16.gmra.mrb[0].mxu0 %v735
        %v842 = vpop.f32.mrb[0].mxu0
        %v843 = vadd.f32 0.0, %v842
        %v844 = vpop.f32.mrb[0].mxu0
        %v845 = vpop.f32.mrb[0].mxu0
        %v846 = vadd.f32 0.0, %v845
        %v847 = vpop.f32.mrb[0].mxu0
        %848 = vdwg.mxu0
        %v849 = vld [vmem:[#allocation10] sm:$0xf]
        %v850 = vld [vmem:[#allocation10 + $0x4] sm:$0xf]
        %v851 = vld [vmem:[#allocation10 + $0x8] sm:$0xf]
        %v852 = vld [vmem:[#allocation10 + $0xc] sm:$0xf]
        %v857 = vunpack.c.l.b16 %v849
        %v858 = vunpack.c.l.b16 %v850
        %v859 = vunpack.c.l.b16 %v851
        %v860 = vunpack.c.l.b16 %v852
        %v861 = vpack.c.b16 %v858, %v857
        %v862 = vpack.c.b16 %v860, %v859
        %v866 = vsel %vm309, %v603, 0
        %v869 = vsel %vm309, %v604, 0
        %v872 = vsel %vm309, %v605, 0
        %v875 = vsel %vm309, %v606, 0
        %877 = vmatprep.subr.bf16.mxu0 0
        %878 = vmatpush1.bf16.msra.mxu0 %v861
        %879 = vmatprep.subr.bf16.mxu0 0
        %880 = vmatpush1.bf16.msra.mxu0 %v862
        %881 = vmatprep.subr.bf16.mxu0 0
        %882 = vmatpush1.bf16.msra.mxu0 0
        %883 = vmatprep.subr.bf16.mxu0 0
        %884 = vmatpush1.bf16.msra.mxu0 0
        %885 = vmatprep.subr.bf16.mxu0 0
        %886 = vmatpush1.bf16.msra.mxu0 0
        %887 = vmatprep.subr.bf16.mxu0 0
        %888 = vmatpush1.bf16.msra.mxu0 0
        %889 = vmatprep.subr.bf16.mxu0 0
        %890 = vmatpush1.bf16.msra.mxu0 0
        %891 = vmatprep.subr.bf16.mxu0 0
        %892 = vmatpush1.bf16.msra.mxu0 0
        %893 = vmatprep.subr.bf16.mxu0 0
        %894 = vmatpush1.bf16.msra.mxu0 0
        %895 = vmatprep.subr.bf16.mxu0 0
        %896 = vmatpush1.bf16.msra.mxu0 0
        %897 = vmatprep.subr.bf16.mxu0 0
        %898 = vmatpush1.bf16.msra.mxu0 0
        %899 = vmatprep.subr.bf16.mxu0 0
        %900 = vmatpush1.bf16.msra.mxu0 0
        %901 = vmatprep.subr.bf16.mxu0 0
        %902 = vmatpush1.bf16.msra.mxu0 0
        %903 = vmatprep.subr.bf16.mxu0 0
        %904 = vmatpush1.bf16.msra.mxu0 0
        %905 = vmatprep.subr.bf16.mxu0 0
        %906 = vmatpush1.bf16.msra.mxu0 0
        %907 = vmatprep.subr.bf16.mxu0 0
        %908 = vmatpush1.bf16.msra.mxu0 0
        %909 = vmatprep.mubr.bf16.mxu0 0
        %910 = vmatmul.mubr.bf16.gmra.mrb[0].mxu0 %v866
        %v911 = vpop.f32.mrb[0].mxu0
        %v912 = vadd.f32 0.0, %v911
        %v913 = vpop.f32.mrb[0].mxu0
        %v914 = vpop.f32.mrb[0].mxu0
        %v915 = vadd.f32 0.0, %v914
        %v916 = vpop.f32.mrb[0].mxu0
        %917 = vmatprep.mubr.bf16.mxu0 0
        %918 = vmatmul.mubr.bf16.gmra.mrb[0].mxu0 %v869
        %v919 = vpop.f32.mrb[0].mxu0
        %v920 = vadd.f32 0.0, %v919
        %v921 = vpop.f32.mrb[0].mxu0
        %v922 = vpop.f32.mrb[0].mxu0
        %v923 = vadd.f32 0.0, %v922
        %v924 = vpop.f32.mrb[0].mxu0
        %925 = vmatprep.mubr.bf16.mxu0 0
        %926 = vmatmul.mubr.bf16.gmra.mrb[0].mxu0 %v872
        %v927 = vpop.f32.mrb[0].mxu0
        %v928 = vadd.f32 0.0, %v927
        %v929 = vpop.f32.mrb[0].mxu0
        %v930 = vpop.f32.mrb[0].mxu0
        %v931 = vadd.f32 0.0, %v930
        %v932 = vpop.f32.mrb[0].mxu0
        %933 = vmatprep.mubr.bf16.mxu0 0
        %934 = vmatmul.mubr.bf16.gmra.mrb[0].mxu0 %v875
        %v935 = vpop.f32.mrb[0].mxu0
        %v936 = vadd.f32 0.0, %v935
        %v937 = vpop.f32.mrb[0].mxu0
        %v938 = vpop.f32.mrb[0].mxu0
        %v939 = vadd.f32 0.0, %v938
        %v940 = vpop.f32.mrb[0].mxu0
        %941 = vdwg.mxu0
        %v942 = vxor.u32 %v912, 2147483648
        %v943 = vxor.u32 %v915, 2147483648
        %v944 = vxor.u32 %v920, 2147483648
        %v945 = vxor.u32 %v923, 2147483648
        %v946 = vxor.u32 %v928, 2147483648
        %v947 = vxor.u32 %v931, 2147483648
        %v948 = vxor.u32 %v936, 2147483648
        %v949 = vxor.u32 %v939, 2147483648
        %v950 = vmul.f32 %v942, 1.442695
        %v951 = vpow.pop %v950
        %v952 = vmul.f32 %v943, 1.442695
        %v953 = vpow.pop %v952
        %v954 = vmul.f32 %v944, 1.442695
        %v955 = vpow.pop %v954
        %v956 = vmul.f32 %v945, 1.442695
        %v957 = vpow.pop %v956
        %v958 = vmul.f32 %v946, 1.442695
        %v959 = vpow.pop %v958
        %v960 = vmul.f32 %v947, 1.442695
        %v961 = vpow.pop %v960
        %v962 = vmul.f32 %v948, 1.442695
        %v963 = vpow.pop %v962
        %v964 = vmul.f32 %v949, 1.442695
        %v965 = vpow.pop %v964
        %v966 = vadd.f32 %v951, 1.0
        %v967 = vadd.f32 %v953, 1.0
        %v968 = vadd.f32 %v955, 1.0
        %v969 = vadd.f32 %v957, 1.0
        %v970 = vadd.f32 %v959, 1.0
        %v971 = vadd.f32 %v961, 1.0
        %v972 = vadd.f32 %v963, 1.0
        %v973 = vadd.f32 %v965, 1.0
        %v974 = vrcp.pop %v966
        %v975 = vmul.f32 1.0, %v974
        %v976 = vrcp.pop %v967
        %v977 = vmul.f32 1.0, %v976
        %v978 = vrcp.pop %v968
        %v979 = vmul.f32 1.0, %v978
        %v980 = vrcp.pop %v969
        %v981 = vmul.f32 1.0, %v980
        %v982 = vrcp.pop %v970
        %v983 = vmul.f32 1.0, %v982
        %v984 = vrcp.pop %v971
        %v985 = vmul.f32 1.0, %v984
        %v986 = vrcp.pop %v972
        %v987 = vmul.f32 1.0, %v986
        %v988 = vrcp.pop %v973
        %v989 = vmul.f32 1.0, %v988
        %v990 = vmul.f32 %v975, %v819
        %v991 = vmul.f32 %v977, %v822
        %v992 = vmul.f32 %v979, %v827
        %v993 = vmul.f32 %v981, %v830
        %v994 = vmul.f32 %v983, %v835
        %v995 = vmul.f32 %v985, %v838
        %v996 = vmul.f32 %v987, %v843
        %v997 = vmul.f32 %v989, %v846
        %v998 = vadd.f32 %v300, %v990
        %v999 = vadd.f32 %v301, %v991
        %v1000 = vadd.f32 %v302, %v992
        %v1001 = vadd.f32 %v303, %v993
        %v1002 = vadd.f32 %v304, %v994
        %v1003 = vadd.f32 %v305, %v995
        %v1004 = vadd.f32 %v306, %v996
        %v1005 = vadd.f32 %v307, %v997
        %1006 = vst.msk [vmem:[%s298] sm:$0xff] %vm309, %v998
        %1007 = vst.msk [vmem:[%s298 + $0x8] sm:$0xff] %vm309, %v999
        %1008 = vst.msk [vmem:[%s298 + $0x10] sm:$0xff] %vm309, %v1000
        %1009 = vst.msk [vmem:[%s298 + $0x18] sm:$0xff] %vm309, %v1001
        %1010 = vst.msk [vmem:[%s298 + $0x20] sm:$0xff] %vm309, %v1002
        %1011 = vst.msk [vmem:[%s298 + $0x28] sm:$0xff] %vm309, %v1003
        %1012 = vst.msk [vmem:[%s298 + $0x30] sm:$0xff] %vm309, %v1004
        %1013 = vst.msk [vmem:[%s298 + $0x38] sm:$0xff] %vm309, %v1005
        %s1014 = sand.u32 %s142, 1
        %s1015 = scalar_lea.sflag [#allocation4], %s1014
        %s1016 = sand.u32 %s142, 1
        %s1017 = smul.addr %s1016, 64
        %s1018 = scalar_lea.vmem [#allocation11], %s1017
        // Predicated region
        $region61: #{_lambda_.5} parent=39 // pred_check
          %p1019 = pneg %p152
        $region62: #{_lambda_.5} parent=39 // pred_check_branch
          %1021 = sbr.rel (%p1019) target = $region64
        $region63: #{_lambda_.5} parent=39 // pred_region
          %s1023 = ssub.s32 1024, 1024
          %1024 = vsyncadd %s1015, %s1023
          %s1025 = smul.addr %s24, 8
          %s1026 = smul.addr %s1025, 128
          %s1027 = scalar_lea.hbm %s5, %s1026
          %s1028 = sshll.u32 %s1018, 4
          %s1029 = int_to_ptr.vmem [resolvable:$true] %s1028
          %1034 = dma.vmem_to_hbm [thread:$0]  %s1029, 1024, %s1027, %s1015, 128, 128, 8
        $region64: #{_lambda_.5} parent=39 // pred_fallthru
          _
      $region40: #{_lambda_.5} parent=5 // pred_fallthru
        _
      %p1035 = scmp.le.s32.totalorder 2, %s19
      // Predicated region
      $region65: #{_lambda_.5} parent=5 // pred_check
        %p1036 = pneg %p1035
      $region66: #{_lambda_.5} parent=5 // pred_check_branch
        %1038 = sbr.rel (%p1036) target = $region68
      $region67: #{_lambda_.5} parent=5 // pred_region
        %s1039 = ssub.s32 %s19, 2
        // Predicated region
        $region69: #{_lambda_.5} parent=67 // pred_check
          %p1040 = pneg %p158
        $region70: #{_lambda_.5} parent=67 // pred_check_branch
          %1042 = sbr.rel (%p1040) target = $region72
        $region71: #{_lambda_.5} parent=67 // pred_region
          %s1043 = sand.u32 %s143, 1
          %s1044 = scalar_lea.sflag [#allocation4], %s1043
          %s1045 = sand.u32 %s143, 1
          %s1046 = smul.addr %s1045, 64
          %s1047 = scalar_lea.vmem [#allocation11], %s1046
          %1048 = dma.done %s1044, 1024
        $region72: #{_lambda_.5} parent=67 // pred_fallthru
          _
      $region68: #{_lambda_.5} parent=5 // pred_fallthru
        _
    $region6: #{_lambda_.5} parent=1 // loop_footer
      %s23 = sadd.s32 1, %s19
    $region7: #{_lambda_.5} parent=1 // loop_footer_branch
      %18 = sbr.rel target = $region3
    $region8: #{_lambda_.5} parent=1 // loop_exit
      _
    %1049 = vsyncpa [#allocation3], 1
    %s1050 = scalar_lea.sflag [#allocation3], 1
    %1051 = vsyncpa %s1050, 1
    %1052 = vsyncpa [#allocation6], 1
    %1053 = vsyncpa [#allocation9], 1
    %1054 = vsyncpa [#allocation4], 1
    %s1055 = scalar_lea.sflag [#allocation4], 1
    %1056 = vsyncpa %s1055, 1

// kernel: _lambda_.7
$region0: #{_lambda_.7}
  #allocation0 [shape = 'u32[]', space=smem, size = 0x4, offset = 0x4, fixed_abs, tag = 'smem constant byte address 0x4 - core index']
  #allocation1 [shape = 'u32[144,128]{1,0:T(1,128)}', space=vmem, size = 0x12000, scoped, tag = 'internal scratch']
  %s0 = inlined_call_operand.hbm [shape: f32[2,64,32], index: 0, kind: input, shape index: {}]
  %s1 = inlined_call_operand.hbm [shape: f32[8,32], index: 1, kind: input, shape index: {}]
  %s2 = inlined_call_operand.hbm [shape: bf16[32,128], index: 2, kind: input, shape index: {}]
  %s3 = inlined_call_operand.hbm [shape: bf16[128,32], index: 3, kind: input, shape index: {}]
  %s4 = inlined_call_operand.hbm [shape: bf16[32,32], index: 4, kind: input, shape index: {}]
  %s5 = inlined_call_operand.hbm [shape: f32[2,64,32], index: 5, kind: output, shape index: {}]
  %s6 = sld [smem:[#allocation0]]
  $region73: #{_lambda_.7} parent=0
    _
  %s8 = ssub.s32 1, %s6
  %s9 = scalar_select 0, %s8, %s6
  $region1: #{_lambda_.7} parent=0
    #allocation2 [shape = 'u8[65536]{0}', space=vmem, size = 0x10000, scoped, tag = 'input window, operand 0']
    #allocation3 [shape = 's32[2]{0}', space=sflag, size = 0x8, scoped, tag = 'scoped memory for _lambda_.7']
    #allocation4 [shape = 's32[2]{0}', space=sflag, size = 0x8, scoped, tag = 'scoped memory for _lambda_.7']
    #allocation5 [shape = 'u8[4096]{0}', space=vmem, size = 0x1000, scoped, tag = 'input window, operand 1, single buffered']
    #allocation6 [shape = 's32[1]{0}', space=sflag, size = 0x4, scoped, tag = 'scoped memory for _lambda_.7']
    #allocation7 [shape = 'u8[8192]{0}', space=vmem, size = 0x2000, scoped, tag = 'input window, operand 2, single buffered']
    #allocation8 [shape = 'u8[32768]{0}', space=vmem, size = 0x8000, scoped, tag = 'input window, operand 3, single buffered']
    #allocation9 [shape = 's32[1]{0}', space=sflag, size = 0x4, scoped, tag = 'scoped memory for _lambda_.7']
    #allocation10 [shape = 'u8[8192]{0}', space=vmem, size = 0x2000, scoped, tag = 'input window, operand 4, single buffered']
    #allocation11 [shape = 'u8[65536]{0}', space=vmem, size = 0x10000, scoped, tag = 'output window, operand 0']
    %10 = vsyncpa [#allocation3], 0
    %s11 = scalar_lea.sflag [#allocation3], 1
    %12 = vsyncpa %s11, 0
    %13 = vsyncpa [#allocation6], 0
    %14 = vsyncpa [#allocation9], 0
    %15 = vsyncpa [#allocation4], 0
    %s16 = scalar_lea.sflag [#allocation4], 1
    %17 = vsyncpa %s16, 0
    loop: start=0, step=1, limit=4
    $region2: #{_lambda_.7} parent=1 // loop_pre_header
      _
    $region3: #{_lambda_.7} parent=1 // loop_header
      %s19 = sphi 0, %s23
      %p20 = scmp.ge.s32.totalorder %s19, 4
      %s29 = sphi 0, %s31
      %s32 = sphi 0, %s29
      %s33 = sphi 0, %s32
      %s49 = sphi 0, %s33
      %s53 = sphi 0, %s53
      %s55 = sphi 0, %s53
      %s56 = sphi 0, %s55
      %s70 = sphi 0, %s56
      %s74 = sphi 0, %s74
      %s76 = sphi 0, %s74
      %s77 = sphi 0, %s76
      %s91 = sphi 0, %s77
      %s95 = sphi 0, %s95
      %s97 = sphi 0, %s95
      %s98 = sphi 0, %s97
      %s112 = sphi 0, %s98
      %s116 = sphi 0, %s116
      %s118 = sphi 0, %s116
      %s119 = sphi 0, %s118
      %s133 = sphi 0, %s119
      %s139 = sphi 0, %s141
      %s142 = sphi 0, %s139
      %s143 = sphi 0, %s142
      %s159 = sphi 0, %s143
    $region4: #{_lambda_.7} parent=1 // loop_header_branch
      %22 = sbr.rel (%p20) target = $region8
    $region5: #{_lambda_.7} parent=1 // loop_body
      %s24 = ssub.s32 %s19, 1
      %s25 = ssub.s32 %s19, 2
      %s26 = sadd.s32 %s19, 1
      %s27 = ssub.s32 %s19, %s26
      %p28 = scmp.eq.s32.totalorder %s27, 0
      %s30 = sadd.s32 %s29, 1
      %s31 = scalar_select %p28, %s29, %s30
      %p34 = pneg %p28
      %p35 = scmp.eq.s32.totalorder %s19, 1
      %p36 = por %p34, %p35
      %p37 = scmp.ne.s32.totalorder %s29, %s32
      %p38 = scmp.eq.s32.totalorder %s19, 0
      %p39 = por %p37, %p38
      %p40 = scmp.ne.s32.totalorder %s29, %s32
      %p41 = scmp.eq.s32.totalorder %s24, 1
      %p42 = por %p40, %p41
      %p43 = scmp.ne.s32.totalorder %s32, %s33
      %p44 = scmp.eq.s32.totalorder %s24, 0
      %p45 = por %p43, %p44
      %p46 = scmp.ne.s32.totalorder %s32, %s33
      %p47 = scmp.eq.s32.totalorder %s25, 1
      %p48 = por %p46, %p47
      %p50 = scmp.ne.s32.totalorder %s33, %s49
      %p51 = scmp.eq.s32.totalorder %s25, 0
      %p52 = por %p50, %p51
      %s54 = sadd.s32 %s53, 1
      %p57 = scmp.eq.s32.totalorder %s19, 1
      %p58 = scmp.ne.s32.totalorder %s53, %s55
      %p59 = scmp.eq.s32.totalorder %s19, 0
      %p60 = por %p58, %p59
      %p61 = scmp.ne.s32.totalorder %s53, %s55
      %p62 = scmp.eq.s32.totalorder %s24, 1
      %p63 = por %p61, %p62
      %p64 = scmp.ne.s32.totalorder %s55, %s56
      %p65 = scmp.eq.s32.totalorder %s24, 0
      %p66 = por %p64, %p65
      %p67 = scmp.ne.s32.totalorder %s55, %s56
      %p68 = scmp.eq.s32.totalorder %s25, 1
      %p69 = por %p67, %p68
      %p71 = scmp.ne.s32.totalorder %s56, %s70
      %p72 = scmp.eq.s32.totalorder %s25, 0
      %p73 = por %p71, %p72
      %s75 = sadd.s32 %s74, 1
      %p78 = scmp.eq.s32.totalorder %s19, 1
      %p79 = scmp.ne.s32.totalorder %s74, %s76
      %p80 = scmp.eq.s32.totalorder %s19, 0
      %p81 = por %p79, %p80
      %p82 = scmp.ne.s32.totalorder %s74, %s76
      %p83 = scmp.eq.s32.totalorder %s24, 1
      %p84 = por %p82, %p83
      %p85 = scmp.ne.s32.totalorder %s76, %s77
      %p86 = scmp.eq.s32.totalorder %s24, 0
      %p87 = por %p85, %p86
      %p88 = scmp.ne.s32.totalorder %s76, %s77
      %p89 = scmp.eq.s32.totalorder %s25, 1
      %p90 = por %p88, %p89
      %p92 = scmp.ne.s32.totalorder %s77, %s91
      %p93 = scmp.eq.s32.totalorder %s25, 0
      %p94 = por %p92, %p93
      %s96 = sadd.s32 %s95, 1
      %p99 = scmp.eq.s32.totalorder %s19, 1
      %p100 = scmp.ne.s32.totalorder %s95, %s97
      %p101 = scmp.eq.s32.totalorder %s19, 0
      %p102 = por %p100, %p101
      %p103 = scmp.ne.s32.totalorder %s95, %s97
      %p104 = scmp.eq.s32.totalorder %s24, 1
      %p105 = por %p103, %p104
      %p106 = scmp.ne.s32.totalorder %s97, %s98
      %p107 = scmp.eq.s32.totalorder %s24, 0
      %p108 = por %p106, %p107
      %p109 = scmp.ne.s32.totalorder %s97, %s98
      %p110 = scmp.eq.s32.totalorder %s25, 1
      %p111 = por %p109, %p110
      %p113 = scmp.ne.s32.totalorder %s98, %s112
      %p114 = scmp.eq.s32.totalorder %s25, 0
      %p115 = por %p113, %p114
      %s117 = sadd.s32 %s116, 1
      %p120 = scmp.eq.s32.totalorder %s19, 1
      %p121 = scmp.ne.s32.totalorder %s116, %s118
      %p122 = scmp.eq.s32.totalorder %s19, 0
      %p123 = por %p121, %p122
      %p124 = scmp.ne.s32.totalorder %s116, %s118
      %p125 = scmp.eq.s32.totalorder %s24, 1
      %p126 = por %p124, %p125
      %p127 = scmp.ne.s32.totalorder %s118, %s119
      %p128 = scmp.eq.s32.totalorder %s24, 0
      %p129 = por %p127, %p128
      %p130 = scmp.ne.s32.totalorder %s118, %s119
      %p131 = scmp.eq.s32.totalorder %s25, 1
      %p132 = por %p130, %p131
      %p134 = scmp.ne.s32.totalorder %s119, %s133
      %p135 = scmp.eq.s32.totalorder %s25, 0
      %p136 = por %p134, %p135
      %s137 = ssub.s32 %s19, %s26
      %p138 = scmp.eq.s32.totalorder %s137, 0
      %s140 = sadd.s32 %s139, 1
      %s141 = scalar_select %p138, %s139, %s140
      %p144 = pneg %p138
      %p145 = scmp.eq.s32.totalorder %s19, 1
      %p146 = por %p144, %p145
      %p147 = scmp.ne.s32.totalorder %s139, %s142
      %p148 = scmp.eq.s32.totalorder %s19, 0
      %p149 = por %p147, %p148
      %p150 = scmp.ne.s32.totalorder %s139, %s142
      %p151 = scmp.eq.s32.totalorder %s24, 1
      %p152 = por %p150, %p151
      %p153 = scmp.ne.s32.totalorder %s142, %s143
      %p154 = scmp.eq.s32.totalorder %s24, 0
      %p155 = por %p153, %p154
      %p156 = scmp.ne.s32.totalorder %s142, %s143
      %p157 = scmp.eq.s32.totalorder %s25, 1
      %p158 = por %p156, %p157
      %p160 = scmp.ne.s32.totalorder %s143, %s159
      %p161 = scmp.eq.s32.totalorder %s25, 0
      %p162 = por %p160, %p161
      %p163 = scmp.le.s32.totalorder 1, %s19
      %p164 = scmp.lt.s32.totalorder %s19, 3
      %p165 = pnand %p163, %p164
      %p166 = pneg %p165
      // Predicated region
      $region9: #{_lambda_.7} parent=5 // pred_check
        _
      $region10: #{_lambda_.7} parent=5 // pred_check_branch
        %168 = sbr.rel (%p165) target = $region12
      $region11: #{_lambda_.7} parent=5 // pred_region
        %s169 = ssub.s32 %s19, 1
        // Predicated region
        $region13: #{_lambda_.7} parent=11 // pred_check
          %p170 = pneg %p66
        $region14: #{_lambda_.7} parent=11 // pred_check_branch
          %172 = sbr.rel (%p170) target = $region16
        $region15: #{_lambda_.7} parent=11 // pred_region
          %s174 = ssub.s32 128, 128
          %175 = vsyncadd [#allocation6], %s174
          %s177 = sshll.u32 [#allocation5], 4
          %s178 = int_to_ptr.vmem [resolvable:$true] %s177
          %180 = dma.hbm_to_vmem [thread:$0]  %s1, 128, %s178, [#allocation6]
        $region16: #{_lambda_.7} parent=11 // pred_fallthru
          _
        // Predicated region
        $region17: #{_lambda_.7} parent=11 // pred_check
          %p181 = pneg %p87
        $region18: #{_lambda_.7} parent=11 // pred_check_branch
          %183 = sbr.rel (%p181) target = $region20
        $region19: #{_lambda_.7} parent=11 // pred_region
          %s185 = ssub.s32 256, 256
          %186 = vsyncadd [#allocation6], %s185
          %s187 = sshll.u32 [#allocation7], 4
          %s188 = int_to_ptr.vmem [resolvable:$true] %s187
          %193 = dma.hbm_to_vmem [thread:$0]  %s2, 256, %s188, [#allocation6], 64, 64, 4
        $region20: #{_lambda_.7} parent=11 // pred_fallthru
          _
        // Predicated region
        $region21: #{_lambda_.7} parent=11 // pred_check
          %p194 = pneg %p108
        $region22: #{_lambda_.7} parent=11 // pred_check_branch
          %196 = sbr.rel (%p194) target = $region24
        $region23: #{_lambda_.7} parent=11 // pred_region
          %s198 = ssub.s32 1024, 1024
          %199 = vsyncadd [#allocation9], %s198
          %s200 = sshll.u32 [#allocation8], 4
          %s201 = int_to_ptr.vmem [resolvable:$true] %s200
          %206 = dma.hbm_to_vmem [thread:$0]  %s3, 1024, %s201, [#allocation9], 64, 64, 4
        $region24: #{_lambda_.7} parent=11 // pred_fallthru
          _
        // Predicated region
        $region25: #{_lambda_.7} parent=11 // pred_check
          %p207 = pneg %p129
        $region26: #{_lambda_.7} parent=11 // pred_check_branch
          %209 = sbr.rel (%p207) target = $region28
        $region27: #{_lambda_.7} parent=11 // pred_region
          %s211 = ssub.s32 256, 256
          %212 = vsyncadd [#allocation9], %s211
          %s213 = sshll.u32 [#allocation10], 4
          %s214 = int_to_ptr.vmem [resolvable:$true] %s213
          %219 = dma.hbm_to_vmem [thread:$0]  %s4, 256, %s214, [#allocation9], 64, 64, 4
        $region28: #{_lambda_.7} parent=11 // pred_fallthru
          _
      $region12: #{_lambda_.7} parent=5 // pred_fallthru
        _
      %p220 = scmp.lt.s32.totalorder %s19, 2
      // Predicated region
      $region29: #{_lambda_.7} parent=5 // pred_check
        %p221 = pneg %p220
      $region30: #{_lambda_.7} parent=5 // pred_check_branch
        %223 = sbr.rel (%p221) target = $region32
      $region31: #{_lambda_.7} parent=5 // pred_region
        // Predicated region
        $region33: #{_lambda_.7} parent=31 // pred_check
          %p224 = pneg %p39
        $region34: #{_lambda_.7} parent=31 // pred_check_branch
          %226 = sbr.rel (%p224) target = $region36
        $region35: #{_lambda_.7} parent=31 // pred_region
          %s227 = sand.u32 %s29, 1
          %s228 = scalar_lea.sflag [#allocation3], %s227
          %s229 = sand.u32 %s29, 1
          %s230 = smul.addr %s229, 64
          %s231 = scalar_lea.vmem [#allocation2], %s230
          %s233 = ssub.s32 1024, 1024
          %234 = vsyncadd %s228, %s233
          %s235 = smul.addr %s19, 8
          %s236 = smul.addr %s235, 128
          %s237 = scalar_lea.hbm %s0, %s236
          %s238 = sshll.u32 %s231, 4
          %s239 = int_to_ptr.vmem [resolvable:$true] %s238
          %244 = dma.hbm_to_vmem [thread:$0]  %s237, 1024, %s239, %s228, 128, 128, 8
        $region36: #{_lambda_.7} parent=31 // pred_fallthru
          _
      $region32: #{_lambda_.7} parent=5 // pred_fallthru
        _
      %p245 = scmp.le.s32.totalorder 1, %s19
      %p246 = scmp.lt.s32.totalorder %s19, 3
      %p247 = pnand %p245, %p246
      %p248 = pneg %p247
      // Predicated region
      $region37: #{_lambda_.7} parent=5 // pred_check
        _
      $region38: #{_lambda_.7} parent=5 // pred_check_branch
        %250 = sbr.rel (%p247) target = $region40
      $region39: #{_lambda_.7} parent=5 // pred_region
        %s251 = ssub.s32 %s19, 1
        %s252 = sand.u32 %s32, 1
        %s253 = scalar_lea.sflag [#allocation3], %s252
        %s254 = sand.u32 %s32, 1
        %s255 = smul.addr %s254, 64
        %s256 = scalar_lea.vmem [#allocation2], %s255
        // Predicated region
        $region41: #{_lambda_.7} parent=39 // pred_check
          %p257 = pneg %p45
        $region42: #{_lambda_.7} parent=39 // pred_check_branch
          %259 = sbr.rel (%p257) target = $region44
        $region43: #{_lambda_.7} parent=39 // pred_region
          %260 = dma.done %s253, 1024
        $region44: #{_lambda_.7} parent=39 // pred_fallthru
          _
        // Predicated region
        $region45: #{_lambda_.7} parent=39 // pred_check
          %p261 = pneg %p66
        $region46: #{_lambda_.7} parent=39 // pred_check_branch
          %263 = sbr.rel (%p261) target = $region48
        $region47: #{_lambda_.7} parent=39 // pred_region
          %264 = dma.done [#allocation6], 128
        $region48: #{_lambda_.7} parent=39 // pred_fallthru
          _
        // Predicated region
        $region49: #{_lambda_.7} parent=39 // pred_check
          %p265 = pneg %p87
        $region50: #{_lambda_.7} parent=39 // pred_check_branch
          %267 = sbr.rel (%p265) target = $region52
        $region51: #{_lambda_.7} parent=39 // pred_region
          %268 = dma.done [#allocation6], 256
        $region52: #{_lambda_.7} parent=39 // pred_fallthru
          _
        // Predicated region
        $region53: #{_lambda_.7} parent=39 // pred_check
          %p269 = pneg %p108
        $region54: #{_lambda_.7} parent=39 // pred_check_branch
          %271 = sbr.rel (%p269) target = $region56
        $region55: #{_lambda_.7} parent=39 // pred_region
          %272 = dma.done [#allocation9], 1024
        $region56: #{_lambda_.7} parent=39 // pred_fallthru
          _
        // Predicated region
        $region57: #{_lambda_.7} parent=39 // pred_check
          %p273 = pneg %p129
        $region58: #{_lambda_.7} parent=39 // pred_check_branch
          %275 = sbr.rel (%p273) target = $region60
        $region59: #{_lambda_.7} parent=39 // pred_region
          %276 = dma.done [#allocation9], 256
        $region60: #{_lambda_.7} parent=39 // pred_fallthru
          _
        %s277 = sand.u32 %s32, 1
        %s278 = scalar_lea.sflag [#allocation3], %s277
        %s279 = sand.u32 %s32, 1
        %s280 = smul.addr %s279, 64
        %s281 = scalar_lea.vmem [#allocation2], %s280
        %p282 = pneg %p45
        %p283 = pneg %p42
        %p284 = pneg %p66
        %p285 = pneg %p63
        %p286 = pneg %p87
        %p287 = pneg %p84
        %p288 = pneg %p108
        %p289 = pneg %p105
        %p290 = pneg %p129
        %p291 = pneg %p126
        %p292 = pneg %p155
        %p293 = pneg %p152
        %s294 = sand.u32 %s142, 1
        %s295 = scalar_lea.sflag [#allocation4], %s294
        %s296 = sand.u32 %s142, 1
        %s297 = smul.addr %s296, 64
        %s298 = scalar_lea.vmem [#allocation11], %s297
        %v300 = vld [vmem:[%s256] sm:$0xff]
        %v301 = vld [vmem:[%s256 + $0x8] sm:$0xff]
        %v302 = vld [vmem:[%s256 + $0x10] sm:$0xff]
        %v303 = vld [vmem:[%s256 + $0x18] sm:$0xff]
        %v304 = vld [vmem:[%s256 + $0x20] sm:$0xff]
        %v305 = vld [vmem:[%s256 + $0x28] sm:$0xff]
        %v306 = vld [vmem:[%s256 + $0x30] sm:$0xff]
        %v307 = vld [vmem:[%s256 + $0x38] sm:$0xff]
        %v308 = vld [vmem:[#allocation5] sm:$0xff]
        %vm309 = vcmask 261120
        %v310 = vsel %vm309, %v300, 0.0
        %311 = vadd.xlane.f32.xlu0 %v310
        %v312 = vpop.xlane.xlu0 %311
        %v313 = vsel %vm309, %v301, 0.0
        %314 = vadd.xlane.f32.xlu0 %v313
        %v315 = vpop.xlane.xlu0 %314
        %v316 = vsel %vm309, %v302, 0.0
        %317 = vadd.xlane.f32.xlu0 %v316
        %v318 = vpop.xlane.xlu0 %317
        %v319 = vsel %vm309, %v303, 0.0
        %320 = vadd.xlane.f32.xlu0 %v319
        %v321 = vpop.xlane.xlu0 %320
        %v322 = vsel %vm309, %v304, 0.0
        %323 = vadd.xlane.f32.xlu0 %v322
        %v324 = vpop.xlane.xlu0 %323
        %v325 = vsel %vm309, %v305, 0.0
        %326 = vadd.xlane.f32.xlu0 %v325
        %v327 = vpop.xlane.xlu0 %326
        %v328 = vsel %vm309, %v306, 0.0
        %329 = vadd.xlane.f32.xlu0 %v328
        %v330 = vpop.xlane.xlu0 %329
        %v331 = vsel %vm309, %v307, 0.0
        %332 = vadd.xlane.f32.xlu0 %v331
        %v333 = vpop.xlane.xlu0 %332
        %v334 = vrcp.pop 32.0
        %v335 = vmul.f32 %v312, %v334
        %v336 = vmul.f32 %v315, %v334
        %v337 = vmul.f32 %v318, %v334
        %v338 = vmul.f32 %v321, %v334
        %v339 = vmul.f32 %v324, %v334
        %v340 = vmul.f32 %v327, %v334
        %v341 = vmul.f32 %v330, %v334
        %v342 = vmul.f32 %v333, %v334
        %v343 = vsub.f32 %v300, %v335
        %v344 = vsub.f32 %v301, %v336
        %v345 = vsub.f32 %v302, %v337
        %v346 = vsub.f32 %v303, %v338
        %v347 = vsub.f32 %v304, %v339
        %v348 = vsub.f32 %v305, %v340
        %v349 = vsub.f32 %v306, %v341
        %v350 = vsub.f32 %v307, %v342
        %v351 = vmul.f32 %v343, %v343
        %v352 = vmul.f32 %v344, %v344
        %v353 = vmul.f32 %v345, %v345
        %v354 = vmul.f32 %v346, %v346
        %v355 = vmul.f32 %v347, %v347
        %v356 = vmul.f32 %v348, %v348
        %v357 = vmul.f32 %v349, %v349
        %v358 = vmul.f32 %v350, %v350
        %v359 = vsel %vm309, %v351, 0.0
        %360 = vadd.xlane.f32.xlu0 %v359
        %v361 = vpop.xlane.xlu0 %360
        %v362 = vsel %vm309, %v352, 0.0
        %363 = vadd.xlane.f32.xlu0 %v362
        %v364 = vpop.xlane.xlu0 %363
        %v365 = vsel %vm309, %v353, 0.0
        %366 = vadd.xlane.f32.xlu0 %v365
        %v367 = vpop.xlane.xlu0 %366
        %v368 = vsel %vm309, %v354, 0.0
        %369 = vadd.xlane.f32.xlu0 %v368
        %v370 = vpop.xlane.xlu0 %369
        %v371 = vsel %vm309, %v355, 0.0
        %372 = vadd.xlane.f32.xlu0 %v371
        %v373 = vpop.xlane.xlu0 %372
        %v374 = vsel %vm309, %v356, 0.0
        %375 = vadd.xlane.f32.xlu0 %v374
        %v376 = vpop.xlane.xlu0 %375
        %v377 = vsel %vm309, %v357, 0.0
        %378 = vadd.xlane.f32.xlu0 %v377
        %v379 = vpop.xlane.xlu0 %378
        %v380 = vsel %vm309, %v358, 0.0
        %381 = vadd.xlane.f32.xlu0 %v380
        %v382 = vpop.xlane.xlu0 %381
        %v383 = vmul.f32 %v361, %v334
        %v384 = vmul.f32 %v364, %v334
        %v385 = vmul.f32 %v367, %v334
        %v386 = vmul.f32 %v370, %v334
        %v387 = vmul.f32 %v373, %v334
        %v388 = vmul.f32 %v376, %v334
        %v389 = vmul.f32 %v379, %v334
        %v390 = vmul.f32 %v382, %v334
        %v391 = vadd.f32 %v383, 1e-05
        %v392 = vadd.f32 %v384, 1e-05
        %v393 = vadd.f32 %v385, 1e-05
        %v394 = vadd.f32 %v386, 1e-05
        %v395 = vadd.f32 %v387, 1e-05
        %v396 = vadd.f32 %v388, 1e-05
        %v397 = vadd.f32 %v389, 1e-05
        %v398 = vadd.f32 %v390, 1e-05
        %v399 = vrsqrt.pop %v391
        %v400 = vrsqrt.pop %v392
        %v401 = vrsqrt.pop %v393
        %v402 = vrsqrt.pop %v394
        %v403 = vrsqrt.pop %v395
        %v404 = vrsqrt.pop %v396
        %v405 = vrsqrt.pop %v397
        %v406 = vrsqrt.pop %v398
        %v407 = vmul.f32 %v343, %v399
        %v408 = vmul.f32 %v344, %v400
        %v409 = vmul.f32 %v345, %v401
        %v410 = vmul.f32 %v346, %v402
        %v411 = vmul.f32 %v347, %v403
        %v412 = vmul.f32 %v348, %v404
        %v413 = vmul.f32 %v349, %v405
        %v414 = vmul.f32 %v350, %v406
        %v415 = vlaneseq
        %v416 = vshrl.u32 %v415, 7
        %v417 = vsub.s32 0, %v416
        %v418 = vrot.slane %v308, %v417
        %v419 = vmul.f32 %v407, %v418
        %v420 = vmul.f32 %v408, %v418
        %v421 = vmul.f32 %v409, %v418
        %v422 = vmul.f32 %v410, %v418
        %v423 = vmul.f32 %v411, %v418
        %v424 = vmul.f32 %v412, %v418
        %v425 = vmul.f32 %v413, %v418
        %v426 = vmul.f32 %v414, %v418
        %v427 = vlaneseq
        %v428 = vshrl.u32 %v427, 7
        %v429 = vsub.s32 1, %v428
        %v430 = vrot.slane %v308, %v429
        %v431 = vadd.f32 %v419, %v430
        %v432 = vadd.f32 %v420, %v430
        %v433 = vadd.f32 %v421, %v430
        %v434 = vadd.f32 %v422, %v430
        %v435 = vadd.f32 %v423, %v430
        %v436 = vadd.f32 %v424, %v430
        %v437 = vadd.f32 %v425, %v430
        %v438 = vadd.f32 %v426, %v430
        %v439 = vlaneseq
        %v440 = vshrl.u32 %v439, 7
        %v441 = vadd.s32 %v440, 8
        %v442 = vadd.s32 %v440, 16
        %v443 = vadd.s32 %v440, 24
        %v444 = vadd.s32 %v440, 32
        %v445 = vadd.s32 %v440, 40
        %v446 = vadd.s32 %v440, 48
        %v447 = vadd.s32 %v440, 56
        %v448 = vlaneseq
        %v449 = vand.u32 %v448, 127
        %v450 = vrot.slane %v431, 7
        %v451 = vrot.slane %v432, 7
        %v452 = vrot.slane %v433, 7
        %v453 = vrot.slane %v434, 7
        %v454 = vrot.slane %v435, 7
        %v455 = vrot.slane %v436, 7
        %v456 = vrot.slane %v437, 7
        %v457 = vrot.slane %v438, 7
        %vm458 = vcmp.lt.s32.totalorder %v440, 1
        %v459 = vsel %vm458, %v456, %v457
        %v460 = vsel %vm458, %v455, %v456
        %v461 = vsel %vm458, %v454, %v455
        %v462 = vsel %vm458, %v453, %v454
        %v463 = vsel %vm458, %v452, %v453
        %v464 = vsel %vm458, %v451, %v452
        %v465 = vsel %vm458, %v450, %v451
        %v466 = vsel %vm458, %v457, %v450
        %v467 = vrot.slane %v431, 1
        %v468 = vrot.slane %v432, 1
        %v469 = vrot.slane %v433, 1
        %v470 = vrot.slane %v434, 1
        %v471 = vrot.slane %v435, 1
        %v472 = vrot.slane %v436, 1
        %v473 = vrot.slane %v437, 1
        %v474 = vrot.slane %v438, 1
        %vm475 = vcmp.lt.s32.totalorder %v440, 7
        %v476 = vsel %vm475, %v473, %v474
        %v477 = vsel %vm475, %v472, %v473
        %v478 = vsel %vm475, %v471, %v472
        %v479 = vsel %vm475, %v470, %v471
        %v480 = vsel %vm475, %v469, %v470
        %v481 = vsel %vm475, %v468, %v469
        %v482 = vsel %vm475, %v467, %v468
        %v483 = vsel %vm475, %v474, %v467
        %vm484 = vcmp.ge.s32.totalorder %v440, 1
        %vm485 = vcmp.ge.s32.totalorder %v441, 1
        %vm486 = vcmp.ge.s32.totalorder %v442, 1
        %vm487 = vcmp.ge.s32.totalorder %v443, 1
        %vm488 = vcmp.ge.s32.totalorder %v444, 1
        %vm489 = vcmp.ge.s32.totalorder %v445, 1
        %vm490 = vcmp.ge.s32.totalorder %v446, 1
        %vm491 = vcmp.ge.s32.totalorder %v447, 1
        %v492 = vsel %vm484, %v466, 0.0
        %v493 = vsel %vm485, %v465, 0.0
        %v494 = vsel %vm486, %v464, 0.0
        %v495 = vsel %vm487, %v463, 0.0
        %v496 = vsel %vm488, %v462, 0.0
        %v497 = vsel %vm489, %v461, 0.0
        %v498 = vsel %vm490, %v460, 0.0
        %v499 = vsel %vm491, %v459, 0.0
        %vm500 = vcmp.lt.s32.totalorder %v440, 63
        %vm501 = vcmp.lt.s32.totalorder %v441, 63
        %vm502 = vcmp.lt.s32.totalorder %v442, 63
        %vm503 = vcmp.lt.s32.totalorder %v443, 63
        %vm504 = vcmp.lt.s32.totalorder %v444, 63
        %vm505 = vcmp.lt.s32.totalorder %v445, 63
        %vm506 = vcmp.lt.s32.totalorder %v446, 63
        %vm507 = vcmp.lt.s32.totalorder %v447, 63
        %v508 = vsel %vm500, %v482, 0.0
        %v509 = vsel %vm501, %v481, 0.0
        %v510 = vsel %vm502, %v480, 0.0
        %v511 = vsel %vm503, %v479, 0.0
        %v512 = vsel %vm504, %v478, 0.0
        %v513 = vsel %vm505, %v477, 0.0
        %v514 = vsel %vm506, %v476, 0.0
        %v515 = vsel %vm507, %v483, 0.0
        %vm516 = vcmp.lt.s32.totalorder %v449, 16
        %vm517 = vcmp.lt.s32.totalorder %v449, 32
        %v518 = vsel %vm517, %v508, %v431
        %v519 = vsel %vm517, %v509, %v432
        %v520 = vsel %vm517, %v510, %v433
        %v521 = vsel %vm517, %v511, %v434
        %v522 = vsel %vm517, %v512, %v435
        %v523 = vsel %vm517, %v513, %v436
        %v524 = vsel %vm517, %v514, %v437
        %v525 = vsel %vm517, %v515, %v438
        %v526 = vsel %vm516, %v492, %v518
        %v527 = vsel %vm516, %v493, %v519
        %v528 = vsel %vm516, %v494, %v520
        %v529 = vsel %vm516, %v495, %v521
        %v530 = vsel %vm516, %v496, %v522
        %v531 = vsel %vm516, %v497, %v523
        %v532 = vsel %vm516, %v498, %v524
        %v533 = vsel %vm516, %v499, %v525
        %v534 = vlaneseq
        %v535 = vshrl.u32 %v534, 7
        %v536 = vsub.s32 2, %v535
        %v537 = vrot.slane %v308, %v536
        %v538 = vmul.f32 %v431, %v537
        %v539 = vmul.f32 %v432, %v537
        %v540 = vmul.f32 %v433, %v537
        %v541 = vmul.f32 %v434, %v537
        %v542 = vmul.f32 %v435, %v537
        %v543 = vmul.f32 %v436, %v537
        %v544 = vmul.f32 %v437, %v537
        %v545 = vmul.f32 %v438, %v537
        %v546 = vsub.f32 1.0, %v308
        %v547 = vlaneseq
        %v548 = vshrl.u32 %v547, 7
        %v549 = vsub.s32 2, %v548
        %v550 = vrot.slane %v546, %v549
        %v551 = vmul.f32 %v526, %v550
        %v552 = vmul.f32 %v527, %v550
        %v553 = vmul.f32 %v528, %v550
        %v554 = vmul.f32 %v529, %v550
        %v555 = vmul.f32 %v530, %v550
        %v556 = vmul.f32 %v531, %v550
        %v557 = vmul.f32 %v532, %v550
        %v558 = vmul.f32 %v533, %v550
        %v559 = vadd.f32 %v538, %v551
        %v560 = vadd.f32 %v539, %v552
        %v561 = vadd.f32 %v540, %v553
        %v562 = vadd.f32 %v541, %v554
        %v563 = vadd.f32 %v542, %v555
        %v564 = vadd.f32 %v543, %v556
        %v565 = vadd.f32 %v544, %v557
        %v566 = vadd.f32 %v545, %v558
        %v567 = vpack.c.bf16 %v560, %v559
        %v568 = vpack.c.bf16 %v562, %v561
        %v569 = vpack.c.bf16 %v564, %v563
        %v570 = vpack.c.bf16 %v566, %v565
        %v571 = vlaneseq
        %v572 = vshrl.u32 %v571, 7
        %v573 = vsub.s32 3, %v572
        %v574 = vrot.slane %v308, %v573
        %v575 = vmul.f32 %v431, %v574
        %v576 = vmul.f32 %v432, %v574
        %v577 = vmul.f32 %v433, %v574
        %v578 = vmul.f32 %v434, %v574
        %v579 = vmul.f32 %v435, %v574
        %v580 = vmul.f32 %v436, %v574
        %v581 = vmul.f32 %v437, %v574
        %v582 = vmul.f32 %v438, %v574
        %v583 = vlaneseq
        %v584 = vshrl.u32 %v583, 7
        %v585 = vsub.s32 3, %v584
        %v586 = vrot.slane %v546, %v585
        %v587 = vmul.f32 %v526, %v586
        %v588 = vmul.f32 %v527, %v586
        %v589 = vmul.f32 %v528, %v586
        %v590 = vmul.f32 %v529, %v586
        %v591 = vmul.f32 %v530, %v586
        %v592 = vmul.f32 %v531, %v586
        %v593 = vmul.f32 %v532, %v586
        %v594 = vmul.f32 %v533, %v586
        %v595 = vadd.f32 %v575, %v587
        %v596 = vadd.f32 %v576, %v588
        %v597 = vadd.f32 %v577, %v589
        %v598 = vadd.f32 %v578, %v590
        %v599 = vadd.f32 %v579, %v591
        %v600 = vadd.f32 %v580, %v592
        %v601 = vadd.f32 %v581, %v593
        %v602 = vadd.f32 %v582, %v594
        %v603 = vpack.c.bf16 %v596, %v595
        %v604 = vpack.c.bf16 %v598, %v597
        %v605 = vpack.c.bf16 %v600, %v599
        %v606 = vpack.c.bf16 %v602, %v601
        %v607 = vld [vmem:[#allocation7] sm:$0xf]
        %v608 = vld [vmem:[#allocation7 + $0x4] sm:$0xf]
        %v609 = vld [vmem:[#allocation7 + $0x8] sm:$0xf]
        %v610 = vld [vmem:[#allocation7 + $0xc] sm:$0xf]
        %v611 = vld [vmem:[#allocation8] sm:$0xf]
        %v612 = vld [vmem:[#allocation8 + $0x4] sm:$0xf]
        %v613 = vld [vmem:[#allocation8 + $0x8] sm:$0xf]
        %v614 = vld [vmem:[#allocation8 + $0xc] sm:$0xf]
        %v615 = vld [vmem:[#allocation8 + $0x10] sm:$0xf]
        %v616 = vld [vmem:[#allocation8 + $0x14] sm:$0xf]
        %v617 = vld [vmem:[#allocation8 + $0x18] sm:$0xf]
        %v618 = vld [vmem:[#allocation8 + $0x1c] sm:$0xf]
        %v619 = vld [vmem:[#allocation8 + $0x20] sm:$0xf]
        %v620 = vld [vmem:[#allocation8 + $0x24] sm:$0xf]
        %v621 = vld [vmem:[#allocation8 + $0x28] sm:$0xf]
        %v622 = vld [vmem:[#allocation8 + $0x2c] sm:$0xf]
        %v623 = vld [vmem:[#allocation8 + $0x30] sm:$0xf]
        %v624 = vld [vmem:[#allocation8 + $0x34] sm:$0xf]
        %v625 = vld [vmem:[#allocation8 + $0x38] sm:$0xf]
        %v626 = vld [vmem:[#allocation8 + $0x3c] sm:$0xf]
        %v631 = vunpack.c.l.b16 %v607
        %v632 = vunpack.c.l.b16 %v608
        %v633 = vunpack.c.l.b16 %v609
        %v634 = vunpack.c.l.b16 %v610
        %v635 = vpack.c.b16 %v632, %v631
        %v636 = vpack.c.b16 %v634, %v633
        %v640 = vsel %vm309, %v567, 0
        %v643 = vsel %vm309, %v568, 0
        %v646 = vsel %vm309, %v569, 0
        %v649 = vsel %vm309, %v570, 0
        %651 = vmatprep.subr.bf16.mxu0 0
        %652 = vmatpush1.bf16.msra.mxu0 %v635
        %653 = vmatprep.subr.bf16.mxu0 0
        %654 = vmatpush1.bf16.msra.mxu0 %v636
        %655 = vmatprep.subr.bf16.mxu0 0
        %656 = vmatpush1.bf16.msra.mxu0 0
        %657 = vmatprep.subr.bf16.mxu0 0
        %658 = vmatpush1.bf16.msra.mxu0 0
        %659 = vmatprep.subr.bf16.mxu0 0
        %660 = vmatpush1.bf16.msra.mxu0 0
        %661 = vmatprep.subr.bf16.mxu0 0
        %662 = vmatpush1.bf16.msra.mxu0 0
        %663 = vmatprep.subr.bf16.mxu0 0
        %664 = vmatpush1.bf16.msra.mxu0 0
        %665 = vmatprep.subr.bf16.mxu0 0
        %666 = vmatpush1.bf16.msra.mxu0 0
        %667 = vmatprep.subr.bf16.mxu0 0
        %668 = vmatpush1.bf16.msra.mxu0 0
        %669 = vmatprep.subr.bf16.mxu0 0
        %670 = vmatpush1.bf16.msra.mxu0 0
        %671 = vmatprep.subr.bf16.mxu0 0
        %672 = vmatpush1.bf16.msra.mxu0 0
        %673 = vmatprep.subr.bf16.mxu0 0
        %674 = vmatpush1.bf16.msra.mxu0 0
        %675 = vmatprep.subr.bf16.mxu0 0
        %676 = vmatpush1.bf16.msra.mxu0 0
        %677 = vmatprep.subr.bf16.mxu0 0
        %678 = vmatpush1.bf16.msra.mxu0 0
        %679 = vmatprep.subr.bf16.mxu0 0
        %680 = vmatpush1.bf16.msra.mxu0 0
        %681 = vmatprep.subr.bf16.mxu0 0
        %682 = vmatpush1.bf16.msra.mxu0 0
        %683 = vmatprep.mubr.bf16.mxu0 0
        %684 = vmatmul.mubr.bf16.gmra.mrb[0].mxu0 %v640
        %v685 = vpop.f32.mrb[0].mxu0
        %v686 = vadd.f32 0.0, %v685
        %v687 = vpop.f32.mrb[0].mxu0
        %v688 = vpop.f32.mrb[0].mxu0
        %v689 = vadd.f32 0.0, %v688
        %v690 = vpop.f32.mrb[0].mxu0
        %691 = vmatprep.mubr.bf16.mxu0 0
        %692 = vmatmul.mubr.bf16.gmra.mrb[0].mxu0 %v643
        %v693 = vpop.f32.mrb[0].mxu0
        %v694 = vadd.f32 0.0, %v693
        %v695 = vpop.f32.mrb[0].mxu0
        %v696 = vpop.f32.mrb[0].mxu0
        %v697 = vadd.f32 0.0, %v696
        %v698 = vpop.f32.mrb[0].mxu0
        %699 = vmatprep.mubr.bf16.mxu0 0
        %700 = vmatmul.mubr.bf16.gmra.mrb[0].mxu0 %v646
        %v701 = vpop.f32.mrb[0].mxu0
        %v702 = vadd.f32 0.0, %v701
        %v703 = vpop.f32.mrb[0].mxu0
        %v704 = vpop.f32.mrb[0].mxu0
        %v705 = vadd.f32 0.0, %v704
        %v706 = vpop.f32.mrb[0].mxu0
        %707 = vmatprep.mubr.bf16.mxu0 0
        %708 = vmatmul.mubr.bf16.gmra.mrb[0].mxu0 %v649
        %v709 = vpop.f32.mrb[0].mxu0
        %v710 = vadd.f32 0.0, %v709
        %v711 = vpop.f32.mrb[0].mxu0
        %v712 = vpop.f32.mrb[0].mxu0
        %v713 = vadd.f32 0.0, %v712
        %v714 = vpop.f32.mrb[0].mxu0
        %715 = vdwg.mxu0
        %v716 = vmax.f32 %v686, 0.0
        %v717 = vmax.f32 %v689, 0.0
        %v718 = vmax.f32 %v694, 0.0
        %v719 = vmax.f32 %v697, 0.0
        %v720 = vmax.f32 %v702, 0.0
        %v721 = vmax.f32 %v705, 0.0
        %v722 = vmax.f32 %v710, 0.0
        %v723 = vmax.f32 %v713, 0.0
        %v724 = vmul.f32 %v716, %v716
        %v725 = vmul.f32 %v717, %v717
        %v726 = vmul.f32 %v718, %v718
        %v727 = vmul.f32 %v719, %v719
        %v728 = vmul.f32 %v720, %v720
        %v729 = vmul.f32 %v721, %v721
        %v730 = vmul.f32 %v722, %v722
        %v731 = vmul.f32 %v723, %v723
        %v732 = vpack.c.bf16 %v725, %v724
        %v733 = vpack.c.bf16 %v727, %v726
        %v734 = vpack.c.bf16 %v729, %v728
        %v735 = vpack.c.bf16 %v731, %v730
        %v752 = vunpack.c.l.b16 %v611
        %v753 = vunpack.c.l.b16 %v612
        %v754 = vunpack.c.l.b16 %v613
        %v755 = vunpack.c.l.b16 %v614
        %v756 = vunpack.c.l.b16 %v615
        %v757 = vunpack.c.l.b16 %v616
        %v758 = vunpack.c.l.b16 %v617
        %v759 = vunpack.c.l.b16 %v618
        %v760 = vunpack.c.l.b16 %v619
        %v761 = vunpack.c.l.b16 %v620
        %v762 = vunpack.c.l.b16 %v621
        %v763 = vunpack.c.l.b16 %v622
        %v764 = vunpack.c.l.b16 %v623
        %v765 = vunpack.c.l.b16 %v624
        %v766 = vunpack.c.l.b16 %v625
        %v767 = vunpack.c.l.b16 %v626
        %v768 = vpack.c.b16 %v753, %v752
        %v769 = vpack.c.b16 %v755, %v754
        %v770 = vpack.c.b16 %v757, %v756
        %v771 = vpack.c.b16 %v759, %v758
        %v772 = vpack.c.b16 %v761, %v760
        %v773 = vpack.c.b16 %v763, %v762
        %v774 = vpack.c.b16 %v765, %v764
        %v775 = vpack.c.b16 %v767, %v766
        %784 = vmatprep.subr.bf16.mxu0 0
        %785 = vmatpush1.bf16.msra.mxu0 %v768
        %786 = vmatprep.subr.bf16.mxu0 0
        %787 = vmatpush1.bf16.msra.mxu0 %v769
        %788 = vmatprep.subr.bf16.mxu0 0
        %789 = vmatpush1.bf16.msra.mxu0 %v770
        %790 = vmatprep.subr.bf16.mxu0 0
        %791 = vmatpush1.bf16.msra.mxu0 %v771
        %792 = vmatprep.subr.bf16.mxu0 0
        %793 = vmatpush1.bf16.msra.mxu0 %v772
        %794 = vmatprep.subr.bf16.mxu0 0
        %795 = vmatpush1.bf16.msra.mxu0 %v773
        %796 = vmatprep.subr.bf16.mxu0 0
        %797 = vmatpush1.bf16.msra.mxu0 %v774
        %798 = vmatprep.subr.bf16.mxu0 0
        %799 = vmatpush1.bf16.msra.mxu0 %v775
        %800 = vmatprep.subr.bf16.mxu0 0
        %801 = vmatpush1.bf16.msra.mxu0 0
        %802 = vmatprep.subr.bf16.mxu0 0
        %803 = vmatpush1.bf16.msra.mxu0 0
        %804 = vmatprep.subr.bf16.mxu0 0
        %805 = vmatpush1.bf16.msra.mxu0 0
        %806 = vmatprep.subr.bf16.mxu0 0
        %807 = vmatpush1.bf16.msra.mxu0 0
        %808 = vmatprep.subr.bf16.mxu0 0
        %809 = vmatpush1.bf16.msra.mxu0 0
        %810 = vmatprep.subr.bf16.mxu0 0
        %811 = vmatpush1.bf16.msra.mxu0 0
        %812 = vmatprep.subr.bf16.mxu0 0
        %813 = vmatpush1.bf16.msra.mxu0 0
        %814 = vmatprep.subr.bf16.mxu0 0
        %815 = vmatpush1.bf16.msra.mxu0 0
        %816 = vmatprep.mubr.bf16.mxu0 0
        %817 = vmatmul.mubr.bf16.gmra.mrb[0].mxu0 %v732
        %v818 = vpop.f32.mrb[0].mxu0
        %v819 = vadd.f32 0.0, %v818
        %v820 = vpop.f32.mrb[0].mxu0
        %v821 = vpop.f32.mrb[0].mxu0
        %v822 = vadd.f32 0.0, %v821
        %v823 = vpop.f32.mrb[0].mxu0
        %824 = vmatprep.mubr.bf16.mxu0 0
        %825 = vmatmul.mubr.bf16.gmra.mrb[0].mxu0 %v733
        %v826 = vpop.f32.mrb[0].mxu0
        %v827 = vadd.f32 0.0, %v826
        %v828 = vpop.f32.mrb[0].mxu0
        %v829 = vpop.f32.mrb[0].mxu0
        %v830 = vadd.f32 0.0, %v829
        %v831 = vpop.f32.mrb[0].mxu0
        %832 = vmatprep.mubr.bf16.mxu0 0
        %833 = vmatmul.mubr.bf16.gmra.mrb[0].mxu0 %v734
        %v834 = vpop.f32.mrb[0].mxu0
        %v835 = vadd.f32 0.0, %v834
        %v836 = vpop.f32.mrb[0].mxu0
        %v837 = vpop.f32.mrb[0].mxu0
        %v838 = vadd.f32 0.0, %v837
        %v839 = vpop.f32.mrb[0].mxu0
        %840 = vmatprep.mubr.bf16.mxu0 0
        %841 = vmatmul.mubr.bf16.gmra.mrb[0].mxu0 %v735
        %v842 = vpop.f32.mrb[0].mxu0
        %v843 = vadd.f32 0.0, %v842
        %v844 = vpop.f32.mrb[0].mxu0
        %v845 = vpop.f32.mrb[0].mxu0
        %v846 = vadd.f32 0.0, %v845
        %v847 = vpop.f32.mrb[0].mxu0
        %848 = vdwg.mxu0
        %v849 = vld [vmem:[#allocation10] sm:$0xf]
        %v850 = vld [vmem:[#allocation10 + $0x4] sm:$0xf]
        %v851 = vld [vmem:[#allocation10 + $0x8] sm:$0xf]
        %v852 = vld [vmem:[#allocation10 + $0xc] sm:$0xf]
        %v857 = vunpack.c.l.b16 %v849
        %v858 = vunpack.c.l.b16 %v850
        %v859 = vunpack.c.l.b16 %v851
        %v860 = vunpack.c.l.b16 %v852
        %v861 = vpack.c.b16 %v858, %v857
        %v862 = vpack.c.b16 %v860, %v859
        %v866 = vsel %vm309, %v603, 0
        %v869 = vsel %vm309, %v604, 0
        %v872 = vsel %vm309, %v605, 0
        %v875 = vsel %vm309, %v606, 0
        %877 = vmatprep.subr.bf16.mxu0 0
        %878 = vmatpush1.bf16.msra.mxu0 %v861
        %879 = vmatprep.subr.bf16.mxu0 0
        %880 = vmatpush1.bf16.msra.mxu0 %v862
        %881 = vmatprep.subr.bf16.mxu0 0
        %882 = vmatpush1.bf16.msra.mxu0 0
        %883 = vmatprep.subr.bf16.mxu0 0
        %884 = vmatpush1.bf16.msra.mxu0 0
        %885 = vmatprep.subr.bf16.mxu0 0
        %886 = vmatpush1.bf16.msra.mxu0 0
        %887 = vmatprep.subr.bf16.mxu0 0
        %888 = vmatpush1.bf16.msra.mxu0 0
        %889 = vmatprep.subr.bf16.mxu0 0
        %890 = vmatpush1.bf16.msra.mxu0 0
        %891 = vmatprep.subr.bf16.mxu0 0
        %892 = vmatpush1.bf16.msra.mxu0 0
        %893 = vmatprep.subr.bf16.mxu0 0
        %894 = vmatpush1.bf16.msra.mxu0 0
        %895 = vmatprep.subr.bf16.mxu0 0
        %896 = vmatpush1.bf16.msra.mxu0 0
        %897 = vmatprep.subr.bf16.mxu0 0
        %898 = vmatpush1.bf16.msra.mxu0 0
        %899 = vmatprep.subr.bf16.mxu0 0
        %900 = vmatpush1.bf16.msra.mxu0 0
        %901 = vmatprep.subr.bf16.mxu0 0
        %902 = vmatpush1.bf16.msra.mxu0 0
        %903 = vmatprep.subr.bf16.mxu0 0
        %904 = vmatpush1.bf16.msra.mxu0 0
        %905 = vmatprep.subr.bf16.mxu0 0
        %906 = vmatpush1.bf16.msra.mxu0 0
        %907 = vmatprep.subr.bf16.mxu0 0
        %908 = vmatpush1.bf16.msra.mxu0 0
        %909 = vmatprep.mubr.bf16.mxu0 0
        %910 = vmatmul.mubr.bf16.gmra.mrb[0].mxu0 %v866
        %v911 = vpop.f32.mrb[0].mxu0
        %v912 = vadd.f32 0.0, %v911
        %v913 = vpop.f32.mrb[0].mxu0
        %v914 = vpop.f32.mrb[0].mxu0
        %v915 = vadd.f32 0.0, %v914
        %v916 = vpop.f32.mrb[0].mxu0
        %917 = vmatprep.mubr.bf16.mxu0 0
        %918 = vmatmul.mubr.bf16.gmra.mrb[0].mxu0 %v869
        %v919 = vpop.f32.mrb[0].mxu0
        %v920 = vadd.f32 0.0, %v919
        %v921 = vpop.f32.mrb[0].mxu0
        %v922 = vpop.f32.mrb[0].mxu0
        %v923 = vadd.f32 0.0, %v922
        %v924 = vpop.f32.mrb[0].mxu0
        %925 = vmatprep.mubr.bf16.mxu0 0
        %926 = vmatmul.mubr.bf16.gmra.mrb[0].mxu0 %v872
        %v927 = vpop.f32.mrb[0].mxu0
        %v928 = vadd.f32 0.0, %v927
        %v929 = vpop.f32.mrb[0].mxu0
        %v930 = vpop.f32.mrb[0].mxu0
        %v931 = vadd.f32 0.0, %v930
        %v932 = vpop.f32.mrb[0].mxu0
        %933 = vmatprep.mubr.bf16.mxu0 0
        %934 = vmatmul.mubr.bf16.gmra.mrb[0].mxu0 %v875
        %v935 = vpop.f32.mrb[0].mxu0
        %v936 = vadd.f32 0.0, %v935
        %v937 = vpop.f32.mrb[0].mxu0
        %v938 = vpop.f32.mrb[0].mxu0
        %v939 = vadd.f32 0.0, %v938
        %v940 = vpop.f32.mrb[0].mxu0
        %941 = vdwg.mxu0
        %v942 = vxor.u32 %v912, 2147483648
        %v943 = vxor.u32 %v915, 2147483648
        %v944 = vxor.u32 %v920, 2147483648
        %v945 = vxor.u32 %v923, 2147483648
        %v946 = vxor.u32 %v928, 2147483648
        %v947 = vxor.u32 %v931, 2147483648
        %v948 = vxor.u32 %v936, 2147483648
        %v949 = vxor.u32 %v939, 2147483648
        %v950 = vmul.f32 %v942, 1.442695
        %v951 = vpow.pop %v950
        %v952 = vmul.f32 %v943, 1.442695
        %v953 = vpow.pop %v952
        %v954 = vmul.f32 %v944, 1.442695
        %v955 = vpow.pop %v954
        %v956 = vmul.f32 %v945, 1.442695
        %v957 = vpow.pop %v956
        %v958 = vmul.f32 %v946, 1.442695
        %v959 = vpow.pop %v958
        %v960 = vmul.f32 %v947, 1.442695
        %v961 = vpow.pop %v960
        %v962 = vmul.f32 %v948, 1.442695
        %v963 = vpow.pop %v962
        %v964 = vmul.f32 %v949, 1.442695
        %v965 = vpow.pop %v964
        %v966 = vadd.f32 %v951, 1.0
        %v967 = vadd.f32 %v953, 1.0
        %v968 = vadd.f32 %v955, 1.0
        %v969 = vadd.f32 %v957, 1.0
        %v970 = vadd.f32 %v959, 1.0
        %v971 = vadd.f32 %v961, 1.0
        %v972 = vadd.f32 %v963, 1.0
        %v973 = vadd.f32 %v965, 1.0
        %v974 = vrcp.pop %v966
        %v975 = vmul.f32 1.0, %v974
        %v976 = vrcp.pop %v967
        %v977 = vmul.f32 1.0, %v976
        %v978 = vrcp.pop %v968
        %v979 = vmul.f32 1.0, %v978
        %v980 = vrcp.pop %v969
        %v981 = vmul.f32 1.0, %v980
        %v982 = vrcp.pop %v970
        %v983 = vmul.f32 1.0, %v982
        %v984 = vrcp.pop %v971
        %v985 = vmul.f32 1.0, %v984
        %v986 = vrcp.pop %v972
        %v987 = vmul.f32 1.0, %v986
        %v988 = vrcp.pop %v973
        %v989 = vmul.f32 1.0, %v988
        %v990 = vmul.f32 %v975, %v819
        %v991 = vmul.f32 %v977, %v822
        %v992 = vmul.f32 %v979, %v827
        %v993 = vmul.f32 %v981, %v830
        %v994 = vmul.f32 %v983, %v835
        %v995 = vmul.f32 %v985, %v838
        %v996 = vmul.f32 %v987, %v843
        %v997 = vmul.f32 %v989, %v846
        %v998 = vadd.f32 %v300, %v990
        %v999 = vadd.f32 %v301, %v991
        %v1000 = vadd.f32 %v302, %v992
        %v1001 = vadd.f32 %v303, %v993
        %v1002 = vadd.f32 %v304, %v994
        %v1003 = vadd.f32 %v305, %v995
        %v1004 = vadd.f32 %v306, %v996
        %v1005 = vadd.f32 %v307, %v997
        %v1006 = vsel %vm309, %v998, 0.0
        %1007 = vadd.xlane.f32.xlu0 %v1006
        %v1008 = vpop.xlane.xlu0 %1007
        %v1009 = vsel %vm309, %v999, 0.0
        %1010 = vadd.xlane.f32.xlu0 %v1009
        %v1011 = vpop.xlane.xlu0 %1010
        %v1012 = vsel %vm309, %v1000, 0.0
        %1013 = vadd.xlane.f32.xlu0 %v1012
        %v1014 = vpop.xlane.xlu0 %1013
        %v1015 = vsel %vm309, %v1001, 0.0
        %1016 = vadd.xlane.f32.xlu0 %v1015
        %v1017 = vpop.xlane.xlu0 %1016
        %v1018 = vsel %vm309, %v1002, 0.0
        %1019 = vadd.xlane.f32.xlu0 %v1018
        %v1020 = vpop.xlane.xlu0 %1019
        %v1021 = vsel %vm309, %v1003, 0.0
        %1022 = vadd.xlane.f32.xlu0 %v1021
        %v1023 = vpop.xlane.xlu0 %1022
        %v1024 = vsel %vm309, %v1004, 0.0
        %1025 = vadd.xlane.f32.xlu0 %v1024
        %v1026 = vpop.xlane.xlu0 %1025
        %v1027 = vsel %vm309, %v1005, 0.0
        %1028 = vadd.xlane.f32.xlu0 %v1027
        %v1029 = vpop.xlane.xlu0 %1028
        %v1030 = vmul.f32 %v1008, %v334
        %v1031 = vmul.f32 %v1011, %v334
        %v1032 = vmul.f32 %v1014, %v334
        %v1033 = vmul.f32 %v1017, %v334
        %v1034 = vmul.f32 %v1020, %v334
        %v1035 = vmul.f32 %v1023, %v334
        %v1036 = vmul.f32 %v1026, %v334
        %v1037 = vmul.f32 %v1029, %v334
        %v1038 = vsub.f32 %v998, %v1030
        %v1039 = vsub.f32 %v999, %v1031
        %v1040 = vsub.f32 %v1000, %v1032
        %v1041 = vsub.f32 %v1001, %v1033
        %v1042 = vsub.f32 %v1002, %v1034
        %v1043 = vsub.f32 %v1003, %v1035
        %v1044 = vsub.f32 %v1004, %v1036
        %v1045 = vsub.f32 %v1005, %v1037
        %v1046 = vmul.f32 %v1038, %v1038
        %v1047 = vmul.f32 %v1039, %v1039
        %v1048 = vmul.f32 %v1040, %v1040
        %v1049 = vmul.f32 %v1041, %v1041
        %v1050 = vmul.f32 %v1042, %v1042
        %v1051 = vmul.f32 %v1043, %v1043
        %v1052 = vmul.f32 %v1044, %v1044
        %v1053 = vmul.f32 %v1045, %v1045
        %v1054 = vsel %vm309, %v1046, 0.0
        %1055 = vadd.xlane.f32.xlu0 %v1054
        %v1056 = vpop.xlane.xlu0 %1055
        %v1057 = vsel %vm309, %v1047, 0.0
        %1058 = vadd.xlane.f32.xlu0 %v1057
        %v1059 = vpop.xlane.xlu0 %1058
        %v1060 = vsel %vm309, %v1048, 0.0
        %1061 = vadd.xlane.f32.xlu0 %v1060
        %v1062 = vpop.xlane.xlu0 %1061
        %v1063 = vsel %vm309, %v1049, 0.0
        %1064 = vadd.xlane.f32.xlu0 %v1063
        %v1065 = vpop.xlane.xlu0 %1064
        %v1066 = vsel %vm309, %v1050, 0.0
        %1067 = vadd.xlane.f32.xlu0 %v1066
        %v1068 = vpop.xlane.xlu0 %1067
        %v1069 = vsel %vm309, %v1051, 0.0
        %1070 = vadd.xlane.f32.xlu0 %v1069
        %v1071 = vpop.xlane.xlu0 %1070
        %v1072 = vsel %vm309, %v1052, 0.0
        %1073 = vadd.xlane.f32.xlu0 %v1072
        %v1074 = vpop.xlane.xlu0 %1073
        %v1075 = vsel %vm309, %v1053, 0.0
        %1076 = vadd.xlane.f32.xlu0 %v1075
        %v1077 = vpop.xlane.xlu0 %1076
        %v1078 = vmul.f32 %v1056, %v334
        %v1079 = vmul.f32 %v1059, %v334
        %v1080 = vmul.f32 %v1062, %v334
        %v1081 = vmul.f32 %v1065, %v334
        %v1082 = vmul.f32 %v1068, %v334
        %v1083 = vmul.f32 %v1071, %v334
        %v1084 = vmul.f32 %v1074, %v334
        %v1085 = vmul.f32 %v1077, %v334
        %v1086 = vadd.f32 %v1078, 1e-05
        %v1087 = vadd.f32 %v1079, 1e-05
        %v1088 = vadd.f32 %v1080, 1e-05
        %v1089 = vadd.f32 %v1081, 1e-05
        %v1090 = vadd.f32 %v1082, 1e-05
        %v1091 = vadd.f32 %v1083, 1e-05
        %v1092 = vadd.f32 %v1084, 1e-05
        %v1093 = vadd.f32 %v1085, 1e-05
        %v1094 = vrsqrt.pop %v1086
        %v1095 = vrsqrt.pop %v1087
        %v1096 = vrsqrt.pop %v1088
        %v1097 = vrsqrt.pop %v1089
        %v1098 = vrsqrt.pop %v1090
        %v1099 = vrsqrt.pop %v1091
        %v1100 = vrsqrt.pop %v1092
        %v1101 = vrsqrt.pop %v1093
        %v1102 = vmul.f32 %v1038, %v1094
        %v1103 = vmul.f32 %v1039, %v1095
        %v1104 = vmul.f32 %v1040, %v1096
        %v1105 = vmul.f32 %v1041, %v1097
        %v1106 = vmul.f32 %v1042, %v1098
        %v1107 = vmul.f32 %v1043, %v1099
        %v1108 = vmul.f32 %v1044, %v1100
        %v1109 = vmul.f32 %v1045, %v1101
        %v1110 = vlaneseq
        %v1111 = vshrl.u32 %v1110, 7
        %v1112 = vsub.s32 4, %v1111
        %v1113 = vrot.slane %v308, %v1112
        %v1114 = vmul.f32 %v1102, %v1113
        %v1115 = vmul.f32 %v1103, %v1113
        %v1116 = vmul.f32 %v1104, %v1113
        %v1117 = vmul.f32 %v1105, %v1113
        %v1118 = vmul.f32 %v1106, %v1113
        %v1119 = vmul.f32 %v1107, %v1113
        %v1120 = vmul.f32 %v1108, %v1113
        %v1121 = vmul.f32 %v1109, %v1113
        %v1122 = vlaneseq
        %v1123 = vshrl.u32 %v1122, 7
        %v1124 = vsub.s32 5, %v1123
        %v1125 = vrot.slane %v308, %v1124
        %v1126 = vadd.f32 %v1114, %v1125
        %v1127 = vadd.f32 %v1115, %v1125
        %v1128 = vadd.f32 %v1116, %v1125
        %v1129 = vadd.f32 %v1117, %v1125
        %v1130 = vadd.f32 %v1118, %v1125
        %v1131 = vadd.f32 %v1119, %v1125
        %v1132 = vadd.f32 %v1120, %v1125
        %v1133 = vadd.f32 %v1121, %v1125
        %1134 = vst.msk [vmem:[%s298] sm:$0xff] %vm309, %v1126
        %1135 = vst.msk [vmem:[%s298 + $0x8] sm:$0xff] %vm309, %v1127
        %1136 = vst.msk [vmem:[%s298 + $0x10] sm:$0xff] %vm309, %v1128
        %1137 = vst.msk [vmem:[%s298 + $0x18] sm:$0xff] %vm309, %v1129
        %1138 = vst.msk [vmem:[%s298 + $0x20] sm:$0xff] %vm309, %v1130
        %1139 = vst.msk [vmem:[%s298 + $0x28] sm:$0xff] %vm309, %v1131
        %1140 = vst.msk [vmem:[%s298 + $0x30] sm:$0xff] %vm309, %v1132
        %1141 = vst.msk [vmem:[%s298 + $0x38] sm:$0xff] %vm309, %v1133
        %s1142 = sand.u32 %s142, 1
        %s1143 = scalar_lea.sflag [#allocation4], %s1142
        %s1144 = sand.u32 %s142, 1
        %s1145 = smul.addr %s1144, 64
        %s1146 = scalar_lea.vmem [#allocation11], %s1145
        // Predicated region
        $region61: #{_lambda_.7} parent=39 // pred_check
          %p1147 = pneg %p152
        $region62: #{_lambda_.7} parent=39 // pred_check_branch
          %1149 = sbr.rel (%p1147) target = $region64
        $region63: #{_lambda_.7} parent=39 // pred_region
          %s1151 = ssub.s32 1024, 1024
          %1152 = vsyncadd %s1143, %s1151
          %s1153 = smul.addr %s24, 8
          %s1154 = smul.addr %s1153, 128
          %s1155 = scalar_lea.hbm %s5, %s1154
          %s1156 = sshll.u32 %s1146, 4
          %s1157 = int_to_ptr.vmem [resolvable:$true] %s1156
          %1162 = dma.vmem_to_hbm [thread:$0]  %s1157, 1024, %s1155, %s1143, 128, 128, 8
        $region64: #{_lambda_.7} parent=39 // pred_fallthru
          _
      $region40: #{_lambda_.7} parent=5 // pred_fallthru
        _
      %p1163 = scmp.le.s32.totalorder 2, %s19
      // Predicated region
      $region65: #{_lambda_.7} parent=5 // pred_check
        %p1164 = pneg %p1163
      $region66: #{_lambda_.7} parent=5 // pred_check_branch
        %1166 = sbr.rel (%p1164) target = $region68
      $region67: #{_lambda_.7} parent=5 // pred_region
        %s1167 = ssub.s32 %s19, 2
        // Predicated region
        $region69: #{_lambda_.7} parent=67 // pred_check
          %p1168 = pneg %p158
        $region70: #{_lambda_.7} parent=67 // pred_check_branch
          %1170 = sbr.rel (%p1168) target = $region72
        $region71: #{_lambda_.7} parent=67 // pred_region
          %s1171 = sand.u32 %s143, 1
          %s1172 = scalar_lea.sflag [#allocation4], %s1171
          %s1173 = sand.u32 %s143, 1
          %s1174 = smul.addr %s1173, 64
          %s1175 = scalar_lea.vmem [#allocation11], %s1174
          %1176 = dma.done %s1172, 1024
        $region72: #{_lambda_.7} parent=67 // pred_fallthru
          _
      $region68: #{_lambda_.7} parent=5 // pred_fallthru
        _
    $region6: #{_lambda_.7} parent=1 // loop_footer
      %s23 = sadd.s32 1, %s19
    $region7: #{_lambda_.7} parent=1 // loop_footer_branch
      %18 = sbr.rel target = $region3
    $region8: #{_lambda_.7} parent=1 // loop_exit
      _
    %1177 = vsyncpa [#allocation3], 1
    %s1178 = scalar_lea.sflag [#allocation3], 1
    %1179 = vsyncpa %s1178, 1
    %1180 = vsyncpa [#allocation6], 1
    %1181 = vsyncpa [#allocation9], 1
    %1182 = vsyncpa [#allocation4], 1
    %s1183 = scalar_lea.sflag [#allocation4], 1
    %1184 = vsyncpa %s1183, 1

// kernel: _lambda_.4
$region0: #{_lambda_.4}
  #allocation0 [shape = 'u32[]', space=smem, size = 0x4, offset = 0x4, fixed_abs, tag = 'smem constant byte address 0x4 - core index']
  #allocation1 [shape = 'u32[144,128]{1,0:T(1,128)}', space=vmem, size = 0x12000, scoped, tag = 'internal scratch']
  #allocation2 [shape = 'f32[64,32]{1,0:T(8,128)}', space=vmem, size = 0x8000, scoped, tag = 'scratch operand']
  #allocation3 [shape = 'f32[64,32]{1,0:T(8,128)}', space=vmem, size = 0x8000, scoped, tag = 'scratch operand']
  #allocation4 [shape = 'f32[64,32]{1,0:T(8,128)}', space=vmem, size = 0x8000, scoped, tag = 'scratch operand']
  #allocation5 [shape = 'f32[64,32]{1,0:T(8,128)}', space=vmem, size = 0x8000, scoped, tag = 'scratch operand']
  #allocation6 [shape = 'f32[64,32]{1,0:T(8,128)}', space=vmem, size = 0x8000, scoped, tag = 'scratch operand']
  %s0 = inlined_call_operand.hbm [shape: f32[2,64,32], index: 0, kind: input, shape index: {}]
  %s1 = inlined_call_operand.hbm [shape: f32[16,32], index: 1, kind: input, shape index: {}]
  %s2 = inlined_call_operand.hbm [shape: bf16[32,32], index: 2, kind: input, shape index: {}]
  %s3 = inlined_call_operand.hbm [shape: bf16[32,32], index: 3, kind: input, shape index: {}]
  %s4 = inlined_call_operand.hbm [shape: bf16[32,32], index: 4, kind: input, shape index: {}]
  %s5 = inlined_call_operand.hbm [shape: bf16[32,32], index: 5, kind: input, shape index: {}]
  %s6 = inlined_call_operand.hbm [shape: f32[2,64,32], index: 6, kind: output, shape index: {}]
  %s7 = sld [smem:[#allocation0]]
  $region95: #{_lambda_.4} parent=0
    _
  %s9 = ssub.s32 1, %s7
  %s10 = scalar_select 0, %s9, %s7
  $region1: #{_lambda_.4} parent=0
    #allocation7 [shape = 'u8[65536]{0}', space=vmem, size = 0x10000, scoped, tag = 'input window, operand 0']
    #allocation8 [shape = 's32[2]{0}', space=sflag, size = 0x8, scoped, tag = 'scoped memory for _lambda_.4']
    #allocation9 [shape = 's32[2]{0}', space=sflag, size = 0x8, scoped, tag = 'scoped memory for _lambda_.4']
    #allocation10 [shape = 'u8[8192]{0}', space=vmem, size = 0x2000, scoped, tag = 'input window, operand 1, single buffered']
    #allocation11 [shape = 's32[1]{0}', space=sflag, size = 0x4, scoped, tag = 'scoped memory for _lambda_.4']
    #allocation12 [shape = 'u8[8192]{0}', space=vmem, size = 0x2000, scoped, tag = 'input window, operand 2, single buffered']
    #allocation13 [shape = 'u8[8192]{0}', space=vmem, size = 0x2000, scoped, tag = 'input window, operand 3, single buffered']
    #allocation14 [shape = 's32[1]{0}', space=sflag, size = 0x4, scoped, tag = 'scoped memory for _lambda_.4']
    #allocation15 [shape = 'u8[8192]{0}', space=vmem, size = 0x2000, scoped, tag = 'input window, operand 4, single buffered']
    #allocation16 [shape = 'u8[8192]{0}', space=vmem, size = 0x2000, scoped, tag = 'input window, operand 5, single buffered']
    #allocation17 [shape = 's32[1]{0}', space=sflag, size = 0x4, scoped, tag = 'scoped memory for _lambda_.4']
    #allocation18 [shape = 'u8[65536]{0}', space=vmem, size = 0x10000, scoped, tag = 'output window, operand 0']
    %11 = vsyncpa [#allocation8], 0
    %s12 = scalar_lea.sflag [#allocation8], 1
    %13 = vsyncpa %s12, 0
    %14 = vsyncpa [#allocation11], 0
    %15 = vsyncpa [#allocation14], 0
    %16 = vsyncpa [#allocation17], 0
    %17 = vsyncpa [#allocation9], 0
    %s18 = scalar_lea.sflag [#allocation9], 1
    %19 = vsyncpa %s18, 0
    loop: start=0, step=1, limit=4
    $region2: #{_lambda_.4} parent=1 // loop_pre_header
      _
    $region3: #{_lambda_.4} parent=1 // loop_header
      %s21 = sphi 0, %s25
      %p22 = scmp.ge.s32.totalorder %s21, 4
      %s31 = sphi 0, %s33
      %s34 = sphi 0, %s31
      %s35 = sphi 0, %s34
      %s51 = sphi 0, %s35
      %s55 = sphi 0, %s55
      %s57 = sphi 0, %s55
      %s58 = sphi 0, %s57
      %s72 = sphi 0, %s58
      %s76 = sphi 0, %s76
      %s78 = sphi 0, %s76
      %s79 = sphi 0, %s78
      %s93 = sphi 0, %s79
      %s97 = sphi 0, %s97
      %s99 = sphi 0, %s97
      %s100 = sphi 0, %s99
      %s114 = sphi 0, %s100
      %s118 = sphi 0, %s118
      %s120 = sphi 0, %s118
      %s121 = sphi 0, %s120
      %s135 = sphi 0, %s121
      %s139 = sphi 0, %s139
      %s141 = sphi 0, %s139
      %s142 = sphi 0, %s141
      %s156 = sphi 0, %s142
      %s162 = sphi 0, %s164
      %s165 = sphi 0, %s162
      %s166 = sphi 0, %s165
      %s182 = sphi 0, %s166
    $region4: #{_lambda_.4} parent=1 // loop_header_branch
      %24 = sbr.rel (%p22) target = $region8
    $region5: #{_lambda_.4} parent=1 // loop_body
      %s26 = ssub.s32 %s21, 1
      %s27 = ssub.s32 %s21, 2
      %s28 = sadd.s32 %s21, 1
      %s29 = ssub.s32 %s21, %s28
      %p30 = scmp.eq.s32.totalorder %s29, 0
      %s32 = sadd.s32 %s31, 1
      %s33 = scalar_select %p30, %s31, %s32
      %p36 = pneg %p30
      %p37 = scmp.eq.s32.totalorder %s21, 1
      %p38 = por %p36, %p37
      %p39 = scmp.ne.s32.totalorder %s31, %s34
      %p40 = scmp.eq.s32.totalorder %s21, 0
      %p41 = por %p39, %p40
      %p42 = scmp.ne.s32.totalorder %s31, %s34
      %p43 = scmp.eq.s32.totalorder %s26, 1
      %p44 = por %p42, %p43
      %p45 = scmp.ne.s32.totalorder %s34, %s35
      %p46 = scmp.eq.s32.totalorder %s26, 0
      %p47 = por %p45, %p46
      %p48 = scmp.ne.s32.totalorder %s34, %s35
      %p49 = scmp.eq.s32.totalorder %s27, 1
      %p50 = por %p48, %p49
      %p52 = scmp.ne.s32.totalorder %s35, %s51
      %p53 = scmp.eq.s32.totalorder %s27, 0
      %p54 = por %p52, %p53
      %s56 = sadd.s32 %s55, 1
      %p59 = scmp.eq.s32.totalorder %s21, 1
      %p60 = scmp.ne.s32.totalorder %s55, %s57
      %p61 = scmp.eq.s32.totalorder %s21, 0
      %p62 = por %p60, %p61
      %p63 = scmp.ne.s32.totalorder %s55, %s57
      %p64 = scmp.eq.s32.totalorder %s26, 1
      %p65 = por %p63, %p64
      %p66 = scmp.ne.s32.totalorder %s57, %s58
      %p67 = scmp.eq.s32.totalorder %s26, 0
      %p68 = por %p66, %p67
      %p69 = scmp.ne.s32.totalorder %s57, %s58
      %p70 = scmp.eq.s32.totalorder %s27, 1
      %p71 = por %p69, %p70
      %p73 = scmp.ne.s32.totalorder %s58, %s72
      %p74 = scmp.eq.s32.totalorder %s27, 0
      %p75 = por %p73, %p74
      %s77 = sadd.s32 %s76, 1
      %p80 = scmp.eq.s32.totalorder %s21, 1
      %p81 = scmp.ne.s32.totalorder %s76, %s78
      %p82 = scmp.eq.s32.totalorder %s21, 0
      %p83 = por %p81, %p82
      %p84 = scmp.ne.s32.totalorder %s76, %s78
      %p85 = scmp.eq.s32.totalorder %s26, 1
      %p86 = por %p84, %p85
      %p87 = scmp.ne.s32.totalorder %s78, %s79
      %p88 = scmp.eq.s32.totalorder %s26, 0
      %p89 = por %p87, %p88
      %p90 = scmp.ne.s32.totalorder %s78, %s79
      %p91 = scmp.eq.s32.totalorder %s27, 1
      %p92 = por %p90, %p91
      %p94 = scmp.ne.s32.totalorder %s79, %s93
      %p95 = scmp.eq.s32.totalorder %s27, 0
      %p96 = por %p94, %p95
      %s98 = sadd.s32 %s97, 1
      %p101 = scmp.eq.s32.totalorder %s21, 1
      %p102 = scmp.ne.s32.totalorder %s97, %s99
      %p103 = scmp.eq.s32.totalorder %s21, 0
      %p104 = por %p102, %p103
      %p105 = scmp.ne.s32.totalorder %s97, %s99
      %p106 = scmp.eq.s32.totalorder %s26, 1
      %p107 = por %p105, %p106
      %p108 = scmp.ne.s32.totalorder %s99, %s100
      %p109 = scmp.eq.s32.totalorder %s26, 0
      %p110 = por %p108, %p109
      %p111 = scmp.ne.s32.totalorder %s99, %s100
      %p112 = scmp.eq.s32.totalorder %s27, 1
      %p113 = por %p111, %p112
      %p115 = scmp.ne.s32.totalorder %s100, %s114
      %p116 = scmp.eq.s32.totalorder %s27, 0
      %p117 = por %p115, %p116
      %s119 = sadd.s32 %s118, 1
      %p122 = scmp.eq.s32.totalorder %s21, 1
      %p123 = scmp.ne.s32.totalorder %s118, %s120
      %p124 = scmp.eq.s32.totalorder %s21, 0
      %p125 = por %p123, %p124
      %p126 = scmp.ne.s32.totalorder %s118, %s120
      %p127 = scmp.eq.s32.totalorder %s26, 1
      %p128 = por %p126, %p127
      %p129 = scmp.ne.s32.totalorder %s120, %s121
      %p130 = scmp.eq.s32.totalorder %s26, 0
      %p131 = por %p129, %p130
      %p132 = scmp.ne.s32.totalorder %s120, %s121
      %p133 = scmp.eq.s32.totalorder %s27, 1
      %p134 = por %p132, %p133
      %p136 = scmp.ne.s32.totalorder %s121, %s135
      %p137 = scmp.eq.s32.totalorder %s27, 0
      %p138 = por %p136, %p137
      %s140 = sadd.s32 %s139, 1
      %p143 = scmp.eq.s32.totalorder %s21, 1
      %p144 = scmp.ne.s32.totalorder %s139, %s141
      %p145 = scmp.eq.s32.totalorder %s21, 0
      %p146 = por %p144, %p145
      %p147 = scmp.ne.s32.totalorder %s139, %s141
      %p148 = scmp.eq.s32.totalorder %s26, 1
      %p149 = por %p147, %p148
      %p150 = scmp.ne.s32.totalorder %s141, %s142
      %p151 = scmp.eq.s32.totalorder %s26, 0
      %p152 = por %p150, %p151
      %p153 = scmp.ne.s32.totalorder %s141, %s142
      %p154 = scmp.eq.s32.totalorder %s27, 1
      %p155 = por %p153, %p154
      %p157 = scmp.ne.s32.totalorder %s142, %s156
      %p158 = scmp.eq.s32.totalorder %s27, 0
      %p159 = por %p157, %p158
      %s160 = ssub.s32 %s21, %s28
      %p161 = scmp.eq.s32.totalorder %s160, 0
      %s163 = sadd.s32 %s162, 1
      %s164 = scalar_select %p161, %s162, %s163
      %p167 = pneg %p161
      %p168 = scmp.eq.s32.totalorder %s21, 1
      %p169 = por %p167, %p168
      %p170 = scmp.ne.s32.totalorder %s162, %s165
      %p171 = scmp.eq.s32.totalorder %s21, 0
      %p172 = por %p170, %p171
      %p173 = scmp.ne.s32.totalorder %s162, %s165
      %p174 = scmp.eq.s32.totalorder %s26, 1
      %p175 = por %p173, %p174
      %p176 = scmp.ne.s32.totalorder %s165, %s166
      %p177 = scmp.eq.s32.totalorder %s26, 0
      %p178 = por %p176, %p177
      %p179 = scmp.ne.s32.totalorder %s165, %s166
      %p180 = scmp.eq.s32.totalorder %s27, 1
      %p181 = por %p179, %p180
      %p183 = scmp.ne.s32.totalorder %s166, %s182
      %p184 = scmp.eq.s32.totalorder %s27, 0
      %p185 = por %p183, %p184
      %p186 = scmp.le.s32.totalorder 1, %s21
      %p187 = scmp.lt.s32.totalorder %s21, 3
      %p188 = pnand %p186, %p187
      %p189 = pneg %p188
      // Predicated region
      $region9: #{_lambda_.4} parent=5 // pred_check
        _
      $region10: #{_lambda_.4} parent=5 // pred_check_branch
        %191 = sbr.rel (%p188) target = $region12
      $region11: #{_lambda_.4} parent=5 // pred_region
        %s192 = ssub.s32 %s21, 1
        // Predicated region
        $region13: #{_lambda_.4} parent=11 // pred_check
          %p193 = pneg %p68
        $region14: #{_lambda_.4} parent=11 // pred_check_branch
          %195 = sbr.rel (%p193) target = $region16
        $region15: #{_lambda_.4} parent=11 // pred_region
          %s197 = ssub.s32 256, 256
          %198 = vsyncadd [#allocation11], %s197
          %s199 = sshll.u32 [#allocation10], 4
          %s200 = int_to_ptr.vmem [resolvable:$true] %s199
          %205 = dma.hbm_to_vmem [thread:$0]  %s1, 256, %s200, [#allocation11], 128, 128, 8
        $region16: #{_lambda_.4} parent=11 // pred_fallthru
          _
        // Predicated region
        $region17: #{_lambda_.4} parent=11 // pred_check
          %p206 = pneg %p89
        $region18: #{_lambda_.4} parent=11 // pred_check_branch
          %208 = sbr.rel (%p206) target = $region20
        $region19: #{_lambda_.4} parent=11 // pred_region
          %s210 = ssub.s32 256, 256
          %211 = vsyncadd [#allocation11], %s210
          %s212 = sshll.u32 [#allocation12], 4
          %s213 = int_to_ptr.vmem [resolvable:$true] %s212
          %218 = dma.hbm_to_vmem [thread:$0]  %s2, 256, %s213, [#allocation11], 64, 64, 4
        $region20: #{_lambda_.4} parent=11 // pred_fallthru
          _
        // Predicated region
        $region21: #{_lambda_.4} parent=11 // pred_check
          %p219 = pneg %p110
        $region22: #{_lambda_.4} parent=11 // pred_check_branch
          %221 = sbr.rel (%p219) target = $region24
        $region23: #{_lambda_.4} parent=11 // pred_region
          %s223 = ssub.s32 256, 256
          %224 = vsyncadd [#allocation14], %s223
          %s225 = sshll.u32 [#allocation13], 4
          %s226 = int_to_ptr.vmem [resolvable:$true] %s225
          %231 = dma.hbm_to_vmem [thread:$0]  %s3, 256, %s226, [#allocation14], 64, 64, 4
        $region24: #{_lambda_.4} parent=11 // pred_fallthru
          _
        // Predicated region
        $region25: #{_lambda_.4} parent=11 // pred_check
          %p232 = pneg %p131
        $region26: #{_lambda_.4} parent=11 // pred_check_branch
          %234 = sbr.rel (%p232) target = $region28
        $region27: #{_lambda_.4} parent=11 // pred_region
          %s236 = ssub.s32 256, 256
          %237 = vsyncadd [#allocation14], %s236
          %s238 = sshll.u32 [#allocation15], 4
          %s239 = int_to_ptr.vmem [resolvable:$true] %s238
          %244 = dma.hbm_to_vmem [thread:$0]  %s4, 256, %s239, [#allocation14], 64, 64, 4
        $region28: #{_lambda_.4} parent=11 // pred_fallthru
          _
        // Predicated region
        $region29: #{_lambda_.4} parent=11 // pred_check
          %p245 = pneg %p152
        $region30: #{_lambda_.4} parent=11 // pred_check_branch
          %247 = sbr.rel (%p245) target = $region32
        $region31: #{_lambda_.4} parent=11 // pred_region
          %s249 = ssub.s32 256, 256
          %250 = vsyncadd [#allocation17], %s249
          %s251 = sshll.u32 [#allocation16], 4
          %s252 = int_to_ptr.vmem [resolvable:$true] %s251
          %257 = dma.hbm_to_vmem [thread:$0]  %s5, 256, %s252, [#allocation17], 64, 64, 4
        $region32: #{_lambda_.4} parent=11 // pred_fallthru
          _
      $region12: #{_lambda_.4} parent=5 // pred_fallthru
        _
      %p258 = scmp.lt.s32.totalorder %s21, 2
      // Predicated region
      $region33: #{_lambda_.4} parent=5 // pred_check
        %p259 = pneg %p258
      $region34: #{_lambda_.4} parent=5 // pred_check_branch
        %261 = sbr.rel (%p259) target = $region36
      $region35: #{_lambda_.4} parent=5 // pred_region
        // Predicated region
        $region37: #{_lambda_.4} parent=35 // pred_check
          %p262 = pneg %p41
        $region38: #{_lambda_.4} parent=35 // pred_check_branch
          %264 = sbr.rel (%p262) target = $region40
        $region39: #{_lambda_.4} parent=35 // pred_region
          %s265 = sand.u32 %s31, 1
          %s266 = scalar_lea.sflag [#allocation8], %s265
          %s267 = sand.u32 %s31, 1
          %s268 = smul.addr %s267, 64
          %s269 = scalar_lea.vmem [#allocation7], %s268
          %s271 = ssub.s32 1024, 1024
          %272 = vsyncadd %s266, %s271
          %s273 = smul.addr %s21, 8
          %s274 = smul.addr %s273, 128
          %s275 = scalar_lea.hbm %s0, %s274
          %s276 = sshll.u32 %s269, 4
          %s277 = int_to_ptr.vmem [resolvable:$true] %s276
          %282 = dma.hbm_to_vmem [thread:$0]  %s275, 1024, %s277, %s266, 128, 128, 8
        $region40: #{_lambda_.4} parent=35 // pred_fallthru
          _
      $region36: #{_lambda_.4} parent=5 // pred_fallthru
        _
      %p283 = scmp.le.s32.totalorder 1, %s21
      %p284 = scmp.lt.s32.totalorder %s21, 3
      %p285 = pnand %p283, %p284
      %p286 = pneg %p285
      // Predicated region
      $region41: #{_lambda_.4} parent=5 // pred_check
        _
      $region42: #{_lambda_.4} parent=5 // pred_check_branch
        %288 = sbr.rel (%p285) target = $region44
      $region43: #{_lambda_.4} parent=5 // pred_region
        %s289 = ssub.s32 %s21, 1
        %s290 = sand.u32 %s34, 1
        %s291 = scalar_lea.sflag [#allocation8], %s290
        %s292 = sand.u32 %s34, 1
        %s293 = smul.addr %s292, 64
        %s294 = scalar_lea.vmem [#allocation7], %s293
        // Predicated region
        $region45: #{_lambda_.4} parent=43 // pred_check
          %p295 = pneg %p47
        $region46: #{_lambda_.4} parent=43 // pred_check_branch
          %297 = sbr.rel (%p295) target = $region48
        $region47: #{_lambda_.4} parent=43 // pred_region
          %298 = dma.done %s291, 1024
        $region48: #{_lambda_.4} parent=43 // pred_fallthru
          _
        // Predicated region
        $region49: #{_lambda_.4} parent=43 // pred_check
          %p299 = pneg %p68
        $region50: #{_lambda_.4} parent=43 // pred_check_branch
          %301 = sbr.rel (%p299) target = $region52
        $region51: #{_lambda_.4} parent=43 // pred_region
          %302 = dma.done [#allocation11], 256
        $region52: #{_lambda_.4} parent=43 // pred_fallthru
          _
        // Predicated region
        $region53: #{_lambda_.4} parent=43 // pred_check
          %p303 = pneg %p89
        $region54: #{_lambda_.4} parent=43 // pred_check_branch
          %305 = sbr.rel (%p303) target = $region56
        $region55: #{_lambda_.4} parent=43 // pred_region
          %306 = dma.done [#allocation11], 256
        $region56: #{_lambda_.4} parent=43 // pred_fallthru
          _
        // Predicated region
        $region57: #{_lambda_.4} parent=43 // pred_check
          %p307 = pneg %p110
        $region58: #{_lambda_.4} parent=43 // pred_check_branch
          %309 = sbr.rel (%p307) target = $region60
        $region59: #{_lambda_.4} parent=43 // pred_region
          %310 = dma.done [#allocation14], 256
        $region60: #{_lambda_.4} parent=43 // pred_fallthru
          _
        // Predicated region
        $region61: #{_lambda_.4} parent=43 // pred_check
          %p311 = pneg %p131
        $region62: #{_lambda_.4} parent=43 // pred_check_branch
          %313 = sbr.rel (%p311) target = $region64
        $region63: #{_lambda_.4} parent=43 // pred_region
          %314 = dma.done [#allocation14], 256
        $region64: #{_lambda_.4} parent=43 // pred_fallthru
          _
        // Predicated region
        $region65: #{_lambda_.4} parent=43 // pred_check
          %p315 = pneg %p152
        $region66: #{_lambda_.4} parent=43 // pred_check_branch
          %317 = sbr.rel (%p315) target = $region68
        $region67: #{_lambda_.4} parent=43 // pred_region
          %318 = dma.done [#allocation17], 256
        $region68: #{_lambda_.4} parent=43 // pred_fallthru
          _
        %s319 = sand.u32 %s34, 1
        %s320 = scalar_lea.sflag [#allocation8], %s319
        %s321 = sand.u32 %s34, 1
        %s322 = smul.addr %s321, 64
        %s323 = scalar_lea.vmem [#allocation7], %s322
        %p324 = pneg %p47
        %p325 = pneg %p44
        %p326 = pneg %p68
        %p327 = pneg %p65
        %p328 = pneg %p89
        %p329 = pneg %p86
        %p330 = pneg %p110
        %p331 = pneg %p107
        %p332 = pneg %p131
        %p333 = pneg %p128
        %p334 = pneg %p152
        %p335 = pneg %p149
        %p336 = pneg %p178
        %p337 = pneg %p175
        %s338 = sand.u32 %s165, 1
        %s339 = scalar_lea.sflag [#allocation9], %s338
        %s340 = sand.u32 %s165, 1
        %s341 = smul.addr %s340, 64
        %s342 = scalar_lea.vmem [#allocation18], %s341
        %v344 = vld [vmem:[%s294] sm:$0xff]
        %v345 = vld [vmem:[%s294 + $0x8] sm:$0xff]
        %v346 = vld [vmem:[%s294 + $0x10] sm:$0xff]
        %v347 = vld [vmem:[%s294 + $0x18] sm:$0xff]
        %v348 = vld [vmem:[%s294 + $0x20] sm:$0xff]
        %v349 = vld [vmem:[%s294 + $0x28] sm:$0xff]
        %v350 = vld [vmem:[%s294 + $0x30] sm:$0xff]
        %v351 = vld [vmem:[%s294 + $0x38] sm:$0xff]
        %v352 = vld [vmem:[#allocation10] sm:$0xff]
        %v353 = vld [vmem:[#allocation10 + $0x8] sm:$0xff]
        %vm354 = vcmask 261120
        %v355 = vsel %vm354, %v344, 0.0
        %356 = vadd.xlane.f32.xlu0 %v355
        %v357 = vpop.xlane.xlu0 %356
        %v358 = vsel %vm354, %v345, 0.0
        %359 = vadd.xlane.f32.xlu0 %v358
        %v360 = vpop.xlane.xlu0 %359
        %v361 = vsel %vm354, %v346, 0.0
        %362 = vadd.xlane.f32.xlu0 %v361
        %v363 = vpop.xlane.xlu0 %362
        %v364 = vsel %vm354, %v347, 0.0
        %365 = vadd.xlane.f32.xlu0 %v364
        %v366 = vpop.xlane.xlu0 %365
        %v367 = vsel %vm354, %v348, 0.0
        %368 = vadd.xlane.f32.xlu0 %v367
        %v369 = vpop.xlane.xlu0 %368
        %v370 = vsel %vm354, %v349, 0.0
        %371 = vadd.xlane.f32.xlu0 %v370
        %v372 = vpop.xlane.xlu0 %371
        %v373 = vsel %vm354, %v350, 0.0
        %374 = vadd.xlane.f32.xlu0 %v373
        %v375 = vpop.xlane.xlu0 %374
        %v376 = vsel %vm354, %v351, 0.0
        %377 = vadd.xlane.f32.xlu0 %v376
        %v378 = vpop.xlane.xlu0 %377
        %v379 = vrcp.pop 32.0
        %v380 = vmul.f32 %v357, %v379
        %v381 = vmul.f32 %v360, %v379
        %v382 = vmul.f32 %v363, %v379
        %v383 = vmul.f32 %v366, %v379
        %v384 = vmul.f32 %v369, %v379
        %v385 = vmul.f32 %v372, %v379
        %v386 = vmul.f32 %v375, %v379
        %v387 = vmul.f32 %v378, %v379
        %v388 = vsub.f32 %v344, %v380
        %v389 = vsub.f32 %v345, %v381
        %v390 = vsub.f32 %v346, %v382
        %v391 = vsub.f32 %v347, %v383
        %v392 = vsub.f32 %v348, %v384
        %v393 = vsub.f32 %v349, %v385
        %v394 = vsub.f32 %v350, %v386
        %v395 = vsub.f32 %v351, %v387
        %v396 = vmul.f32 %v388, %v388
        %v397 = vmul.f32 %v389, %v389
        %v398 = vmul.f32 %v390, %v390
        %v399 = vmul.f32 %v391, %v391
        %v400 = vmul.f32 %v392, %v392
        %v401 = vmul.f32 %v393, %v393
        %v402 = vmul.f32 %v394, %v394
        %v403 = vmul.f32 %v395, %v395
        %v404 = vsel %vm354, %v396, 0.0
        %405 = vadd.xlane.f32.xlu0 %v404
        %v406 = vpop.xlane.xlu0 %405
        %v407 = vsel %vm354, %v397, 0.0
        %408 = vadd.xlane.f32.xlu0 %v407
        %v409 = vpop.xlane.xlu0 %408
        %v410 = vsel %vm354, %v398, 0.0
        %411 = vadd.xlane.f32.xlu0 %v410
        %v412 = vpop.xlane.xlu0 %411
        %v413 = vsel %vm354, %v399, 0.0
        %414 = vadd.xlane.f32.xlu0 %v413
        %v415 = vpop.xlane.xlu0 %414
        %v416 = vsel %vm354, %v400, 0.0
        %417 = vadd.xlane.f32.xlu0 %v416
        %v418 = vpop.xlane.xlu0 %417
        %v419 = vsel %vm354, %v401, 0.0
        %420 = vadd.xlane.f32.xlu0 %v419
        %v421 = vpop.xlane.xlu0 %420
        %v422 = vsel %vm354, %v402, 0.0
        %423 = vadd.xlane.f32.xlu0 %v422
        %v424 = vpop.xlane.xlu0 %423
        %v425 = vsel %vm354, %v403, 0.0
        %426 = vadd.xlane.f32.xlu0 %v425
        %v427 = vpop.xlane.xlu0 %426
        %v428 = vmul.f32 %v406, %v379
        %v429 = vmul.f32 %v409, %v379
        %v430 = vmul.f32 %v412, %v379
        %v431 = vmul.f32 %v415, %v379
        %v432 = vmul.f32 %v418, %v379
        %v433 = vmul.f32 %v421, %v379
        %v434 = vmul.f32 %v424, %v379
        %v435 = vmul.f32 %v427, %v379
        %v436 = vadd.f32 %v428, 1e-05
        %v437 = vadd.f32 %v429, 1e-05
        %v438 = vadd.f32 %v430, 1e-05
        %v439 = vadd.f32 %v431, 1e-05
        %v440 = vadd.f32 %v432, 1e-05
        %v441 = vadd.f32 %v433, 1e-05
        %v442 = vadd.f32 %v434, 1e-05
        %v443 = vadd.f32 %v435, 1e-05
        %v444 = vrsqrt.pop %v436
        %v445 = vrsqrt.pop %v437
        %v446 = vrsqrt.pop %v438
        %v447 = vrsqrt.pop %v439
        %v448 = vrsqrt.pop %v440
        %v449 = vrsqrt.pop %v441
        %v450 = vrsqrt.pop %v442
        %v451 = vrsqrt.pop %v443
        %v452 = vmul.f32 %v388, %v444
        %v453 = vmul.f32 %v389, %v445
        %v454 = vmul.f32 %v390, %v446
        %v455 = vmul.f32 %v391, %v447
        %v456 = vmul.f32 %v392, %v448
        %v457 = vmul.f32 %v393, %v449
        %v458 = vmul.f32 %v394, %v450
        %v459 = vmul.f32 %v395, %v451
        %v460 = vlaneseq
        %v461 = vshrl.u32 %v460, 7
        %v462 = vsub.s32 7, %v461
        %v463 = vrot.slane %v352, %v462
        %v464 = vmul.f32 %v452, %v463
        %v465 = vmul.f32 %v453, %v463
        %v466 = vmul.f32 %v454, %v463
        %v467 = vmul.f32 %v455, %v463
        %v468 = vmul.f32 %v456, %v463
        %v469 = vmul.f32 %v457, %v463
        %v470 = vmul.f32 %v458, %v463
        %v471 = vmul.f32 %v459, %v463
        %v472 = vlaneseq
        %v473 = vshrl.u32 %v472, 7
        %v474 = vsub.s32 0, %v473
        %v475 = vrot.slane %v353, %v474
        %v476 = vadd.f32 %v464, %v475
        %v477 = vadd.f32 %v465, %v475
        %v478 = vadd.f32 %v466, %v475
        %v479 = vadd.f32 %v467, %v475
        %v480 = vadd.f32 %v468, %v475
        %v481 = vadd.f32 %v469, %v475
        %v482 = vadd.f32 %v470, %v475
        %v483 = vadd.f32 %v471, %v475
        %v484 = vsel %vm354, %v476, 0.0
        %485 = vadd.xlane.f32.xlu0 %v484
        %v486 = vpop.xlane.xlu0 %485
        %v487 = vsel %vm354, %v477, 0.0
        %488 = vadd.xlane.f32.xlu0 %v487
        %v489 = vpop.xlane.xlu0 %488
        %v490 = vsel %vm354, %v478, 0.0
        %491 = vadd.xlane.f32.xlu0 %v490
        %v492 = vpop.xlane.xlu0 %491
        %v493 = vsel %vm354, %v479, 0.0
        %494 = vadd.xlane.f32.xlu0 %v493
        %v495 = vpop.xlane.xlu0 %494
        %v496 = vsel %vm354, %v480, 0.0
        %497 = vadd.xlane.f32.xlu0 %v496
        %v498 = vpop.xlane.xlu0 %497
        %v499 = vsel %vm354, %v481, 0.0
        %500 = vadd.xlane.f32.xlu0 %v499
        %v501 = vpop.xlane.xlu0 %500
        %v502 = vsel %vm354, %v482, 0.0
        %503 = vadd.xlane.f32.xlu0 %v502
        %v504 = vpop.xlane.xlu0 %503
        %v505 = vsel %vm354, %v483, 0.0
        %506 = vadd.xlane.f32.xlu0 %v505
        %v507 = vpop.xlane.xlu0 %506
        %v508 = vmul.f32 %v486, %v379
        %v509 = vmul.f32 %v489, %v379
        %v510 = vmul.f32 %v492, %v379
        %v511 = vmul.f32 %v495, %v379
        %v512 = vmul.f32 %v498, %v379
        %v513 = vmul.f32 %v501, %v379
        %v514 = vmul.f32 %v504, %v379
        %v515 = vmul.f32 %v507, %v379
        %v516 = vsub.f32 %v476, %v508
        %v517 = vsub.f32 %v477, %v509
        %v518 = vsub.f32 %v478, %v510
        %v519 = vsub.f32 %v479, %v511
        %v520 = vsub.f32 %v480, %v512
        %v521 = vsub.f32 %v481, %v513
        %v522 = vsub.f32 %v482, %v514
        %v523 = vsub.f32 %v483, %v515
        %v524 = vmul.f32 %v516, %v516
        %v525 = vmul.f32 %v517, %v517
        %v526 = vmul.f32 %v518, %v518
        %v527 = vmul.f32 %v519, %v519
        %v528 = vmul.f32 %v520, %v520
        %v529 = vmul.f32 %v521, %v521
        %v530 = vmul.f32 %v522, %v522
        %v531 = vmul.f32 %v523, %v523
        %v532 = vsel %vm354, %v524, 0.0
        %533 = vadd.xlane.f32.xlu0 %v532
        %v534 = vpop.xlane.xlu0 %533
        %v535 = vsel %vm354, %v525, 0.0
        %536 = vadd.xlane.f32.xlu0 %v535
        %v537 = vpop.xlane.xlu0 %536
        %v538 = vsel %vm354, %v526, 0.0
        %539 = vadd.xlane.f32.xlu0 %v538
        %v540 = vpop.xlane.xlu0 %539
        %v541 = vsel %vm354, %v527, 0.0
        %542 = vadd.xlane.f32.xlu0 %v541
        %v543 = vpop.xlane.xlu0 %542
        %v544 = vsel %vm354, %v528, 0.0
        %545 = vadd.xlane.f32.xlu0 %v544
        %v546 = vpop.xlane.xlu0 %545
        %v547 = vsel %vm354, %v529, 0.0
        %548 = vadd.xlane.f32.xlu0 %v547
        %v549 = vpop.xlane.xlu0 %548
        %v550 = vsel %vm354, %v530, 0.0
        %551 = vadd.xlane.f32.xlu0 %v550
        %v552 = vpop.xlane.xlu0 %551
        %v553 = vsel %vm354, %v531, 0.0
        %554 = vadd.xlane.f32.xlu0 %v553
        %v555 = vpop.xlane.xlu0 %554
        %v556 = vmul.f32 %v534, %v379
        %v557 = vmul.f32 %v537, %v379
        %v558 = vmul.f32 %v540, %v379
        %v559 = vmul.f32 %v543, %v379
        %v560 = vmul.f32 %v546, %v379
        %v561 = vmul.f32 %v549, %v379
        %v562 = vmul.f32 %v552, %v379
        %v563 = vmul.f32 %v555, %v379
        %v564 = vadd.f32 %v556, 1e-05
        %v565 = vadd.f32 %v557, 1e-05
        %v566 = vadd.f32 %v558, 1e-05
        %v567 = vadd.f32 %v559, 1e-05
        %v568 = vadd.f32 %v560, 1e-05
        %v569 = vadd.f32 %v561, 1e-05
        %v570 = vadd.f32 %v562, 1e-05
        %v571 = vadd.f32 %v563, 1e-05
        %v572 = vrsqrt.pop %v564
        %v573 = vrsqrt.pop %v565
        %v574 = vrsqrt.pop %v566
        %v575 = vrsqrt.pop %v567
        %v576 = vrsqrt.pop %v568
        %v577 = vrsqrt.pop %v569
        %v578 = vrsqrt.pop %v570
        %v579 = vrsqrt.pop %v571
        %v580 = vmul.f32 %v516, %v572
        %v581 = vmul.f32 %v517, %v573
        %v582 = vmul.f32 %v518, %v574
        %v583 = vmul.f32 %v519, %v575
        %v584 = vmul.f32 %v520, %v576
        %v585 = vmul.f32 %v521, %v577
        %v586 = vmul.f32 %v522, %v578
        %v587 = vmul.f32 %v523, %v579
        %v588 = vlaneseq
        %v589 = vshrl.u32 %v588, 7
        %v590 = vsub.s32 0, %v589
        %v591 = vrot.slane %v352, %v590
        %v592 = vmul.f32 %v580, %v591
        %v593 = vmul.f32 %v581, %v591
        %v594 = vmul.f32 %v582, %v591
        %v595 = vmul.f32 %v583, %v591
        %v596 = vmul.f32 %v584, %v591
        %v597 = vmul.f32 %v585, %v591
        %v598 = vmul.f32 %v586, %v591
        %v599 = vmul.f32 %v587, %v591
        %v600 = vlaneseq
        %v601 = vshrl.u32 %v600, 7
        %v602 = vsub.s32 1, %v601
        %v603 = vrot.slane %v352, %v602
        %v604 = vadd.f32 %v592, %v603
        %v605 = vadd.f32 %v593, %v603
        %v606 = vadd.f32 %v594, %v603
        %v607 = vadd.f32 %v595, %v603
        %v608 = vadd.f32 %v596, %v603
        %v609 = vadd.f32 %v597, %v603
        %v610 = vadd.f32 %v598, %v603
        %v611 = vadd.f32 %v599, %v603
        %v612 = vlaneseq
        %v613 = vshrl.u32 %v612, 7
        %v614 = vadd.s32 %v613, 8
        %v615 = vadd.s32 %v613, 16
        %v616 = vadd.s32 %v613, 24
        %v617 = vadd.s32 %v613, 32
        %v618 = vadd.s32 %v613, 40
        %v619 = vadd.s32 %v613, 48
        %v620 = vadd.s32 %v613, 56
        %v621 = vlaneseq
        %v622 = vand.u32 %v621, 127
        %v623 = vrot.slane %v604, 7
        %v624 = vrot.slane %v605, 7
        %v625 = vrot.slane %v606, 7
        %v626 = vrot.slane %v607, 7
        %v627 = vrot.slane %v608, 7
        %v628 = vrot.slane %v609, 7
        %v629 = vrot.slane %v610, 7
        %v630 = vrot.slane %v611, 7
        %vm631 = vcmp.lt.s32.totalorder %v613, 1
        %v632 = vsel %vm631, %v629, %v630
        %v633 = vsel %vm631, %v628, %v629
        %v634 = vsel %vm631, %v627, %v628
        %v635 = vsel %vm631, %v626, %v627
        %v636 = vsel %vm631, %v625, %v626
        %v637 = vsel %vm631, %v624, %v625
        %v638 = vsel %vm631, %v623, %v624
        %v639 = vsel %vm631, %v630, %v623
        %v640 = vrot.slane %v604, 1
        %v641 = vrot.slane %v605, 1
        %v642 = vrot.slane %v606, 1
        %v643 = vrot.slane %v607, 1
        %v644 = vrot.slane %v608, 1
        %v645 = vrot.slane %v609, 1
        %v646 = vrot.slane %v610, 1
        %v647 = vrot.slane %v611, 1
        %vm648 = vcmp.lt.s32.totalorder %v613, 7
        %v649 = vsel %vm648, %v646, %v647
        %v650 = vsel %vm648, %v645, %v646
        %v651 = vsel %vm648, %v644, %v645
        %v652 = vsel %vm648, %v643, %v644
        %v653 = vsel %vm648, %v642, %v643
        %v654 = vsel %vm648, %v641, %v642
        %v655 = vsel %vm648, %v640, %v641
        %v656 = vsel %vm648, %v647, %v640
        %vm657 = vcmp.ge.s32.totalorder %v613, 1
        %vm658 = vcmp.ge.s32.totalorder %v614, 1
        %vm659 = vcmp.ge.s32.totalorder %v615, 1
        %vm660 = vcmp.ge.s32.totalorder %v616, 1
        %vm661 = vcmp.ge.s32.totalorder %v617, 1
        %vm662 = vcmp.ge.s32.totalorder %v618, 1
        %vm663 = vcmp.ge.s32.totalorder %v619, 1
        %vm664 = vcmp.ge.s32.totalorder %v620, 1
        %v665 = vsel %vm657, %v639, 0.0
        %v666 = vsel %vm658, %v638, 0.0
        %v667 = vsel %vm659, %v637, 0.0
        %v668 = vsel %vm660, %v636, 0.0
        %v669 = vsel %vm661, %v635, 0.0
        %v670 = vsel %vm662, %v634, 0.0
        %v671 = vsel %vm663, %v633, 0.0
        %v672 = vsel %vm664, %v632, 0.0
        %vm673 = vcmp.lt.s32.totalorder %v613, 63
        %vm674 = vcmp.lt.s32.totalorder %v614, 63
        %vm675 = vcmp.lt.s32.totalorder %v615, 63
        %vm676 = vcmp.lt.s32.totalorder %v616, 63
        %vm677 = vcmp.lt.s32.totalorder %v617, 63
        %vm678 = vcmp.lt.s32.totalorder %v618, 63
        %vm679 = vcmp.lt.s32.totalorder %v619, 63
        %vm680 = vcmp.lt.s32.totalorder %v620, 63
        %v681 = vsel %vm673, %v655, 0.0
        %v682 = vsel %vm674, %v654, 0.0
        %v683 = vsel %vm675, %v653, 0.0
        %v684 = vsel %vm676, %v652, 0.0
        %v685 = vsel %vm677, %v651, 0.0
        %v686 = vsel %vm678, %v650, 0.0
        %v687 = vsel %vm679, %v649, 0.0
        %v688 = vsel %vm680, %v656, 0.0
        %vm689 = vcmp.lt.s32.totalorder %v622, 16
        %vm690 = vcmp.lt.s32.totalorder %v622, 32
        %v691 = vsel %vm690, %v681, %v604
        %v692 = vsel %vm690, %v682, %v605
        %v693 = vsel %vm690, %v683, %v606
        %v694 = vsel %vm690, %v684, %v607
        %v695 = vsel %vm690, %v685, %v608
        %v696 = vsel %vm690, %v686, %v609
        %v697 = vsel %vm690, %v687, %v610
        %v698 = vsel %vm690, %v688, %v611
        %v699 = vsel %vm689, %v665, %v691
        %v700 = vsel %vm689, %v666, %v692
        %v701 = vsel %vm689, %v667, %v693
        %v702 = vsel %vm689, %v668, %v694
        %v703 = vsel %vm689, %v669, %v695
        %v704 = vsel %vm689, %v670, %v696
        %v705 = vsel %vm689, %v671, %v697
        %v706 = vsel %vm689, %v672, %v698
        %v707 = vlaneseq
        %v708 = vshrl.u32 %v707, 7
        %v709 = vsub.s32 2, %v708
        %v710 = vrot.slane %v352, %v709
        %v711 = vmul.f32 %v604, %v710
        %v712 = vmul.f32 %v605, %v710
        %v713 = vmul.f32 %v606, %v710
        %v714 = vmul.f32 %v607, %v710
        %v715 = vmul.f32 %v608, %v710
        %v716 = vmul.f32 %v609, %v710
        %v717 = vmul.f32 %v610, %v710
        %v718 = vmul.f32 %v611, %v710
        %v719 = vsub.f32 1.0, %v352
        %v720 = vlaneseq
        %v721 = vshrl.u32 %v720, 7
        %v722 = vsub.s32 2, %v721
        %v723 = vrot.slane %v719, %v722
        %v724 = vmul.f32 %v699, %v723
        %v725 = vmul.f32 %v700, %v723
        %v726 = vmul.f32 %v701, %v723
        %v727 = vmul.f32 %v702, %v723
        %v728 = vmul.f32 %v703, %v723
        %v729 = vmul.f32 %v704, %v723
        %v730 = vmul.f32 %v705, %v723
        %v731 = vmul.f32 %v706, %v723
        %v732 = vadd.f32 %v711, %v724
        %v733 = vadd.f32 %v712, %v725
        %v734 = vadd.f32 %v713, %v726
        %v735 = vadd.f32 %v714, %v727
        %v736 = vadd.f32 %v715, %v728
        %v737 = vadd.f32 %v716, %v729
        %v738 = vadd.f32 %v717, %v730
        %v739 = vadd.f32 %v718, %v731
        %v740 = vpack.c.bf16 %v733, %v732
        %v741 = vpack.c.bf16 %v735, %v734
        %v742 = vpack.c.bf16 %v737, %v736
        %v743 = vpack.c.bf16 %v739, %v738
        %v744 = vlaneseq
        %v745 = vshrl.u32 %v744, 7
        %v746 = vsub.s32 3, %v745
        %v747 = vrot.slane %v352, %v746
        %v748 = vmul.f32 %v604, %v747
        %v749 = vmul.f32 %v605, %v747
        %v750 = vmul.f32 %v606, %v747
        %v751 = vmul.f32 %v607, %v747
        %v752 = vmul.f32 %v608, %v747
        %v753 = vmul.f32 %v609, %v747
        %v754 = vmul.f32 %v610, %v747
        %v755 = vmul.f32 %v611, %v747
        %v756 = vlaneseq
        %v757 = vshrl.u32 %v756, 7
        %v758 = vsub.s32 3, %v757
        %v759 = vrot.slane %v719, %v758
        %v760 = vmul.f32 %v699, %v759
        %v761 = vmul.f32 %v700, %v759
        %v762 = vmul.f32 %v701, %v759
        %v763 = vmul.f32 %v702, %v759
        %v764 = vmul.f32 %v703, %v759
        %v765 = vmul.f32 %v704, %v759
        %v766 = vmul.f32 %v705, %v759
        %v767 = vmul.f32 %v706, %v759
        %v768 = vadd.f32 %v748, %v760
        %v769 = vadd.f32 %v749, %v761
        %v770 = vadd.f32 %v750, %v762
        %v771 = vadd.f32 %v751, %v763
        %v772 = vadd.f32 %v752, %v764
        %v773 = vadd.f32 %v753, %v765
        %v774 = vadd.f32 %v754, %v766
        %v775 = vadd.f32 %v755, %v767
        %v776 = vpack.c.bf16 %v769, %v768
        %v777 = vpack.c.bf16 %v771, %v770
        %v778 = vpack.c.bf16 %v773, %v772
        %v779 = vpack.c.bf16 %v775, %v774
        %v780 = vlaneseq
        %v781 = vshrl.u32 %v780, 7
        %v782 = vsub.s32 4, %v781
        %v783 = vrot.slane %v352, %v782
        %v784 = vmul.f32 %v604, %v783
        %v785 = vmul.f32 %v605, %v783
        %v786 = vmul.f32 %v606, %v783
        %v787 = vmul.f32 %v607, %v783
        %v788 = vmul.f32 %v608, %v783
        %v789 = vmul.f32 %v609, %v783
        %v790 = vmul.f32 %v610, %v783
        %v791 = vmul.f32 %v611, %v783
        %v792 = vlaneseq
        %v793 = vshrl.u32 %v792, 7
        %v794 = vsub.s32 4, %v793
        %v795 = vrot.slane %v719, %v794
        %v796 = vmul.f32 %v699, %v795
        %v797 = vmul.f32 %v700, %v795
        %v798 = vmul.f32 %v701, %v795
        %v799 = vmul.f32 %v702, %v795
        %v800 = vmul.f32 %v703, %v795
        %v801 = vmul.f32 %v704, %v795
        %v802 = vmul.f32 %v705, %v795
        %v803 = vmul.f32 %v706, %v795
        %v804 = vadd.f32 %v784, %v796
        %v805 = vadd.f32 %v785, %v797
        %v806 = vadd.f32 %v786, %v798
        %v807 = vadd.f32 %v787, %v799
        %v808 = vadd.f32 %v788, %v800
        %v809 = vadd.f32 %v789, %v801
        %v810 = vadd.f32 %v790, %v802
        %v811 = vadd.f32 %v791, %v803
        %v812 = vpack.c.bf16 %v805, %v804
        %v813 = vpack.c.bf16 %v807, %v806
        %v814 = vpack.c.bf16 %v809, %v808
        %v815 = vpack.c.bf16 %v811, %v810
        %v816 = vld [vmem:[#allocation12] sm:$0xf]
        %v817 = vld [vmem:[#allocation12 + $0x4] sm:$0xf]
        %v818 = vld [vmem:[#allocation12 + $0x8] sm:$0xf]
        %v819 = vld [vmem:[#allocation12 + $0xc] sm:$0xf]
        %v824 = vunpack.c.l.b16 %v816
        %v825 = vunpack.c.l.b16 %v817
        %v826 = vunpack.c.l.b16 %v818
        %v827 = vunpack.c.l.b16 %v819
        %v828 = vpack.c.b16 %v825, %v824
        %v829 = vpack.c.b16 %v827, %v826
        %v833 = vsel %vm354, %v740, 0
        %v836 = vsel %vm354, %v741, 0
        %v839 = vsel %vm354, %v742, 0
        %v842 = vsel %vm354, %v743, 0
        %844 = vmatprep.subr.bf16.mxu0 0
        %845 = vmatpush1.bf16.msra.mxu0 %v828
        %846 = vmatprep.subr.bf16.mxu0 0
        %847 = vmatpush1.bf16.msra.mxu0 %v829
        %848 = vmatprep.subr.bf16.mxu0 0
        %849 = vmatpush1.bf16.msra.mxu0 0
        %850 = vmatprep.subr.bf16.mxu0 0
        %851 = vmatpush1.bf16.msra.mxu0 0
        %852 = vmatprep.subr.bf16.mxu0 0
        %853 = vmatpush1.bf16.msra.mxu0 0
        %854 = vmatprep.subr.bf16.mxu0 0
        %855 = vmatpush1.bf16.msra.mxu0 0
        %856 = vmatprep.subr.bf16.mxu0 0
        %857 = vmatpush1.bf16.msra.mxu0 0
        %858 = vmatprep.subr.bf16.mxu0 0
        %859 = vmatpush1.bf16.msra.mxu0 0
        %860 = vmatprep.subr.bf16.mxu0 0
        %861 = vmatpush1.bf16.msra.mxu0 0
        %862 = vmatprep.subr.bf16.mxu0 0
        %863 = vmatpush1.bf16.msra.mxu0 0
        %864 = vmatprep.subr.bf16.mxu0 0
        %865 = vmatpush1.bf16.msra.mxu0 0
        %866 = vmatprep.subr.bf16.mxu0 0
        %867 = vmatpush1.bf16.msra.mxu0 0
        %868 = vmatprep.subr.bf16.mxu0 0
        %869 = vmatpush1.bf16.msra.mxu0 0
        %870 = vmatprep.subr.bf16.mxu0 0
        %871 = vmatpush1.bf16.msra.mxu0 0
        %872 = vmatprep.subr.bf16.mxu0 0
        %873 = vmatpush1.bf16.msra.mxu0 0
        %874 = vmatprep.subr.bf16.mxu0 0
        %875 = vmatpush1.bf16.msra.mxu0 0
        %876 = vmatprep.mubr.bf16.mxu0 0
        %877 = vmatmul.mubr.bf16.gmra.mrb[0].mxu0 %v833
        %v878 = vpop.f32.mrb[0].mxu0
        %v879 = vadd.f32 0.0, %v878
        %v880 = vpop.f32.mrb[0].mxu0
        %v881 = vpop.f32.mrb[0].mxu0
        %v882 = vadd.f32 0.0, %v881
        %v883 = vpop.f32.mrb[0].mxu0
        %884 = vmatprep.mubr.bf16.mxu0 0
        %885 = vmatmul.mubr.bf16.gmra.mrb[0].mxu0 %v836
        %v886 = vpop.f32.mrb[0].mxu0
        %v887 = vadd.f32 0.0, %v886
        %v888 = vpop.f32.mrb[0].mxu0
        %v889 = vpop.f32.mrb[0].mxu0
        %v890 = vadd.f32 0.0, %v889
        %v891 = vpop.f32.mrb[0].mxu0
        %892 = vmatprep.mubr.bf16.mxu0 0
        %893 = vmatmul.mubr.bf16.gmra.mrb[0].mxu0 %v839
        %v894 = vpop.f32.mrb[0].mxu0
        %v895 = vadd.f32 0.0, %v894
        %v896 = vpop.f32.mrb[0].mxu0
        %v897 = vpop.f32.mrb[0].mxu0
        %v898 = vadd.f32 0.0, %v897
        %v899 = vpop.f32.mrb[0].mxu0
        %900 = vmatprep.mubr.bf16.mxu0 0
        %901 = vmatmul.mubr.bf16.gmra.mrb[0].mxu0 %v842
        %v902 = vpop.f32.mrb[0].mxu0
        %v903 = vadd.f32 0.0, %v902
        %v904 = vpop.f32.mrb[0].mxu0
        %v905 = vpop.f32.mrb[0].mxu0
        %v906 = vadd.f32 0.0, %v905
        %v907 = vpop.f32.mrb[0].mxu0
        %908 = vdwg.mxu0
        %909 = vst.msk [vmem:[#allocation2] sm:$0xff] %vm354, %v879
        %910 = vst.msk [vmem:[#allocation2 + $0x8] sm:$0xff] %vm354, %v882
        %911 = vst.msk [vmem:[#allocation2 + $0x10] sm:$0xff] %vm354, %v887
        %912 = vst.msk [vmem:[#allocation2 + $0x18] sm:$0xff] %vm354, %v890
        %913 = vst.msk [vmem:[#allocation2 + $0x20] sm:$0xff] %vm354, %v895
        %914 = vst.msk [vmem:[#allocation2 + $0x28] sm:$0xff] %vm354, %v898
        %915 = vst.msk [vmem:[#allocation2 + $0x30] sm:$0xff] %vm354, %v903
        %916 = vst.msk [vmem:[#allocation2 + $0x38] sm:$0xff] %vm354, %v906
        %v917 = vld [vmem:[#allocation13] sm:$0xf]
        %v918 = vld [vmem:[#allocation13 + $0x4] sm:$0xf]
        %v919 = vld [vmem:[#allocation13 + $0x8] sm:$0xf]
        %v920 = vld [vmem:[#allocation13 + $0xc] sm:$0xf]
        %v925 = vunpack.c.l.b16 %v917
        %v926 = vunpack.c.l.b16 %v918
        %v927 = vunpack.c.l.b16 %v919
        %v928 = vunpack.c.l.b16 %v920
        %v929 = vpack.c.b16 %v926, %v925
        %v930 = vpack.c.b16 %v928, %v927
        %v934 = vsel %vm354, %v776, 0
        %v937 = vsel %vm354, %v777, 0
        %v940 = vsel %vm354, %v778, 0
        %v943 = vsel %vm354, %v779, 0
        %945 = vmatprep.subr.bf16.mxu0 0
        %946 = vmatpush1.bf16.msra.mxu0 %v929
        %947 = vmatprep.subr.bf16.mxu0 0
        %948 = vmatpush1.bf16.msra.mxu0 %v930
        %949 = vmatprep.subr.bf16.mxu0 0
        %950 = vmatpush1.bf16.msra.mxu0 0
        %951 = vmatprep.subr.bf16.mxu0 0
        %952 = vmatpush1.bf16.msra.mxu0 0
        %953 = vmatprep.subr.bf16.mxu0 0
        %954 = vmatpush1.bf16.msra.mxu0 0
        %955 = vmatprep.subr.bf16.mxu0 0
        %956 = vmatpush1.bf16.msra.mxu0 0
        %957 = vmatprep.subr.bf16.mxu0 0
        %958 = vmatpush1.bf16.msra.mxu0 0
        %959 = vmatprep.subr.bf16.mxu0 0
        %960 = vmatpush1.bf16.msra.mxu0 0
        %961 = vmatprep.subr.bf16.mxu0 0
        %962 = vmatpush1.bf16.msra.mxu0 0
        %963 = vmatprep.subr.bf16.mxu0 0
        %964 = vmatpush1.bf16.msra.mxu0 0
        %965 = vmatprep.subr.bf16.mxu0 0
        %966 = vmatpush1.bf16.msra.mxu0 0
        %967 = vmatprep.subr.bf16.mxu0 0
        %968 = vmatpush1.bf16.msra.mxu0 0
        %969 = vmatprep.subr.bf16.mxu0 0
        %970 = vmatpush1.bf16.msra.mxu0 0
        %971 = vmatprep.subr.bf16.mxu0 0
        %972 = vmatpush1.bf16.msra.mxu0 0
        %973 = vmatprep.subr.bf16.mxu0 0
        %974 = vmatpush1.bf16.msra.mxu0 0
        %975 = vmatprep.subr.bf16.mxu0 0
        %976 = vmatpush1.bf16.msra.mxu0 0
        %977 = vmatprep.mubr.bf16.mxu0 0
        %978 = vmatmul.mubr.bf16.gmra.mrb[0].mxu0 %v934
        %v979 = vpop.f32.mrb[0].mxu0
        %v980 = vadd.f32 0.0, %v979
        %v981 = vpop.f32.mrb[0].mxu0
        %v982 = vpop.f32.mrb[0].mxu0
        %v983 = vadd.f32 0.0, %v982
        %v984 = vpop.f32.mrb[0].mxu0
        %985 = vmatprep.mubr.bf16.mxu0 0
        %986 = vmatmul.mubr.bf16.gmra.mrb[0].mxu0 %v937
        %v987 = vpop.f32.mrb[0].mxu0
        %v988 = vadd.f32 0.0, %v987
        %v989 = vpop.f32.mrb[0].mxu0
        %v990 = vpop.f32.mrb[0].mxu0
        %v991 = vadd.f32 0.0, %v990
        %v992 = vpop.f32.mrb[0].mxu0
        %993 = vmatprep.mubr.bf16.mxu0 0
        %994 = vmatmul.mubr.bf16.gmra.mrb[0].mxu0 %v940
        %v995 = vpop.f32.mrb[0].mxu0
        %v996 = vadd.f32 0.0, %v995
        %v997 = vpop.f32.mrb[0].mxu0
        %v998 = vpop.f32.mrb[0].mxu0
        %v999 = vadd.f32 0.0, %v998
        %v1000 = vpop.f32.mrb[0].mxu0
        %1001 = vmatprep.mubr.bf16.mxu0 0
        %1002 = vmatmul.mubr.bf16.gmra.mrb[0].mxu0 %v943
        %v1003 = vpop.f32.mrb[0].mxu0
        %v1004 = vadd.f32 0.0, %v1003
        %v1005 = vpop.f32.mrb[0].mxu0
        %v1006 = vpop.f32.mrb[0].mxu0
        %v1007 = vadd.f32 0.0, %v1006
        %v1008 = vpop.f32.mrb[0].mxu0
        %1009 = vdwg.mxu0
        %1010 = vst.msk [vmem:[#allocation3] sm:$0xff] %vm354, %v980
        %1011 = vst.msk [vmem:[#allocation3 + $0x8] sm:$0xff] %vm354, %v983
        %1012 = vst.msk [vmem:[#allocation3 + $0x10] sm:$0xff] %vm354, %v988
        %1013 = vst.msk [vmem:[#allocation3 + $0x18] sm:$0xff] %vm354, %v991
        %1014 = vst.msk [vmem:[#allocation3 + $0x20] sm:$0xff] %vm354, %v996
        %1015 = vst.msk [vmem:[#allocation3 + $0x28] sm:$0xff] %vm354, %v999
        %1016 = vst.msk [vmem:[#allocation3 + $0x30] sm:$0xff] %vm354, %v1004
        %1017 = vst.msk [vmem:[#allocation3 + $0x38] sm:$0xff] %vm354, %v1007
        loop: start=0, step=1, limit=8
        $region69: #{_lambda_.4} parent=43 // loop_pre_header
          _
        $region70: #{_lambda_.4} parent=43 // loop_header
          %s1019 = sphi 0, %s1023
          %p1020 = scmp.ge.s32.totalorder %s1019, 8
          %v1024 = vphi -1e+30, %v1403
          %v1025 = vphi 0.0, %v1418
          %v1026 = vphi 0.0, %v1423
        $region71: #{_lambda_.4} parent=43 // loop_header_branch
          %1022 = sbr.rel (%p1020) target = $region75
        $region72: #{_lambda_.4} parent=43 // loop_body
          %s1027 = ssub.s32 7, %s1019
          %s1028 = smul.u32 %s1027, 8
          %s1029 = scalar_lea.vmem [#allocation2], %s1028
          %v1030 = vld [vmem:[%s1029] sm:$0xff]
          %s1031 = scalar_lea.vmem [#allocation3], %s1028
          %v1032 = vld [vmem:[%s1031] sm:$0xff]
          %v1034 = vrot.slane %v1030, 1
          %v1036 = vadd.f32 %v352, %v1034
          %v1038 = vrot.slane %v1036, 1
          %v1040 = vmax.f32 %v1024, %v1038
          %v1041 = vsub.f32 %v1024, %v1040
          %v1042 = vmul.f32 %v1041, 1.442695
          %v1043 = vpow.pop %v1042
          %v1045 = vrot.slane %v1040, 7
          %v1047 = vsub.f32 %v1036, %v1045
          %v1048 = vmul.f32 %v1047, 1.442695
          %v1049 = vpow.pop %v1048
          %v1050 = vmul.f32 %v1025, %v1043
          %v1052 = vrot.slane %v1049, 7
          %v1054 = vmul.f32 %v1032, %v1052
          %v1056 = vrot.slane %v1054, 2
          %v1058 = vadd.f32 %v1050, %v1056
          %v1059 = vmul.f32 %v1026, %v1043
          %v1060 = vrot.slane %v1049, 1
          %v1062 = vadd.f32 %v1059, %v1060
          %v1063 = vsub.f32 %v1024, %v352
          %v1064 = vrot.slane %v1030, 2
          %v1066 = vmax.f32 %v1063, %v1064
          %v1067 = vsub.f32 %v1063, %v1066
          %v1068 = vmul.f32 %v1067, 1.442695
          %v1069 = vpow.pop %v1068
          %v1071 = vrot.slane %v1066, 6
          %v1073 = vsub.f32 %v1030, %v1071
          %v1074 = vmul.f32 %v1073, 1.442695
          %v1075 = vpow.pop %v1074
          %v1076 = vmul.f32 %v1025, %v1069
          %v1077 = vmul.f32 %v1032, %v1075
          %v1079 = vrot.slane %v1077, 2
          %v1081 = vadd.f32 %v1076, %v1079
          %v1082 = vmul.f32 %v1026, %v1069
          %v1084 = vrot.slane %v1075, 2
          %v1086 = vadd.f32 %v1082, %v1084
          %v1087 = vadd.f32 %v352, %v1030
          %v1089 = vrot.slane %v1087, 1
          %v1091 = vmax.f32 %v1066, %v1089
          %v1092 = vsub.f32 %v1066, %v1091
          %v1093 = vmul.f32 %v1092, 1.442695
          %v1094 = vpow.pop %v1093
          %v1096 = vrot.slane %v1091, 7
          %v1098 = vsub.f32 %v1087, %v1096
          %v1099 = vmul.f32 %v1098, 1.442695
          %v1100 = vpow.pop %v1099
          %v1101 = vmul.f32 %v1081, %v1094
          %v1102 = vmul.f32 %v1032, %v1100
          %v1104 = vrot.slane %v1102, 1
          %v1106 = vadd.f32 %v1101, %v1104
          %v1107 = vmul.f32 %v1086, %v1094
          %v1109 = vrot.slane %v1100, 1
          %v1111 = vadd.f32 %v1107, %v1109
          %v1112 = vsub.f32 %v1066, %v352
          %v1113 = vmax.f32 %v1112, %v1034
          %v1114 = vsub.f32 %v1112, %v1113
          %v1115 = vmul.f32 %v1114, 1.442695
          %v1116 = vpow.pop %v1115
          %v1118 = vrot.slane %v1113, 7
          %v1120 = vsub.f32 %v1030, %v1118
          %v1121 = vmul.f32 %v1120, 1.442695
          %v1122 = vpow.pop %v1121
          %v1123 = vmul.f32 %v1081, %v1116
          %v1124 = vmul.f32 %v1032, %v1122
          %v1126 = vrot.slane %v1124, 1
          %v1128 = vadd.f32 %v1123, %v1126
          %v1129 = vmul.f32 %v1086, %v1116
          %v1131 = vrot.slane %v1122, 1
          %v1133 = vadd.f32 %v1129, %v1131
          %v1134 = vrot.slane %v1030, 7
          %v1136 = vadd.f32 %v352, %v1134
          %v1138 = vrot.slane %v1136, 1
          %v1140 = vmax.f32 %v1113, %v1138
          %v1141 = vsub.f32 %v1113, %v1140
          %v1142 = vmul.f32 %v1141, 1.442695
          %v1143 = vpow.pop %v1142
          %v1145 = vrot.slane %v1140, 7
          %v1147 = vsub.f32 %v1136, %v1145
          %v1148 = vmul.f32 %v1147, 1.442695
          %v1149 = vpow.pop %v1148
          %v1150 = vmul.f32 %v1128, %v1143
          %v1152 = vrot.slane %v1149, 1
          %v1154 = vmul.f32 %v1032, %v1152
          %v1155 = vadd.f32 %v1150, %v1154
          %v1156 = vmul.f32 %v1133, %v1143
          %v1157 = vadd.f32 %v1156, %v1152
          %v1158 = vsub.f32 %v1113, %v352
          %v1159 = vmax.f32 %v1158, %v1030
          %v1160 = vsub.f32 %v1158, %v1159
          %v1161 = vmul.f32 %v1160, 1.442695
          %v1162 = vpow.pop %v1161
          %v1163 = vsub.f32 %v1030, %v1159
          %v1164 = vmul.f32 %v1163, 1.442695
          %v1165 = vpow.pop %v1164
          %v1166 = vmul.f32 %v1128, %v1162
          %v1167 = vmul.f32 %v1032, %v1165
          %v1168 = vadd.f32 %v1166, %v1167
          %v1169 = vmul.f32 %v1133, %v1162
          %v1170 = vadd.f32 %v1169, %v1165
          %v1171 = vrot.slane %v1030, 6
          %v1173 = vadd.f32 %v352, %v1171
          %v1175 = vrot.slane %v1173, 1
          %v1177 = vmax.f32 %v1159, %v1175
          %v1178 = vsub.f32 %v1159, %v1177
          %v1179 = vmul.f32 %v1178, 1.442695
          %v1180 = vpow.pop %v1179
          %v1182 = vrot.slane %v1177, 7
          %v1184 = vsub.f32 %v1173, %v1182
          %v1185 = vmul.f32 %v1184, 1.442695
          %v1186 = vpow.pop %v1185
          %v1187 = vmul.f32 %v1168, %v1180
          %v1189 = vrot.slane %v1186, 2
          %v1191 = vmul.f32 %v1032, %v1189
          %v1193 = vrot.slane %v1191, 7
          %v1195 = vadd.f32 %v1187, %v1193
          %v1196 = vmul.f32 %v1170, %v1180
          %v1197 = vrot.slane %v1186, 1
          %v1199 = vadd.f32 %v1196, %v1197
          %v1200 = vsub.f32 %v1159, %v352
          %v1201 = vmax.f32 %v1200, %v1134
          %v1202 = vsub.f32 %v1200, %v1201
          %v1203 = vmul.f32 %v1202, 1.442695
          %v1204 = vpow.pop %v1203
          %v1206 = vrot.slane %v1201, 1
          %v1208 = vsub.f32 %v1030, %v1206
          %v1209 = vmul.f32 %v1208, 1.442695
          %v1210 = vpow.pop %v1209
          %v1211 = vmul.f32 %v1168, %v1204
          %v1212 = vmul.f32 %v1032, %v1210
          %v1214 = vrot.slane %v1212, 7
          %v1216 = vadd.f32 %v1211, %v1214
          %v1217 = vmul.f32 %v1170, %v1204
          %v1219 = vrot.slane %v1210, 7
          %v1221 = vadd.f32 %v1217, %v1219
          %v1222 = vrot.slane %v1030, 5
          %v1224 = vadd.f32 %v352, %v1222
          %v1226 = vrot.slane %v1224, 1
          %v1228 = vmax.f32 %v1201, %v1226
          %v1229 = vsub.f32 %v1201, %v1228
          %v1230 = vmul.f32 %v1229, 1.442695
          %v1231 = vpow.pop %v1230
          %v1233 = vrot.slane %v1228, 7
          %v1235 = vsub.f32 %v1224, %v1233
          %v1236 = vmul.f32 %v1235, 1.442695
          %v1237 = vpow.pop %v1236
          %v1238 = vmul.f32 %v1216, %v1231
          %v1240 = vrot.slane %v1237, 3
          %v1242 = vmul.f32 %v1032, %v1240
          %v1244 = vrot.slane %v1242, 6
          %v1246 = vadd.f32 %v1238, %v1244
          %v1247 = vmul.f32 %v1221, %v1231
          %v1248 = vrot.slane %v1237, 1
          %v1250 = vadd.f32 %v1247, %v1248
          %v1251 = vsub.f32 %v1201, %v352
          %v1252 = vmax.f32 %v1251, %v1171
          %v1253 = vsub.f32 %v1251, %v1252
          %v1254 = vmul.f32 %v1253, 1.442695
          %v1255 = vpow.pop %v1254
          %v1257 = vrot.slane %v1252, 2
          %v1259 = vsub.f32 %v1030, %v1257
          %v1260 = vmul.f32 %v1259, 1.442695
          %v1261 = vpow.pop %v1260
          %v1262 = vmul.f32 %v1216, %v1255
          %v1263 = vmul.f32 %v1032, %v1261
          %v1265 = vrot.slane %v1263, 6
          %v1267 = vadd.f32 %v1262, %v1265
          %v1268 = vmul.f32 %v1221, %v1255
          %v1270 = vrot.slane %v1261, 6
          %v1272 = vadd.f32 %v1268, %v1270
          %v1273 = vrot.slane %v1030, 4
          %v1275 = vadd.f32 %v352, %v1273
          %v1277 = vrot.slane %v1275, 1
          %v1279 = vmax.f32 %v1252, %v1277
          %v1280 = vsub.f32 %v1252, %v1279
          %v1281 = vmul.f32 %v1280, 1.442695
          %v1282 = vpow.pop %v1281
          %v1284 = vrot.slane %v1279, 7
          %v1286 = vsub.f32 %v1275, %v1284
          %v1287 = vmul.f32 %v1286, 1.442695
          %v1288 = vpow.pop %v1287
          %v1289 = vmul.f32 %v1267, %v1282
          %v1291 = vrot.slane %v1288, 4
          %v1293 = vmul.f32 %v1032, %v1291
          %v1295 = vrot.slane %v1293, 5
          %v1297 = vadd.f32 %v1289, %v1295
          %v1298 = vmul.f32 %v1272, %v1282
          %v1299 = vrot.slane %v1288, 1
          %v1301 = vadd.f32 %v1298, %v1299
          %v1302 = vsub.f32 %v1252, %v352
          %v1303 = vmax.f32 %v1302, %v1222
          %v1304 = vsub.f32 %v1302, %v1303
          %v1305 = vmul.f32 %v1304, 1.442695
          %v1306 = vpow.pop %v1305
          %v1308 = vrot.slane %v1303, 3
          %v1310 = vsub.f32 %v1030, %v1308
          %v1311 = vmul.f32 %v1310, 1.442695
          %v1312 = vpow.pop %v1311
          %v1313 = vmul.f32 %v1267, %v1306
          %v1314 = vmul.f32 %v1032, %v1312
          %v1316 = vrot.slane %v1314, 5
          %v1318 = vadd.f32 %v1313, %v1316
          %v1319 = vmul.f32 %v1272, %v1306
          %v1321 = vrot.slane %v1312, 5
          %v1323 = vadd.f32 %v1319, %v1321
          %v1324 = vrot.slane %v1030, 3
          %v1326 = vadd.f32 %v352, %v1324
          %v1328 = vrot.slane %v1326, 1
          %v1330 = vmax.f32 %v1303, %v1328
          %v1331 = vsub.f32 %v1303, %v1330
          %v1332 = vmul.f32 %v1331, 1.442695
          %v1333 = vpow.pop %v1332
          %v1335 = vrot.slane %v1330, 7
          %v1337 = vsub.f32 %v1326, %v1335
          %v1338 = vmul.f32 %v1337, 1.442695
          %v1339 = vpow.pop %v1338
          %v1340 = vmul.f32 %v1318, %v1333
          %v1342 = vrot.slane %v1339, 5
          %v1344 = vmul.f32 %v1032, %v1342
          %v1346 = vrot.slane %v1344, 4
          %v1348 = vadd.f32 %v1340, %v1346
          %v1349 = vmul.f32 %v1323, %v1333
          %v1350 = vrot.slane %v1339, 1
          %v1352 = vadd.f32 %v1349, %v1350
          %v1353 = vsub.f32 %v1303, %v352
          %v1354 = vmax.f32 %v1353, %v1273
          %v1355 = vsub.f32 %v1353, %v1354
          %v1356 = vmul.f32 %v1355, 1.442695
          %v1357 = vpow.pop %v1356
          %v1359 = vrot.slane %v1354, 4
          %v1361 = vsub.f32 %v1030, %v1359
          %v1362 = vmul.f32 %v1361, 1.442695
          %v1363 = vpow.pop %v1362
          %v1364 = vmul.f32 %v1318, %v1357
          %v1365 = vmul.f32 %v1032, %v1363
          %v1367 = vrot.slane %v1365, 4
          %v1369 = vadd.f32 %v1364, %v1367
          %v1370 = vmul.f32 %v1323, %v1357
          %v1372 = vrot.slane %v1363, 4
          %v1374 = vadd.f32 %v1370, %v1372
          %v1375 = vadd.f32 %v352, %v1064
          %v1377 = vrot.slane %v1375, 1
          %v1379 = vmax.f32 %v1354, %v1377
          %v1380 = vsub.f32 %v1354, %v1379
          %v1381 = vmul.f32 %v1380, 1.442695
          %v1382 = vpow.pop %v1381
          %v1384 = vrot.slane %v1379, 7
          %v1386 = vsub.f32 %v1375, %v1384
          %v1387 = vmul.f32 %v1386, 1.442695
          %v1388 = vpow.pop %v1387
          %v1389 = vmul.f32 %v1369, %v1382
          %v1391 = vrot.slane %v1388, 6
          %v1393 = vmul.f32 %v1032, %v1391
          %v1395 = vrot.slane %v1393, 3
          %v1397 = vadd.f32 %v1389, %v1395
          %v1398 = vmul.f32 %v1374, %v1382
          %v1399 = vrot.slane %v1388, 1
          %v1401 = vadd.f32 %v1398, %v1399
          %v1402 = vsub.f32 %v1354, %v352
          %v1403 = vmax.f32 %v1402, %v1324
          %v1404 = vsub.f32 %v1402, %v1403
          %v1405 = vmul.f32 %v1404, 1.442695
          %v1406 = vpow.pop %v1405
          %v1408 = vrot.slane %v1403, 5
          %v1410 = vsub.f32 %v1030, %v1408
          %v1411 = vmul.f32 %v1410, 1.442695
          %v1412 = vpow.pop %v1411
          %v1413 = vmul.f32 %v1369, %v1406
          %v1414 = vmul.f32 %v1032, %v1412
          %v1416 = vrot.slane %v1414, 3
          %v1418 = vadd.f32 %v1413, %v1416
          %v1419 = vmul.f32 %v1374, %v1406
          %v1421 = vrot.slane %v1412, 3
          %v1423 = vadd.f32 %v1419, %v1421
          %v1424 = vrot.slane %v1379, 5
          %v1426 = vrot.slane %v1330, 4
          %v1428 = vrot.slane %v1279, 3
          %v1430 = vrot.slane %v1228, 2
          %v1432 = vrot.slane %v1177, 1
          %v1434 = vrot.slane %v1040, 6
          %vm1436 = vcmask 1040384
          %v1437 = vsel %vm1436, %v1424, %v1426
          %vm1438 = vcmask 1041408
          %v1439 = vsel %vm1438, %v1437, %v1428
          %vm1440 = vcmask 1042432
          %v1441 = vsel %vm1440, %v1439, %v1430
          %vm1442 = vcmask 1043456
          %v1443 = vsel %vm1442, %v1441, %v1432
          %vm1444 = vcmask 1044480
          %v1445 = vsel %vm1444, %v1443, %v1140
          %vm1446 = vcmask 1045504
          %v1447 = vsel %vm1446, %v1445, %v1096
          %vm1448 = vcmask 1046528
          %v1449 = vsel %vm1448, %v1447, %v1434
          %s1450 = scalar_lea.vmem [#allocation4], %s1028
          %1451 = vst.msk [vmem:[%s1450] sm:$0xff] %vm354, %v1449
          %v1453 = vrot.slane %v1397, 5
          %v1456 = vrot.slane %v1348, 4
          %v1459 = vrot.slane %v1297, 3
          %v1462 = vrot.slane %v1246, 2
          %v1465 = vrot.slane %v1195, 1
          %v1468 = vrot.slane %v1106, 7
          %v1471 = vrot.slane %v1058, 6
          %v1473 = vsel %vm1436, %v1453, %v1456
          %v1474 = vsel %vm1438, %v1473, %v1459
          %v1475 = vsel %vm1440, %v1474, %v1462
          %v1476 = vsel %vm1442, %v1475, %v1465
          %v1477 = vsel %vm1444, %v1476, %v1155
          %v1478 = vsel %vm1446, %v1477, %v1468
          %v1479 = vsel %vm1448, %v1478, %v1471
          %s1480 = scalar_lea.vmem [#allocation5], %s1028
          %1481 = vst.msk [vmem:[%s1480] sm:$0xff] %vm354, %v1479
          %v1483 = vrot.slane %v1401, 5
          %v1486 = vrot.slane %v1352, 4
          %v1489 = vrot.slane %v1301, 3
          %v1492 = vrot.slane %v1250, 2
          %v1495 = vrot.slane %v1199, 1
          %v1498 = vrot.slane %v1111, 7
          %v1501 = vrot.slane %v1062, 6
          %v1503 = vsel %vm1436, %v1483, %v1486
          %v1504 = vsel %vm1438, %v1503, %v1489
          %v1505 = vsel %vm1440, %v1504, %v1492
          %v1506 = vsel %vm1442, %v1505, %v1495
          %v1507 = vsel %vm1444, %v1506, %v1157
          %v1508 = vsel %vm1446, %v1507, %v1498
          %v1509 = vsel %vm1448, %v1508, %v1501
          %s1510 = scalar_lea.vmem [#allocation6], %s1028
          %1511 = vst.msk [vmem:[%s1510] sm:$0xff] %vm354, %v1509
        $region73: #{_lambda_.4} parent=43 // loop_footer
          %s1023 = sadd.s32 1, %s1019
        $region74: #{_lambda_.4} parent=43 // loop_footer_branch
          %1018 = sbr.rel target = $region70
        $region75: #{_lambda_.4} parent=43 // loop_exit
          _
        loop: start=0, step=1, limit=8
        $region76: #{_lambda_.4} parent=43 // loop_pre_header
          _
        $region77: #{_lambda_.4} parent=43 // loop_header
          %s1513 = sphi 0, %s1517
          %p1514 = scmp.ge.s32.totalorder %s1513, 8
          %v1518 = vphi -1e+30, %v1875
          %v1519 = vphi 0.0, %v1890
          %v1520 = vphi 0.0, %v1895
        $region78: #{_lambda_.4} parent=43 // loop_header_branch
          %1516 = sbr.rel (%p1514) target = $region82
        $region79: #{_lambda_.4} parent=43 // loop_body
          %s1521 = smul.u32 %s1513, 8
          %s1522 = scalar_lea.vmem [#allocation2], %s1521
          %v1523 = vld [vmem:[%s1522] sm:$0xff]
          %s1524 = scalar_lea.vmem [#allocation3], %s1521
          %v1525 = vld [vmem:[%s1524] sm:$0xff]
          %s1526 = scalar_lea.vmem [#allocation4], %s1521
          %v1527 = vld [vmem:[%s1526] sm:$0xff]
          %s1528 = scalar_lea.vmem [#allocation5], %s1521
          %v1529 = vld [vmem:[%s1528] sm:$0xff]
          %s1530 = scalar_lea.vmem [#allocation6], %s1521
          %v1531 = vld [vmem:[%s1530] sm:$0xff]
          %v1533 = vrot.slane %v1527, 3
          %v1535 = vmax.f32 %v1518, %v1533
          %v1536 = vsub.f32 %v1518, %v1535
          %v1537 = vmul.f32 %v1536, 1.442695
          %v1538 = vpow.pop %v1537
          %v1540 = vrot.slane %v1535, 5
          %v1542 = vsub.f32 %v1527, %v1540
          %v1543 = vmul.f32 %v1542, 1.442695
          %v1544 = vpow.pop %v1543
          %v1545 = vmul.f32 %v1519, %v1538
          %v1546 = vmul.f32 %v1529, %v1544
          %v1548 = vrot.slane %v1546, 3
          %v1550 = vadd.f32 %v1545, %v1548
          %v1551 = vmul.f32 %v1520, %v1538
          %v1552 = vmul.f32 %v1531, %v1544
          %v1554 = vrot.slane %v1552, 3
          %v1556 = vadd.f32 %v1551, %v1554
          %v1557 = vsub.f32 %v1518, %v352
          %v1559 = vrot.slane %v1523, 3
          %v1561 = vmax.f32 %v1557, %v1559
          %v1562 = vsub.f32 %v1557, %v1561
          %v1563 = vmul.f32 %v1562, 1.442695
          %v1564 = vpow.pop %v1563
          %v1566 = vrot.slane %v1561, 5
          %v1568 = vsub.f32 %v1523, %v1566
          %v1569 = vmul.f32 %v1568, 1.442695
          %v1570 = vpow.pop %v1569
          %v1571 = vmul.f32 %v1519, %v1564
          %v1572 = vmul.f32 %v1525, %v1570
          %v1574 = vrot.slane %v1572, 3
          %v1576 = vadd.f32 %v1571, %v1574
          %v1577 = vmul.f32 %v1520, %v1564
          %v1579 = vrot.slane %v1570, 3
          %v1581 = vadd.f32 %v1577, %v1579
          %v1582 = vrot.slane %v1527, 4
          %v1584 = vmax.f32 %v1561, %v1582
          %v1585 = vsub.f32 %v1561, %v1584
          %v1586 = vmul.f32 %v1585, 1.442695
          %v1587 = vpow.pop %v1586
          %v1589 = vrot.slane %v1584, 4
          %v1591 = vsub.f32 %v1527, %v1589
          %v1592 = vmul.f32 %v1591, 1.442695
          %v1593 = vpow.pop %v1592
          %v1594 = vmul.f32 %v1576, %v1587
          %v1595 = vmul.f32 %v1529, %v1593
          %v1597 = vrot.slane %v1595, 4
          %v1599 = vadd.f32 %v1594, %v1597
          %v1600 = vmul.f32 %v1581, %v1587
          %v1601 = vmul.f32 %v1531, %v1593
          %v1603 = vrot.slane %v1601, 4
          %v1605 = vadd.f32 %v1600, %v1603
          %v1606 = vsub.f32 %v1561, %v352
          %v1607 = vrot.slane %v1523, 4
          %v1609 = vmax.f32 %v1606, %v1607
          %v1610 = vsub.f32 %v1606, %v1609
          %v1611 = vmul.f32 %v1610, 1.442695
          %v1612 = vpow.pop %v1611
          %v1614 = vrot.slane %v1609, 4
          %v1616 = vsub.f32 %v1523, %v1614
          %v1617 = vmul.f32 %v1616, 1.442695
          %v1618 = vpow.pop %v1617
          %v1619 = vmul.f32 %v1576, %v1612
          %v1620 = vmul.f32 %v1525, %v1618
          %v1622 = vrot.slane %v1620, 4
          %v1624 = vadd.f32 %v1619, %v1622
          %v1625 = vmul.f32 %v1581, %v1612
          %v1627 = vrot.slane %v1618, 4
          %v1629 = vadd.f32 %v1625, %v1627
          %v1630 = vrot.slane %v1527, 5
          %v1632 = vmax.f32 %v1609, %v1630
          %v1633 = vsub.f32 %v1609, %v1632
          %v1634 = vmul.f32 %v1633, 1.442695
          %v1635 = vpow.pop %v1634
          %v1637 = vrot.slane %v1632, 3
          %v1639 = vsub.f32 %v1527, %v1637
          %v1640 = vmul.f32 %v1639, 1.442695
          %v1641 = vpow.pop %v1640
          %v1642 = vmul.f32 %v1624, %v1635
          %v1643 = vmul.f32 %v1529, %v1641
          %v1645 = vrot.slane %v1643, 5
          %v1647 = vadd.f32 %v1642, %v1645
          %v1648 = vmul.f32 %v1629, %v1635
          %v1649 = vmul.f32 %v1531, %v1641
          %v1651 = vrot.slane %v1649, 5
          %v1653 = vadd.f32 %v1648, %v1651
          %v1654 = vsub.f32 %v1609, %v352
          %v1655 = vrot.slane %v1523, 5
          %v1657 = vmax.f32 %v1654, %v1655
          %v1658 = vsub.f32 %v1654, %v1657
          %v1659 = vmul.f32 %v1658, 1.442695
          %v1660 = vpow.pop %v1659
          %v1662 = vrot.slane %v1657, 3
          %v1664 = vsub.f32 %v1523, %v1662
          %v1665 = vmul.f32 %v1664, 1.442695
          %v1666 = vpow.pop %v1665
          %v1667 = vmul.f32 %v1624, %v1660
          %v1668 = vmul.f32 %v1525, %v1666
          %v1670 = vrot.slane %v1668, 5
          %v1672 = vadd.f32 %v1667, %v1670
          %v1673 = vmul.f32 %v1629, %v1660
          %v1675 = vrot.slane %v1666, 5
          %v1677 = vadd.f32 %v1673, %v1675
          %v1678 = vrot.slane %v1527, 6
          %v1680 = vmax.f32 %v1657, %v1678
          %v1681 = vsub.f32 %v1657, %v1680
          %v1682 = vmul.f32 %v1681, 1.442695
          %v1683 = vpow.pop %v1682
          %v1685 = vrot.slane %v1680, 2
          %v1687 = vsub.f32 %v1527, %v1685
          %v1688 = vmul.f32 %v1687, 1.442695
          %v1689 = vpow.pop %v1688
          %v1690 = vmul.f32 %v1672, %v1683
          %v1691 = vmul.f32 %v1529, %v1689
          %v1693 = vrot.slane %v1691, 6
          %v1695 = vadd.f32 %v1690, %v1693
          %v1696 = vmul.f32 %v1677, %v1683
          %v1697 = vmul.f32 %v1531, %v1689
          %v1699 = vrot.slane %v1697, 6
          %v1701 = vadd.f32 %v1696, %v1699
          %v1702 = vsub.f32 %v1657, %v352
          %v1703 = vrot.slane %v1523, 6
          %v1705 = vmax.f32 %v1702, %v1703
          %v1706 = vsub.f32 %v1702, %v1705
          %v1707 = vmul.f32 %v1706, 1.442695
          %v1708 = vpow.pop %v1707
          %v1710 = vrot.slane %v1705, 2
          %v1712 = vsub.f32 %v1523, %v1710
          %v1713 = vmul.f32 %v1712, 1.442695
          %v1714 = vpow.pop %v1713
          %v1715 = vmul.f32 %v1672, %v1708
          %v1716 = vmul.f32 %v1525, %v1714
          %v1718 = vrot.slane %v1716, 6
          %v1720 = vadd.f32 %v1715, %v1718
          %v1721 = vmul.f32 %v1677, %v1708
          %v1723 = vrot.slane %v1714, 6
          %v1725 = vadd.f32 %v1721, %v1723
          %v1726 = vrot.slane %v1527, 7
          %v1728 = vmax.f32 %v1705, %v1726
          %v1729 = vsub.f32 %v1705, %v1728
          %v1730 = vmul.f32 %v1729, 1.442695
          %v1731 = vpow.pop %v1730
          %v1733 = vrot.slane %v1728, 1
          %v1735 = vsub.f32 %v1527, %v1733
          %v1736 = vmul.f32 %v1735, 1.442695
          %v1737 = vpow.pop %v1736
          %v1738 = vmul.f32 %v1720, %v1731
          %v1739 = vmul.f32 %v1529, %v1737
          %v1741 = vrot.slane %v1739, 7
          %v1743 = vadd.f32 %v1738, %v1741
          %v1744 = vmul.f32 %v1725, %v1731
          %v1745 = vmul.f32 %v1531, %v1737
          %v1747 = vrot.slane %v1745, 7
          %v1749 = vadd.f32 %v1744, %v1747
          %v1750 = vsub.f32 %v1705, %v352
          %v1751 = vrot.slane %v1523, 7
          %v1753 = vmax.f32 %v1750, %v1751
          %v1754 = vsub.f32 %v1750, %v1753
          %v1755 = vmul.f32 %v1754, 1.442695
          %v1756 = vpow.pop %v1755
          %v1758 = vrot.slane %v1753, 1
          %v1760 = vsub.f32 %v1523, %v1758
          %v1761 = vmul.f32 %v1760, 1.442695
          %v1762 = vpow.pop %v1761
          %v1763 = vmul.f32 %v1720, %v1756
          %v1764 = vmul.f32 %v1525, %v1762
          %v1766 = vrot.slane %v1764, 7
          %v1768 = vadd.f32 %v1763, %v1766
          %v1769 = vmul.f32 %v1725, %v1756
          %v1771 = vrot.slane %v1762, 7
          %v1773 = vadd.f32 %v1769, %v1771
          %v1774 = vmax.f32 %v1753, %v1527
          %v1775 = vsub.f32 %v1753, %v1774
          %v1776 = vmul.f32 %v1775, 1.442695
          %v1777 = vpow.pop %v1776
          %v1778 = vsub.f32 %v1527, %v1774
          %v1779 = vmul.f32 %v1778, 1.442695
          %v1780 = vpow.pop %v1779
          %v1781 = vmul.f32 %v1768, %v1777
          %v1782 = vmul.f32 %v1529, %v1780
          %v1783 = vadd.f32 %v1781, %v1782
          %v1784 = vmul.f32 %v1773, %v1777
          %v1785 = vmul.f32 %v1531, %v1780
          %v1786 = vadd.f32 %v1784, %v1785
          %v1787 = vsub.f32 %v1753, %v352
          %v1788 = vmax.f32 %v1787, %v1523
          %v1789 = vsub.f32 %v1787, %v1788
          %v1790 = vmul.f32 %v1789, 1.442695
          %v1791 = vpow.pop %v1790
          %v1792 = vsub.f32 %v1523, %v1788
          %v1793 = vmul.f32 %v1792, 1.442695
          %v1794 = vpow.pop %v1793
          %v1795 = vmul.f32 %v1768, %v1791
          %v1796 = vmul.f32 %v1525, %v1794
          %v1797 = vadd.f32 %v1795, %v1796
          %v1798 = vmul.f32 %v1773, %v1791
          %v1799 = vadd.f32 %v1798, %v1794
          %v1800 = vrot.slane %v1527, 1
          %v1802 = vmax.f32 %v1788, %v1800
          %v1803 = vsub.f32 %v1788, %v1802
          %v1804 = vmul.f32 %v1803, 1.442695
          %v1805 = vpow.pop %v1804
          %v1807 = vrot.slane %v1802, 7
          %v1809 = vsub.f32 %v1527, %v1807
          %v1810 = vmul.f32 %v1809, 1.442695
          %v1811 = vpow.pop %v1810
          %v1812 = vmul.f32 %v1797, %v1805
          %v1813 = vmul.f32 %v1529, %v1811
          %v1815 = vrot.slane %v1813, 1
          %v1817 = vadd.f32 %v1812, %v1815
          %v1818 = vmul.f32 %v1799, %v1805
          %v1819 = vmul.f32 %v1531, %v1811
          %v1821 = vrot.slane %v1819, 1
          %v1823 = vadd.f32 %v1818, %v1821
          %v1824 = vsub.f32 %v1788, %v352
          %v1825 = vrot.slane %v1523, 1
          %v1827 = vmax.f32 %v1824, %v1825
          %v1828 = vsub.f32 %v1824, %v1827
          %v1829 = vmul.f32 %v1828, 1.442695
          %v1830 = vpow.pop %v1829
          %v1832 = vrot.slane %v1827, 7
          %v1834 = vsub.f32 %v1523, %v1832
          %v1835 = vmul.f32 %v1834, 1.442695
          %v1836 = vpow.pop %v1835
          %v1837 = vmul.f32 %v1797, %v1830
          %v1838 = vmul.f32 %v1525, %v1836
          %v1840 = vrot.slane %v1838, 1
          %v1842 = vadd.f32 %v1837, %v1840
          %v1843 = vmul.f32 %v1799, %v1830
          %v1845 = vrot.slane %v1836, 1
          %v1847 = vadd.f32 %v1843, %v1845
          %v1848 = vrot.slane %v1527, 2
          %v1850 = vmax.f32 %v1827, %v1848
          %v1851 = vsub.f32 %v1827, %v1850
          %v1852 = vmul.f32 %v1851, 1.442695
          %v1853 = vpow.pop %v1852
          %v1855 = vrot.slane %v1850, 6
          %v1857 = vsub.f32 %v1527, %v1855
          %v1858 = vmul.f32 %v1857, 1.442695
          %v1859 = vpow.pop %v1858
          %v1860 = vmul.f32 %v1842, %v1853
          %v1861 = vmul.f32 %v1529, %v1859
          %v1863 = vrot.slane %v1861, 2
          %v1865 = vadd.f32 %v1860, %v1863
          %v1866 = vmul.f32 %v1847, %v1853
          %v1867 = vmul.f32 %v1531, %v1859
          %v1869 = vrot.slane %v1867, 2
          %v1871 = vadd.f32 %v1866, %v1869
          %v1872 = vsub.f32 %v1827, %v352
          %v1873 = vrot.slane %v1523, 2
          %v1875 = vmax.f32 %v1872, %v1873
          %v1876 = vsub.f32 %v1872, %v1875
          %v1877 = vmul.f32 %v1876, 1.442695
          %v1878 = vpow.pop %v1877
          %v1880 = vrot.slane %v1875, 6
          %v1882 = vsub.f32 %v1523, %v1880
          %v1883 = vmul.f32 %v1882, 1.442695
          %v1884 = vpow.pop %v1883
          %v1885 = vmul.f32 %v1842, %v1878
          %v1886 = vmul.f32 %v1525, %v1884
          %v1888 = vrot.slane %v1886, 2
          %v1890 = vadd.f32 %v1885, %v1888
          %v1891 = vmul.f32 %v1847, %v1878
          %v1893 = vrot.slane %v1884, 2
          %v1895 = vadd.f32 %v1891, %v1893
          %v1897 = vrot.slane %v1550, 5
          %v1900 = vrot.slane %v1599, 4
          %v1903 = vrot.slane %v1647, 3
          %v1906 = vrot.slane %v1695, 2
          %v1909 = vrot.slane %v1743, 1
          %v1912 = vrot.slane %v1817, 7
          %v1915 = vrot.slane %v1865, 6
          %vm1917 = vcmask 1040384
          %v1918 = vsel %vm1917, %v1897, %v1900
          %vm1919 = vcmask 1041408
          %v1920 = vsel %vm1919, %v1918, %v1903
          %vm1921 = vcmask 1042432
          %v1922 = vsel %vm1921, %v1920, %v1906
          %vm1923 = vcmask 1043456
          %v1924 = vsel %vm1923, %v1922, %v1909
          %vm1925 = vcmask 1044480
          %v1926 = vsel %vm1925, %v1924, %v1783
          %vm1927 = vcmask 1045504
          %v1928 = vsel %vm1927, %v1926, %v1912
          %vm1929 = vcmask 1046528
          %v1930 = vsel %vm1929, %v1928, %v1915
          %1931 = vst.msk [vmem:[%s1528] sm:$0xff] %vm354, %v1930
          %v1933 = vrot.slane %v1556, 5
          %v1936 = vrot.slane %v1605, 4
          %v1939 = vrot.slane %v1653, 3
          %v1942 = vrot.slane %v1701, 2
          %v1945 = vrot.slane %v1749, 1
          %v1948 = vrot.slane %v1823, 7
          %v1951 = vrot.slane %v1871, 6
          %v1953 = vsel %vm1917, %v1933, %v1936
          %v1954 = vsel %vm1919, %v1953, %v1939
          %v1955 = vsel %vm1921, %v1954, %v1942
          %v1956 = vsel %vm1923, %v1955, %v1945
          %v1957 = vsel %vm1925, %v1956, %v1786
          %v1958 = vsel %vm1927, %v1957, %v1948
          %v1959 = vsel %vm1929, %v1958, %v1951
          %1960 = vst.msk [vmem:[%s1530] sm:$0xff] %vm354, %v1959
        $region80: #{_lambda_.4} parent=43 // loop_footer
          %s1517 = sadd.s32 1, %s1513
        $region81: #{_lambda_.4} parent=43 // loop_footer_branch
          %1512 = sbr.rel target = $region77
        $region82: #{_lambda_.4} parent=43 // loop_exit
          _
        %v1961 = vld [vmem:[#allocation5] sm:$0xff]
        %v1962 = vld [vmem:[#allocation5 + $0x8] sm:$0xff]
        %v1963 = vld [vmem:[#allocation5 + $0x10] sm:$0xff]
        %v1964 = vld [vmem:[#allocation5 + $0x18] sm:$0xff]
        %v1965 = vld [vmem:[#allocation5 + $0x20] sm:$0xff]
        %v1966 = vld [vmem:[#allocation5 + $0x28] sm:$0xff]
        %v1967 = vld [vmem:[#allocation5 + $0x30] sm:$0xff]
        %v1968 = vld [vmem:[#allocation5 + $0x38] sm:$0xff]
        %v1969 = vld [vmem:[#allocation6] sm:$0xff]
        %v1970 = vld [vmem:[#allocation6 + $0x8] sm:$0xff]
        %v1971 = vld [vmem:[#allocation6 + $0x10] sm:$0xff]
        %v1972 = vld [vmem:[#allocation6 + $0x18] sm:$0xff]
        %v1973 = vld [vmem:[#allocation6 + $0x20] sm:$0xff]
        %v1974 = vld [vmem:[#allocation6 + $0x28] sm:$0xff]
        %v1975 = vld [vmem:[#allocation6 + $0x30] sm:$0xff]
        %v1976 = vld [vmem:[#allocation6 + $0x38] sm:$0xff]
        %v1977 = vrcp.pop %v1969
        %v1978 = vmul.f32 %v1961, %v1977
        %v1979 = vrcp.pop %v1970
        %v1980 = vmul.f32 %v1962, %v1979
        %v1981 = vrcp.pop %v1971
        %v1982 = vmul.f32 %v1963, %v1981
        %v1983 = vrcp.pop %v1972
        %v1984 = vmul.f32 %v1964, %v1983
        %v1985 = vrcp.pop %v1973
        %v1986 = vmul.f32 %v1965, %v1985
        %v1987 = vrcp.pop %v1974
        %v1988 = vmul.f32 %v1966, %v1987
        %v1989 = vrcp.pop %v1975
        %v1990 = vmul.f32 %v1967, %v1989
        %v1991 = vrcp.pop %v1976
        %v1992 = vmul.f32 %v1968, %v1991
        %v1993 = vld [vmem:[#allocation15] sm:$0xf]
        %v1994 = vld [vmem:[#allocation15 + $0x4] sm:$0xf]
        %v1995 = vld [vmem:[#allocation15 + $0x8] sm:$0xf]
        %v1996 = vld [vmem:[#allocation15 + $0xc] sm:$0xf]
        %v2001 = vunpack.c.l.b16 %v1993
        %v2002 = vunpack.c.l.b16 %v1994
        %v2003 = vunpack.c.l.b16 %v1995
        %v2004 = vunpack.c.l.b16 %v1996
        %v2005 = vpack.c.b16 %v2002, %v2001
        %v2006 = vpack.c.b16 %v2004, %v2003
        %v2010 = vsel %vm354, %v812, 0
        %v2013 = vsel %vm354, %v813, 0
        %v2016 = vsel %vm354, %v814, 0
        %v2019 = vsel %vm354, %v815, 0
        %2021 = vmatprep.subr.bf16.mxu0 0
        %2022 = vmatpush1.bf16.msra.mxu0 %v2005
        %2023 = vmatprep.subr.bf16.mxu0 0
        %2024 = vmatpush1.bf16.msra.mxu0 %v2006
        %2025 = vmatprep.subr.bf16.mxu0 0
        %2026 = vmatpush1.bf16.msra.mxu0 0
        %2027 = vmatprep.subr.bf16.mxu0 0
        %2028 = vmatpush1.bf16.msra.mxu0 0
        %2029 = vmatprep.subr.bf16.mxu0 0
        %2030 = vmatpush1.bf16.msra.mxu0 0
        %2031 = vmatprep.subr.bf16.mxu0 0
        %2032 = vmatpush1.bf16.msra.mxu0 0
        %2033 = vmatprep.subr.bf16.mxu0 0
        %2034 = vmatpush1.bf16.msra.mxu0 0
        %2035 = vmatprep.subr.bf16.mxu0 0
        %2036 = vmatpush1.bf16.msra.mxu0 0
        %2037 = vmatprep.subr.bf16.mxu0 0
        %2038 = vmatpush1.bf16.msra.mxu0 0
        %2039 = vmatprep.subr.bf16.mxu0 0
        %2040 = vmatpush1.bf16.msra.mxu0 0
        %2041 = vmatprep.subr.bf16.mxu0 0
        %2042 = vmatpush1.bf16.msra.mxu0 0
        %2043 = vmatprep.subr.bf16.mxu0 0
        %2044 = vmatpush1.bf16.msra.mxu0 0
        %2045 = vmatprep.subr.bf16.mxu0 0
        %2046 = vmatpush1.bf16.msra.mxu0 0
        %2047 = vmatprep.subr.bf16.mxu0 0
        %2048 = vmatpush1.bf16.msra.mxu0 0
        %2049 = vmatprep.subr.bf16.mxu0 0
        %2050 = vmatpush1.bf16.msra.mxu0 0
        %2051 = vmatprep.subr.bf16.mxu0 0
        %2052 = vmatpush1.bf16.msra.mxu0 0
        %2053 = vmatprep.mubr.bf16.mxu0 0
        %2054 = vmatmul.mubr.bf16.gmra.mrb[0].mxu0 %v2010
        %v2055 = vpop.f32.mrb[0].mxu0
        %v2056 = vadd.f32 0.0, %v2055
        %v2057 = vpop.f32.mrb[0].mxu0
        %v2058 = vpop.f32.mrb[0].mxu0
        %v2059 = vadd.f32 0.0, %v2058
        %v2060 = vpop.f32.mrb[0].mxu0
        %2061 = vmatprep.mubr.bf16.mxu0 0
        %2062 = vmatmul.mubr.bf16.gmra.mrb[0].mxu0 %v2013
        %v2063 = vpop.f32.mrb[0].mxu0
        %v2064 = vadd.f32 0.0, %v2063
        %v2065 = vpop.f32.mrb[0].mxu0
        %v2066 = vpop.f32.mrb[0].mxu0
        %v2067 = vadd.f32 0.0, %v2066
        %v2068 = vpop.f32.mrb[0].mxu0
        %2069 = vmatprep.mubr.bf16.mxu0 0
        %2070 = vmatmul.mubr.bf16.gmra.mrb[0].mxu0 %v2016
        %v2071 = vpop.f32.mrb[0].mxu0
        %v2072 = vadd.f32 0.0, %v2071
        %v2073 = vpop.f32.mrb[0].mxu0
        %v2074 = vpop.f32.mrb[0].mxu0
        %v2075 = vadd.f32 0.0, %v2074
        %v2076 = vpop.f32.mrb[0].mxu0
        %2077 = vmatprep.mubr.bf16.mxu0 0
        %2078 = vmatmul.mubr.bf16.gmra.mrb[0].mxu0 %v2019
        %v2079 = vpop.f32.mrb[0].mxu0
        %v2080 = vadd.f32 0.0, %v2079
        %v2081 = vpop.f32.mrb[0].mxu0
        %v2082 = vpop.f32.mrb[0].mxu0
        %v2083 = vadd.f32 0.0, %v2082
        %v2084 = vpop.f32.mrb[0].mxu0
        %2085 = vdwg.mxu0
        %v2086 = vxor.u32 %v2056, 2147483648
        %v2087 = vxor.u32 %v2059, 2147483648
        %v2088 = vxor.u32 %v2064, 2147483648
        %v2089 = vxor.u32 %v2067, 2147483648
        %v2090 = vxor.u32 %v2072, 2147483648
        %v2091 = vxor.u32 %v2075, 2147483648
        %v2092 = vxor.u32 %v2080, 2147483648
        %v2093 = vxor.u32 %v2083, 2147483648
        %v2094 = vmul.f32 %v2086, 1.442695
        %v2095 = vpow.pop %v2094
        %v2096 = vmul.f32 %v2087, 1.442695
        %v2097 = vpow.pop %v2096
        %v2098 = vmul.f32 %v2088, 1.442695
        %v2099 = vpow.pop %v2098
        %v2100 = vmul.f32 %v2089, 1.442695
        %v2101 = vpow.pop %v2100
        %v2102 = vmul.f32 %v2090, 1.442695
        %v2103 = vpow.pop %v2102
        %v2104 = vmul.f32 %v2091, 1.442695
        %v2105 = vpow.pop %v2104
        %v2106 = vmul.f32 %v2092, 1.442695
        %v2107 = vpow.pop %v2106
        %v2108 = vmul.f32 %v2093, 1.442695
        %v2109 = vpow.pop %v2108
        %v2110 = vadd.f32 %v2095, 1.0
        %v2111 = vadd.f32 %v2097, 1.0
        %v2112 = vadd.f32 %v2099, 1.0
        %v2113 = vadd.f32 %v2101, 1.0
        %v2114 = vadd.f32 %v2103, 1.0
        %v2115 = vadd.f32 %v2105, 1.0
        %v2116 = vadd.f32 %v2107, 1.0
        %v2117 = vadd.f32 %v2109, 1.0
        %v2118 = vrcp.pop %v2110
        %v2119 = vmul.f32 1.0, %v2118
        %v2120 = vrcp.pop %v2111
        %v2121 = vmul.f32 1.0, %v2120
        %v2122 = vrcp.pop %v2112
        %v2123 = vmul.f32 1.0, %v2122
        %v2124 = vrcp.pop %v2113
        %v2125 = vmul.f32 1.0, %v2124
        %v2126 = vrcp.pop %v2114
        %v2127 = vmul.f32 1.0, %v2126
        %v2128 = vrcp.pop %v2115
        %v2129 = vmul.f32 1.0, %v2128
        %v2130 = vrcp.pop %v2116
        %v2131 = vmul.f32 1.0, %v2130
        %v2132 = vrcp.pop %v2117
        %v2133 = vmul.f32 1.0, %v2132
        %v2134 = vmul.f32 %v2119, %v1978
        %v2135 = vmul.f32 %v2121, %v1980
        %v2136 = vmul.f32 %v2123, %v1982
        %v2137 = vmul.f32 %v2125, %v1984
        %v2138 = vmul.f32 %v2127, %v1986
        %v2139 = vmul.f32 %v2129, %v1988
        %v2140 = vmul.f32 %v2131, %v1990
        %v2141 = vmul.f32 %v2133, %v1992
        %v2142 = vpack.c.bf16 %v2135, %v2134
        %v2143 = vpack.c.bf16 %v2137, %v2136
        %v2144 = vpack.c.bf16 %v2139, %v2138
        %v2145 = vpack.c.bf16 %v2141, %v2140
        %v2146 = vld [vmem:[#allocation16] sm:$0xf]
        %v2147 = vld [vmem:[#allocation16 + $0x4] sm:$0xf]
        %v2148 = vld [vmem:[#allocation16 + $0x8] sm:$0xf]
        %v2149 = vld [vmem:[#allocation16 + $0xc] sm:$0xf]
        %v2154 = vunpack.c.l.b16 %v2146
        %v2155 = vunpack.c.l.b16 %v2147
        %v2156 = vunpack.c.l.b16 %v2148
        %v2157 = vunpack.c.l.b16 %v2149
        %v2158 = vpack.c.b16 %v2155, %v2154
        %v2159 = vpack.c.b16 %v2157, %v2156
        %v2163 = vsel %vm354, %v2142, 0
        %v2166 = vsel %vm354, %v2143, 0
        %v2169 = vsel %vm354, %v2144, 0
        %v2172 = vsel %vm354, %v2145, 0
        %2174 = vmatprep.subr.bf16.mxu0 0
        %2175 = vmatpush1.bf16.msra.mxu0 %v2158
        %2176 = vmatprep.subr.bf16.mxu0 0
        %2177 = vmatpush1.bf16.msra.mxu0 %v2159
        %2178 = vmatprep.subr.bf16.mxu0 0
        %2179 = vmatpush1.bf16.msra.mxu0 0
        %2180 = vmatprep.subr.bf16.mxu0 0
        %2181 = vmatpush1.bf16.msra.mxu0 0
        %2182 = vmatprep.subr.bf16.mxu0 0
        %2183 = vmatpush1.bf16.msra.mxu0 0
        %2184 = vmatprep.subr.bf16.mxu0 0
        %2185 = vmatpush1.bf16.msra.mxu0 0
        %2186 = vmatprep.subr.bf16.mxu0 0
        %2187 = vmatpush1.bf16.msra.mxu0 0
        %2188 = vmatprep.subr.bf16.mxu0 0
        %2189 = vmatpush1.bf16.msra.mxu0 0
        %2190 = vmatprep.subr.bf16.mxu0 0
        %2191 = vmatpush1.bf16.msra.mxu0 0
        %2192 = vmatprep.subr.bf16.mxu0 0
        %2193 = vmatpush1.bf16.msra.mxu0 0
        %2194 = vmatprep.subr.bf16.mxu0 0
        %2195 = vmatpush1.bf16.msra.mxu0 0
        %2196 = vmatprep.subr.bf16.mxu0 0
        %2197 = vmatpush1.bf16.msra.mxu0 0
        %2198 = vmatprep.subr.bf16.mxu0 0
        %2199 = vmatpush1.bf16.msra.mxu0 0
        %2200 = vmatprep.subr.bf16.mxu0 0
        %2201 = vmatpush1.bf16.msra.mxu0 0
        %2202 = vmatprep.subr.bf16.mxu0 0
        %2203 = vmatpush1.bf16.msra.mxu0 0
        %2204 = vmatprep.subr.bf16.mxu0 0
        %2205 = vmatpush1.bf16.msra.mxu0 0
        %2206 = vmatprep.mubr.bf16.mxu0 0
        %2207 = vmatmul.mubr.bf16.gmra.mrb[0].mxu0 %v2163
        %v2208 = vpop.f32.mrb[0].mxu0
        %v2209 = vadd.f32 0.0, %v2208
        %v2210 = vpop.f32.mrb[0].mxu0
        %v2211 = vpop.f32.mrb[0].mxu0
        %v2212 = vadd.f32 0.0, %v2211
        %v2213 = vpop.f32.mrb[0].mxu0
        %2214 = vmatprep.mubr.bf16.mxu0 0
        %2215 = vmatmul.mubr.bf16.gmra.mrb[0].mxu0 %v2166
        %v2216 = vpop.f32.mrb[0].mxu0
        %v2217 = vadd.f32 0.0, %v2216
        %v2218 = vpop.f32.mrb[0].mxu0
        %v2219 = vpop.f32.mrb[0].mxu0
        %v2220 = vadd.f32 0.0, %v2219
        %v2221 = vpop.f32.mrb[0].mxu0
        %2222 = vmatprep.mubr.bf16.mxu0 0
        %2223 = vmatmul.mubr.bf16.gmra.mrb[0].mxu0 %v2169
        %v2224 = vpop.f32.mrb[0].mxu0
        %v2225 = vadd.f32 0.0, %v2224
        %v2226 = vpop.f32.mrb[0].mxu0
        %v2227 = vpop.f32.mrb[0].mxu0
        %v2228 = vadd.f32 0.0, %v2227
        %v2229 = vpop.f32.mrb[0].mxu0
        %2230 = vmatprep.mubr.bf16.mxu0 0
        %2231 = vmatmul.mubr.bf16.gmra.mrb[0].mxu0 %v2172
        %v2232 = vpop.f32.mrb[0].mxu0
        %v2233 = vadd.f32 0.0, %v2232
        %v2234 = vpop.f32.mrb[0].mxu0
        %v2235 = vpop.f32.mrb[0].mxu0
        %v2236 = vadd.f32 0.0, %v2235
        %v2237 = vpop.f32.mrb[0].mxu0
        %2238 = vdwg.mxu0
        %v2239 = vadd.f32 %v476, %v2209
        %v2240 = vadd.f32 %v477, %v2212
        %v2241 = vadd.f32 %v478, %v2217
        %v2242 = vadd.f32 %v479, %v2220
        %v2243 = vadd.f32 %v480, %v2225
        %v2244 = vadd.f32 %v481, %v2228
        %v2245 = vadd.f32 %v482, %v2233
        %v2246 = vadd.f32 %v483, %v2236
        %2247 = vst.msk [vmem:[%s342] sm:$0xff] %vm354, %v2239
        %2248 = vst.msk [vmem:[%s342 + $0x8] sm:$0xff] %vm354, %v2240
        %2249 = vst.msk [vmem:[%s342 + $0x10] sm:$0xff] %vm354, %v2241
        %2250 = vst.msk [vmem:[%s342 + $0x18] sm:$0xff] %vm354, %v2242
        %2251 = vst.msk [vmem:[%s342 + $0x20] sm:$0xff] %vm354, %v2243
        %2252 = vst.msk [vmem:[%s342 + $0x28] sm:$0xff] %vm354, %v2244
        %2253 = vst.msk [vmem:[%s342 + $0x30] sm:$0xff] %vm354, %v2245
        %2254 = vst.msk [vmem:[%s342 + $0x38] sm:$0xff] %vm354, %v2246
        %s2255 = sand.u32 %s165, 1
        %s2256 = scalar_lea.sflag [#allocation9], %s2255
        %s2257 = sand.u32 %s165, 1
        %s2258 = smul.addr %s2257, 64
        %s2259 = scalar_lea.vmem [#allocation18], %s2258
        // Predicated region
        $region83: #{_lambda_.4} parent=43 // pred_check
          %p2260 = pneg %p175
        $region84: #{_lambda_.4} parent=43 // pred_check_branch
          %2262 = sbr.rel (%p2260) target = $region86
        $region85: #{_lambda_.4} parent=43 // pred_region
          %s2264 = ssub.s32 1024, 1024
          %2265 = vsyncadd %s2256, %s2264
          %s2266 = smul.addr %s26, 8
          %s2267 = smul.addr %s2266, 128
          %s2268 = scalar_lea.hbm %s6, %s2267
          %s2269 = sshll.u32 %s2259, 4
          %s2270 = int_to_ptr.vmem [resolvable:$true] %s2269
          %2275 = dma.vmem_to_hbm [thread:$0]  %s2270, 1024, %s2268, %s2256, 128, 128, 8
        $region86: #{_lambda_.4} parent=43 // pred_fallthru
          _
      $region44: #{_lambda_.4} parent=5 // pred_fallthru
        _
      %p2276 = scmp.le.s32.totalorder 2, %s21
      // Predicated region
      $region87: #{_lambda_.4} parent=5 // pred_check
        %p2277 = pneg %p2276
      $region88: #{_lambda_.4} parent=5 // pred_check_branch
        %2279 = sbr.rel (%p2277) target = $region90
      $region89: #{_lambda_.4} parent=5 // pred_region
        %s2280 = ssub.s32 %s21, 2
        // Predicated region
        $region91: #{_lambda_.4} parent=89 // pred_check
          %p2281 = pneg %p181
        $region92: #{_lambda_.4} parent=89 // pred_check_branch
          %2283 = sbr.rel (%p2281) target = $region94
        $region93: #{_lambda_.4} parent=89 // pred_region
          %s2284 = sand.u32 %s166, 1
          %s2285 = scalar_lea.sflag [#allocation9], %s2284
          %s2286 = sand.u32 %s166, 1
          %s2287 = smul.addr %s2286, 64
          %s2288 = scalar_lea.vmem [#allocation18], %s2287
          %2289 = dma.done %s2285, 1024
        $region94: #{_lambda_.4} parent=89 // pred_fallthru
          _
      $region90: #{_lambda_.4} parent=5 // pred_fallthru
        _
    $region6: #{_lambda_.4} parent=1 // loop_footer
      %s25 = sadd.s32 1, %s21
    $region7: #{_lambda_.4} parent=1 // loop_footer_branch
      %20 = sbr.rel target = $region3
    $region8: #{_lambda_.4} parent=1 // loop_exit
      _
    %2290 = vsyncpa [#allocation8], 1
    %s2291 = scalar_lea.sflag [#allocation8], 1
    %2292 = vsyncpa %s2291, 1
    %2293 = vsyncpa [#allocation11], 1
    %2294 = vsyncpa [#allocation14], 1
    %2295 = vsyncpa [#allocation17], 1
    %2296 = vsyncpa [#allocation9], 1
    %s2297 = scalar_lea.sflag [#allocation9], 1
    %2298 = vsyncpa %s2297, 1

// kernel: _lambda_.6
$region0: #{_lambda_.6}
  #allocation0 [shape = 'u32[]', space=smem, size = 0x4, offset = 0x4, fixed_abs, tag = 'smem constant byte address 0x4 - core index']
  #allocation1 [shape = 'u32[144,128]{1,0:T(1,128)}', space=vmem, size = 0x12000, scoped, tag = 'internal scratch']
  #allocation2 [shape = 'f32[64,32]{1,0:T(8,128)}', space=vmem, size = 0x8000, scoped, tag = 'scratch operand']
  #allocation3 [shape = 'f32[64,32]{1,0:T(8,128)}', space=vmem, size = 0x8000, scoped, tag = 'scratch operand']
  #allocation4 [shape = 'f32[64,32]{1,0:T(8,128)}', space=vmem, size = 0x8000, scoped, tag = 'scratch operand']
  #allocation5 [shape = 'f32[64,32]{1,0:T(8,128)}', space=vmem, size = 0x8000, scoped, tag = 'scratch operand']
  #allocation6 [shape = 'f32[64,32]{1,0:T(8,128)}', space=vmem, size = 0x8000, scoped, tag = 'scratch operand']
  %s0 = inlined_call_operand.hbm [shape: f32[2,64,32], index: 0, kind: input, shape index: {}]
  %s1 = inlined_call_operand.hbm [shape: f32[16,32], index: 1, kind: input, shape index: {}]
  %s2 = inlined_call_operand.hbm [shape: bf16[32,32], index: 2, kind: input, shape index: {}]
  %s3 = inlined_call_operand.hbm [shape: bf16[32,32], index: 3, kind: input, shape index: {}]
  %s4 = inlined_call_operand.hbm [shape: bf16[32,32], index: 4, kind: input, shape index: {}]
  %s5 = inlined_call_operand.hbm [shape: bf16[32,32], index: 5, kind: input, shape index: {}]
  %s6 = inlined_call_operand.hbm [shape: f32[2,64,32], index: 6, kind: output, shape index: {}]
  %s7 = sld [smem:[#allocation0]]
  $region95: #{_lambda_.6} parent=0
    _
  %s9 = ssub.s32 1, %s7
  %s10 = scalar_select 0, %s9, %s7
  $region1: #{_lambda_.6} parent=0
    #allocation7 [shape = 'u8[65536]{0}', space=vmem, size = 0x10000, scoped, tag = 'input window, operand 0']
    #allocation8 [shape = 's32[2]{0}', space=sflag, size = 0x8, scoped, tag = 'scoped memory for _lambda_.6']
    #allocation9 [shape = 's32[2]{0}', space=sflag, size = 0x8, scoped, tag = 'scoped memory for _lambda_.6']
    #allocation10 [shape = 'u8[8192]{0}', space=vmem, size = 0x2000, scoped, tag = 'input window, operand 1, single buffered']
    #allocation11 [shape = 's32[1]{0}', space=sflag, size = 0x4, scoped, tag = 'scoped memory for _lambda_.6']
    #allocation12 [shape = 'u8[8192]{0}', space=vmem, size = 0x2000, scoped, tag = 'input window, operand 2, single buffered']
    #allocation13 [shape = 'u8[8192]{0}', space=vmem, size = 0x2000, scoped, tag = 'input window, operand 3, single buffered']
    #allocation14 [shape = 's32[1]{0}', space=sflag, size = 0x4, scoped, tag = 'scoped memory for _lambda_.6']
    #allocation15 [shape = 'u8[8192]{0}', space=vmem, size = 0x2000, scoped, tag = 'input window, operand 4, single buffered']
    #allocation16 [shape = 'u8[8192]{0}', space=vmem, size = 0x2000, scoped, tag = 'input window, operand 5, single buffered']
    #allocation17 [shape = 's32[1]{0}', space=sflag, size = 0x4, scoped, tag = 'scoped memory for _lambda_.6']
    #allocation18 [shape = 'u8[65536]{0}', space=vmem, size = 0x10000, scoped, tag = 'output window, operand 0']
    %11 = vsyncpa [#allocation8], 0
    %s12 = scalar_lea.sflag [#allocation8], 1
    %13 = vsyncpa %s12, 0
    %14 = vsyncpa [#allocation11], 0
    %15 = vsyncpa [#allocation14], 0
    %16 = vsyncpa [#allocation17], 0
    %17 = vsyncpa [#allocation9], 0
    %s18 = scalar_lea.sflag [#allocation9], 1
    %19 = vsyncpa %s18, 0
    loop: start=0, step=1, limit=4
    $region2: #{_lambda_.6} parent=1 // loop_pre_header
      _
    $region3: #{_lambda_.6} parent=1 // loop_header
      %s21 = sphi 0, %s25
      %p22 = scmp.ge.s32.totalorder %s21, 4
      %s31 = sphi 0, %s33
      %s34 = sphi 0, %s31
      %s35 = sphi 0, %s34
      %s51 = sphi 0, %s35
      %s55 = sphi 0, %s55
      %s57 = sphi 0, %s55
      %s58 = sphi 0, %s57
      %s72 = sphi 0, %s58
      %s76 = sphi 0, %s76
      %s78 = sphi 0, %s76
      %s79 = sphi 0, %s78
      %s93 = sphi 0, %s79
      %s97 = sphi 0, %s97
      %s99 = sphi 0, %s97
      %s100 = sphi 0, %s99
      %s114 = sphi 0, %s100
      %s118 = sphi 0, %s118
      %s120 = sphi 0, %s118
      %s121 = sphi 0, %s120
      %s135 = sphi 0, %s121
      %s139 = sphi 0, %s139
      %s141 = sphi 0, %s139
      %s142 = sphi 0, %s141
      %s156 = sphi 0, %s142
      %s162 = sphi 0, %s164
      %s165 = sphi 0, %s162
      %s166 = sphi 0, %s165
      %s182 = sphi 0, %s166
    $region4: #{_lambda_.6} parent=1 // loop_header_branch
      %24 = sbr.rel (%p22) target = $region8
    $region5: #{_lambda_.6} parent=1 // loop_body
      %s26 = ssub.s32 %s21, 1
      %s27 = ssub.s32 %s21, 2
      %s28 = sadd.s32 %s21, 1
      %s29 = ssub.s32 %s21, %s28
      %p30 = scmp.eq.s32.totalorder %s29, 0
      %s32 = sadd.s32 %s31, 1
      %s33 = scalar_select %p30, %s31, %s32
      %p36 = pneg %p30
      %p37 = scmp.eq.s32.totalorder %s21, 1
      %p38 = por %p36, %p37
      %p39 = scmp.ne.s32.totalorder %s31, %s34
      %p40 = scmp.eq.s32.totalorder %s21, 0
      %p41 = por %p39, %p40
      %p42 = scmp.ne.s32.totalorder %s31, %s34
      %p43 = scmp.eq.s32.totalorder %s26, 1
      %p44 = por %p42, %p43
      %p45 = scmp.ne.s32.totalorder %s34, %s35
      %p46 = scmp.eq.s32.totalorder %s26, 0
      %p47 = por %p45, %p46
      %p48 = scmp.ne.s32.totalorder %s34, %s35
      %p49 = scmp.eq.s32.totalorder %s27, 1
      %p50 = por %p48, %p49
      %p52 = scmp.ne.s32.totalorder %s35, %s51
      %p53 = scmp.eq.s32.totalorder %s27, 0
      %p54 = por %p52, %p53
      %s56 = sadd.s32 %s55, 1
      %p59 = scmp.eq.s32.totalorder %s21, 1
      %p60 = scmp.ne.s32.totalorder %s55, %s57
      %p61 = scmp.eq.s32.totalorder %s21, 0
      %p62 = por %p60, %p61
      %p63 = scmp.ne.s32.totalorder %s55, %s57
      %p64 = scmp.eq.s32.totalorder %s26, 1
      %p65 = por %p63, %p64
      %p66 = scmp.ne.s32.totalorder %s57, %s58
      %p67 = scmp.eq.s32.totalorder %s26, 0
      %p68 = por %p66, %p67
      %p69 = scmp.ne.s32.totalorder %s57, %s58
      %p70 = scmp.eq.s32.totalorder %s27, 1
      %p71 = por %p69, %p70
      %p73 = scmp.ne.s32.totalorder %s58, %s72
      %p74 = scmp.eq.s32.totalorder %s27, 0
      %p75 = por %p73, %p74
      %s77 = sadd.s32 %s76, 1
      %p80 = scmp.eq.s32.totalorder %s21, 1
      %p81 = scmp.ne.s32.totalorder %s76, %s78
      %p82 = scmp.eq.s32.totalorder %s21, 0
      %p83 = por %p81, %p82
      %p84 = scmp.ne.s32.totalorder %s76, %s78
      %p85 = scmp.eq.s32.totalorder %s26, 1
      %p86 = por %p84, %p85
      %p87 = scmp.ne.s32.totalorder %s78, %s79
      %p88 = scmp.eq.s32.totalorder %s26, 0
      %p89 = por %p87, %p88
      %p90 = scmp.ne.s32.totalorder %s78, %s79
      %p91 = scmp.eq.s32.totalorder %s27, 1
      %p92 = por %p90, %p91
      %p94 = scmp.ne.s32.totalorder %s79, %s93
      %p95 = scmp.eq.s32.totalorder %s27, 0
      %p96 = por %p94, %p95
      %s98 = sadd.s32 %s97, 1
      %p101 = scmp.eq.s32.totalorder %s21, 1
      %p102 = scmp.ne.s32.totalorder %s97, %s99
      %p103 = scmp.eq.s32.totalorder %s21, 0
      %p104 = por %p102, %p103
      %p105 = scmp.ne.s32.totalorder %s97, %s99
      %p106 = scmp.eq.s32.totalorder %s26, 1
      %p107 = por %p105, %p106
      %p108 = scmp.ne.s32.totalorder %s99, %s100
      %p109 = scmp.eq.s32.totalorder %s26, 0
      %p110 = por %p108, %p109
      %p111 = scmp.ne.s32.totalorder %s99, %s100
      %p112 = scmp.eq.s32.totalorder %s27, 1
      %p113 = por %p111, %p112
      %p115 = scmp.ne.s32.totalorder %s100, %s114
      %p116 = scmp.eq.s32.totalorder %s27, 0
      %p117 = por %p115, %p116
      %s119 = sadd.s32 %s118, 1
      %p122 = scmp.eq.s32.totalorder %s21, 1
      %p123 = scmp.ne.s32.totalorder %s118, %s120
      %p124 = scmp.eq.s32.totalorder %s21, 0
      %p125 = por %p123, %p124
      %p126 = scmp.ne.s32.totalorder %s118, %s120
      %p127 = scmp.eq.s32.totalorder %s26, 1
      %p128 = por %p126, %p127
      %p129 = scmp.ne.s32.totalorder %s120, %s121
      %p130 = scmp.eq.s32.totalorder %s26, 0
      %p131 = por %p129, %p130
      %p132 = scmp.ne.s32.totalorder %s120, %s121
      %p133 = scmp.eq.s32.totalorder %s27, 1
      %p134 = por %p132, %p133
      %p136 = scmp.ne.s32.totalorder %s121, %s135
      %p137 = scmp.eq.s32.totalorder %s27, 0
      %p138 = por %p136, %p137
      %s140 = sadd.s32 %s139, 1
      %p143 = scmp.eq.s32.totalorder %s21, 1
      %p144 = scmp.ne.s32.totalorder %s139, %s141
      %p145 = scmp.eq.s32.totalorder %s21, 0
      %p146 = por %p144, %p145
      %p147 = scmp.ne.s32.totalorder %s139, %s141
      %p148 = scmp.eq.s32.totalorder %s26, 1
      %p149 = por %p147, %p148
      %p150 = scmp.ne.s32.totalorder %s141, %s142
      %p151 = scmp.eq.s32.totalorder %s26, 0
      %p152 = por %p150, %p151
      %p153 = scmp.ne.s32.totalorder %s141, %s142
      %p154 = scmp.eq.s32.totalorder %s27, 1
      %p155 = por %p153, %p154
      %p157 = scmp.ne.s32.totalorder %s142, %s156
      %p158 = scmp.eq.s32.totalorder %s27, 0
      %p159 = por %p157, %p158
      %s160 = ssub.s32 %s21, %s28
      %p161 = scmp.eq.s32.totalorder %s160, 0
      %s163 = sadd.s32 %s162, 1
      %s164 = scalar_select %p161, %s162, %s163
      %p167 = pneg %p161
      %p168 = scmp.eq.s32.totalorder %s21, 1
      %p169 = por %p167, %p168
      %p170 = scmp.ne.s32.totalorder %s162, %s165
      %p171 = scmp.eq.s32.totalorder %s21, 0
      %p172 = por %p170, %p171
      %p173 = scmp.ne.s32.totalorder %s162, %s165
      %p174 = scmp.eq.s32.totalorder %s26, 1
      %p175 = por %p173, %p174
      %p176 = scmp.ne.s32.totalorder %s165, %s166
      %p177 = scmp.eq.s32.totalorder %s26, 0
      %p178 = por %p176, %p177
      %p179 = scmp.ne.s32.totalorder %s165, %s166
      %p180 = scmp.eq.s32.totalorder %s27, 1
      %p181 = por %p179, %p180
      %p183 = scmp.ne.s32.totalorder %s166, %s182
      %p184 = scmp.eq.s32.totalorder %s27, 0
      %p185 = por %p183, %p184
      %p186 = scmp.le.s32.totalorder 1, %s21
      %p187 = scmp.lt.s32.totalorder %s21, 3
      %p188 = pnand %p186, %p187
      %p189 = pneg %p188
      // Predicated region
      $region9: #{_lambda_.6} parent=5 // pred_check
        _
      $region10: #{_lambda_.6} parent=5 // pred_check_branch
        %191 = sbr.rel (%p188) target = $region12
      $region11: #{_lambda_.6} parent=5 // pred_region
        %s192 = ssub.s32 %s21, 1
        // Predicated region
        $region13: #{_lambda_.6} parent=11 // pred_check
          %p193 = pneg %p68
        $region14: #{_lambda_.6} parent=11 // pred_check_branch
          %195 = sbr.rel (%p193) target = $region16
        $region15: #{_lambda_.6} parent=11 // pred_region
          %s197 = ssub.s32 256, 256
          %198 = vsyncadd [#allocation11], %s197
          %s199 = sshll.u32 [#allocation10], 4
          %s200 = int_to_ptr.vmem [resolvable:$true] %s199
          %205 = dma.hbm_to_vmem [thread:$0]  %s1, 256, %s200, [#allocation11], 128, 128, 8
        $region16: #{_lambda_.6} parent=11 // pred_fallthru
          _
        // Predicated region
        $region17: #{_lambda_.6} parent=11 // pred_check
          %p206 = pneg %p89
        $region18: #{_lambda_.6} parent=11 // pred_check_branch
          %208 = sbr.rel (%p206) target = $region20
        $region19: #{_lambda_.6} parent=11 // pred_region
          %s210 = ssub.s32 256, 256
          %211 = vsyncadd [#allocation11], %s210
          %s212 = sshll.u32 [#allocation12], 4
          %s213 = int_to_ptr.vmem [resolvable:$true] %s212
          %218 = dma.hbm_to_vmem [thread:$0]  %s2, 256, %s213, [#allocation11], 64, 64, 4
        $region20: #{_lambda_.6} parent=11 // pred_fallthru
          _
        // Predicated region
        $region21: #{_lambda_.6} parent=11 // pred_check
          %p219 = pneg %p110
        $region22: #{_lambda_.6} parent=11 // pred_check_branch
          %221 = sbr.rel (%p219) target = $region24
        $region23: #{_lambda_.6} parent=11 // pred_region
          %s223 = ssub.s32 256, 256
          %224 = vsyncadd [#allocation14], %s223
          %s225 = sshll.u32 [#allocation13], 4
          %s226 = int_to_ptr.vmem [resolvable:$true] %s225
          %231 = dma.hbm_to_vmem [thread:$0]  %s3, 256, %s226, [#allocation14], 64, 64, 4
        $region24: #{_lambda_.6} parent=11 // pred_fallthru
          _
        // Predicated region
        $region25: #{_lambda_.6} parent=11 // pred_check
          %p232 = pneg %p131
        $region26: #{_lambda_.6} parent=11 // pred_check_branch
          %234 = sbr.rel (%p232) target = $region28
        $region27: #{_lambda_.6} parent=11 // pred_region
          %s236 = ssub.s32 256, 256
          %237 = vsyncadd [#allocation14], %s236
          %s238 = sshll.u32 [#allocation15], 4
          %s239 = int_to_ptr.vmem [resolvable:$true] %s238
          %244 = dma.hbm_to_vmem [thread:$0]  %s4, 256, %s239, [#allocation14], 64, 64, 4
        $region28: #{_lambda_.6} parent=11 // pred_fallthru
          _
        // Predicated region
        $region29: #{_lambda_.6} parent=11 // pred_check
          %p245 = pneg %p152
        $region30: #{_lambda_.6} parent=11 // pred_check_branch
          %247 = sbr.rel (%p245) target = $region32
        $region31: #{_lambda_.6} parent=11 // pred_region
          %s249 = ssub.s32 256, 256
          %250 = vsyncadd [#allocation17], %s249
          %s251 = sshll.u32 [#allocation16], 4
          %s252 = int_to_ptr.vmem [resolvable:$true] %s251
          %257 = dma.hbm_to_vmem [thread:$0]  %s5, 256, %s252, [#allocation17], 64, 64, 4
        $region32: #{_lambda_.6} parent=11 // pred_fallthru
          _
      $region12: #{_lambda_.6} parent=5 // pred_fallthru
        _
      %p258 = scmp.lt.s32.totalorder %s21, 2
      // Predicated region
      $region33: #{_lambda_.6} parent=5 // pred_check
        %p259 = pneg %p258
      $region34: #{_lambda_.6} parent=5 // pred_check_branch
        %261 = sbr.rel (%p259) target = $region36
      $region35: #{_lambda_.6} parent=5 // pred_region
        // Predicated region
        $region37: #{_lambda_.6} parent=35 // pred_check
          %p262 = pneg %p41
        $region38: #{_lambda_.6} parent=35 // pred_check_branch
          %264 = sbr.rel (%p262) target = $region40
        $region39: #{_lambda_.6} parent=35 // pred_region
          %s265 = sand.u32 %s31, 1
          %s266 = scalar_lea.sflag [#allocation8], %s265
          %s267 = sand.u32 %s31, 1
          %s268 = smul.addr %s267, 64
          %s269 = scalar_lea.vmem [#allocation7], %s268
          %s271 = ssub.s32 1024, 1024
          %272 = vsyncadd %s266, %s271
          %s273 = smul.addr %s21, 8
          %s274 = smul.addr %s273, 128
          %s275 = scalar_lea.hbm %s0, %s274
          %s276 = sshll.u32 %s269, 4
          %s277 = int_to_ptr.vmem [resolvable:$true] %s276
          %282 = dma.hbm_to_vmem [thread:$0]  %s275, 1024, %s277, %s266, 128, 128, 8
        $region40: #{_lambda_.6} parent=35 // pred_fallthru
          _
      $region36: #{_lambda_.6} parent=5 // pred_fallthru
        _
      %p283 = scmp.le.s32.totalorder 1, %s21
      %p284 = scmp.lt.s32.totalorder %s21, 3
      %p285 = pnand %p283, %p284
      %p286 = pneg %p285
      // Predicated region
      $region41: #{_lambda_.6} parent=5 // pred_check
        _
      $region42: #{_lambda_.6} parent=5 // pred_check_branch
        %288 = sbr.rel (%p285) target = $region44
      $region43: #{_lambda_.6} parent=5 // pred_region
        %s289 = ssub.s32 %s21, 1
        %s290 = sand.u32 %s34, 1
        %s291 = scalar_lea.sflag [#allocation8], %s290
        %s292 = sand.u32 %s34, 1
        %s293 = smul.addr %s292, 64
        %s294 = scalar_lea.vmem [#allocation7], %s293
        // Predicated region
        $region45: #{_lambda_.6} parent=43 // pred_check
          %p295 = pneg %p47
        $region46: #{_lambda_.6} parent=43 // pred_check_branch
          %297 = sbr.rel (%p295) target = $region48
        $region47: #{_lambda_.6} parent=43 // pred_region
          %298 = dma.done %s291, 1024
        $region48: #{_lambda_.6} parent=43 // pred_fallthru
          _
        // Predicated region
        $region49: #{_lambda_.6} parent=43 // pred_check
          %p299 = pneg %p68
        $region50: #{_lambda_.6} parent=43 // pred_check_branch
          %301 = sbr.rel (%p299) target = $region52
        $region51: #{_lambda_.6} parent=43 // pred_region
          %302 = dma.done [#allocation11], 256
        $region52: #{_lambda_.6} parent=43 // pred_fallthru
          _
        // Predicated region
        $region53: #{_lambda_.6} parent=43 // pred_check
          %p303 = pneg %p89
        $region54: #{_lambda_.6} parent=43 // pred_check_branch
          %305 = sbr.rel (%p303) target = $region56
        $region55: #{_lambda_.6} parent=43 // pred_region
          %306 = dma.done [#allocation11], 256
        $region56: #{_lambda_.6} parent=43 // pred_fallthru
          _
        // Predicated region
        $region57: #{_lambda_.6} parent=43 // pred_check
          %p307 = pneg %p110
        $region58: #{_lambda_.6} parent=43 // pred_check_branch
          %309 = sbr.rel (%p307) target = $region60
        $region59: #{_lambda_.6} parent=43 // pred_region
          %310 = dma.done [#allocation14], 256
        $region60: #{_lambda_.6} parent=43 // pred_fallthru
          _
        // Predicated region
        $region61: #{_lambda_.6} parent=43 // pred_check
          %p311 = pneg %p131
        $region62: #{_lambda_.6} parent=43 // pred_check_branch
          %313 = sbr.rel (%p311) target = $region64
        $region63: #{_lambda_.6} parent=43 // pred_region
          %314 = dma.done [#allocation14], 256
        $region64: #{_lambda_.6} parent=43 // pred_fallthru
          _
        // Predicated region
        $region65: #{_lambda_.6} parent=43 // pred_check
          %p315 = pneg %p152
        $region66: #{_lambda_.6} parent=43 // pred_check_branch
          %317 = sbr.rel (%p315) target = $region68
        $region67: #{_lambda_.6} parent=43 // pred_region
          %318 = dma.done [#allocation17], 256
        $region68: #{_lambda_.6} parent=43 // pred_fallthru
          _
        %s319 = sand.u32 %s34, 1
        %s320 = scalar_lea.sflag [#allocation8], %s319
        %s321 = sand.u32 %s34, 1
        %s322 = smul.addr %s321, 64
        %s323 = scalar_lea.vmem [#allocation7], %s322
        %p324 = pneg %p47
        %p325 = pneg %p44
        %p326 = pneg %p68
        %p327 = pneg %p65
        %p328 = pneg %p89
        %p329 = pneg %p86
        %p330 = pneg %p110
        %p331 = pneg %p107
        %p332 = pneg %p131
        %p333 = pneg %p128
        %p334 = pneg %p152
        %p335 = pneg %p149
        %p336 = pneg %p178
        %p337 = pneg %p175
        %s338 = sand.u32 %s165, 1
        %s339 = scalar_lea.sflag [#allocation9], %s338
        %s340 = sand.u32 %s165, 1
        %s341 = smul.addr %s340, 64
        %s342 = scalar_lea.vmem [#allocation18], %s341
        %v344 = vld [vmem:[%s294] sm:$0xff]
        %v345 = vld [vmem:[%s294 + $0x8] sm:$0xff]
        %v346 = vld [vmem:[%s294 + $0x10] sm:$0xff]
        %v347 = vld [vmem:[%s294 + $0x18] sm:$0xff]
        %v348 = vld [vmem:[%s294 + $0x20] sm:$0xff]
        %v349 = vld [vmem:[%s294 + $0x28] sm:$0xff]
        %v350 = vld [vmem:[%s294 + $0x30] sm:$0xff]
        %v351 = vld [vmem:[%s294 + $0x38] sm:$0xff]
        %v352 = vld [vmem:[#allocation10] sm:$0xff]
        %vm353 = vcmask 261120
        %v354 = vsel %vm353, %v344, 0.0
        %355 = vadd.xlane.f32.xlu0 %v354
        %v356 = vpop.xlane.xlu0 %355
        %v357 = vsel %vm353, %v345, 0.0
        %358 = vadd.xlane.f32.xlu0 %v357
        %v359 = vpop.xlane.xlu0 %358
        %v360 = vsel %vm353, %v346, 0.0
        %361 = vadd.xlane.f32.xlu0 %v360
        %v362 = vpop.xlane.xlu0 %361
        %v363 = vsel %vm353, %v347, 0.0
        %364 = vadd.xlane.f32.xlu0 %v363
        %v365 = vpop.xlane.xlu0 %364
        %v366 = vsel %vm353, %v348, 0.0
        %367 = vadd.xlane.f32.xlu0 %v366
        %v368 = vpop.xlane.xlu0 %367
        %v369 = vsel %vm353, %v349, 0.0
        %370 = vadd.xlane.f32.xlu0 %v369
        %v371 = vpop.xlane.xlu0 %370
        %v372 = vsel %vm353, %v350, 0.0
        %373 = vadd.xlane.f32.xlu0 %v372
        %v374 = vpop.xlane.xlu0 %373
        %v375 = vsel %vm353, %v351, 0.0
        %376 = vadd.xlane.f32.xlu0 %v375
        %v377 = vpop.xlane.xlu0 %376
        %v378 = vrcp.pop 32.0
        %v379 = vmul.f32 %v356, %v378
        %v380 = vmul.f32 %v359, %v378
        %v381 = vmul.f32 %v362, %v378
        %v382 = vmul.f32 %v365, %v378
        %v383 = vmul.f32 %v368, %v378
        %v384 = vmul.f32 %v371, %v378
        %v385 = vmul.f32 %v374, %v378
        %v386 = vmul.f32 %v377, %v378
        %v387 = vsub.f32 %v344, %v379
        %v388 = vsub.f32 %v345, %v380
        %v389 = vsub.f32 %v346, %v381
        %v390 = vsub.f32 %v347, %v382
        %v391 = vsub.f32 %v348, %v383
        %v392 = vsub.f32 %v349, %v384
        %v393 = vsub.f32 %v350, %v385
        %v394 = vsub.f32 %v351, %v386
        %v395 = vmul.f32 %v387, %v387
        %v396 = vmul.f32 %v388, %v388
        %v397 = vmul.f32 %v389, %v389
        %v398 = vmul.f32 %v390, %v390
        %v399 = vmul.f32 %v391, %v391
        %v400 = vmul.f32 %v392, %v392
        %v401 = vmul.f32 %v393, %v393
        %v402 = vmul.f32 %v394, %v394
        %v403 = vsel %vm353, %v395, 0.0
        %404 = vadd.xlane.f32.xlu0 %v403
        %v405 = vpop.xlane.xlu0 %404
        %v406 = vsel %vm353, %v396, 0.0
        %407 = vadd.xlane.f32.xlu0 %v406
        %v408 = vpop.xlane.xlu0 %407
        %v409 = vsel %vm353, %v397, 0.0
        %410 = vadd.xlane.f32.xlu0 %v409
        %v411 = vpop.xlane.xlu0 %410
        %v412 = vsel %vm353, %v398, 0.0
        %413 = vadd.xlane.f32.xlu0 %v412
        %v414 = vpop.xlane.xlu0 %413
        %v415 = vsel %vm353, %v399, 0.0
        %416 = vadd.xlane.f32.xlu0 %v415
        %v417 = vpop.xlane.xlu0 %416
        %v418 = vsel %vm353, %v400, 0.0
        %419 = vadd.xlane.f32.xlu0 %v418
        %v420 = vpop.xlane.xlu0 %419
        %v421 = vsel %vm353, %v401, 0.0
        %422 = vadd.xlane.f32.xlu0 %v421
        %v423 = vpop.xlane.xlu0 %422
        %v424 = vsel %vm353, %v402, 0.0
        %425 = vadd.xlane.f32.xlu0 %v424
        %v426 = vpop.xlane.xlu0 %425
        %v427 = vmul.f32 %v405, %v378
        %v428 = vmul.f32 %v408, %v378
        %v429 = vmul.f32 %v411, %v378
        %v430 = vmul.f32 %v414, %v378
        %v431 = vmul.f32 %v417, %v378
        %v432 = vmul.f32 %v420, %v378
        %v433 = vmul.f32 %v423, %v378
        %v434 = vmul.f32 %v426, %v378
        %v435 = vadd.f32 %v427, 1e-05
        %v436 = vadd.f32 %v428, 1e-05
        %v437 = vadd.f32 %v429, 1e-05
        %v438 = vadd.f32 %v430, 1e-05
        %v439 = vadd.f32 %v431, 1e-05
        %v440 = vadd.f32 %v432, 1e-05
        %v441 = vadd.f32 %v433, 1e-05
        %v442 = vadd.f32 %v434, 1e-05
        %v443 = vrsqrt.pop %v435
        %v444 = vrsqrt.pop %v436
        %v445 = vrsqrt.pop %v437
        %v446 = vrsqrt.pop %v438
        %v447 = vrsqrt.pop %v439
        %v448 = vrsqrt.pop %v440
        %v449 = vrsqrt.pop %v441
        %v450 = vrsqrt.pop %v442
        %v451 = vmul.f32 %v387, %v443
        %v452 = vmul.f32 %v388, %v444
        %v453 = vmul.f32 %v389, %v445
        %v454 = vmul.f32 %v390, %v446
        %v455 = vmul.f32 %v391, %v447
        %v456 = vmul.f32 %v392, %v448
        %v457 = vmul.f32 %v393, %v449
        %v458 = vmul.f32 %v394, %v450
        %v459 = vlaneseq
        %v460 = vshrl.u32 %v459, 7
        %v461 = vsub.s32 0, %v460
        %v462 = vrot.slane %v352, %v461
        %v463 = vmul.f32 %v451, %v462
        %v464 = vmul.f32 %v452, %v462
        %v465 = vmul.f32 %v453, %v462
        %v466 = vmul.f32 %v454, %v462
        %v467 = vmul.f32 %v455, %v462
        %v468 = vmul.f32 %v456, %v462
        %v469 = vmul.f32 %v457, %v462
        %v470 = vmul.f32 %v458, %v462
        %v471 = vlaneseq
        %v472 = vshrl.u32 %v471, 7
        %v473 = vsub.s32 1, %v472
        %v474 = vrot.slane %v352, %v473
        %v475 = vadd.f32 %v463, %v474
        %v476 = vadd.f32 %v464, %v474
        %v477 = vadd.f32 %v465, %v474
        %v478 = vadd.f32 %v466, %v474
        %v479 = vadd.f32 %v467, %v474
        %v480 = vadd.f32 %v468, %v474
        %v481 = vadd.f32 %v469, %v474
        %v482 = vadd.f32 %v470, %v474
        %v483 = vlaneseq
        %v484 = vshrl.u32 %v483, 7
        %v485 = vadd.s32 %v484, 8
        %v486 = vadd.s32 %v484, 16
        %v487 = vadd.s32 %v484, 24
        %v488 = vadd.s32 %v484, 32
        %v489 = vadd.s32 %v484, 40
        %v490 = vadd.s32 %v484, 48
        %v491 = vadd.s32 %v484, 56
        %v492 = vlaneseq
        %v493 = vand.u32 %v492, 127
        %v494 = vrot.slane %v475, 7
        %v495 = vrot.slane %v476, 7
        %v496 = vrot.slane %v477, 7
        %v497 = vrot.slane %v478, 7
        %v498 = vrot.slane %v479, 7
        %v499 = vrot.slane %v480, 7
        %v500 = vrot.slane %v481, 7
        %v501 = vrot.slane %v482, 7
        %vm502 = vcmp.lt.s32.totalorder %v484, 1
        %v503 = vsel %vm502, %v500, %v501
        %v504 = vsel %vm502, %v499, %v500
        %v505 = vsel %vm502, %v498, %v499
        %v506 = vsel %vm502, %v497, %v498
        %v507 = vsel %vm502, %v496, %v497
        %v508 = vsel %vm502, %v495, %v496
        %v509 = vsel %vm502, %v494, %v495
        %v510 = vsel %vm502, %v501, %v494
        %v511 = vrot.slane %v475, 1
        %v512 = vrot.slane %v476, 1
        %v513 = vrot.slane %v477, 1
        %v514 = vrot.slane %v478, 1
        %v515 = vrot.slane %v479, 1
        %v516 = vrot.slane %v480, 1
        %v517 = vrot.slane %v481, 1
        %v518 = vrot.slane %v482, 1
        %vm519 = vcmp.lt.s32.totalorder %v484, 7
        %v520 = vsel %vm519, %v517, %v518
        %v521 = vsel %vm519, %v516, %v517
        %v522 = vsel %vm519, %v515, %v516
        %v523 = vsel %vm519, %v514, %v515
        %v524 = vsel %vm519, %v513, %v514
        %v525 = vsel %vm519, %v512, %v513
        %v526 = vsel %vm519, %v511, %v512
        %v527 = vsel %vm519, %v518, %v511
        %vm528 = vcmp.ge.s32.totalorder %v484, 1
        %vm529 = vcmp.ge.s32.totalorder %v485, 1
        %vm530 = vcmp.ge.s32.totalorder %v486, 1
        %vm531 = vcmp.ge.s32.totalorder %v487, 1
        %vm532 = vcmp.ge.s32.totalorder %v488, 1
        %vm533 = vcmp.ge.s32.totalorder %v489, 1
        %vm534 = vcmp.ge.s32.totalorder %v490, 1
        %vm535 = vcmp.ge.s32.totalorder %v491, 1
        %v536 = vsel %vm528, %v510, 0.0
        %v537 = vsel %vm529, %v509, 0.0
        %v538 = vsel %vm530, %v508, 0.0
        %v539 = vsel %vm531, %v507, 0.0
        %v540 = vsel %vm532, %v506, 0.0
        %v541 = vsel %vm533, %v505, 0.0
        %v542 = vsel %vm534, %v504, 0.0
        %v543 = vsel %vm535, %v503, 0.0
        %vm544 = vcmp.lt.s32.totalorder %v484, 63
        %vm545 = vcmp.lt.s32.totalorder %v485, 63
        %vm546 = vcmp.lt.s32.totalorder %v486, 63
        %vm547 = vcmp.lt.s32.totalorder %v487, 63
        %vm548 = vcmp.lt.s32.totalorder %v488, 63
        %vm549 = vcmp.lt.s32.totalorder %v489, 63
        %vm550 = vcmp.lt.s32.totalorder %v490, 63
        %vm551 = vcmp.lt.s32.totalorder %v491, 63
        %v552 = vsel %vm544, %v526, 0.0
        %v553 = vsel %vm545, %v525, 0.0
        %v554 = vsel %vm546, %v524, 0.0
        %v555 = vsel %vm547, %v523, 0.0
        %v556 = vsel %vm548, %v522, 0.0
        %v557 = vsel %vm549, %v521, 0.0
        %v558 = vsel %vm550, %v520, 0.0
        %v559 = vsel %vm551, %v527, 0.0
        %vm560 = vcmp.lt.s32.totalorder %v493, 16
        %vm561 = vcmp.lt.s32.totalorder %v493, 32
        %v562 = vsel %vm561, %v552, %v475
        %v563 = vsel %vm561, %v553, %v476
        %v564 = vsel %vm561, %v554, %v477
        %v565 = vsel %vm561, %v555, %v478
        %v566 = vsel %vm561, %v556, %v479
        %v567 = vsel %vm561, %v557, %v480
        %v568 = vsel %vm561, %v558, %v481
        %v569 = vsel %vm561, %v559, %v482
        %v570 = vsel %vm560, %v536, %v562
        %v571 = vsel %vm560, %v537, %v563
        %v572 = vsel %vm560, %v538, %v564
        %v573 = vsel %vm560, %v539, %v565
        %v574 = vsel %vm560, %v540, %v566
        %v575 = vsel %vm560, %v541, %v567
        %v576 = vsel %vm560, %v542, %v568
        %v577 = vsel %vm560, %v543, %v569
        %v578 = vlaneseq
        %v579 = vshrl.u32 %v578, 7
        %v580 = vsub.s32 2, %v579
        %v581 = vrot.slane %v352, %v580
        %v582 = vmul.f32 %v475, %v581
        %v583 = vmul.f32 %v476, %v581
        %v584 = vmul.f32 %v477, %v581
        %v585 = vmul.f32 %v478, %v581
        %v586 = vmul.f32 %v479, %v581
        %v587 = vmul.f32 %v480, %v581
        %v588 = vmul.f32 %v481, %v581
        %v589 = vmul.f32 %v482, %v581
        %v590 = vsub.f32 1.0, %v352
        %v591 = vlaneseq
        %v592 = vshrl.u32 %v591, 7
        %v593 = vsub.s32 2, %v592
        %v594 = vrot.slane %v590, %v593
        %v595 = vmul.f32 %v570, %v594
        %v596 = vmul.f32 %v571, %v594
        %v597 = vmul.f32 %v572, %v594
        %v598 = vmul.f32 %v573, %v594
        %v599 = vmul.f32 %v574, %v594
        %v600 = vmul.f32 %v575, %v594
        %v601 = vmul.f32 %v576, %v594
        %v602 = vmul.f32 %v577, %v594
        %v603 = vadd.f32 %v582, %v595
        %v604 = vadd.f32 %v583, %v596
        %v605 = vadd.f32 %v584, %v597
        %v606 = vadd.f32 %v585, %v598
        %v607 = vadd.f32 %v586, %v599
        %v608 = vadd.f32 %v587, %v600
        %v609 = vadd.f32 %v588, %v601
        %v610 = vadd.f32 %v589, %v602
        %v611 = vpack.c.bf16 %v604, %v603
        %v612 = vpack.c.bf16 %v606, %v605
        %v613 = vpack.c.bf16 %v608, %v607
        %v614 = vpack.c.bf16 %v610, %v609
        %v615 = vlaneseq
        %v616 = vshrl.u32 %v615, 7
        %v617 = vsub.s32 3, %v616
        %v618 = vrot.slane %v352, %v617
        %v619 = vmul.f32 %v475, %v618
        %v620 = vmul.f32 %v476, %v618
        %v621 = vmul.f32 %v477, %v618
        %v622 = vmul.f32 %v478, %v618
        %v623 = vmul.f32 %v479, %v618
        %v624 = vmul.f32 %v480, %v618
        %v625 = vmul.f32 %v481, %v618
        %v626 = vmul.f32 %v482, %v618
        %v627 = vlaneseq
        %v628 = vshrl.u32 %v627, 7
        %v629 = vsub.s32 3, %v628
        %v630 = vrot.slane %v590, %v629
        %v631 = vmul.f32 %v570, %v630
        %v632 = vmul.f32 %v571, %v630
        %v633 = vmul.f32 %v572, %v630
        %v634 = vmul.f32 %v573, %v630
        %v635 = vmul.f32 %v574, %v630
        %v636 = vmul.f32 %v575, %v630
        %v637 = vmul.f32 %v576, %v630
        %v638 = vmul.f32 %v577, %v630
        %v639 = vadd.f32 %v619, %v631
        %v640 = vadd.f32 %v620, %v632
        %v641 = vadd.f32 %v621, %v633
        %v642 = vadd.f32 %v622, %v634
        %v643 = vadd.f32 %v623, %v635
        %v644 = vadd.f32 %v624, %v636
        %v645 = vadd.f32 %v625, %v637
        %v646 = vadd.f32 %v626, %v638
        %v647 = vpack.c.bf16 %v640, %v639
        %v648 = vpack.c.bf16 %v642, %v641
        %v649 = vpack.c.bf16 %v644, %v643
        %v650 = vpack.c.bf16 %v646, %v645
        %v651 = vlaneseq
        %v652 = vshrl.u32 %v651, 7
        %v653 = vsub.s32 4, %v652
        %v654 = vrot.slane %v352, %v653
        %v655 = vmul.f32 %v475, %v654
        %v656 = vmul.f32 %v476, %v654
        %v657 = vmul.f32 %v477, %v654
        %v658 = vmul.f32 %v478, %v654
        %v659 = vmul.f32 %v479, %v654
        %v660 = vmul.f32 %v480, %v654
        %v661 = vmul.f32 %v481, %v654
        %v662 = vmul.f32 %v482, %v654
        %v663 = vlaneseq
        %v664 = vshrl.u32 %v663, 7
        %v665 = vsub.s32 4, %v664
        %v666 = vrot.slane %v590, %v665
        %v667 = vmul.f32 %v570, %v666
        %v668 = vmul.f32 %v571, %v666
        %v669 = vmul.f32 %v572, %v666
        %v670 = vmul.f32 %v573, %v666
        %v671 = vmul.f32 %v574, %v666
        %v672 = vmul.f32 %v575, %v666
        %v673 = vmul.f32 %v576, %v666
        %v674 = vmul.f32 %v577, %v666
        %v675 = vadd.f32 %v655, %v667
        %v676 = vadd.f32 %v656, %v668
        %v677 = vadd.f32 %v657, %v669
        %v678 = vadd.f32 %v658, %v670
        %v679 = vadd.f32 %v659, %v671
        %v680 = vadd.f32 %v660, %v672
        %v681 = vadd.f32 %v661, %v673
        %v682 = vadd.f32 %v662, %v674
        %v683 = vpack.c.bf16 %v676, %v675
        %v684 = vpack.c.bf16 %v678, %v677
        %v685 = vpack.c.bf16 %v680, %v679
        %v686 = vpack.c.bf16 %v682, %v681
        %v687 = vld [vmem:[#allocation12] sm:$0xf]
        %v688 = vld [vmem:[#allocation12 + $0x4] sm:$0xf]
        %v689 = vld [vmem:[#allocation12 + $0x8] sm:$0xf]
        %v690 = vld [vmem:[#allocation12 + $0xc] sm:$0xf]
        %v695 = vunpack.c.l.b16 %v687
        %v696 = vunpack.c.l.b16 %v688
        %v697 = vunpack.c.l.b16 %v689
        %v698 = vunpack.c.l.b16 %v690
        %v699 = vpack.c.b16 %v696, %v695
        %v700 = vpack.c.b16 %v698, %v697
        %v704 = vsel %vm353, %v611, 0
        %v707 = vsel %vm353, %v612, 0
        %v710 = vsel %vm353, %v613, 0
        %v713 = vsel %vm353, %v614, 0
        %715 = vmatprep.subr.bf16.mxu0 0
        %716 = vmatpush1.bf16.msra.mxu0 %v699
        %717 = vmatprep.subr.bf16.mxu0 0
        %718 = vmatpush1.bf16.msra.mxu0 %v700
        %719 = vmatprep.subr.bf16.mxu0 0
        %720 = vmatpush1.bf16.msra.mxu0 0
        %721 = vmatprep.subr.bf16.mxu0 0
        %722 = vmatpush1.bf16.msra.mxu0 0
        %723 = vmatprep.subr.bf16.mxu0 0
        %724 = vmatpush1.bf16.msra.mxu0 0
        %725 = vmatprep.subr.bf16.mxu0 0
        %726 = vmatpush1.bf16.msra.mxu0 0
        %727 = vmatprep.subr.bf16.mxu0 0
        %728 = vmatpush1.bf16.msra.mxu0 0
        %729 = vmatprep.subr.bf16.mxu0 0
        %730 = vmatpush1.bf16.msra.mxu0 0
        %731 = vmatprep.subr.bf16.mxu0 0
        %732 = vmatpush1.bf16.msra.mxu0 0
        %733 = vmatprep.subr.bf16.mxu0 0
        %734 = vmatpush1.bf16.msra.mxu0 0
        %735 = vmatprep.subr.bf16.mxu0 0
        %736 = vmatpush1.bf16.msra.mxu0 0
        %737 = vmatprep.subr.bf16.mxu0 0
        %738 = vmatpush1.bf16.msra.mxu0 0
        %739 = vmatprep.subr.bf16.mxu0 0
        %740 = vmatpush1.bf16.msra.mxu0 0
        %741 = vmatprep.subr.bf16.mxu0 0
        %742 = vmatpush1.bf16.msra.mxu0 0
        %743 = vmatprep.subr.bf16.mxu0 0
        %744 = vmatpush1.bf16.msra.mxu0 0
        %745 = vmatprep.subr.bf16.mxu0 0
        %746 = vmatpush1.bf16.msra.mxu0 0
        %747 = vmatprep.mubr.bf16.mxu0 0
        %748 = vmatmul.mubr.bf16.gmra.mrb[0].mxu0 %v704
        %v749 = vpop.f32.mrb[0].mxu0
        %v750 = vadd.f32 0.0, %v749
        %v751 = vpop.f32.mrb[0].mxu0
        %v752 = vpop.f32.mrb[0].mxu0
        %v753 = vadd.f32 0.0, %v752
        %v754 = vpop.f32.mrb[0].mxu0
        %755 = vmatprep.mubr.bf16.mxu0 0
        %756 = vmatmul.mubr.bf16.gmra.mrb[0].mxu0 %v707
        %v757 = vpop.f32.mrb[0].mxu0
        %v758 = vadd.f32 0.0, %v757
        %v759 = vpop.f32.mrb[0].mxu0
        %v760 = vpop.f32.mrb[0].mxu0
        %v761 = vadd.f32 0.0, %v760
        %v762 = vpop.f32.mrb[0].mxu0
        %763 = vmatprep.mubr.bf16.mxu0 0
        %764 = vmatmul.mubr.bf16.gmra.mrb[0].mxu0 %v710
        %v765 = vpop.f32.mrb[0].mxu0
        %v766 = vadd.f32 0.0, %v765
        %v767 = vpop.f32.mrb[0].mxu0
        %v768 = vpop.f32.mrb[0].mxu0
        %v769 = vadd.f32 0.0, %v768
        %v770 = vpop.f32.mrb[0].mxu0
        %771 = vmatprep.mubr.bf16.mxu0 0
        %772 = vmatmul.mubr.bf16.gmra.mrb[0].mxu0 %v713
        %v773 = vpop.f32.mrb[0].mxu0
        %v774 = vadd.f32 0.0, %v773
        %v775 = vpop.f32.mrb[0].mxu0
        %v776 = vpop.f32.mrb[0].mxu0
        %v777 = vadd.f32 0.0, %v776
        %v778 = vpop.f32.mrb[0].mxu0
        %779 = vdwg.mxu0
        %780 = vst.msk [vmem:[#allocation2] sm:$0xff] %vm353, %v750
        %781 = vst.msk [vmem:[#allocation2 + $0x8] sm:$0xff] %vm353, %v753
        %782 = vst.msk [vmem:[#allocation2 + $0x10] sm:$0xff] %vm353, %v758
        %783 = vst.msk [vmem:[#allocation2 + $0x18] sm:$0xff] %vm353, %v761
        %784 = vst.msk [vmem:[#allocation2 + $0x20] sm:$0xff] %vm353, %v766
        %785 = vst.msk [vmem:[#allocation2 + $0x28] sm:$0xff] %vm353, %v769
        %786 = vst.msk [vmem:[#allocation2 + $0x30] sm:$0xff] %vm353, %v774
        %787 = vst.msk [vmem:[#allocation2 + $0x38] sm:$0xff] %vm353, %v777
        %v788 = vld [vmem:[#allocation13] sm:$0xf]
        %v789 = vld [vmem:[#allocation13 + $0x4] sm:$0xf]
        %v790 = vld [vmem:[#allocation13 + $0x8] sm:$0xf]
        %v791 = vld [vmem:[#allocation13 + $0xc] sm:$0xf]
        %v796 = vunpack.c.l.b16 %v788
        %v797 = vunpack.c.l.b16 %v789
        %v798 = vunpack.c.l.b16 %v790
        %v799 = vunpack.c.l.b16 %v791
        %v800 = vpack.c.b16 %v797, %v796
        %v801 = vpack.c.b16 %v799, %v798
        %v805 = vsel %vm353, %v647, 0
        %v808 = vsel %vm353, %v648, 0
        %v811 = vsel %vm353, %v649, 0
        %v814 = vsel %vm353, %v650, 0
        %816 = vmatprep.subr.bf16.mxu0 0
        %817 = vmatpush1.bf16.msra.mxu0 %v800
        %818 = vmatprep.subr.bf16.mxu0 0
        %819 = vmatpush1.bf16.msra.mxu0 %v801
        %820 = vmatprep.subr.bf16.mxu0 0
        %821 = vmatpush1.bf16.msra.mxu0 0
        %822 = vmatprep.subr.bf16.mxu0 0
        %823 = vmatpush1.bf16.msra.mxu0 0
        %824 = vmatprep.subr.bf16.mxu0 0
        %825 = vmatpush1.bf16.msra.mxu0 0
        %826 = vmatprep.subr.bf16.mxu0 0
        %827 = vmatpush1.bf16.msra.mxu0 0
        %828 = vmatprep.subr.bf16.mxu0 0
        %829 = vmatpush1.bf16.msra.mxu0 0
        %830 = vmatprep.subr.bf16.mxu0 0
        %831 = vmatpush1.bf16.msra.mxu0 0
        %832 = vmatprep.subr.bf16.mxu0 0
        %833 = vmatpush1.bf16.msra.mxu0 0
        %834 = vmatprep.subr.bf16.mxu0 0
        %835 = vmatpush1.bf16.msra.mxu0 0
        %836 = vmatprep.subr.bf16.mxu0 0
        %837 = vmatpush1.bf16.msra.mxu0 0
        %838 = vmatprep.subr.bf16.mxu0 0
        %839 = vmatpush1.bf16.msra.mxu0 0
        %840 = vmatprep.subr.bf16.mxu0 0
        %841 = vmatpush1.bf16.msra.mxu0 0
        %842 = vmatprep.subr.bf16.mxu0 0
        %843 = vmatpush1.bf16.msra.mxu0 0
        %844 = vmatprep.subr.bf16.mxu0 0
        %845 = vmatpush1.bf16.msra.mxu0 0
        %846 = vmatprep.subr.bf16.mxu0 0
        %847 = vmatpush1.bf16.msra.mxu0 0
        %848 = vmatprep.mubr.bf16.mxu0 0
        %849 = vmatmul.mubr.bf16.gmra.mrb[0].mxu0 %v805
        %v850 = vpop.f32.mrb[0].mxu0
        %v851 = vadd.f32 0.0, %v850
        %v852 = vpop.f32.mrb[0].mxu0
        %v853 = vpop.f32.mrb[0].mxu0
        %v854 = vadd.f32 0.0, %v853
        %v855 = vpop.f32.mrb[0].mxu0
        %856 = vmatprep.mubr.bf16.mxu0 0
        %857 = vmatmul.mubr.bf16.gmra.mrb[0].mxu0 %v808
        %v858 = vpop.f32.mrb[0].mxu0
        %v859 = vadd.f32 0.0, %v858
        %v860 = vpop.f32.mrb[0].mxu0
        %v861 = vpop.f32.mrb[0].mxu0
        %v862 = vadd.f32 0.0, %v861
        %v863 = vpop.f32.mrb[0].mxu0
        %864 = vmatprep.mubr.bf16.mxu0 0
        %865 = vmatmul.mubr.bf16.gmra.mrb[0].mxu0 %v811
        %v866 = vpop.f32.mrb[0].mxu0
        %v867 = vadd.f32 0.0, %v866
        %v868 = vpop.f32.mrb[0].mxu0
        %v869 = vpop.f32.mrb[0].mxu0
        %v870 = vadd.f32 0.0, %v869
        %v871 = vpop.f32.mrb[0].mxu0
        %872 = vmatprep.mubr.bf16.mxu0 0
        %873 = vmatmul.mubr.bf16.gmra.mrb[0].mxu0 %v814
        %v874 = vpop.f32.mrb[0].mxu0
        %v875 = vadd.f32 0.0, %v874
        %v876 = vpop.f32.mrb[0].mxu0
        %v877 = vpop.f32.mrb[0].mxu0
        %v878 = vadd.f32 0.0, %v877
        %v879 = vpop.f32.mrb[0].mxu0
        %880 = vdwg.mxu0
        %881 = vst.msk [vmem:[#allocation3] sm:$0xff] %vm353, %v851
        %882 = vst.msk [vmem:[#allocation3 + $0x8] sm:$0xff] %vm353, %v854
        %883 = vst.msk [vmem:[#allocation3 + $0x10] sm:$0xff] %vm353, %v859
        %884 = vst.msk [vmem:[#allocation3 + $0x18] sm:$0xff] %vm353, %v862
        %885 = vst.msk [vmem:[#allocation3 + $0x20] sm:$0xff] %vm353, %v867
        %886 = vst.msk [vmem:[#allocation3 + $0x28] sm:$0xff] %vm353, %v870
        %887 = vst.msk [vmem:[#allocation3 + $0x30] sm:$0xff] %vm353, %v875
        %888 = vst.msk [vmem:[#allocation3 + $0x38] sm:$0xff] %vm353, %v878
        loop: start=0, step=1, limit=8
        $region69: #{_lambda_.6} parent=43 // loop_pre_header
          _
        $region70: #{_lambda_.6} parent=43 // loop_header
          %s890 = sphi 0, %s894
          %p891 = scmp.ge.s32.totalorder %s890, 8
          %v895 = vphi -1e+30, %v1274
          %v896 = vphi 0.0, %v1289
          %v897 = vphi 0.0, %v1294
        $region71: #{_lambda_.6} parent=43 // loop_header_branch
          %893 = sbr.rel (%p891) target = $region75
        $region72: #{_lambda_.6} parent=43 // loop_body
          %s898 = ssub.s32 7, %s890
          %s899 = smul.u32 %s898, 8
          %s900 = scalar_lea.vmem [#allocation2], %s899
          %v901 = vld [vmem:[%s900] sm:$0xff]
          %s902 = scalar_lea.vmem [#allocation3], %s899
          %v903 = vld [vmem:[%s902] sm:$0xff]
          %v905 = vrot.slane %v901, 1
          %v907 = vadd.f32 %v352, %v905
          %v909 = vrot.slane %v907, 1
          %v911 = vmax.f32 %v895, %v909
          %v912 = vsub.f32 %v895, %v911
          %v913 = vmul.f32 %v912, 1.442695
          %v914 = vpow.pop %v913
          %v916 = vrot.slane %v911, 7
          %v918 = vsub.f32 %v907, %v916
          %v919 = vmul.f32 %v918, 1.442695
          %v920 = vpow.pop %v919
          %v921 = vmul.f32 %v896, %v914
          %v923 = vrot.slane %v920, 7
          %v925 = vmul.f32 %v903, %v923
          %v927 = vrot.slane %v925, 2
          %v929 = vadd.f32 %v921, %v927
          %v930 = vmul.f32 %v897, %v914
          %v931 = vrot.slane %v920, 1
          %v933 = vadd.f32 %v930, %v931
          %v934 = vsub.f32 %v895, %v352
          %v935 = vrot.slane %v901, 2
          %v937 = vmax.f32 %v934, %v935
          %v938 = vsub.f32 %v934, %v937
          %v939 = vmul.f32 %v938, 1.442695
          %v940 = vpow.pop %v939
          %v942 = vrot.slane %v937, 6
          %v944 = vsub.f32 %v901, %v942
          %v945 = vmul.f32 %v944, 1.442695
          %v946 = vpow.pop %v945
          %v947 = vmul.f32 %v896, %v940
          %v948 = vmul.f32 %v903, %v946
          %v950 = vrot.slane %v948, 2
          %v952 = vadd.f32 %v947, %v950
          %v953 = vmul.f32 %v897, %v940
          %v955 = vrot.slane %v946, 2
          %v957 = vadd.f32 %v953, %v955
          %v958 = vadd.f32 %v352, %v901
          %v960 = vrot.slane %v958, 1
          %v962 = vmax.f32 %v937, %v960
          %v963 = vsub.f32 %v937, %v962
          %v964 = vmul.f32 %v963, 1.442695
          %v965 = vpow.pop %v964
          %v967 = vrot.slane %v962, 7
          %v969 = vsub.f32 %v958, %v967
          %v970 = vmul.f32 %v969, 1.442695
          %v971 = vpow.pop %v970
          %v972 = vmul.f32 %v952, %v965
          %v973 = vmul.f32 %v903, %v971
          %v975 = vrot.slane %v973, 1
          %v977 = vadd.f32 %v972, %v975
          %v978 = vmul.f32 %v957, %v965
          %v980 = vrot.slane %v971, 1
          %v982 = vadd.f32 %v978, %v980
          %v983 = vsub.f32 %v937, %v352
          %v984 = vmax.f32 %v983, %v905
          %v985 = vsub.f32 %v983, %v984
          %v986 = vmul.f32 %v985, 1.442695
          %v987 = vpow.pop %v986
          %v989 = vrot.slane %v984, 7
          %v991 = vsub.f32 %v901, %v989
          %v992 = vmul.f32 %v991, 1.442695
          %v993 = vpow.pop %v992
          %v994 = vmul.f32 %v952, %v987
          %v995 = vmul.f32 %v903, %v993
          %v997 = vrot.slane %v995, 1
          %v999 = vadd.f32 %v994, %v997
          %v1000 = vmul.f32 %v957, %v987
          %v1002 = vrot.slane %v993, 1
          %v1004 = vadd.f32 %v1000, %v1002
          %v1005 = vrot.slane %v901, 7
          %v1007 = vadd.f32 %v352, %v1005
          %v1009 = vrot.slane %v1007, 1
          %v1011 = vmax.f32 %v984, %v1009
          %v1012 = vsub.f32 %v984, %v1011
          %v1013 = vmul.f32 %v1012, 1.442695
          %v1014 = vpow.pop %v1013
          %v1016 = vrot.slane %v1011, 7
          %v1018 = vsub.f32 %v1007, %v1016
          %v1019 = vmul.f32 %v1018, 1.442695
          %v1020 = vpow.pop %v1019
          %v1021 = vmul.f32 %v999, %v1014
          %v1023 = vrot.slane %v1020, 1
          %v1025 = vmul.f32 %v903, %v1023
          %v1026 = vadd.f32 %v1021, %v1025
          %v1027 = vmul.f32 %v1004, %v1014
          %v1028 = vadd.f32 %v1027, %v1023
          %v1029 = vsub.f32 %v984, %v352
          %v1030 = vmax.f32 %v1029, %v901
          %v1031 = vsub.f32 %v1029, %v1030
          %v1032 = vmul.f32 %v1031, 1.442695
          %v1033 = vpow.pop %v1032
          %v1034 = vsub.f32 %v901, %v1030
          %v1035 = vmul.f32 %v1034, 1.442695
          %v1036 = vpow.pop %v1035
          %v1037 = vmul.f32 %v999, %v1033
          %v1038 = vmul.f32 %v903, %v1036
          %v1039 = vadd.f32 %v1037, %v1038
          %v1040 = vmul.f32 %v1004, %v1033
          %v1041 = vadd.f32 %v1040, %v1036
          %v1042 = vrot.slane %v901, 6
          %v1044 = vadd.f32 %v352, %v1042
          %v1046 = vrot.slane %v1044, 1
          %v1048 = vmax.f32 %v1030, %v1046
          %v1049 = vsub.f32 %v1030, %v1048
          %v1050 = vmul.f32 %v1049, 1.442695
          %v1051 = vpow.pop %v1050
          %v1053 = vrot.slane %v1048, 7
          %v1055 = vsub.f32 %v1044, %v1053
          %v1056 = vmul.f32 %v1055, 1.442695
          %v1057 = vpow.pop %v1056
          %v1058 = vmul.f32 %v1039, %v1051
          %v1060 = vrot.slane %v1057, 2
          %v1062 = vmul.f32 %v903, %v1060
          %v1064 = vrot.slane %v1062, 7
          %v1066 = vadd.f32 %v1058, %v1064
          %v1067 = vmul.f32 %v1041, %v1051
          %v1068 = vrot.slane %v1057, 1
          %v1070 = vadd.f32 %v1067, %v1068
          %v1071 = vsub.f32 %v1030, %v352
          %v1072 = vmax.f32 %v1071, %v1005
          %v1073 = vsub.f32 %v1071, %v1072
          %v1074 = vmul.f32 %v1073, 1.442695
          %v1075 = vpow.pop %v1074
          %v1077 = vrot.slane %v1072, 1
          %v1079 = vsub.f32 %v901, %v1077
          %v1080 = vmul.f32 %v1079, 1.442695
          %v1081 = vpow.pop %v1080
          %v1082 = vmul.f32 %v1039, %v1075
          %v1083 = vmul.f32 %v903, %v1081
          %v1085 = vrot.slane %v1083, 7
          %v1087 = vadd.f32 %v1082, %v1085
          %v1088 = vmul.f32 %v1041, %v1075
          %v1090 = vrot.slane %v1081, 7
          %v1092 = vadd.f32 %v1088, %v1090
          %v1093 = vrot.slane %v901, 5
          %v1095 = vadd.f32 %v352, %v1093
          %v1097 = vrot.slane %v1095, 1
          %v1099 = vmax.f32 %v1072, %v1097
          %v1100 = vsub.f32 %v1072, %v1099
          %v1101 = vmul.f32 %v1100, 1.442695
          %v1102 = vpow.pop %v1101
          %v1104 = vrot.slane %v1099, 7
          %v1106 = vsub.f32 %v1095, %v1104
          %v1107 = vmul.f32 %v1106, 1.442695
          %v1108 = vpow.pop %v1107
          %v1109 = vmul.f32 %v1087, %v1102
          %v1111 = vrot.slane %v1108, 3
          %v1113 = vmul.f32 %v903, %v1111
          %v1115 = vrot.slane %v1113, 6
          %v1117 = vadd.f32 %v1109, %v1115
          %v1118 = vmul.f32 %v1092, %v1102
          %v1119 = vrot.slane %v1108, 1
          %v1121 = vadd.f32 %v1118, %v1119
          %v1122 = vsub.f32 %v1072, %v352
          %v1123 = vmax.f32 %v1122, %v1042
          %v1124 = vsub.f32 %v1122, %v1123
          %v1125 = vmul.f32 %v1124, 1.442695
          %v1126 = vpow.pop %v1125
          %v1128 = vrot.slane %v1123, 2
          %v1130 = vsub.f32 %v901, %v1128
          %v1131 = vmul.f32 %v1130, 1.442695
          %v1132 = vpow.pop %v1131
          %v1133 = vmul.f32 %v1087, %v1126
          %v1134 = vmul.f32 %v903, %v1132
          %v1136 = vrot.slane %v1134, 6
          %v1138 = vadd.f32 %v1133, %v1136
          %v1139 = vmul.f32 %v1092, %v1126
          %v1141 = vrot.slane %v1132, 6
          %v1143 = vadd.f32 %v1139, %v1141
          %v1144 = vrot.slane %v901, 4
          %v1146 = vadd.f32 %v352, %v1144
          %v1148 = vrot.slane %v1146, 1
          %v1150 = vmax.f32 %v1123, %v1148
          %v1151 = vsub.f32 %v1123, %v1150
          %v1152 = vmul.f32 %v1151, 1.442695
          %v1153 = vpow.pop %v1152
          %v1155 = vrot.slane %v1150, 7
          %v1157 = vsub.f32 %v1146, %v1155
          %v1158 = vmul.f32 %v1157, 1.442695
          %v1159 = vpow.pop %v1158
          %v1160 = vmul.f32 %v1138, %v1153
          %v1162 = vrot.slane %v1159, 4
          %v1164 = vmul.f32 %v903, %v1162
          %v1166 = vrot.slane %v1164, 5
          %v1168 = vadd.f32 %v1160, %v1166
          %v1169 = vmul.f32 %v1143, %v1153
          %v1170 = vrot.slane %v1159, 1
          %v1172 = vadd.f32 %v1169, %v1170
          %v1173 = vsub.f32 %v1123, %v352
          %v1174 = vmax.f32 %v1173, %v1093
          %v1175 = vsub.f32 %v1173, %v1174
          %v1176 = vmul.f32 %v1175, 1.442695
          %v1177 = vpow.pop %v1176
          %v1179 = vrot.slane %v1174, 3
          %v1181 = vsub.f32 %v901, %v1179
          %v1182 = vmul.f32 %v1181, 1.442695
          %v1183 = vpow.pop %v1182
          %v1184 = vmul.f32 %v1138, %v1177
          %v1185 = vmul.f32 %v903, %v1183
          %v1187 = vrot.slane %v1185, 5
          %v1189 = vadd.f32 %v1184, %v1187
          %v1190 = vmul.f32 %v1143, %v1177
          %v1192 = vrot.slane %v1183, 5
          %v1194 = vadd.f32 %v1190, %v1192
          %v1195 = vrot.slane %v901, 3
          %v1197 = vadd.f32 %v352, %v1195
          %v1199 = vrot.slane %v1197, 1
          %v1201 = vmax.f32 %v1174, %v1199
          %v1202 = vsub.f32 %v1174, %v1201
          %v1203 = vmul.f32 %v1202, 1.442695
          %v1204 = vpow.pop %v1203
          %v1206 = vrot.slane %v1201, 7
          %v1208 = vsub.f32 %v1197, %v1206
          %v1209 = vmul.f32 %v1208, 1.442695
          %v1210 = vpow.pop %v1209
          %v1211 = vmul.f32 %v1189, %v1204
          %v1213 = vrot.slane %v1210, 5
          %v1215 = vmul.f32 %v903, %v1213
          %v1217 = vrot.slane %v1215, 4
          %v1219 = vadd.f32 %v1211, %v1217
          %v1220 = vmul.f32 %v1194, %v1204
          %v1221 = vrot.slane %v1210, 1
          %v1223 = vadd.f32 %v1220, %v1221
          %v1224 = vsub.f32 %v1174, %v352
          %v1225 = vmax.f32 %v1224, %v1144
          %v1226 = vsub.f32 %v1224, %v1225
          %v1227 = vmul.f32 %v1226, 1.442695
          %v1228 = vpow.pop %v1227
          %v1230 = vrot.slane %v1225, 4
          %v1232 = vsub.f32 %v901, %v1230
          %v1233 = vmul.f32 %v1232, 1.442695
          %v1234 = vpow.pop %v1233
          %v1235 = vmul.f32 %v1189, %v1228
          %v1236 = vmul.f32 %v903, %v1234
          %v1238 = vrot.slane %v1236, 4
          %v1240 = vadd.f32 %v1235, %v1238
          %v1241 = vmul.f32 %v1194, %v1228
          %v1243 = vrot.slane %v1234, 4
          %v1245 = vadd.f32 %v1241, %v1243
          %v1246 = vadd.f32 %v352, %v935
          %v1248 = vrot.slane %v1246, 1
          %v1250 = vmax.f32 %v1225, %v1248
          %v1251 = vsub.f32 %v1225, %v1250
          %v1252 = vmul.f32 %v1251, 1.442695
          %v1253 = vpow.pop %v1252
          %v1255 = vrot.slane %v1250, 7
          %v1257 = vsub.f32 %v1246, %v1255
          %v1258 = vmul.f32 %v1257, 1.442695
          %v1259 = vpow.pop %v1258
          %v1260 = vmul.f32 %v1240, %v1253
          %v1262 = vrot.slane %v1259, 6
          %v1264 = vmul.f32 %v903, %v1262
          %v1266 = vrot.slane %v1264, 3
          %v1268 = vadd.f32 %v1260, %v1266
          %v1269 = vmul.f32 %v1245, %v1253
          %v1270 = vrot.slane %v1259, 1
          %v1272 = vadd.f32 %v1269, %v1270
          %v1273 = vsub.f32 %v1225, %v352
          %v1274 = vmax.f32 %v1273, %v1195
          %v1275 = vsub.f32 %v1273, %v1274
          %v1276 = vmul.f32 %v1275, 1.442695
          %v1277 = vpow.pop %v1276
          %v1279 = vrot.slane %v1274, 5
          %v1281 = vsub.f32 %v901, %v1279
          %v1282 = vmul.f32 %v1281, 1.442695
          %v1283 = vpow.pop %v1282
          %v1284 = vmul.f32 %v1240, %v1277
          %v1285 = vmul.f32 %v903, %v1283
          %v1287 = vrot.slane %v1285, 3
          %v1289 = vadd.f32 %v1284, %v1287
          %v1290 = vmul.f32 %v1245, %v1277
          %v1292 = vrot.slane %v1283, 3
          %v1294 = vadd.f32 %v1290, %v1292
          %v1295 = vrot.slane %v1250, 5
          %v1297 = vrot.slane %v1201, 4
          %v1299 = vrot.slane %v1150, 3
          %v1301 = vrot.slane %v1099, 2
          %v1303 = vrot.slane %v1048, 1
          %v1305 = vrot.slane %v911, 6
          %vm1307 = vcmask 1040384
          %v1308 = vsel %vm1307, %v1295, %v1297
          %vm1309 = vcmask 1041408
          %v1310 = vsel %vm1309, %v1308, %v1299
          %vm1311 = vcmask 1042432
          %v1312 = vsel %vm1311, %v1310, %v1301
          %vm1313 = vcmask 1043456
          %v1314 = vsel %vm1313, %v1312, %v1303
          %vm1315 = vcmask 1044480
          %v1316 = vsel %vm1315, %v1314, %v1011
          %vm1317 = vcmask 1045504
          %v1318 = vsel %vm1317, %v1316, %v967
          %vm1319 = vcmask 1046528
          %v1320 = vsel %vm1319, %v1318, %v1305
          %s1321 = scalar_lea.vmem [#allocation4], %s899
          %1322 = vst.msk [vmem:[%s1321] sm:$0xff] %vm353, %v1320
          %v1324 = vrot.slane %v1268, 5
          %v1327 = vrot.slane %v1219, 4
          %v1330 = vrot.slane %v1168, 3
          %v1333 = vrot.slane %v1117, 2
          %v1336 = vrot.slane %v1066, 1
          %v1339 = vrot.slane %v977, 7
          %v1342 = vrot.slane %v929, 6
          %v1344 = vsel %vm1307, %v1324, %v1327
          %v1345 = vsel %vm1309, %v1344, %v1330
          %v1346 = vsel %vm1311, %v1345, %v1333
          %v1347 = vsel %vm1313, %v1346, %v1336
          %v1348 = vsel %vm1315, %v1347, %v1026
          %v1349 = vsel %vm1317, %v1348, %v1339
          %v1350 = vsel %vm1319, %v1349, %v1342
          %s1351 = scalar_lea.vmem [#allocation5], %s899
          %1352 = vst.msk [vmem:[%s1351] sm:$0xff] %vm353, %v1350
          %v1354 = vrot.slane %v1272, 5
          %v1357 = vrot.slane %v1223, 4
          %v1360 = vrot.slane %v1172, 3
          %v1363 = vrot.slane %v1121, 2
          %v1366 = vrot.slane %v1070, 1
          %v1369 = vrot.slane %v982, 7
          %v1372 = vrot.slane %v933, 6
          %v1374 = vsel %vm1307, %v1354, %v1357
          %v1375 = vsel %vm1309, %v1374, %v1360
          %v1376 = vsel %vm1311, %v1375, %v1363
          %v1377 = vsel %vm1313, %v1376, %v1366
          %v1378 = vsel %vm1315, %v1377, %v1028
          %v1379 = vsel %vm1317, %v1378, %v1369
          %v1380 = vsel %vm1319, %v1379, %v1372
          %s1381 = scalar_lea.vmem [#allocation6], %s899
          %1382 = vst.msk [vmem:[%s1381] sm:$0xff] %vm353, %v1380
        $region73: #{_lambda_.6} parent=43 // loop_footer
          %s894 = sadd.s32 1, %s890
        $region74: #{_lambda_.6} parent=43 // loop_footer_branch
          %889 = sbr.rel target = $region70
        $region75: #{_lambda_.6} parent=43 // loop_exit
          _
        loop: start=0, step=1, limit=8
        $region76: #{_lambda_.6} parent=43 // loop_pre_header
          _
        $region77: #{_lambda_.6} parent=43 // loop_header
          %s1384 = sphi 0, %s1388
          %p1385 = scmp.ge.s32.totalorder %s1384, 8
          %v1389 = vphi -1e+30, %v1746
          %v1390 = vphi 0.0, %v1761
          %v1391 = vphi 0.0, %v1766
        $region78: #{_lambda_.6} parent=43 // loop_header_branch
          %1387 = sbr.rel (%p1385) target = $region82
        $region79: #{_lambda_.6} parent=43 // loop_body
          %s1392 = smul.u32 %s1384, 8
          %s1393 = scalar_lea.vmem [#allocation2], %s1392
          %v1394 = vld [vmem:[%s1393] sm:$0xff]
          %s1395 = scalar_lea.vmem [#allocation3], %s1392
          %v1396 = vld [vmem:[%s1395] sm:$0xff]
          %s1397 = scalar_lea.vmem [#allocation4], %s1392
          %v1398 = vld [vmem:[%s1397] sm:$0xff]
          %s1399 = scalar_lea.vmem [#allocation5], %s1392
          %v1400 = vld [vmem:[%s1399] sm:$0xff]
          %s1401 = scalar_lea.vmem [#allocation6], %s1392
          %v1402 = vld [vmem:[%s1401] sm:$0xff]
          %v1404 = vrot.slane %v1398, 3
          %v1406 = vmax.f32 %v1389, %v1404
          %v1407 = vsub.f32 %v1389, %v1406
          %v1408 = vmul.f32 %v1407, 1.442695
          %v1409 = vpow.pop %v1408
          %v1411 = vrot.slane %v1406, 5
          %v1413 = vsub.f32 %v1398, %v1411
          %v1414 = vmul.f32 %v1413, 1.442695
          %v1415 = vpow.pop %v1414
          %v1416 = vmul.f32 %v1390, %v1409
          %v1417 = vmul.f32 %v1400, %v1415
          %v1419 = vrot.slane %v1417, 3
          %v1421 = vadd.f32 %v1416, %v1419
          %v1422 = vmul.f32 %v1391, %v1409
          %v1423 = vmul.f32 %v1402, %v1415
          %v1425 = vrot.slane %v1423, 3
          %v1427 = vadd.f32 %v1422, %v1425
          %v1428 = vsub.f32 %v1389, %v352
          %v1430 = vrot.slane %v1394, 3
          %v1432 = vmax.f32 %v1428, %v1430
          %v1433 = vsub.f32 %v1428, %v1432
          %v1434 = vmul.f32 %v1433, 1.442695
          %v1435 = vpow.pop %v1434
          %v1437 = vrot.slane %v1432, 5
          %v1439 = vsub.f32 %v1394, %v1437
          %v1440 = vmul.f32 %v1439, 1.442695
          %v1441 = vpow.pop %v1440
          %v1442 = vmul.f32 %v1390, %v1435
          %v1443 = vmul.f32 %v1396, %v1441
          %v1445 = vrot.slane %v1443, 3
          %v1447 = vadd.f32 %v1442, %v1445
          %v1448 = vmul.f32 %v1391, %v1435
          %v1450 = vrot.slane %v1441, 3
          %v1452 = vadd.f32 %v1448, %v1450
          %v1453 = vrot.slane %v1398, 4
          %v1455 = vmax.f32 %v1432, %v1453
          %v1456 = vsub.f32 %v1432, %v1455
          %v1457 = vmul.f32 %v1456, 1.442695
          %v1458 = vpow.pop %v1457
          %v1460 = vrot.slane %v1455, 4
          %v1462 = vsub.f32 %v1398, %v1460
          %v1463 = vmul.f32 %v1462, 1.442695
          %v1464 = vpow.pop %v1463
          %v1465 = vmul.f32 %v1447, %v1458
          %v1466 = vmul.f32 %v1400, %v1464
          %v1468 = vrot.slane %v1466, 4
          %v1470 = vadd.f32 %v1465, %v1468
          %v1471 = vmul.f32 %v1452, %v1458
          %v1472 = vmul.f32 %v1402, %v1464
          %v1474 = vrot.slane %v1472, 4
          %v1476 = vadd.f32 %v1471, %v1474
          %v1477 = vsub.f32 %v1432, %v352
          %v1478 = vrot.slane %v1394, 4
          %v1480 = vmax.f32 %v1477, %v1478
          %v1481 = vsub.f32 %v1477, %v1480
          %v1482 = vmul.f32 %v1481, 1.442695
          %v1483 = vpow.pop %v1482
          %v1485 = vrot.slane %v1480, 4
          %v1487 = vsub.f32 %v1394, %v1485
          %v1488 = vmul.f32 %v1487, 1.442695
          %v1489 = vpow.pop %v1488
          %v1490 = vmul.f32 %v1447, %v1483
          %v1491 = vmul.f32 %v1396, %v1489
          %v1493 = vrot.slane %v1491, 4
          %v1495 = vadd.f32 %v1490, %v1493
          %v1496 = vmul.f32 %v1452, %v1483
          %v1498 = vrot.slane %v1489, 4
          %v1500 = vadd.f32 %v1496, %v1498
          %v1501 = vrot.slane %v1398, 5
          %v1503 = vmax.f32 %v1480, %v1501
          %v1504 = vsub.f32 %v1480, %v1503
          %v1505 = vmul.f32 %v1504, 1.442695
          %v1506 = vpow.pop %v1505
          %v1508 = vrot.slane %v1503, 3
          %v1510 = vsub.f32 %v1398, %v1508
          %v1511 = vmul.f32 %v1510, 1.442695
          %v1512 = vpow.pop %v1511
          %v1513 = vmul.f32 %v1495, %v1506
          %v1514 = vmul.f32 %v1400, %v1512
          %v1516 = vrot.slane %v1514, 5
          %v1518 = vadd.f32 %v1513, %v1516
          %v1519 = vmul.f32 %v1500, %v1506
          %v1520 = vmul.f32 %v1402, %v1512
          %v1522 = vrot.slane %v1520, 5
          %v1524 = vadd.f32 %v1519, %v1522
          %v1525 = vsub.f32 %v1480, %v352
          %v1526 = vrot.slane %v1394, 5
          %v1528 = vmax.f32 %v1525, %v1526
          %v1529 = vsub.f32 %v1525, %v1528
          %v1530 = vmul.f32 %v1529, 1.442695
          %v1531 = vpow.pop %v1530
          %v1533 = vrot.slane %v1528, 3
          %v1535 = vsub.f32 %v1394, %v1533
          %v1536 = vmul.f32 %v1535, 1.442695
          %v1537 = vpow.pop %v1536
          %v1538 = vmul.f32 %v1495, %v1531
          %v1539 = vmul.f32 %v1396, %v1537
          %v1541 = vrot.slane %v1539, 5
          %v1543 = vadd.f32 %v1538, %v1541
          %v1544 = vmul.f32 %v1500, %v1531
          %v1546 = vrot.slane %v1537, 5
          %v1548 = vadd.f32 %v1544, %v1546
          %v1549 = vrot.slane %v1398, 6
          %v1551 = vmax.f32 %v1528, %v1549
          %v1552 = vsub.f32 %v1528, %v1551
          %v1553 = vmul.f32 %v1552, 1.442695
          %v1554 = vpow.pop %v1553
          %v1556 = vrot.slane %v1551, 2
          %v1558 = vsub.f32 %v1398, %v1556
          %v1559 = vmul.f32 %v1558, 1.442695
          %v1560 = vpow.pop %v1559
          %v1561 = vmul.f32 %v1543, %v1554
          %v1562 = vmul.f32 %v1400, %v1560
          %v1564 = vrot.slane %v1562, 6
          %v1566 = vadd.f32 %v1561, %v1564
          %v1567 = vmul.f32 %v1548, %v1554
          %v1568 = vmul.f32 %v1402, %v1560
          %v1570 = vrot.slane %v1568, 6
          %v1572 = vadd.f32 %v1567, %v1570
          %v1573 = vsub.f32 %v1528, %v352
          %v1574 = vrot.slane %v1394, 6
          %v1576 = vmax.f32 %v1573, %v1574
          %v1577 = vsub.f32 %v1573, %v1576
          %v1578 = vmul.f32 %v1577, 1.442695
          %v1579 = vpow.pop %v1578
          %v1581 = vrot.slane %v1576, 2
          %v1583 = vsub.f32 %v1394, %v1581
          %v1584 = vmul.f32 %v1583, 1.442695
          %v1585 = vpow.pop %v1584
          %v1586 = vmul.f32 %v1543, %v1579
          %v1587 = vmul.f32 %v1396, %v1585
          %v1589 = vrot.slane %v1587, 6
          %v1591 = vadd.f32 %v1586, %v1589
          %v1592 = vmul.f32 %v1548, %v1579
          %v1594 = vrot.slane %v1585, 6
          %v1596 = vadd.f32 %v1592, %v1594
          %v1597 = vrot.slane %v1398, 7
          %v1599 = vmax.f32 %v1576, %v1597
          %v1600 = vsub.f32 %v1576, %v1599
          %v1601 = vmul.f32 %v1600, 1.442695
          %v1602 = vpow.pop %v1601
          %v1604 = vrot.slane %v1599, 1
          %v1606 = vsub.f32 %v1398, %v1604
          %v1607 = vmul.f32 %v1606, 1.442695
          %v1608 = vpow.pop %v1607
          %v1609 = vmul.f32 %v1591, %v1602
          %v1610 = vmul.f32 %v1400, %v1608
          %v1612 = vrot.slane %v1610, 7
          %v1614 = vadd.f32 %v1609, %v1612
          %v1615 = vmul.f32 %v1596, %v1602
          %v1616 = vmul.f32 %v1402, %v1608
          %v1618 = vrot.slane %v1616, 7
          %v1620 = vadd.f32 %v1615, %v1618
          %v1621 = vsub.f32 %v1576, %v352
          %v1622 = vrot.slane %v1394, 7
          %v1624 = vmax.f32 %v1621, %v1622
          %v1625 = vsub.f32 %v1621, %v1624
          %v1626 = vmul.f32 %v1625, 1.442695
          %v1627 = vpow.pop %v1626
          %v1629 = vrot.slane %v1624, 1
          %v1631 = vsub.f32 %v1394, %v1629
          %v1632 = vmul.f32 %v1631, 1.442695
          %v1633 = vpow.pop %v1632
          %v1634 = vmul.f32 %v1591, %v1627
          %v1635 = vmul.f32 %v1396, %v1633
          %v1637 = vrot.slane %v1635, 7
          %v1639 = vadd.f32 %v1634, %v1637
          %v1640 = vmul.f32 %v1596, %v1627
          %v1642 = vrot.slane %v1633, 7
          %v1644 = vadd.f32 %v1640, %v1642
          %v1645 = vmax.f32 %v1624, %v1398
          %v1646 = vsub.f32 %v1624, %v1645
          %v1647 = vmul.f32 %v1646, 1.442695
          %v1648 = vpow.pop %v1647
          %v1649 = vsub.f32 %v1398, %v1645
          %v1650 = vmul.f32 %v1649, 1.442695
          %v1651 = vpow.pop %v1650
          %v1652 = vmul.f32 %v1639, %v1648
          %v1653 = vmul.f32 %v1400, %v1651
          %v1654 = vadd.f32 %v1652, %v1653
          %v1655 = vmul.f32 %v1644, %v1648
          %v1656 = vmul.f32 %v1402, %v1651
          %v1657 = vadd.f32 %v1655, %v1656
          %v1658 = vsub.f32 %v1624, %v352
          %v1659 = vmax.f32 %v1658, %v1394
          %v1660 = vsub.f32 %v1658, %v1659
          %v1661 = vmul.f32 %v1660, 1.442695
          %v1662 = vpow.pop %v1661
          %v1663 = vsub.f32 %v1394, %v1659
          %v1664 = vmul.f32 %v1663, 1.442695
          %v1665 = vpow.pop %v1664
          %v1666 = vmul.f32 %v1639, %v1662
          %v1667 = vmul.f32 %v1396, %v1665
          %v1668 = vadd.f32 %v1666, %v1667
          %v1669 = vmul.f32 %v1644, %v1662
          %v1670 = vadd.f32 %v1669, %v1665
          %v1671 = vrot.slane %v1398, 1
          %v1673 = vmax.f32 %v1659, %v1671
          %v1674 = vsub.f32 %v1659, %v1673
          %v1675 = vmul.f32 %v1674, 1.442695
          %v1676 = vpow.pop %v1675
          %v1678 = vrot.slane %v1673, 7
          %v1680 = vsub.f32 %v1398, %v1678
          %v1681 = vmul.f32 %v1680, 1.442695
          %v1682 = vpow.pop %v1681
          %v1683 = vmul.f32 %v1668, %v1676
          %v1684 = vmul.f32 %v1400, %v1682
          %v1686 = vrot.slane %v1684, 1
          %v1688 = vadd.f32 %v1683, %v1686
          %v1689 = vmul.f32 %v1670, %v1676
          %v1690 = vmul.f32 %v1402, %v1682
          %v1692 = vrot.slane %v1690, 1
          %v1694 = vadd.f32 %v1689, %v1692
          %v1695 = vsub.f32 %v1659, %v352
          %v1696 = vrot.slane %v1394, 1
          %v1698 = vmax.f32 %v1695, %v1696
          %v1699 = vsub.f32 %v1695, %v1698
          %v1700 = vmul.f32 %v1699, 1.442695
          %v1701 = vpow.pop %v1700
          %v1703 = vrot.slane %v1698, 7
          %v1705 = vsub.f32 %v1394, %v1703
          %v1706 = vmul.f32 %v1705, 1.442695
          %v1707 = vpow.pop %v1706
          %v1708 = vmul.f32 %v1668, %v1701
          %v1709 = vmul.f32 %v1396, %v1707
          %v1711 = vrot.slane %v1709, 1
          %v1713 = vadd.f32 %v1708, %v1711
          %v1714 = vmul.f32 %v1670, %v1701
          %v1716 = vrot.slane %v1707, 1
          %v1718 = vadd.f32 %v1714, %v1716
          %v1719 = vrot.slane %v1398, 2
          %v1721 = vmax.f32 %v1698, %v1719
          %v1722 = vsub.f32 %v1698, %v1721
          %v1723 = vmul.f32 %v1722, 1.442695
          %v1724 = vpow.pop %v1723
          %v1726 = vrot.slane %v1721, 6
          %v1728 = vsub.f32 %v1398, %v1726
          %v1729 = vmul.f32 %v1728, 1.442695
          %v1730 = vpow.pop %v1729
          %v1731 = vmul.f32 %v1713, %v1724
          %v1732 = vmul.f32 %v1400, %v1730
          %v1734 = vrot.slane %v1732, 2
          %v1736 = vadd.f32 %v1731, %v1734
          %v1737 = vmul.f32 %v1718, %v1724
          %v1738 = vmul.f32 %v1402, %v1730
          %v1740 = vrot.slane %v1738, 2
          %v1742 = vadd.f32 %v1737, %v1740
          %v1743 = vsub.f32 %v1698, %v352
          %v1744 = vrot.slane %v1394, 2
          %v1746 = vmax.f32 %v1743, %v1744
          %v1747 = vsub.f32 %v1743, %v1746
          %v1748 = vmul.f32 %v1747, 1.442695
          %v1749 = vpow.pop %v1748
          %v1751 = vrot.slane %v1746, 6
          %v1753 = vsub.f32 %v1394, %v1751
          %v1754 = vmul.f32 %v1753, 1.442695
          %v1755 = vpow.pop %v1754
          %v1756 = vmul.f32 %v1713, %v1749
          %v1757 = vmul.f32 %v1396, %v1755
          %v1759 = vrot.slane %v1757, 2
          %v1761 = vadd.f32 %v1756, %v1759
          %v1762 = vmul.f32 %v1718, %v1749
          %v1764 = vrot.slane %v1755, 2
          %v1766 = vadd.f32 %v1762, %v1764
          %v1768 = vrot.slane %v1421, 5
          %v1771 = vrot.slane %v1470, 4
          %v1774 = vrot.slane %v1518, 3
          %v1777 = vrot.slane %v1566, 2
          %v1780 = vrot.slane %v1614, 1
          %v1783 = vrot.slane %v1688, 7
          %v1786 = vrot.slane %v1736, 6
          %vm1788 = vcmask 1040384
          %v1789 = vsel %vm1788, %v1768, %v1771
          %vm1790 = vcmask 1041408
          %v1791 = vsel %vm1790, %v1789, %v1774
          %vm1792 = vcmask 1042432
          %v1793 = vsel %vm1792, %v1791, %v1777
          %vm1794 = vcmask 1043456
          %v1795 = vsel %vm1794, %v1793, %v1780
          %vm1796 = vcmask 1044480
          %v1797 = vsel %vm1796, %v1795, %v1654
          %vm1798 = vcmask 1045504
          %v1799 = vsel %vm1798, %v1797, %v1783
          %vm1800 = vcmask 1046528
          %v1801 = vsel %vm1800, %v1799, %v1786
          %1802 = vst.msk [vmem:[%s1399] sm:$0xff] %vm353, %v1801
          %v1804 = vrot.slane %v1427, 5
          %v1807 = vrot.slane %v1476, 4
          %v1810 = vrot.slane %v1524, 3
          %v1813 = vrot.slane %v1572, 2
          %v1816 = vrot.slane %v1620, 1
          %v1819 = vrot.slane %v1694, 7
          %v1822 = vrot.slane %v1742, 6
          %v1824 = vsel %vm1788, %v1804, %v1807
          %v1825 = vsel %vm1790, %v1824, %v1810
          %v1826 = vsel %vm1792, %v1825, %v1813
          %v1827 = vsel %vm1794, %v1826, %v1816
          %v1828 = vsel %vm1796, %v1827, %v1657
          %v1829 = vsel %vm1798, %v1828, %v1819
          %v1830 = vsel %vm1800, %v1829, %v1822
          %1831 = vst.msk [vmem:[%s1401] sm:$0xff] %vm353, %v1830
        $region80: #{_lambda_.6} parent=43 // loop_footer
          %s1388 = sadd.s32 1, %s1384
        $region81: #{_lambda_.6} parent=43 // loop_footer_branch
          %1383 = sbr.rel target = $region77
        $region82: #{_lambda_.6} parent=43 // loop_exit
          _
        %v1832 = vld [vmem:[#allocation5] sm:$0xff]
        %v1833 = vld [vmem:[#allocation5 + $0x8] sm:$0xff]
        %v1834 = vld [vmem:[#allocation5 + $0x10] sm:$0xff]
        %v1835 = vld [vmem:[#allocation5 + $0x18] sm:$0xff]
        %v1836 = vld [vmem:[#allocation5 + $0x20] sm:$0xff]
        %v1837 = vld [vmem:[#allocation5 + $0x28] sm:$0xff]
        %v1838 = vld [vmem:[#allocation5 + $0x30] sm:$0xff]
        %v1839 = vld [vmem:[#allocation5 + $0x38] sm:$0xff]
        %v1840 = vld [vmem:[#allocation6] sm:$0xff]
        %v1841 = vld [vmem:[#allocation6 + $0x8] sm:$0xff]
        %v1842 = vld [vmem:[#allocation6 + $0x10] sm:$0xff]
        %v1843 = vld [vmem:[#allocation6 + $0x18] sm:$0xff]
        %v1844 = vld [vmem:[#allocation6 + $0x20] sm:$0xff]
        %v1845 = vld [vmem:[#allocation6 + $0x28] sm:$0xff]
        %v1846 = vld [vmem:[#allocation6 + $0x30] sm:$0xff]
        %v1847 = vld [vmem:[#allocation6 + $0x38] sm:$0xff]
        %v1848 = vrcp.pop %v1840
        %v1849 = vmul.f32 %v1832, %v1848
        %v1850 = vrcp.pop %v1841
        %v1851 = vmul.f32 %v1833, %v1850
        %v1852 = vrcp.pop %v1842
        %v1853 = vmul.f32 %v1834, %v1852
        %v1854 = vrcp.pop %v1843
        %v1855 = vmul.f32 %v1835, %v1854
        %v1856 = vrcp.pop %v1844
        %v1857 = vmul.f32 %v1836, %v1856
        %v1858 = vrcp.pop %v1845
        %v1859 = vmul.f32 %v1837, %v1858
        %v1860 = vrcp.pop %v1846
        %v1861 = vmul.f32 %v1838, %v1860
        %v1862 = vrcp.pop %v1847
        %v1863 = vmul.f32 %v1839, %v1862
        %v1864 = vld [vmem:[#allocation15] sm:$0xf]
        %v1865 = vld [vmem:[#allocation15 + $0x4] sm:$0xf]
        %v1866 = vld [vmem:[#allocation15 + $0x8] sm:$0xf]
        %v1867 = vld [vmem:[#allocation15 + $0xc] sm:$0xf]
        %v1872 = vunpack.c.l.b16 %v1864
        %v1873 = vunpack.c.l.b16 %v1865
        %v1874 = vunpack.c.l.b16 %v1866
        %v1875 = vunpack.c.l.b16 %v1867
        %v1876 = vpack.c.b16 %v1873, %v1872
        %v1877 = vpack.c.b16 %v1875, %v1874
        %v1881 = vsel %vm353, %v683, 0
        %v1884 = vsel %vm353, %v684, 0
        %v1887 = vsel %vm353, %v685, 0
        %v1890 = vsel %vm353, %v686, 0
        %1892 = vmatprep.subr.bf16.mxu0 0
        %1893 = vmatpush1.bf16.msra.mxu0 %v1876
        %1894 = vmatprep.subr.bf16.mxu0 0
        %1895 = vmatpush1.bf16.msra.mxu0 %v1877
        %1896 = vmatprep.subr.bf16.mxu0 0
        %1897 = vmatpush1.bf16.msra.mxu0 0
        %1898 = vmatprep.subr.bf16.mxu0 0
        %1899 = vmatpush1.bf16.msra.mxu0 0
        %1900 = vmatprep.subr.bf16.mxu0 0
        %1901 = vmatpush1.bf16.msra.mxu0 0
        %1902 = vmatprep.subr.bf16.mxu0 0
        %1903 = vmatpush1.bf16.msra.mxu0 0
        %1904 = vmatprep.subr.bf16.mxu0 0
        %1905 = vmatpush1.bf16.msra.mxu0 0
        %1906 = vmatprep.subr.bf16.mxu0 0
        %1907 = vmatpush1.bf16.msra.mxu0 0
        %1908 = vmatprep.subr.bf16.mxu0 0
        %1909 = vmatpush1.bf16.msra.mxu0 0
        %1910 = vmatprep.subr.bf16.mxu0 0
        %1911 = vmatpush1.bf16.msra.mxu0 0
        %1912 = vmatprep.subr.bf16.mxu0 0
        %1913 = vmatpush1.bf16.msra.mxu0 0
        %1914 = vmatprep.subr.bf16.mxu0 0
        %1915 = vmatpush1.bf16.msra.mxu0 0
        %1916 = vmatprep.subr.bf16.mxu0 0
        %1917 = vmatpush1.bf16.msra.mxu0 0
        %1918 = vmatprep.subr.bf16.mxu0 0
        %1919 = vmatpush1.bf16.msra.mxu0 0
        %1920 = vmatprep.subr.bf16.mxu0 0
        %1921 = vmatpush1.bf16.msra.mxu0 0
        %1922 = vmatprep.subr.bf16.mxu0 0
        %1923 = vmatpush1.bf16.msra.mxu0 0
        %1924 = vmatprep.mubr.bf16.mxu0 0
        %1925 = vmatmul.mubr.bf16.gmra.mrb[0].mxu0 %v1881
        %v1926 = vpop.f32.mrb[0].mxu0
        %v1927 = vadd.f32 0.0, %v1926
        %v1928 = vpop.f32.mrb[0].mxu0
        %v1929 = vpop.f32.mrb[0].mxu0
        %v1930 = vadd.f32 0.0, %v1929
        %v1931 = vpop.f32.mrb[0].mxu0
        %1932 = vmatprep.mubr.bf16.mxu0 0
        %1933 = vmatmul.mubr.bf16.gmra.mrb[0].mxu0 %v1884
        %v1934 = vpop.f32.mrb[0].mxu0
        %v1935 = vadd.f32 0.0, %v1934
        %v1936 = vpop.f32.mrb[0].mxu0
        %v1937 = vpop.f32.mrb[0].mxu0
        %v1938 = vadd.f32 0.0, %v1937
        %v1939 = vpop.f32.mrb[0].mxu0
        %1940 = vmatprep.mubr.bf16.mxu0 0
        %1941 = vmatmul.mubr.bf16.gmra.mrb[0].mxu0 %v1887
        %v1942 = vpop.f32.mrb[0].mxu0
        %v1943 = vadd.f32 0.0, %v1942
        %v1944 = vpop.f32.mrb[0].mxu0
        %v1945 = vpop.f32.mrb[0].mxu0
        %v1946 = vadd.f32 0.0, %v1945
        %v1947 = vpop.f32.mrb[0].mxu0
        %1948 = vmatprep.mubr.bf16.mxu0 0
        %1949 = vmatmul.mubr.bf16.gmra.mrb[0].mxu0 %v1890
        %v1950 = vpop.f32.mrb[0].mxu0
        %v1951 = vadd.f32 0.0, %v1950
        %v1952 = vpop.f32.mrb[0].mxu0
        %v1953 = vpop.f32.mrb[0].mxu0
        %v1954 = vadd.f32 0.0, %v1953
        %v1955 = vpop.f32.mrb[0].mxu0
        %1956 = vdwg.mxu0
        %v1957 = vxor.u32 %v1927, 2147483648
        %v1958 = vxor.u32 %v1930, 2147483648
        %v1959 = vxor.u32 %v1935, 2147483648
        %v1960 = vxor.u32 %v1938, 2147483648
        %v1961 = vxor.u32 %v1943, 2147483648
        %v1962 = vxor.u32 %v1946, 2147483648
        %v1963 = vxor.u32 %v1951, 2147483648
        %v1964 = vxor.u32 %v1954, 2147483648
        %v1965 = vmul.f32 %v1957, 1.442695
        %v1966 = vpow.pop %v1965
        %v1967 = vmul.f32 %v1958, 1.442695
        %v1968 = vpow.pop %v1967
        %v1969 = vmul.f32 %v1959, 1.442695
        %v1970 = vpow.pop %v1969
        %v1971 = vmul.f32 %v1960, 1.442695
        %v1972 = vpow.pop %v1971
        %v1973 = vmul.f32 %v1961, 1.442695
        %v1974 = vpow.pop %v1973
        %v1975 = vmul.f32 %v1962, 1.442695
        %v1976 = vpow.pop %v1975
        %v1977 = vmul.f32 %v1963, 1.442695
        %v1978 = vpow.pop %v1977
        %v1979 = vmul.f32 %v1964, 1.442695
        %v1980 = vpow.pop %v1979
        %v1981 = vadd.f32 %v1966, 1.0
        %v1982 = vadd.f32 %v1968, 1.0
        %v1983 = vadd.f32 %v1970, 1.0
        %v1984 = vadd.f32 %v1972, 1.0
        %v1985 = vadd.f32 %v1974, 1.0
        %v1986 = vadd.f32 %v1976, 1.0
        %v1987 = vadd.f32 %v1978, 1.0
        %v1988 = vadd.f32 %v1980, 1.0
        %v1989 = vrcp.pop %v1981
        %v1990 = vmul.f32 1.0, %v1989
        %v1991 = vrcp.pop %v1982
        %v1992 = vmul.f32 1.0, %v1991
        %v1993 = vrcp.pop %v1983
        %v1994 = vmul.f32 1.0, %v1993
        %v1995 = vrcp.pop %v1984
        %v1996 = vmul.f32 1.0, %v1995
        %v1997 = vrcp.pop %v1985
        %v1998 = vmul.f32 1.0, %v1997
        %v1999 = vrcp.pop %v1986
        %v2000 = vmul.f32 1.0, %v1999
        %v2001 = vrcp.pop %v1987
        %v2002 = vmul.f32 1.0, %v2001
        %v2003 = vrcp.pop %v1988
        %v2004 = vmul.f32 1.0, %v2003
        %v2005 = vmul.f32 %v1990, %v1849
        %v2006 = vmul.f32 %v1992, %v1851
        %v2007 = vmul.f32 %v1994, %v1853
        %v2008 = vmul.f32 %v1996, %v1855
        %v2009 = vmul.f32 %v1998, %v1857
        %v2010 = vmul.f32 %v2000, %v1859
        %v2011 = vmul.f32 %v2002, %v1861
        %v2012 = vmul.f32 %v2004, %v1863
        %v2013 = vpack.c.bf16 %v2006, %v2005
        %v2014 = vpack.c.bf16 %v2008, %v2007
        %v2015 = vpack.c.bf16 %v2010, %v2009
        %v2016 = vpack.c.bf16 %v2012, %v2011
        %v2017 = vld [vmem:[#allocation16] sm:$0xf]
        %v2018 = vld [vmem:[#allocation16 + $0x4] sm:$0xf]
        %v2019 = vld [vmem:[#allocation16 + $0x8] sm:$0xf]
        %v2020 = vld [vmem:[#allocation16 + $0xc] sm:$0xf]
        %v2025 = vunpack.c.l.b16 %v2017
        %v2026 = vunpack.c.l.b16 %v2018
        %v2027 = vunpack.c.l.b16 %v2019
        %v2028 = vunpack.c.l.b16 %v2020
        %v2029 = vpack.c.b16 %v2026, %v2025
        %v2030 = vpack.c.b16 %v2028, %v2027
        %v2034 = vsel %vm353, %v2013, 0
        %v2037 = vsel %vm353, %v2014, 0
        %v2040 = vsel %vm353, %v2015, 0
        %v2043 = vsel %vm353, %v2016, 0
        %2045 = vmatprep.subr.bf16.mxu0 0
        %2046 = vmatpush1.bf16.msra.mxu0 %v2029
        %2047 = vmatprep.subr.bf16.mxu0 0
        %2048 = vmatpush1.bf16.msra.mxu0 %v2030
        %2049 = vmatprep.subr.bf16.mxu0 0
        %2050 = vmatpush1.bf16.msra.mxu0 0
        %2051 = vmatprep.subr.bf16.mxu0 0
        %2052 = vmatpush1.bf16.msra.mxu0 0
        %2053 = vmatprep.subr.bf16.mxu0 0
        %2054 = vmatpush1.bf16.msra.mxu0 0
        %2055 = vmatprep.subr.bf16.mxu0 0
        %2056 = vmatpush1.bf16.msra.mxu0 0
        %2057 = vmatprep.subr.bf16.mxu0 0
        %2058 = vmatpush1.bf16.msra.mxu0 0
        %2059 = vmatprep.subr.bf16.mxu0 0
        %2060 = vmatpush1.bf16.msra.mxu0 0
        %2061 = vmatprep.subr.bf16.mxu0 0
        %2062 = vmatpush1.bf16.msra.mxu0 0
        %2063 = vmatprep.subr.bf16.mxu0 0
        %2064 = vmatpush1.bf16.msra.mxu0 0
        %2065 = vmatprep.subr.bf16.mxu0 0
        %2066 = vmatpush1.bf16.msra.mxu0 0
        %2067 = vmatprep.subr.bf16.mxu0 0
        %2068 = vmatpush1.bf16.msra.mxu0 0
        %2069 = vmatprep.subr.bf16.mxu0 0
        %2070 = vmatpush1.bf16.msra.mxu0 0
        %2071 = vmatprep.subr.bf16.mxu0 0
        %2072 = vmatpush1.bf16.msra.mxu0 0
        %2073 = vmatprep.subr.bf16.mxu0 0
        %2074 = vmatpush1.bf16.msra.mxu0 0
        %2075 = vmatprep.subr.bf16.mxu0 0
        %2076 = vmatpush1.bf16.msra.mxu0 0
        %2077 = vmatprep.mubr.bf16.mxu0 0
        %2078 = vmatmul.mubr.bf16.gmra.mrb[0].mxu0 %v2034
        %v2079 = vpop.f32.mrb[0].mxu0
        %v2080 = vadd.f32 0.0, %v2079
        %v2081 = vpop.f32.mrb[0].mxu0
        %v2082 = vpop.f32.mrb[0].mxu0
        %v2083 = vadd.f32 0.0, %v2082
        %v2084 = vpop.f32.mrb[0].mxu0
        %2085 = vmatprep.mubr.bf16.mxu0 0
        %2086 = vmatmul.mubr.bf16.gmra.mrb[0].mxu0 %v2037
        %v2087 = vpop.f32.mrb[0].mxu0
        %v2088 = vadd.f32 0.0, %v2087
        %v2089 = vpop.f32.mrb[0].mxu0
        %v2090 = vpop.f32.mrb[0].mxu0
        %v2091 = vadd.f32 0.0, %v2090
        %v2092 = vpop.f32.mrb[0].mxu0
        %2093 = vmatprep.mubr.bf16.mxu0 0
        %2094 = vmatmul.mubr.bf16.gmra.mrb[0].mxu0 %v2040
        %v2095 = vpop.f32.mrb[0].mxu0
        %v2096 = vadd.f32 0.0, %v2095
        %v2097 = vpop.f32.mrb[0].mxu0
        %v2098 = vpop.f32.mrb[0].mxu0
        %v2099 = vadd.f32 0.0, %v2098
        %v2100 = vpop.f32.mrb[0].mxu0
        %2101 = vmatprep.mubr.bf16.mxu0 0
        %2102 = vmatmul.mubr.bf16.gmra.mrb[0].mxu0 %v2043
        %v2103 = vpop.f32.mrb[0].mxu0
        %v2104 = vadd.f32 0.0, %v2103
        %v2105 = vpop.f32.mrb[0].mxu0
        %v2106 = vpop.f32.mrb[0].mxu0
        %v2107 = vadd.f32 0.0, %v2106
        %v2108 = vpop.f32.mrb[0].mxu0
        %2109 = vdwg.mxu0
        %v2110 = vadd.f32 %v344, %v2080
        %v2111 = vadd.f32 %v345, %v2083
        %v2112 = vadd.f32 %v346, %v2088
        %v2113 = vadd.f32 %v347, %v2091
        %v2114 = vadd.f32 %v348, %v2096
        %v2115 = vadd.f32 %v349, %v2099
        %v2116 = vadd.f32 %v350, %v2104
        %v2117 = vadd.f32 %v351, %v2107
        %2118 = vst.msk [vmem:[%s342] sm:$0xff] %vm353, %v2110
        %2119 = vst.msk [vmem:[%s342 + $0x8] sm:$0xff] %vm353, %v2111
        %2120 = vst.msk [vmem:[%s342 + $0x10] sm:$0xff] %vm353, %v2112
        %2121 = vst.msk [vmem:[%s342 + $0x18] sm:$0xff] %vm353, %v2113
        %2122 = vst.msk [vmem:[%s342 + $0x20] sm:$0xff] %vm353, %v2114
        %2123 = vst.msk [vmem:[%s342 + $0x28] sm:$0xff] %vm353, %v2115
        %2124 = vst.msk [vmem:[%s342 + $0x30] sm:$0xff] %vm353, %v2116
        %2125 = vst.msk [vmem:[%s342 + $0x38] sm:$0xff] %vm353, %v2117
        %s2126 = sand.u32 %s165, 1
        %s2127 = scalar_lea.sflag [#allocation9], %s2126
        %s2128 = sand.u32 %s165, 1
        %s2129 = smul.addr %s2128, 64
        %s2130 = scalar_lea.vmem [#allocation18], %s2129
        // Predicated region
        $region83: #{_lambda_.6} parent=43 // pred_check
          %p2131 = pneg %p175
        $region84: #{_lambda_.6} parent=43 // pred_check_branch
          %2133 = sbr.rel (%p2131) target = $region86
        $region85: #{_lambda_.6} parent=43 // pred_region
          %s2135 = ssub.s32 1024, 1024
          %2136 = vsyncadd %s2127, %s2135
          %s2137 = smul.addr %s26, 8
          %s2138 = smul.addr %s2137, 128
          %s2139 = scalar_lea.hbm %s6, %s2138
          %s2140 = sshll.u32 %s2130, 4
          %s2141 = int_to_ptr.vmem [resolvable:$true] %s2140
          %2146 = dma.vmem_to_hbm [thread:$0]  %s2141, 1024, %s2139, %s2127, 128, 128, 8
        $region86: #{_lambda_.6} parent=43 // pred_fallthru
          _
      $region44: #{_lambda_.6} parent=5 // pred_fallthru
        _
      %p2147 = scmp.le.s32.totalorder 2, %s21
      // Predicated region
      $region87: #{_lambda_.6} parent=5 // pred_check
        %p2148 = pneg %p2147
      $region88: #{_lambda_.6} parent=5 // pred_check_branch
        %2150 = sbr.rel (%p2148) target = $region90
      $region89: #{_lambda_.6} parent=5 // pred_region
        %s2151 = ssub.s32 %s21, 2
        // Predicated region
        $region91: #{_lambda_.6} parent=89 // pred_check
          %p2152 = pneg %p181
        $region92: #{_lambda_.6} parent=89 // pred_check_branch
          %2154 = sbr.rel (%p2152) target = $region94
        $region93: #{_lambda_.6} parent=89 // pred_region
          %s2155 = sand.u32 %s166, 1
          %s2156 = scalar_lea.sflag [#allocation9], %s2155
          %s2157 = sand.u32 %s166, 1
          %s2158 = smul.addr %s2157, 64
          %s2159 = scalar_lea.vmem [#allocation18], %s2158
          %2160 = dma.done %s2156, 1024
        $region94: #{_lambda_.6} parent=89 // pred_fallthru
          _
      $region90: #{_lambda_.6} parent=5 // pred_fallthru
        _
    $region6: #{_lambda_.6} parent=1 // loop_footer
      %s25 = sadd.s32 1, %s21
    $region7: #{_lambda_.6} parent=1 // loop_footer_branch
      %20 = sbr.rel target = $region3
    $region8: #{_lambda_.6} parent=1 // loop_exit
      _
    %2161 = vsyncpa [#allocation8], 1
    %s2162 = scalar_lea.sflag [#allocation8], 1
    %2163 = vsyncpa %s2162, 1
    %2164 = vsyncpa [#allocation11], 1
    %2165 = vsyncpa [#allocation14], 1
    %2166 = vsyncpa [#allocation17], 1
    %2167 = vsyncpa [#allocation9], 1
    %s2168 = scalar_lea.sflag [#allocation9], 1
    %2169 = vsyncpa %s2168, 1

</llo_original>
